<compile_context>
chip_gen: v7x
topology: tpu7x:2x2x1
jax: 0.10.0
libtpu: 0.0.40
codegen_flags: <defaults>
</compile_context>

<pallas_src>
import functools
import math

import jax
import jax.numpy as jnp
from jax.experimental import pallas as pl
from jax.experimental.pallas import tpu as pltpu

F32 = jnp.float32
BF16 = jnp.bfloat16
LN_EPS = 1e-5
NEG_INF = -1e30

# Preferred tile sizes (clamped to the full dim at small shapes).  All well inside the
# scoped-VMEM defaults on v5e/v6e/v7x with double buffering.
TM = 256      # matmul row tile
TN = 512      # matmul / conv output-column tile (lane dim)
TK = 512      # matmul contraction tile
ATT_T = 256   # flash-attention q / kv tile (fills the 256-wide MXU on v6e/v7x)
CONV_T = 256  # conv time tile


def _round_up(x, m):
    return (x + m - 1) // m * m


def _tile_dim(dim, pref):
    """(tile, padded_dim): the full dim if it fits in one tile, else `pref`-sized tiles."""
    if dim <= pref:
        return dim, dim
    return pref, _round_up(dim, pref)


def _att_tile(T):
    ts = min(ATT_T, _round_up(T, 8))
    return ts, _round_up(T, ts)


def _gelu_exact(x):
    # nn.GELU default (erf form)
    return 0.5 * x * (1.0 + jax.lax.erf(x * (1.0 / math.sqrt(2.0))))


# ----------------------------- tiled Linear (+bias, +GELU) -----------------------------

def _matmul_kernel(x_ref, w_ref, b_ref, o_ref, acc_ref, *, activation):
    @pl.when(pl.program_id(2) == 0)
    def _():
        acc_ref[...] = jnp.zeros_like(acc_ref)

    acc_ref[...] += jnp.dot(x_ref[...].astype(BF16), w_ref[...],
                            preferred_element_type=jnp.float32)

    @pl.when(pl.program_id(2) == pl.num_programs(2) - 1)
    def _():
        y = acc_ref[...] + b_ref[...]
        if activation == "gelu":
            y = _gelu_exact(y)
        o_ref[...] = y.astype(o_ref.dtype)


def linear(x2d, w, b, n_out, activation=None, out_dtype=F32):
    """x2d (M, K) @ w (Kp, Np) bf16 + b (1, Np) -> (M, n_out), fully tiled.
    Callers pass x2d already in bf16 (no in-kernel cast, half the x DMA bytes)."""
    M, K = x2d.shape
    Kp, Np = w.shape
    tm, Mp = _tile_dim(M, TM)
    tk = Kp if Kp <= TK else TK
    tn = Np if Np <= TN else TN
    if Mp > M or Kp > K:
        x2d = jnp.pad(x2d, ((0, Mp - M), (0, Kp - K)))
    out = pl.pallas_call(
        functools.partial(_matmul_kernel, activation=activation),
        out_shape=jax.ShapeDtypeStruct((Mp, Np), out_dtype),
        grid=(Mp // tm, Np // tn, Kp // tk),
        in_specs=[
            pl.BlockSpec((tm, tk), lambda i, j, k: (i, k)),
            pl.BlockSpec((tk, tn), lambda i, j, k: (k, j)),
            pl.BlockSpec((1, tn), lambda i, j, k: (0, j)),
        ],
        out_specs=pl.BlockSpec((tm, tn), lambda i, j, k: (i, j)),
        scratch_shapes=[pltpu.VMEM((tm, tn), F32)],
        compiler_params=pltpu.CompilerParams(
            dimension_semantics=("parallel", "parallel", "arbitrary")),
    )(x2d, w, b)
    if Mp > M:
        out = out[:M]
    if Np > n_out:
        out = out[:, :n_out]
    return out


# ------------------- LayerNorm(s) fused into the consumer matmul -------------------

def _ln_matmul_kernel(x_ref, lnw_ref, lnb_ref, w_ref, b_ref, o_ref, xn_ref, *,
                      n_ln, activation):
    # LN prologue runs ONCE per row tile (j == 0) and the bf16 MXU operand is cached in
    # VMEM; the x block index ignores j so x is only DMA'd on row-tile changes.
    @pl.when(pl.program_id(1) == 0)
    def _():
        x = x_ref[...].astype(F32)
        for i in range(n_ln):                                   # chained LayerNorms
            mean = jnp.mean(x, axis=-1, keepdims=True)
            var = jnp.mean(jnp.square(x - mean), axis=-1, keepdims=True)
            x = (x - mean) * jax.lax.rsqrt(var + LN_EPS) * lnw_ref[i:i + 1, :] \
                + lnb_ref[i:i + 1, :]
        xn_ref[...] = x.astype(BF16)

    y = jnp.dot(xn_ref[...], w_ref[...], preferred_element_type=jnp.float32)
    y = y + b_ref[...]
    if activation == "gelu":
        y = _gelu_exact(y)
    o_ref[...] = y.astype(o_ref.dtype)


def ln_linear(x2d, ln_w, ln_b, w, b, n_out, activation=None, out_dtype=F32):
    """Row-wise LayerNorm chain fused as a prologue of x @ w + b (K untiled, N tiled)."""
    M, K = x2d.shape
    Np = w.shape[1]
    n_ln = ln_w.shape[0]
    tm, Mp = _tile_dim(M, TM)
    tn = Np if Np <= TN else TN
    if Mp > M:
        x2d = jnp.pad(x2d, ((0, Mp - M), (0, 0)))
    out = pl.pallas_call(
        functools.partial(_ln_matmul_kernel, n_ln=n_ln, activation=activation),
        out_shape=jax.ShapeDtypeStruct((Mp, Np), out_dtype),
        grid=(Mp // tm, Np // tn),
        in_specs=[
            pl.BlockSpec((tm, K), lambda i, j: (i, 0)),
            pl.BlockSpec((n_ln, K), lambda i, j: (0, 0)),
            pl.BlockSpec((n_ln, K), lambda i, j: (0, 0)),
            pl.BlockSpec((K, tn), lambda i, j: (0, j)),
            pl.BlockSpec((1, tn), lambda i, j: (0, j)),
        ],
        out_specs=pl.BlockSpec((tm, tn), lambda i, j: (i, j)),
        scratch_shapes=[pltpu.VMEM((tm, K), BF16)],
        compiler_params=pltpu.CompilerParams(
            dimension_semantics=("parallel", "arbitrary")),  # j reuses the LN scratch
    )(x2d, ln_w, ln_b, w, b)
    if Mp > M:
        out = out[:M]
    if Np > n_out:
        out = out[:, :n_out]
    return out


# -------- 3-tap Conv1d ("same" pad, fused GELU), 8-row halo, tiled over time & N --------

def _conv1d_kernel(x0_ref, xh_ref, w_ref, b_ref, o_ref, xbuf, *, tT):
    # Stage the tT-row tile plus an 8-row halo (~1.06x input DMA, tT+8 staging stores).
    xbuf[0:tT, :] = x0_ref[0]
    xbuf[tT:tT + 8, :] = xh_ref[0]
    acc = jnp.dot(xbuf[0:tT, :].astype(BF16), w_ref[0],
                  preferred_element_type=jnp.float32)
    acc = acc + jnp.dot(xbuf[1:tT + 1, :].astype(BF16), w_ref[1],
                        preferred_element_type=jnp.float32)
    acc = acc + jnp.dot(xbuf[2:tT + 2, :].astype(BF16), w_ref[2],
                        preferred_element_type=jnp.float32)
    o_ref[0] = _gelu_exact(acc + b_ref[...]).astype(o_ref.dtype)


def conv1d_gelu(x, wk, b, n_out):
    """x (B, T, Cin) channels-last f32; wk (3, Cin, Np) bf16; fused GELU -> (B, T, n_out)."""
    B, T, Cin = x.shape
    Np = wk.shape[2]
    tn = Np if Np <= TN else TN
    tT = min(CONV_T, _round_up(T, 8))
    nT = -(-T // tT)
    Tin = nT * tT + 8
    # rows: [0] = left pad, [1:T+1] = x, rest zeros (right pad + halo slack)
    xp = jnp.zeros((B, Tin, Cin), F32).at[:, 1:T + 1, :].set(x.astype(F32))
    out = pl.pallas_call(
        functools.partial(_conv1d_kernel, tT=tT),
        out_shape=jax.ShapeDtypeStruct((B, nT * tT, Np), F32),
        grid=(B, nT, Np // tn),
        in_specs=[
            pl.BlockSpec((1, tT, Cin), lambda bi, ti, ci: (bi, ti, 0)),
            pl.BlockSpec((1, 8, Cin), lambda bi, ti, ci: (bi, (ti + 1) * (tT // 8), 0)),
            pl.BlockSpec((3, Cin, tn), lambda bi, ti, ci: (0, 0, ci)),
            pl.BlockSpec((1, tn), lambda bi, ti, ci: (0, ci)),
        ],
        out_specs=pl.BlockSpec((1, tT, tn), lambda bi, ti, ci: (bi, ti, ci)),
        scratch_shapes=[pltpu.VMEM((tT + 8, Cin), F32)],
        compiler_params=pltpu.CompilerParams(
            dimension_semantics=("parallel", "parallel", "parallel")),
    )(xp, xp, wk, b)
    return out[:, :T, :n_out]


def _dwconv_kernel(x0_ref, xh_ref, w_ref, b_ref, pos_ref, o_ref, xbuf, *, tT):
    xbuf[0:tT, :] = x0_ref[0]
    xbuf[tT:tT + 8, :] = xh_ref[0]
    y = (xbuf[0:tT, :] * w_ref[0:1, :] + xbuf[1:tT + 1, :] * w_ref[1:2, :]
         + xbuf[2:tT + 2, :] * w_ref[2:3, :])
    # fused epilogue: GELU + sinusoid positional embedding
    o_ref[0] = _gelu_exact(y + b_ref[...]) + pos_ref[...]


def dwconv1d_gelu_pos(x, wk, b, pos, n_out):
    """Depthwise 3-tap conv with fused GELU and positional-sinusoid add."""
    B, T, C = x.shape
    Cp = wk.shape[1]
    tc = Cp if Cp <= TN else TN
    tT = min(CONV_T, _round_up(T, 8))
    nT = -(-T // tT)
    Tin = nT * tT + 8
    xp = jnp.zeros((B, Tin, Cp), F32).at[:, 1:T + 1, :C].set(x.astype(F32))
    posp = jnp.zeros((nT * tT, Cp), F32).at[:T, :C].set(pos.astype(F32))
    out = pl.pallas_call(
        functools.partial(_dwconv_kernel, tT=tT),
        out_shape=jax.ShapeDtypeStruct((B, nT * tT, Cp), F32),
        grid=(B, nT, Cp // tc),
        in_specs=[
            pl.BlockSpec((1, tT, tc), lambda bi, ti, ci: (bi, ti, ci)),
            pl.BlockSpec((1, 8, tc), lambda bi, ti, ci: (bi, (ti + 1) * (tT // 8), ci)),
            pl.BlockSpec((3, tc), lambda bi, ti, ci: (0, ci)),
            pl.BlockSpec((1, tc), lambda bi, ti, ci: (0, ci)),
            pl.BlockSpec((tT, tc), lambda bi, ti, ci: (ti, ci)),
        ],
        out_specs=pl.BlockSpec((1, tT, tc), lambda bi, ti, ci: (bi, ti, ci)),
        scratch_shapes=[pltpu.VMEM((tT + 8, tc), F32)],
        compiler_params=pltpu.CompilerParams(
            dimension_semantics=("parallel", "parallel", "parallel")),
    )(xp, xp, wk, b, posp)
    return out[:, :T, :n_out]


def stem_conv_gelu(audio, w, b, n_out):
    """Conv1d(1, D, 3, padding=1) + GELU as an im2col (T, 3) @ (3, D) Pallas matmul.
    (Cin=1 on the lane axis would be a pathological lane-sparse layout.)"""
    B, _, T = audio.shape
    a = audio[:, 0, :].astype(F32)
    ap = jnp.pad(a, ((0, 0), (1, 1)))
    cols = jnp.stack([ap[:, 0:T], ap[:, 1:T + 1], ap[:, 2:T + 2]], axis=-1)  # (B, T, 3)
    y = linear(cols.reshape(B * T, 3).astype(BF16), w, b, n_out, activation="gelu")
    return y.reshape(B, T, n_out)


# ---------- flash attention with fused interleaved RoPE + per-head LayerNorm ----------

def _rope_ln(x, cos, sin, w, head, hd):
    """Interleaved RoPE then per-head LayerNorm (no bias), all full-lane-width math."""
    D = head * hd
    # rot[2i] = -x[2i+1], rot[2i+1] = x[2i]  (pairs never cross a head boundary)
    left = pltpu.roll(x, shift=D - 1, axis=1)               # out[j] = x[j+1]
    right = pltpu.roll(x, shift=1, axis=1)                  # out[j] = x[j-1]
    lane = jax.lax.broadcasted_iota(jnp.int32, x.shape, 1)
    rot = jnp.where(lane % 2 == 0, -left, right)
    y = x * cos + rot * sin
    mu_parts, inv_parts = [], []
    for h in range(head):
        yh = y[:, h * hd:(h + 1) * hd]
        mu = jnp.mean(yh, axis=-1, keepdims=True)
        var = jnp.mean(jnp.square(yh - mu), axis=-1, keepdims=True)
        mu_parts.append(jnp.broadcast_to(mu, yh.shape))
        inv_parts.append(jnp.broadcast_to(jax.lax.rsqrt(var + LN_EPS), yh.shape))
    mu_f = jnp.concatenate(mu_parts, axis=-1)
    inv_f = jnp.concatenate(inv_parts, axis=-1)
    return (y - mu_f) * inv_f * w


def _flash_kernel(q_ref, k_ref, v_ref, cq_ref, sq_ref, ck_ref, sk_ref, w_ref,
                  o_ref, q_scr, m_scr, l_scr, acc_scr, *,
                  head, hd, ts, t_real, t_pad, causal, scale):
    qi = pl.program_id(1)
    ki = pl.program_id(2)
    w = w_ref[...]

    @pl.when(ki == 0)
    def _():
        # RoPE + per-head LN on the q block once per q tile (resident across the kv sweep)
        qn = _rope_ln(q_ref[0].astype(F32), cq_ref[...], sq_ref[...], w, head, hd)
        q_scr[...] = qn.astype(BF16)
        m_scr[...] = jnp.full(m_scr.shape, NEG_INF, dtype=F32)
        l_scr[...] = jnp.zeros_like(l_scr)
        acc_scr[...] = jnp.zeros_like(acc_scr)

    def _process():
        kn = _rope_ln(k_ref[0].astype(F32), ck_ref[...], sk_ref[...], w, head, hd)
        kb = kn.astype(BF16)
        vb = v_ref[0]                                       # bf16
        qb = q_scr[...]
        m_prev = m_scr[...]                                 # (ts, D), per-head broadcast

        need_pad = t_pad > t_real
        bias = None
        if causal or need_pad:
            cols = ki * ts + jax.lax.broadcasted_iota(jnp.int32, (ts, ts), 1)
            valid = None
            if need_pad:
                valid = cols < t_real
            if causal:
                rows = qi * ts + jax.lax.broadcasted_iota(jnp.int32, (ts, ts), 0)
                cm = cols <= rows
                valid = cm if valid is None else jnp.logical_and(valid, cm)
            bias = jnp.where(valid, 0.0, NEG_INF).astype(F32)

        m_parts, l_parts, c_parts = [], [], []
        for h in range(head):                               # heads folded into the block
            sl = slice(h * hd, (h + 1) * hd)
            s = jax.lax.dot_general(qb[:, sl], kb[:, sl], (((1,), (1,)), ((), ())),
                                    preferred_element_type=jnp.float32) * scale
            if bias is not None:
                s = s + bias
            m_h = jnp.maximum(m_prev[:, h * hd:h * hd + 1],
                              jnp.max(s, axis=-1, keepdims=True))
            p = jnp.exp(s - m_h)
            l_h = jnp.sum(p, axis=-1, keepdims=True)
            c_h = jax.lax.dot_general(p.astype(BF16), vb[:, sl], (((1,), (0,)), ((), ())),
                                      preferred_element_type=jnp.float32)
            m_parts.append(jnp.broadcast_to(m_h, (ts, hd)))
            l_parts.append(jnp.broadcast_to(l_h, (ts, hd)))
            c_parts.append(c_h)

        # full-lane-width state update: one (ts, D) store per buffer, no masked sub-stores
        m_new = jnp.concatenate(m_parts, axis=-1)
        alpha = jnp.exp(m_prev - m_new)
        l_scr[...] = alpha * l_scr[...] + jnp.concatenate(l_parts, axis=-1)
        acc_scr[...] = alpha * acc_scr[...] + jnp.concatenate(c_parts, axis=-1)
        m_scr[...] = m_new

    if causal:
        pl.when(ki <= qi)(_process)     # compute skipped; DMA skipped via clamped index_map
    else:
        _process()

    @pl.when(ki == pl.num_programs(2) - 1)
    def _():
        inv = pl.reciprocal(l_scr[...], approx=True)
        o_ref[0] = (acc_scr[...] * inv).astype(o_ref.dtype)


def flash_attention(qkv, cos, sin, lnb_w, *, head, causal, t_real, ts):
    """qkv (B, Tp, 3D) bf16 (q|k|v concatenated on the last axis) -> (B, Tp, D) bf16."""
    B, Tp, D3 = qkv.shape
    D = D3 // 3
    hd = D // head
    nt = Tp // ts
    scale = 1.0 / math.sqrt(hd)

    if causal:
        kv_t = lambda i, j: jnp.minimum(i, j)   # clamp: masked-out blocks revisit -> no DMA
    else:
        kv_t = lambda i, j: j

    return pl.pallas_call(
        functools.partial(_flash_kernel, head=head, hd=hd, ts=ts, t_real=t_real,
                          t_pad=Tp, causal=causal, scale=scale),
        out_shape=jax.ShapeDtypeStruct((B, Tp, D), BF16),
        grid=(B, nt, nt),
        in_specs=[
            pl.BlockSpec((1, ts, D), lambda b, i, j: (b, i, 0)),            # q
            pl.BlockSpec((1, ts, D), lambda b, i, j: (b, kv_t(i, j), 1)),   # k
            pl.BlockSpec((1, ts, D), lambda b, i, j: (b, kv_t(i, j), 2)),   # v
            pl.BlockSpec((ts, D), lambda b, i, j: (i, 0)),                  # cos (q)
            pl.BlockSpec((ts, D), lambda b, i, j: (i, 0)),                  # sin (q)
            pl.BlockSpec((ts, D), lambda b, i, j: (kv_t(i, j), 0)),         # cos (k)
            pl.BlockSpec((ts, D), lambda b, i, j: (kv_t(i, j), 0)),         # sin (k)
            pl.BlockSpec((1, D), lambda b, i, j: (0, 0)),                   # lnb weight
        ],
        out_specs=pl.BlockSpec((1, ts, D), lambda b, i, j: (b, i, 0)),
        scratch_shapes=[
            pltpu.VMEM((ts, D), BF16),   # q after RoPE+LN (resident across kv sweep)
            pltpu.VMEM((ts, D), F32),    # running max (per-head broadcast)
            pltpu.VMEM((ts, D), F32),    # running denominator (per-head broadcast)
            pltpu.VMEM((ts, D), F32),    # running numerator
        ],
        compiler_params=pltpu.CompilerParams(
            dimension_semantics=("parallel", "parallel", "arbitrary")),
    )(qkv, qkv, qkv, cos, sin, cos, sin, lnb_w)


# ----------------------------- model glue (plain JAX) -----------------------------

def rope_tables(theta, T, hd, head):
    half = hd // 2
    mel = 10.0 ** (jnp.linspace(0.0, 2595.0 * math.log10(1.0 + 4000.0 / 200.0), half)
                   / 2595.0) - 1.0
    freqs = (theta / 220.0) * (200.0 * mel / 1000.0)        # (half,)
    ang = jnp.arange(T, dtype=F32)[:, None] * freqs[None, :]
    cos = jnp.repeat(jnp.cos(ang), 2, axis=-1)              # (T, hd) interleave-expanded
    sin = jnp.repeat(jnp.sin(ang), 2, axis=-1)
    return (jnp.tile(cos, (1, head)).astype(F32),
            jnp.tile(sin, (1, head)).astype(F32))           # (T, D)


def sinusoids(length, channels, max_tscale):
    # Whisper-style sinusoid embedding (helper not present in the reference source)
    log_inc = math.log(max_tscale) / (channels // 2 - 1)
    inv = jnp.exp(-log_inc * jnp.arange(channels // 2, dtype=F32))
    t = jnp.arange(length, dtype=F32)[:, None] * inv[None, :]
    return jnp.concatenate([jnp.sin(t), jnp.cos(t)], axis=1)


def attention_block(x, rp, head, causal, t_real, ts):
    """attentionb: fused LN->QKV projection, flash SDPA (RoPE + per-head LN fused), o proj."""
    B, Tp, D = x.shape
    hd = D // head
    qkv = ln_linear(x.reshape(B * Tp, D), rp["qkv_ln_w"], rp["qkv_ln_b"],
                    rp["qkv_w"], rp["qkv_b"], 3 * D, out_dtype=BF16)
    qkv = qkv.reshape(B, Tp, 3 * D)
    cos, sin = rope_tables(rp["theta"], Tp, hd, head)
    a = flash_attention(qkv, cos, sin, rp["lnb_w"], head=head, causal=causal,
                        t_real=t_real, ts=ts)
    o = linear(a.reshape(B * Tp, D), rp["o_w"], rp["o_b"], D)
    return o.reshape(B, Tp, D)


def residual_fwd(x, rp, head, causal, t_real, ts):
    B, Tp, D = x.shape
    x = x + attention_block(x, rp, head, causal, t_real, ts)
    # TODO(synk): Residual.attna (sliding-window/span cross-attention; the `attention`
    # class is not defined in the reference source) is omitted.
    h = ln_linear(x.reshape(B * Tp, D), rp["mlp_ln_w"], rp["mlp_ln_b"],
                  rp["mlp1_w"], rp["mlp1_b"], 4 * D, activation="gelu", out_dtype=BF16)
    h = linear(h, rp["mlp2_w"], rp["mlp2_b"], D)
    return x + h.reshape(B, Tp, D)


def processor_forward(params, tokens, audio, head):
    # tokens: (B, T_text) int32;  audio: (B, 1, T_audio) f32 (PyTorch NCL layout)
    B, Tt = tokens.shape
    vocab, D = params["token"].shape

    # text stream, padded ONCE to the attention tile and kept padded through the stack
    x = params["token"][tokens] + params["positional"][:Tt]
    ts_t, Tt_p = _att_tile(Tt)
    if Tt_p > Tt:
        x = jnp.pad(x, ((0, 0), (0, Tt_p - Tt), (0, 0)))

    # audio encoder
    enc = params["enc"]
    a = stem_conv_gelu(audio, enc["w1"], enc["b1"], D)        # (B, Ta, D)
    a = conv1d_gelu(a, enc["w2"], enc["b2"], D)
    Ta = a.shape[1]
    xa = dwconv1d_gelu_pos(a, enc["w3"], enc["b3"], sinusoids(Ta, D, 36000.0), D)
    ts_a, Ta_p = _att_tile(Ta)
    if Ta_p > Ta:
        xa = jnp.pad(xa, ((0, 0), (0, Ta_p - Ta), (0, 0)))

    for rp in params["bA"]:
        xa = residual_fwd(xa, rp, head, False, Ta, ts_a)
    for rp in params["bB"]:
        x = residual_fwd(x, rp, head, True, Tt, ts_t)         # mask=self.mask -> is_causal
        x = residual_fwd(x, rp, head, False, Tt, ts_t)        # cross-attn to xa omitted (TODO)
    # dropout(p=0.001) is identity at inference; the final LayerNorm is fused into the
    # vocab projection, whose weight is the pre-transposed (bf16) token table.
    logits = ln_linear(x.reshape(B * Tt_p, D), params["final_ln_w"], params["final_ln_b"],
                       params["vocab_w"], params["vocab_b"], vocab)
    return logits.reshape(B, Tt_p, vocab)[:, :Tt]


# ------------------- parameter preparation (outside jit, once) -------------------

def _prep_ln_weight(w, b):
    """Weight consumed by ln_linear: K unpadded, N padded to the tile, cast to bf16."""
    K, N = w.shape
    _, Np = _tile_dim(N, TN)
    wp = jnp.zeros((K, Np), BF16).at[:, :N].set(w.astype(BF16))
    bp = jnp.zeros((1, Np), F32)
    if b is not None:
        bp = bp.at[0, :N].set(b.astype(F32))
    return wp, bp


def _prep_tiled_weight(w, b):
    """Weight consumed by the K-tiled linear: both dims padded, cast to bf16."""
    K, N = w.shape
    _, Kp = _tile_dim(K, TK)
    _, Np = _tile_dim(N, TN)
    wp = jnp.zeros((Kp, Np), BF16).at[:K, :N].set(w.astype(BF16))
    bp = jnp.zeros((1, Np), F32)
    if b is not None:
        bp = bp.at[0, :N].set(b.astype(F32))
    return wp, bp


def prepare_params(params, head):
    """One-time prep (outside jit): fuse q/k/v, transpose the vocab head, pad & cast bf16."""
    D = params["token"].shape[1]

    def prep_res(p):
        at = p["attnb"]
        wqkv = jnp.concatenate([at["wq"], at["wk"], at["wv"]], axis=1)       # (D, 3D)
        bqkv = jnp.concatenate([at["bq"], jnp.zeros((D,), F32), at["bv"]])   # k has no bias
        qkv_w, qkv_b = _prep_ln_weight(wqkv, bqkv)
        o_w, o_b = _prep_tiled_weight(at["wo"], at["bo"])
        m1_w, m1_b = _prep_ln_weight(p["mlp_w1"], p["mlp_b1"])
        m2_w, m2_b = _prep_tiled_weight(p["mlp_w2"], p["mlp_b2"])
        return dict(
            qkv_ln_w=jnp.stack([p["lna_w"], at["lna_w"]]).astype(F32),  # Residual.lna, attnb.lna
            qkv_ln_b=jnp.zeros((2, D), F32),
            qkv_w=qkv_w, qkv_b=qkv_b,
            lnb_w=jnp.tile(at["lnb_w"].astype(F32), head).reshape(1, D),
            theta=at["theta"].astype(F32),
            o_w=o_w, o_b=o_b,
            mlp_ln_w=p["lna_w"].reshape(1, D).astype(F32),
            mlp_ln_b=jnp.zeros((1, D), F32),
            mlp1_w=m1_w, mlp1_b=m1_b,
            mlp2_w=m2_w, mlp2_b=m2_b,
        )

    enc = params["enc"]
    _, Np = _tile_dim(D, TN)
    # stem Conv1d(1, D, 3) -> im2col weight (3, D)
    w1 = jnp.transpose(enc["w1"][:, 0, :], (1, 0))
    w1p = jnp.zeros((3, Np), BF16).at[:, :D].set(w1.astype(BF16))
    b1p = jnp.zeros((1, Np), F32).at[0, :D].set(enc["b1"].astype(F32))
    w2 = jnp.transpose(enc["w2"], (2, 1, 0)).astype(BF16)                    # (3, D, D)
    w2p = jnp.zeros((3, D, Np), BF16).at[:, :, :D].set(w2)
    b2p = jnp.zeros((1, Np), F32).at[0, :D].set(enc["b2"].astype(F32))
    w3 = jnp.transpose(enc["w3"][:, 0, :], (1, 0)).astype(F32)               # (3, D) depthwise
    w3p = jnp.zeros((3, Np), F32).at[:, :D].set(w3)
    b3p = jnp.zeros((1, Np), F32).at[0, :D].set(enc["b3"].astype(F32))

    vocab_w, vocab_b = _prep_ln_weight(jnp.transpose(params["token"]).astype(F32), None)

    return dict(
        token=params["token"].astype(F32),
        positional=params["positional"].astype(F32),
        final_ln_w=params["ln_w"].reshape(1, D).astype(F32),
        final_ln_b=params["ln_b"].reshape(1, D).astype(F32),
        vocab_w=vocab_w, vocab_b=vocab_b,
        enc=dict(w1=w1p, b1=b1p, w2=w2p, b2=b2p, w3=w3p, b3=b3p),
        bA=[prep_res(p) for p in params["bA"]],
        bB=[prep_res(p) for p in params["bB"]],
    )


# ----------------------------- deterministic parameter init -----------------------------

def init_params(key, vocab, ctx, dims, head, layer):
    hd = dims // head
    keys = iter(jax.random.split(key, 256))

    def nrm(shape, scale=0.02):
        return scale * jax.random.normal(next(keys), shape, dtype=F32)

    def attnb_params():
        return dict(
            lna_w=jnp.ones((dims,), F32),
            wq=nrm((dims, dims)), bq=jnp.zeros((dims,), F32),
            wk=nrm((dims, dims)),
            wv=nrm((dims, dims)), bv=jnp.zeros((dims,), F32),
            wo=nrm((dims, dims)), bo=jnp.zeros((dims,), F32),
            lnb_w=jnp.ones((hd,), F32),
            theta=jnp.asarray(10000.0, F32),
        )

    def res_params():
        return dict(
            lna_w=jnp.ones((dims,), F32),
            attnb=attnb_params(),
            mlp_w1=nrm((dims, 4 * dims)), mlp_b1=jnp.zeros((4 * dims,), F32),
            mlp_w2=nrm((4 * dims, dims)), mlp_b2=jnp.zeros((dims,), F32),
        )

    return dict(
        token=nrm((vocab, dims)),
        positional=nrm((ctx, dims)),
        ln_w=jnp.ones((dims,), F32),
        ln_b=jnp.zeros((dims,), F32),
        enc=dict(
            w1=nrm((dims, 1, 3)), b1=jnp.zeros((dims,), F32),     # Conv1d(1, dims, 3)
            w2=nrm((dims, dims, 3)), b2=jnp.zeros((dims,), F32),  # Conv1d(dims, dims, 3)
            w3=nrm((dims, 1, 3)), b3=jnp.zeros((dims,), F32),     # depthwise Conv1d
        ),
        bA=[res_params() for _ in range(layer)],
        bB=[res_params() for _ in range(layer)],
    )


if __name__ == "__main__":
    vocab, mels, ctx, dims, head, layer = 256, 1, 16, 128, 4, 1
    B, T_text, T_audio = 2, 8, 16

    key = jax.random.PRNGKey(0)
    kp, kt, ka = jax.random.split(key, 3)
    raw_params = init_params(kp, vocab, ctx, dims, head, layer)
    params = prepare_params(raw_params, head)     # fuse / transpose / pad / bf16 once
    tokens = jax.random.randint(kt, (B, T_text), 0, vocab, dtype=jnp.int32)
    audio = jax.random.normal(ka, (B, 1, T_audio), dtype=F32)

    fwd = jax.jit(processor_forward, static_argnums=(3,))
    out = fwd(params, tokens, audio, head)
    jax.block_until_ready(out)
    assert out.shape == (B, T_text, vocab) and out.dtype == jnp.float32
    print("KERNEL_OK")
</pallas_src>

<mosaic_0001>
module attributes {stable_mosaic.version = 11 : i64} {
  func.func @_ln_matmul_kernel(%arg0: i32, %arg1: i32, %arg2: memref<16x128xf32, #tpu.memory_space<vmem>>, %arg3: memref<2x128xf32, #tpu.memory_space<vmem>>, %arg4: memref<2x128xf32, #tpu.memory_space<vmem>>, %arg5: memref<128x384xbf16, #tpu.memory_space<vmem>>, %arg6: memref<1x384xf32, #tpu.memory_space<vmem>>, %arg7: memref<16x384xbf16, #tpu.memory_space<vmem>>, %arg8: memref<16x128xbf16, #tpu.memory_space<vmem>>) attributes {dimension_semantics = [#tpu.dimension_semantics<parallel>, #tpu.dimension_semantics<arbitrary>], iteration_bounds = array<i64: 1, 1>, scalar_prefetch = 0 : i64, scratch_operands = 1 : i64, tpu.core_type = #tpu.core_type<tc>, window_params = [{transform_indices = @transform_0, window_bounds = array<i64: 16, 128>}, {pipeline_mode = #tpu.pipeline_mode<synchronous>, transform_indices = @transform_1, window_bounds = array<i64: 2, 128>}, {pipeline_mode = #tpu.pipeline_mode<synchronous>, transform_indices = @transform_2, window_bounds = array<i64: 2, 128>}, {transform_indices = @transform_3, window_bounds = array<i64: 128, 384>}, {transform_indices = @transform_4, window_bounds = array<i64: 1, 384>}, {transform_indices = @transform_5, window_bounds = array<i64: 16, 384>}]} {
    %c0_i32 = arith.constant 0 : i32
    %0 = arith.cmpi eq, %arg1, %c0_i32 : i32
    %1 = arith.extui %0 : i1 to i32
    %c0_i32_0 = arith.constant 0 : i32
    %2 = arith.cmpi ne, %1, %c0_i32_0 : i32
    scf.if %2 {
      %c0_8 = arith.constant 0 : index
      %c0_9 = arith.constant 0 : index
      %11 = vector.load %arg2[%c0_8, %c0_9] : memref<16x128xf32, #tpu.memory_space<vmem>>, vector<16x128xf32>
      %cst_10 = arith.constant dense<0.000000e+00> : vector<16xf32>
      %12 = vector.multi_reduction <add>, %11, %cst_10 [1] : vector<16x128xf32> to vector<16xf32>
      %13 = vector.shape_cast %12 : vector<16xf32> to vector<16x1xf32>
      %cst_11 = arith.constant 1.280000e+02 : f32
      %14 = vector.broadcast %cst_11 : f32 to vector<16x1xf32>
      %15 = arith.divf %13, %14 : vector<16x1xf32>
      %16 = vector.broadcast %15 : vector<16x1xf32> to vector<16x128xf32>
      %17 = arith.subf %11, %16 : vector<16x128xf32>
      %18 = arith.mulf %17, %17 : vector<16x128xf32>
      %cst_12 = arith.constant dense<0.000000e+00> : vector<16xf32>
      %19 = vector.multi_reduction <add>, %18, %cst_12 [1] : vector<16x128xf32> to vector<16xf32>
      %20 = vector.shape_cast %19 : vector<16xf32> to vector<16x1xf32>
      %cst_13 = arith.constant 1.280000e+02 : f32
      %21 = vector.broadcast %cst_13 : f32 to vector<16x1xf32>
      %22 = arith.divf %20, %21 : vector<16x1xf32>
      %23 = vector.broadcast %15 : vector<16x1xf32> to vector<16x128xf32>
      %24 = arith.subf %11, %23 : vector<16x128xf32>
      %cst_14 = arith.constant 9.99999974E-6 : f32
      %25 = vector.broadcast %cst_14 : f32 to vector<16x1xf32>
      %26 = arith.addf %22, %25 : vector<16x1xf32>
      %27 = math.rsqrt %26 : vector<16x1xf32>
      %28 = vector.broadcast %27 : vector<16x1xf32> to vector<16x128xf32>
      %29 = arith.mulf %24, %28 : vector<16x128xf32>
      %c0_15 = arith.constant 0 : index
      %c0_16 = arith.constant 0 : index
      %30 = vector.load %arg3[%c0_15, %c0_16] : memref<2x128xf32, #tpu.memory_space<vmem>>, vector<1x128xf32>
      %31 = vector.broadcast %30 : vector<1x128xf32> to vector<16x128xf32>
      %32 = arith.mulf %29, %31 : vector<16x128xf32>
      %c0_17 = arith.constant 0 : index
      %c0_18 = arith.constant 0 : index
      %33 = vector.load %arg4[%c0_17, %c0_18] : memref<2x128xf32, #tpu.memory_space<vmem>>, vector<1x128xf32>
      %34 = vector.broadcast %33 : vector<1x128xf32> to vector<16x128xf32>
      %35 = arith.addf %32, %34 : vector<16x128xf32>
      %cst_19 = arith.constant dense<0.000000e+00> : vector<16xf32>
      %36 = vector.multi_reduction <add>, %35, %cst_19 [1] : vector<16x128xf32> to vector<16xf32>
      %37 = vector.shape_cast %36 : vector<16xf32> to vector<16x1xf32>
      %cst_20 = arith.constant 1.280000e+02 : f32
      %38 = vector.broadcast %cst_20 : f32 to vector<16x1xf32>
      %39 = arith.divf %37, %38 : vector<16x1xf32>
      %40 = vector.broadcast %39 : vector<16x1xf32> to vector<16x128xf32>
      %41 = arith.subf %35, %40 : vector<16x128xf32>
      %42 = arith.mulf %41, %41 : vector<16x128xf32>
      %cst_21 = arith.constant dense<0.000000e+00> : vector<16xf32>
      %43 = vector.multi_reduction <add>, %42, %cst_21 [1] : vector<16x128xf32> to vector<16xf32>
      %44 = vector.shape_cast %43 : vector<16xf32> to vector<16x1xf32>
      %cst_22 = arith.constant 1.280000e+02 : f32
      %45 = vector.broadcast %cst_22 : f32 to vector<16x1xf32>
      %46 = arith.divf %44, %45 : vector<16x1xf32>
      %47 = vector.broadcast %39 : vector<16x1xf32> to vector<16x128xf32>
      %48 = arith.subf %35, %47 : vector<16x128xf32>
      %cst_23 = arith.constant 9.99999974E-6 : f32
      %49 = vector.broadcast %cst_23 : f32 to vector<16x1xf32>
      %50 = arith.addf %46, %49 : vector<16x1xf32>
      %51 = math.rsqrt %50 : vector<16x1xf32>
      %52 = vector.broadcast %51 : vector<16x1xf32> to vector<16x128xf32>
      %53 = arith.mulf %48, %52 : vector<16x128xf32>
      %c1 = arith.constant 1 : index
      %c0_24 = arith.constant 0 : index
      %54 = vector.load %arg3[%c1, %c0_24] : memref<2x128xf32, #tpu.memory_space<vmem>>, vector<1x128xf32>
      %55 = vector.broadcast %54 : vector<1x128xf32> to vector<16x128xf32>
      %56 = arith.mulf %53, %55 : vector<16x128xf32>
      %c1_25 = arith.constant 1 : index
      %c0_26 = arith.constant 0 : index
      %57 = vector.load %arg4[%c1_25, %c0_26] : memref<2x128xf32, #tpu.memory_space<vmem>>, vector<1x128xf32>
      %58 = vector.broadcast %57 : vector<1x128xf32> to vector<16x128xf32>
      %59 = arith.addf %56, %58 : vector<16x128xf32>
      %60 = arith.truncf %59 : vector<16x128xf32> to vector<16x128xbf16>
      %c0_27 = arith.constant 0 : index
      %c0_28 = arith.constant 0 : index
      %61 = vector.load %arg8[%c0_27, %c0_28] : memref<16x128xbf16, #tpu.memory_space<vmem>>, vector<16x128xbf16>
      tpu.vector_store %arg8[%c0_27, %c0_28], %60 {strides = array<i32>} : memref<16x128xbf16, #tpu.memory_space<vmem>>, vector<16x128xbf16>,
    } else {
    }
    %c0 = arith.constant 0 : index
    %c0_1 = arith.constant 0 : index
    %3 = vector.load %arg8[%c0, %c0_1] : memref<16x128xbf16, #tpu.memory_space<vmem>>, vector<16x128xbf16>
    %c0_2 = arith.constant 0 : index
    %c0_3 = arith.constant 0 : index
    %4 = vector.load %arg5[%c0_2, %c0_3] : memref<128x384xbf16, #tpu.memory_space<vmem>>, vector<128x384xbf16>
    %cst = arith.constant dense<0.000000e+00> : vector<16x384xf32>
    %5 = tpu.matmul %3, %4, %cst {dimension_numbers = #tpu.dot_dimension_numbers<[1], [0], [0], [1], [0, 0, 1, 1], [], []>} : vector<16x128xbf16>, vector<128x384xbf16>, vector<16x384xf32> -> vector<16x384xf32>
    %c0_4 = arith.constant 0 : index
    %c0_5 = arith.constant 0 : index
    %6 = vector.load %arg6[%c0_4, %c0_5] : memref<1x384xf32, #tpu.memory_space<vmem>>, vector<1x384xf32>
    %7 = vector.broadcast %6 : vector<1x384xf32> to vector<16x384xf32>
    %8 = arith.addf %5, %7 : vector<16x384xf32>
    %9 = arith.truncf %8 : vector<16x384xf32> to vector<16x384xbf16>
    %c0_6 = arith.constant 0 : index
    %c0_7 = arith.constant 0 : index
    %10 = vector.load %arg7[%c0_6, %c0_7] : memref<16x384xbf16, #tpu.memory_space<vmem>>, vector<16x384xbf16>
    tpu.vector_store %arg7[%c0_6, %c0_7], %9 {strides = array<i32>} : memref<16x384xbf16, #tpu.memory_space<vmem>>, vector<16x384xbf16>,
    return
  }
  func.func @transform_0(%arg0: i32, %arg1: i32) -> (i32, i32) {
    %c0_i32 = arith.constant 0 : i32
    %c0_i32_0 = arith.constant 0 : i32
    return %arg0, %c0_i32 : i32, i32
  }
  func.func @transform_1(%arg0: i32, %arg1: i32) -> (i32, i32) {
    %c0_i32 = arith.constant 0 : i32
    %c0_i32_0 = arith.constant 0 : i32
    %c0_i32_1 = arith.constant 0 : i32
    return %c0_i32, %c0_i32_0 : i32, i32
  }
  func.func @transform_2(%arg0: i32, %arg1: i32) -> (i32, i32) {
    %c0_i32 = arith.constant 0 : i32
    %c0_i32_0 = arith.constant 0 : i32
    %c0_i32_1 = arith.constant 0 : i32
    return %c0_i32, %c0_i32_0 : i32, i32
  }
  func.func @transform_3(%arg0: i32, %arg1: i32) -> (i32, i32) {
    %c0_i32 = arith.constant 0 : i32
    %c0_i32_0 = arith.constant 0 : i32
    return %c0_i32, %arg1 : i32, i32
  }
  func.func @transform_4(%arg0: i32, %arg1: i32) -> (i32, i32) {
    %c0_i32 = arith.constant 0 : i32
    %c0_i32_0 = arith.constant 0 : i32
    return %c0_i32, %arg1 : i32, i32
  }
  func.func @transform_5(%arg0: i32, %arg1: i32) -> (i32, i32) {
    %c0_i32 = arith.constant 0 : i32
    return %arg0, %arg1 : i32, i32
  }
}

module attributes {stable_mosaic.version = 11 : i64} {
  func.func @_matmul_kernel(%arg0: i32, %arg1: i32, %arg2: i32, %arg3: memref<16x128xbf16, #tpu.memory_space<vmem>>, %arg4: memref<128x128xbf16, #tpu.memory_space<vmem>>, %arg5: memref<1x128xf32, #tpu.memory_space<vmem>>, %arg6: memref<16x128xf32, #tpu.memory_space<vmem>>, %arg7: memref<16x128xf32, #tpu.memory_space<vmem>>) attributes {dimension_semantics = [#tpu.dimension_semantics<parallel>, #tpu.dimension_semantics<parallel>, #tpu.dimension_semantics<arbitrary>], iteration_bounds = array<i64: 1, 1, 1>, scalar_prefetch = 0 : i64, scratch_operands = 1 : i64, tpu.core_type = #tpu.core_type<tc>, window_params = [{transform_indices = @transform_0, window_bounds = array<i64: 16, 128>}, {transform_indices = @transform_1, window_bounds = array<i64: 128, 128>}, {transform_indices = @transform_2, window_bounds = array<i64: 1, 128>}, {transform_indices = @transform_3, window_bounds = array<i64: 16, 128>}]} {
    %c0_i32 = arith.constant 0 : i32
    %0 = arith.cmpi eq, %arg2, %c0_i32 : i32
    %1 = arith.extui %0 : i1 to i32
    %c0_i32_0 = arith.constant 0 : i32
    %2 = arith.cmpi ne, %1, %c0_i32_0 : i32
    scf.if %2 {
      %cst_10 = arith.constant 0.000000e+00 : f32
      %12 = vector.broadcast %cst_10 : f32 to vector<16x128xf32>
      %c0_11 = arith.constant 0 : index
      %c0_12 = arith.constant 0 : index
      %13 = vector.load %arg7[%c0_11, %c0_12] : memref<16x128xf32, #tpu.memory_space<vmem>>, vector<16x128xf32>
      tpu.vector_store %arg7[%c0_11, %c0_12], %12 {strides = array<i32>} : memref<16x128xf32, #tpu.memory_space<vmem>>, vector<16x128xf32>,
    } else {
    }
    %c0 = arith.constant 0 : index
    %c0_1 = arith.constant 0 : index
    %3 = vector.load %arg7[%c0, %c0_1] : memref<16x128xf32, #tpu.memory_space<vmem>>, vector<16x128xf32>
    %c0_2 = arith.constant 0 : index
    %c0_3 = arith.constant 0 : index
    %4 = vector.load %arg3[%c0_2, %c0_3] : memref<16x128xbf16, #tpu.memory_space<vmem>>, vector<16x128xbf16>
    %c0_4 = arith.constant 0 : index
    %c0_5 = arith.constant 0 : index
    %5 = vector.load %arg4[%c0_4, %c0_5] : memref<128x128xbf16, #tpu.memory_space<vmem>>, vector<128x128xbf16>
    %cst = arith.constant dense<0.000000e+00> : vector<16x128xf32>
    %6 = tpu.matmul %4, %5, %cst {dimension_numbers = #tpu.dot_dimension_numbers<[1], [0], [0], [1], [0, 0, 1, 1], [], []>} : vector<16x128xbf16>, vector<128x128xbf16>, vector<16x128xf32> -> vector<16x128xf32>
    %7 = arith.addf %3, %6 : vector<16x128xf32>
    %c0_6 = arith.constant 0 : index
    %c0_7 = arith.constant 0 : index
    %8 = vector.load %arg7[%c0_6, %c0_7] : memref<16x128xf32, #tpu.memory_space<vmem>>, vector<16x128xf32>
    tpu.vector_store %arg7[%c0_6, %c0_7], %7 {strides = array<i32>} : memref<16x128xf32, #tpu.memory_space<vmem>>, vector<16x128xf32>,
    %c0_i32_8 = arith.constant 0 : i32
    %9 = arith.cmpi eq, %arg2, %c0_i32_8 : i32
    %10 = arith.extui %9 : i1 to i32
    %c0_i32_9 = arith.constant 0 : i32
    %11 = arith.cmpi ne, %10, %c0_i32_9 : i32
    scf.if %11 {
      %c0_10 = arith.constant 0 : index
      %c0_11 = arith.constant 0 : index
      %12 = vector.load %arg7[%c0_10, %c0_11] : memref<16x128xf32, #tpu.memory_space<vmem>>, vector<16x128xf32>
      %c0_12 = arith.constant 0 : index
      %c0_13 = arith.constant 0 : index
      %13 = vector.load %arg5[%c0_12, %c0_13] : memref<1x128xf32, #tpu.memory_space<vmem>>, vector<1x128xf32>
      %14 = vector.broadcast %13 : vector<1x128xf32> to vector<16x128xf32>
      %15 = arith.addf %12, %14 : vector<16x128xf32>
      %c0_14 = arith.constant 0 : index
      %c0_15 = arith.constant 0 : index
      %16 = vector.load %arg6[%c0_14, %c0_15] : memref<16x128xf32, #tpu.memory_space<vmem>>, vector<16x128xf32>
      tpu.vector_store %arg6[%c0_14, %c0_15], %15 {strides = array<i32>} : memref<16x128xf32, #tpu.memory_space<vmem>>, vector<16x128xf32>,
    } else {
    }
    return
  }
  func.func @transform_0(%arg0: i32, %arg1: i32, %arg2: i32) -> (i32, i32) {
    %c0_i32 = arith.constant 0 : i32
    return %arg0, %arg2 : i32, i32
  }
  func.func @transform_1(%arg0: i32, %arg1: i32, %arg2: i32) -> (i32, i32) {
    %c0_i32 = arith.constant 0 : i32
    return %arg2, %arg1 : i32, i32
  }
  func.func @transform_2(%arg0: i32, %arg1: i32, %arg2: i32) -> (i32, i32) {
    %c0_i32 = arith.constant 0 : i32
    %c0_i32_0 = arith.constant 0 : i32
    return %c0_i32, %arg1 : i32, i32
  }
  func.func @transform_3(%arg0: i32, %arg1: i32, %arg2: i32) -> (i32, i32) {
    %c0_i32 = arith.constant 0 : i32
    return %arg0, %arg1 : i32, i32
  }
}

module attributes {stable_mosaic.version = 11 : i64} {
  func.func @_ln_matmul_kernel(%arg0: i32, %arg1: i32, %arg2: memref<16x128xf32, #tpu.memory_space<vmem>>, %arg3: memref<1x128xf32, #tpu.memory_space<vmem>>, %arg4: memref<1x128xf32, #tpu.memory_space<vmem>>, %arg5: memref<128x512xbf16, #tpu.memory_space<vmem>>, %arg6: memref<1x512xf32, #tpu.memory_space<vmem>>, %arg7: memref<16x512xbf16, #tpu.memory_space<vmem>>, %arg8: memref<16x128xbf16, #tpu.memory_space<vmem>>) attributes {dimension_semantics = [#tpu.dimension_semantics<parallel>, #tpu.dimension_semantics<arbitrary>], iteration_bounds = array<i64: 1, 1>, scalar_prefetch = 0 : i64, scratch_operands = 1 : i64, tpu.core_type = #tpu.core_type<tc>, window_params = [{transform_indices = @transform_0, window_bounds = array<i64: 16, 128>}, {pipeline_mode = #tpu.pipeline_mode<synchronous>, transform_indices = @transform_1, window_bounds = array<i64: 1, 128>}, {pipeline_mode = #tpu.pipeline_mode<synchronous>, transform_indices = @transform_2, window_bounds = array<i64: 1, 128>}, {transform_indices = @transform_3, window_bounds = array<i64: 128, 512>}, {transform_indices = @transform_4, window_bounds = array<i64: 1, 512>}, {transform_indices = @transform_5, window_bounds = array<i64: 16, 512>}]} {
    %c0_i32 = arith.constant 0 : i32
    %0 = arith.cmpi eq, %arg1, %c0_i32 : i32
    %1 = arith.extui %0 : i1 to i32
    %c0_i32_0 = arith.constant 0 : i32
    %2 = arith.cmpi ne, %1, %c0_i32_0 : i32
    scf.if %2 {
      %c0_11 = arith.constant 0 : index
      %c0_12 = arith.constant 0 : index
      %19 = vector.load %arg2[%c0_11, %c0_12] : memref<16x128xf32, #tpu.memory_space<vmem>>, vector<16x128xf32>
      %cst_13 = arith.constant dense<0.000000e+00> : vector<16xf32>
      %20 = vector.multi_reduction <add>, %19, %cst_13 [1] : vector<16x128xf32> to vector<16xf32>
      %21 = vector.shape_cast %20 : vector<16xf32> to vector<16x1xf32>
      %cst_14 = arith.constant 1.280000e+02 : f32
      %22 = vector.broadcast %cst_14 : f32 to vector<16x1xf32>
      %23 = arith.divf %21, %22 : vector<16x1xf32>
      %24 = vector.broadcast %23 : vector<16x1xf32> to vector<16x128xf32>
      %25 = arith.subf %19, %24 : vector<16x128xf32>
      %26 = arith.mulf %25, %25 : vector<16x128xf32>
      %cst_15 = arith.constant dense<0.000000e+00> : vector<16xf32>
      %27 = vector.multi_reduction <add>, %26, %cst_15 [1] : vector<16x128xf32> to vector<16xf32>
      %28 = vector.shape_cast %27 : vector<16xf32> to vector<16x1xf32>
      %cst_16 = arith.constant 1.280000e+02 : f32
      %29 = vector.broadcast %cst_16 : f32 to vector<16x1xf32>
      %30 = arith.divf %28, %29 : vector<16x1xf32>
      %31 = vector.broadcast %23 : vector<16x1xf32> to vector<16x128xf32>
      %32 = arith.subf %19, %31 : vector<16x128xf32>
      %cst_17 = arith.constant 9.99999974E-6 : f32
      %33 = vector.broadcast %cst_17 : f32 to vector<16x1xf32>
      %34 = arith.addf %30, %33 : vector<16x1xf32>
      %35 = math.rsqrt %34 : vector<16x1xf32>
      %36 = vector.broadcast %35 : vector<16x1xf32> to vector<16x128xf32>
      %37 = arith.mulf %32, %36 : vector<16x128xf32>
      %c0_18 = arith.constant 0 : index
      %c0_19 = arith.constant 0 : index
      %38 = vector.load %arg3[%c0_18, %c0_19] : memref<1x128xf32, #tpu.memory_space<vmem>>, vector<1x128xf32>
      %39 = vector.broadcast %38 : vector<1x128xf32> to vector<16x128xf32>
      %40 = arith.mulf %37, %39 : vector<16x128xf32>
      %c0_20 = arith.constant 0 : index
      %c0_21 = arith.constant 0 : index
      %41 = vector.load %arg4[%c0_20, %c0_21] : memref<1x128xf32, #tpu.memory_space<vmem>>, vector<1x128xf32>
      %42 = vector.broadcast %41 : vector<1x128xf32> to vector<16x128xf32>
      %43 = arith.addf %40, %42 : vector<16x128xf32>
      %44 = arith.truncf %43 : vector<16x128xf32> to vector<16x128xbf16>
      %c0_22 = arith.constant 0 : index
      %c0_23 = arith.constant 0 : index
      %45 = vector.load %arg8[%c0_22, %c0_23] : memref<16x128xbf16, #tpu.memory_space<vmem>>, vector<16x128xbf16>
      tpu.vector_store %arg8[%c0_22, %c0_23], %44 {strides = array<i32>} : memref<16x128xbf16, #tpu.memory_space<vmem>>, vector<16x128xbf16>,
    } else {
    }
    %c0 = arith.constant 0 : index
    %c0_1 = arith.constant 0 : index
    %3 = vector.load %arg8[%c0, %c0_1] : memref<16x128xbf16, #tpu.memory_space<vmem>>, vector<16x128xbf16>
    %c0_2 = arith.constant 0 : index
    %c0_3 = arith.constant 0 : index
    %4 = vector.load %arg5[%c0_2, %c0_3] : memref<128x512xbf16, #tpu.memory_space<vmem>>, vector<128x512xbf16>
    %cst = arith.constant dense<0.000000e+00> : vector<16x512xf32>
    %5 = tpu.matmul %3, %4, %cst {dimension_numbers = #tpu.dot_dimension_numbers<[1], [0], [0], [1], [0, 0, 1, 1], [], []>} : vector<16x128xbf16>, vector<128x512xbf16>, vector<16x512xf32> -> vector<16x512xf32>
    %c0_4 = arith.constant 0 : index
    %c0_5 = arith.constant 0 : index
    %6 = vector.load %arg6[%c0_4, %c0_5] : memref<1x512xf32, #tpu.memory_space<vmem>>, vector<1x512xf32>
    %7 = vector.broadcast %6 : vector<1x512xf32> to vector<16x512xf32>
    %8 = arith.addf %5, %7 : vector<16x512xf32>
    %cst_6 = arith.constant 5.000000e-01 : f32
    %9 = vector.broadcast %cst_6 : f32 to vector<16x512xf32>
    %10 = arith.mulf %9, %8 : vector<16x512xf32>
    %cst_7 = arith.constant 0.707106769 : f32
    %11 = vector.broadcast %cst_7 : f32 to vector<16x512xf32>
    %12 = arith.mulf %8, %11 : vector<16x512xf32>
    %13 = math.erf %12 : vector<16x512xf32>
    %cst_8 = arith.constant 1.000000e+00 : f32
    %14 = vector.broadcast %cst_8 : f32 to vector<16x512xf32>
    %15 = arith.addf %14, %13 : vector<16x512xf32>
    %16 = arith.mulf %10, %15 : vector<16x512xf32>
    %17 = arith.truncf %16 : vector<16x512xf32> to vector<16x512xbf16>
    %c0_9 = arith.constant 0 : index
    %c0_10 = arith.constant 0 : index
    %18 = vector.load %arg7[%c0_9, %c0_10] : memref<16x512xbf16, #tpu.memory_space<vmem>>, vector<16x512xbf16>
    tpu.vector_store %arg7[%c0_9, %c0_10], %17 {strides = array<i32>} : memref<16x512xbf16, #tpu.memory_space<vmem>>, vector<16x512xbf16>,
    return
  }
  func.func @transform_0(%arg0: i32, %arg1: i32) -> (i32, i32) {
    %c0_i32 = arith.constant 0 : i32
    %c0_i32_0 = arith.constant 0 : i32
    return %arg0, %c0_i32 : i32, i32
  }
  func.func @transform_1(%arg0: i32, %arg1: i32) -> (i32, i32) {
    %c0_i32 = arith.constant 0 : i32
    %c0_i32_0 = arith.constant 0 : i32
    %c0_i32_1 = arith.constant 0 : i32
    return %c0_i32, %c0_i32_0 : i32, i32
  }
  func.func @transform_2(%arg0: i32, %arg1: i32) -> (i32, i32) {
    %c0_i32 = arith.constant 0 : i32
    %c0_i32_0 = arith.constant 0 : i32
    %c0_i32_1 = arith.constant 0 : i32
    return %c0_i32, %c0_i32_0 : i32, i32
  }
  func.func @transform_3(%arg0: i32, %arg1: i32) -> (i32, i32) {
    %c0_i32 = arith.constant 0 : i32
    %c0_i32_0 = arith.constant 0 : i32
    return %c0_i32, %arg1 : i32, i32
  }
  func.func @transform_4(%arg0: i32, %arg1: i32) -> (i32, i32) {
    %c0_i32 = arith.constant 0 : i32
    %c0_i32_0 = arith.constant 0 : i32
    return %c0_i32, %arg1 : i32, i32
  }
  func.func @transform_5(%arg0: i32, %arg1: i32) -> (i32, i32) {
    %c0_i32 = arith.constant 0 : i32
    return %arg0, %arg1 : i32, i32
  }
}

module attributes {stable_mosaic.version = 11 : i64} {
  func.func @_flash_kernel(%arg0: i32, %arg1: i32, %arg2: i32, %arg3: memref<1x8x128xbf16, #tpu.memory_space<vmem>>, %arg4: memref<1x8x128xbf16, #tpu.memory_space<vmem>>, %arg5: memref<1x8x128xbf16, #tpu.memory_space<vmem>>, %arg6: memref<8x128xf32, #tpu.memory_space<vmem>>, %arg7: memref<8x128xf32, #tpu.memory_space<vmem>>, %arg8: memref<8x128xf32, #tpu.memory_space<vmem>>, %arg9: memref<8x128xf32, #tpu.memory_space<vmem>>, %arg10: memref<1x128xf32, #tpu.memory_space<vmem>>, %arg11: memref<1x8x128xbf16, #tpu.memory_space<vmem>>, %arg12: memref<8x128xbf16, #tpu.memory_space<vmem>>, %arg13: memref<8x128xf32, #tpu.memory_space<vmem>>, %arg14: memref<8x128xf32, #tpu.memory_space<vmem>>, %arg15: memref<8x128xf32, #tpu.memory_space<vmem>>) attributes {dimension_semantics = [#tpu.dimension_semantics<parallel>, #tpu.dimension_semantics<parallel>, #tpu.dimension_semantics<arbitrary>], iteration_bounds = array<i64: 2, 1, 1>, scalar_prefetch = 0 : i64, scratch_operands = 4 : i64, tpu.core_type = #tpu.core_type<tc>, window_params = [{transform_indices = @transform_0, window_bounds = array<i64: 1, 8, 128>}, {transform_indices = @transform_1, window_bounds = array<i64: 1, 8, 128>}, {transform_indices = @transform_2, window_bounds = array<i64: 1, 8, 128>}, {transform_indices = @transform_3, window_bounds = array<i64: 8, 128>}, {transform_indices = @transform_4, window_bounds = array<i64: 8, 128>}, {transform_indices = @transform_5, window_bounds = array<i64: 8, 128>}, {transform_indices = @transform_6, window_bounds = array<i64: 8, 128>}, {pipeline_mode = #tpu.pipeline_mode<synchronous>, transform_indices = @transform_7, window_bounds = array<i64: 1, 128>}, {transform_indices = @transform_8, window_bounds = array<i64: 1, 8, 128>}]} {
    %c0 = arith.constant 0 : index
    %c0_0 = arith.constant 0 : index
    %0 = vector.load %arg10[%c0, %c0_0] : memref<1x128xf32, #tpu.memory_space<vmem>>, vector<1x128xf32>
    %c0_i32 = arith.constant 0 : i32
    %1 = arith.cmpi eq, %arg2, %c0_i32 : i32
    %2 = arith.extui %1 : i1 to i32
    %c0_i32_1 = arith.constant 0 : i32
    %3 = arith.cmpi ne, %2, %c0_i32_1 : i32
    scf.if %3 {
      %c0_5 = arith.constant 0 : index
      %c0_6 = arith.constant 0 : index
      %c0_7 = arith.constant 0 : index
      %10 = vector.load %arg3[%c0_5, %c0_6, %c0_7] : memref<1x8x128xbf16, #tpu.memory_space<vmem>>, vector<1x8x128xbf16>
      %11 = vector.shape_cast %10 : vector<1x8x128xbf16> to vector<8x128xbf16>
      %12 = arith.extf %11 : vector<8x128xbf16> to vector<8x128xf32>
      %c0_8 = arith.constant 0 : index
      %c0_9 = arith.constant 0 : index
      %13 = vector.load %arg6[%c0_8, %c0_9] : memref<8x128xf32, #tpu.memory_space<vmem>>, vector<8x128xf32>
      %c0_10 = arith.constant 0 : index
      %c0_11 = arith.constant 0 : index
      %14 = vector.load %arg7[%c0_10, %c0_11] : memref<8x128xf32, #tpu.memory_space<vmem>>, vector<8x128xf32>
      %c127_i32 = arith.constant 127 : i32
      %15 = tpu.dynamic_rotate %12 by %c127_i32 dim 1 : vector<8x128xf32>, i32 -> vector<8x128xf32>
      %c1_i32 = arith.constant 1 : i32
      %16 = tpu.dynamic_rotate %12 by %c1_i32 dim 1 : vector<8x128xf32>, i32 -> vector<8x128xf32>
      %17 = tpu.iota {dimensions = array<i32: 1>} : vector<8x128xi32>
      %c2_i32 = arith.constant 2 : i32
      %c0_i32_12 = arith.constant 0 : i32
      %18 = arith.cmpi eq, %c2_i32, %c0_i32_12 : i32
      %c1_i32_13 = arith.constant 1 : i32
      %19 = arith.select %18, %c1_i32_13, %c2_i32 : i32
      %20 = vector.broadcast %19 : i32 to vector<8x128xi32>
      %21 = arith.remsi %17, %20 : vector<8x128xi32>
      %c0_i32_14 = arith.constant 0 : i32
      %22 = vector.broadcast %c0_i32_14 : i32 to vector<8x128xi32>
      %23 = arith.cmpi ne, %21, %22 : vector<8x128xi32>
      %c0_i32_15 = arith.constant 0 : i32
      %24 = vector.broadcast %c0_i32_15 : i32 to vector<8x128xi32>
      %25 = arith.cmpi slt, %21, %24 : vector<8x128xi32>
      %c0_i32_16 = arith.constant 0 : i32
      %26 = arith.cmpi slt, %19, %c0_i32_16 : i32
      %27 = vector.broadcast %26 : i1 to vector<8x128xi1>
      %28 = vector.broadcast %27 : vector<8x128xi1> to vector<8x128xi1>
      %29 = arith.xori %25, %28 : vector<8x128xi1>
      %30 = arith.andi %29, %23 : vector<8x128xi1>
      %31 = vector.broadcast %19 : i32 to vector<8x128xi32>
      %32 = arith.addi %21, %31 : vector<8x128xi32>
      %33 = arith.select %30, %32, %21 : vector<8x128xi1>, vector<8x128xi32>
      %c0_i32_17 = arith.constant 0 : i32
      %34 = vector.broadcast %c0_i32_17 : i32 to vector<8x128xi32>
      %35 = arith.cmpi eq, %33, %34 : vector<8x128xi32>
      %cst = arith.constant 0.000000e+00 : f32
      %36 = vector.broadcast %cst : f32 to vector<8x128xf32>
      %37 = arith.subf %36, %15 : vector<8x128xf32>
      %38 = arith.select %35, %37, %16 : vector<8x128xi1>, vector<8x128xf32>
      %39 = arith.mulf %12, %13 : vector<8x128xf32>
      %40 = arith.mulf %38, %14 : vector<8x128xf32>
      %41 = arith.addf %39, %40 : vector<8x128xf32>
      %42 = vector.extract_strided_slice %41 {offsets = [0, 0], sizes = [8, 32], strides = [1, 1]} : vector<8x128xf32> to vector<8x32xf32>
      %cst_18 = arith.constant dense<0.000000e+00> : vector<8xf32>
      %43 = vector.multi_reduction <add>, %42, %cst_18 [1] : vector<8x32xf32> to vector<8xf32>
      %44 = vector.shape_cast %43 : vector<8xf32> to vector<8x1xf32>
      %cst_19 = arith.constant 3.200000e+01 : f32
      %45 = vector.broadcast %cst_19 : f32 to vector<8x1xf32>
      %46 = arith.divf %44, %45 : vector<8x1xf32>
      %47 = vector.broadcast %46 : vector<8x1xf32> to vector<8x32xf32>
      %48 = arith.subf %42, %47 : vector<8x32xf32>
      %49 = arith.mulf %48, %48 : vector<8x32xf32>
      %cst_20 = arith.constant dense<0.000000e+00> : vector<8xf32>
      %50 = vector.multi_reduction <add>, %49, %cst_20 [1] : vector<8x32xf32> to vector<8xf32>
      %51 = vector.shape_cast %50 : vector<8xf32> to vector<8x1xf32>
      %cst_21 = arith.constant 3.200000e+01 : f32
      %52 = vector.broadcast %cst_21 : f32 to vector<8x1xf32>
      %53 = arith.divf %51, %52 : vector<8x1xf32>
      %54 = vector.shape_cast %46 : vector<8x1xf32> to vector<8x1xf32>
      %55 = vector.broadcast %54 : vector<8x1xf32> to vector<8x32xf32>
      %cst_22 = arith.constant 9.99999974E-6 : f32
      %56 = vector.broadcast %cst_22 : f32 to vector<8x1xf32>
      %57 = arith.addf %53, %56 : vector<8x1xf32>
      %58 = math.rsqrt %57 : vector<8x1xf32>
      %59 = vector.shape_cast %58 : vector<8x1xf32> to vector<8x1xf32>
      %60 = vector.broadcast %59 : vector<8x1xf32> to vector<8x32xf32>
      %61 = vector.extract_strided_slice %41 {offsets = [0, 32], sizes = [8, 32], strides = [1, 1]} : vector<8x128xf32> to vector<8x32xf32>
      %cst_23 = arith.constant dense<0.000000e+00> : vector<8xf32>
      %62 = vector.multi_reduction <add>, %61, %cst_23 [1] : vector<8x32xf32> to vector<8xf32>
      %63 = vector.shape_cast %62 : vector<8xf32> to vector<8x1xf32>
      %cst_24 = arith.constant 3.200000e+01 : f32
      %64 = vector.broadcast %cst_24 : f32 to vector<8x1xf32>
      %65 = arith.divf %63, %64 : vector<8x1xf32>
      %66 = vector.broadcast %65 : vector<8x1xf32> to vector<8x32xf32>
      %67 = arith.subf %61, %66 : vector<8x32xf32>
      %68 = arith.mulf %67, %67 : vector<8x32xf32>
      %cst_25 = arith.constant dense<0.000000e+00> : vector<8xf32>
      %69 = vector.multi_reduction <add>, %68, %cst_25 [1] : vector<8x32xf32> to vector<8xf32>
      %70 = vector.shape_cast %69 : vector<8xf32> to vector<8x1xf32>
      %cst_26 = arith.constant 3.200000e+01 : f32
      %71 = vector.broadcast %cst_26 : f32 to vector<8x1xf32>
      %72 = arith.divf %70, %71 : vector<8x1xf32>
      %73 = vector.shape_cast %65 : vector<8x1xf32> to vector<8x1xf32>
      %74 = vector.broadcast %73 : vector<8x1xf32> to vector<8x32xf32>
      %cst_27 = arith.constant 9.99999974E-6 : f32
      %75 = vector.broadcast %cst_27 : f32 to vector<8x1xf32>
      %76 = arith.addf %72, %75 : vector<8x1xf32>
      %77 = math.rsqrt %76 : vector<8x1xf32>
      %78 = vector.shape_cast %77 : vector<8x1xf32> to vector<8x1xf32>
      %79 = vector.broadcast %78 : vector<8x1xf32> to vector<8x32xf32>
      %80 = vector.extract_strided_slice %41 {offsets = [0, 64], sizes = [8, 32], strides = [1, 1]} : vector<8x128xf32> to vector<8x32xf32>
      %cst_28 = arith.constant dense<0.000000e+00> : vector<8xf32>
      %81 = vector.multi_reduction <add>, %80, %cst_28 [1] : vector<8x32xf32> to vector<8xf32>
      %82 = vector.shape_cast %81 : vector<8xf32> to vector<8x1xf32>
      %cst_29 = arith.constant 3.200000e+01 : f32
      %83 = vector.broadcast %cst_29 : f32 to vector<8x1xf32>
      %84 = arith.divf %82, %83 : vector<8x1xf32>
      %85 = vector.broadcast %84 : vector<8x1xf32> to vector<8x32xf32>
      %86 = arith.subf %80, %85 : vector<8x32xf32>
      %87 = arith.mulf %86, %86 : vector<8x32xf32>
      %cst_30 = arith.constant dense<0.000000e+00> : vector<8xf32>
      %88 = vector.multi_reduction <add>, %87, %cst_30 [1] : vector<8x32xf32> to vector<8xf32>
      %89 = vector.shape_cast %88 : vector<8xf32> to vector<8x1xf32>
      %cst_31 = arith.constant 3.200000e+01 : f32
      %90 = vector.broadcast %cst_31 : f32 to vector<8x1xf32>
      %91 = arith.divf %89, %90 : vector<8x1xf32>
      %92 = vector.shape_cast %84 : vector<8x1xf32> to vector<8x1xf32>
      %93 = vector.broadcast %92 : vector<8x1xf32> to vector<8x32xf32>
      %cst_32 = arith.constant 9.99999974E-6 : f32
      %94 = vector.broadcast %cst_32 : f32 to vector<8x1xf32>
      %95 = arith.addf %91, %94 : vector<8x1xf32>
      %96 = math.rsqrt %95 : vector<8x1xf32>
      %97 = vector.shape_cast %96 : vector<8x1xf32> to vector<8x1xf32>
      %98 = vector.broadcast %97 : vector<8x1xf32> to vector<8x32xf32>
      %99 = vector.extract_strided_slice %41 {offsets = [0, 96], sizes = [8, 32], strides = [1, 1]} : vector<8x128xf32> to vector<8x32xf32>
      %cst_33 = arith.constant dense<0.000000e+00> : vector<8xf32>
      %100 = vector.multi_reduction <add>, %99, %cst_33 [1] : vector<8x32xf32> to vector<8xf32>
      %101 = vector.shape_cast %100 : vector<8xf32> to vector<8x1xf32>
      %cst_34 = arith.constant 3.200000e+01 : f32
      %102 = vector.broadcast %cst_34 : f32 to vector<8x1xf32>
      %103 = arith.divf %101, %102 : vector<8x1xf32>
      %104 = vector.broadcast %103 : vector<8x1xf32> to vector<8x32xf32>
      %105 = arith.subf %99, %104 : vector<8x32xf32>
      %106 = arith.mulf %105, %105 : vector<8x32xf32>
      %cst_35 = arith.constant dense<0.000000e+00> : vector<8xf32>
      %107 = vector.multi_reduction <add>, %106, %cst_35 [1] : vector<8x32xf32> to vector<8xf32>
      %108 = vector.shape_cast %107 : vector<8xf32> to vector<8x1xf32>
      %cst_36 = arith.constant 3.200000e+01 : f32
      %109 = vector.broadcast %cst_36 : f32 to vector<8x1xf32>
      %110 = arith.divf %108, %109 : vector<8x1xf32>
      %111 = vector.shape_cast %103 : vector<8x1xf32> to vector<8x1xf32>
      %112 = vector.broadcast %111 : vector<8x1xf32> to vector<8x32xf32>
      %cst_37 = arith.constant 9.99999974E-6 : f32
      %113 = vector.broadcast %cst_37 : f32 to vector<8x1xf32>
      %114 = arith.addf %110, %113 : vector<8x1xf32>
      %115 = math.rsqrt %114 : vector<8x1xf32>
      %116 = vector.shape_cast %115 : vector<8x1xf32> to vector<8x1xf32>
      %117 = vector.broadcast %116 : vector<8x1xf32> to vector<8x32xf32>
      %118 = tpu.concatenate %55, %74, %93, %112 in 1 : vector<8x32xf32>, vector<8x32xf32>, vector<8x32xf32>, vector<8x32xf32> -> vector<8x128xf32>
      %119 = tpu.concatenate %60, %79, %98, %117 in 1 : vector<8x32xf32>, vector<8x32xf32>, vector<8x32xf32>, vector<8x32xf32> -> vector<8x128xf32>
      %120 = arith.subf %41, %118 : vector<8x128xf32>
      %121 = arith.mulf %120, %119 : vector<8x128xf32>
      %122 = vector.broadcast %0 : vector<1x128xf32> to vector<8x128xf32>
      %123 = arith.mulf %121, %122 : vector<8x128xf32>
      %124 = arith.truncf %123 : vector<8x128xf32> to vector<8x128xbf16>
      %c0_38 = arith.constant 0 : index
      %c0_39 = arith.constant 0 : index
      %125 = vector.load %arg12[%c0_38, %c0_39] : memref<8x128xbf16, #tpu.memory_space<vmem>>, vector<8x128xbf16>
      tpu.vector_store %arg12[%c0_38, %c0_39], %124 {strides = array<i32>} : memref<8x128xbf16, #tpu.memory_space<vmem>>, vector<8x128xbf16>,
      %cst_40 = arith.constant -1.000000e+30 : f32
      %126 = vector.broadcast %cst_40 : f32 to vector<8x128xf32>
      %c0_41 = arith.constant 0 : index
      %c0_42 = arith.constant 0 : index
      %127 = vector.load %arg13[%c0_41, %c0_42] : memref<8x128xf32, #tpu.memory_space<vmem>>, vector<8x128xf32>
      tpu.vector_store %arg13[%c0_41, %c0_42], %126 {strides = array<i32>} : memref<8x128xf32, #tpu.memory_space<vmem>>, vector<8x128xf32>,
      %cst_43 = arith.constant 0.000000e+00 : f32
      %128 = vector.broadcast %cst_43 : f32 to vector<8x128xf32>
      %c0_44 = arith.constant 0 : index
      %c0_45 = arith.constant 0 : index
      %129 = vector.load %arg14[%c0_44, %c0_45] : memref<8x128xf32, #tpu.memory_space<vmem>>, vector<8x128xf32>
      tpu.vector_store %arg14[%c0_44, %c0_45], %128 {strides = array<i32>} : memref<8x128xf32, #tpu.memory_space<vmem>>, vector<8x128xf32>,
      %cst_46 = arith.constant 0.000000e+00 : f32
      %130 = vector.broadcast %cst_46 : f32 to vector<8x128xf32>
      %c0_47 = arith.constant 0 : index
      %c0_48 = arith.constant 0 : index
      %131 = vector.load %arg15[%c0_47, %c0_48] : memref<8x128xf32, #tpu.memory_space<vmem>>, vector<8x128xf32>
      tpu.vector_store %arg15[%c0_47, %c0_48], %130 {strides = array<i32>} : memref<8x128xf32, #tpu.memory_space<vmem>>, vector<8x128xf32>,
    } else {
    }
    %4 = arith.cmpi sle, %arg2, %arg1 : i32
    %5 = arith.extui %4 : i1 to i32
    %c0_i32_2 = arith.constant 0 : i32
    %6 = arith.cmpi ne, %5, %c0_i32_2 : i32
    scf.if %6 {
      %c0_5 = arith.constant 0 : index
      %c0_6 = arith.constant 0 : index
      %c0_7 = arith.constant 0 : index
      %10 = vector.load %arg4[%c0_5, %c0_6, %c0_7] : memref<1x8x128xbf16, #tpu.memory_space<vmem>>, vector<1x8x128xbf16>
      %11 = vector.shape_cast %10 : vector<1x8x128xbf16> to vector<8x128xbf16>
      %12 = arith.extf %11 : vector<8x128xbf16> to vector<8x128xf32>
      %c0_8 = arith.constant 0 : index
      %c0_9 = arith.constant 0 : index
      %13 = vector.load %arg8[%c0_8, %c0_9] : memref<8x128xf32, #tpu.memory_space<vmem>>, vector<8x128xf32>
      %c0_10 = arith.constant 0 : index
      %c0_11 = arith.constant 0 : index
      %14 = vector.load %arg9[%c0_10, %c0_11] : memref<8x128xf32, #tpu.memory_space<vmem>>, vector<8x128xf32>
      %c127_i32 = arith.constant 127 : i32
      %15 = tpu.dynamic_rotate %12 by %c127_i32 dim 1 : vector<8x128xf32>, i32 -> vector<8x128xf32>
      %c1_i32 = arith.constant 1 : i32
      %16 = tpu.dynamic_rotate %12 by %c1_i32 dim 1 : vector<8x128xf32>, i32 -> vector<8x128xf32>
      %17 = tpu.iota {dimensions = array<i32: 1>} : vector<8x128xi32>
      %c2_i32 = arith.constant 2 : i32
      %c0_i32_12 = arith.constant 0 : i32
      %18 = arith.cmpi eq, %c2_i32, %c0_i32_12 : i32
      %c1_i32_13 = arith.constant 1 : i32
      %19 = arith.select %18, %c1_i32_13, %c2_i32 : i32
      %20 = vector.broadcast %19 : i32 to vector<8x128xi32>
      %21 = arith.remsi %17, %20 : vector<8x128xi32>
      %c0_i32_14 = arith.constant 0 : i32
      %22 = vector.broadcast %c0_i32_14 : i32 to vector<8x128xi32>
      %23 = arith.cmpi ne, %21, %22 : vector<8x128xi32>
      %c0_i32_15 = arith.constant 0 : i32
      %24 = vector.broadcast %c0_i32_15 : i32 to vector<8x128xi32>
      %25 = arith.cmpi slt, %21, %24 : vector<8x128xi32>
      %c0_i32_16 = arith.constant 0 : i32
      %26 = arith.cmpi slt, %19, %c0_i32_16 : i32
      %27 = vector.broadcast %26 : i1 to vector<8x128xi1>
      %28 = vector.broadcast %27 : vector<8x128xi1> to vector<8x128xi1>
      %29 = arith.xori %25, %28 : vector<8x128xi1>
      %30 = arith.andi %29, %23 : vector<8x128xi1>
      %31 = vector.broadcast %19 : i32 to vector<8x128xi32>
      %32 = arith.addi %21, %31 : vector<8x128xi32>
      %33 = arith.select %30, %32, %21 : vector<8x128xi1>, vector<8x128xi32>
      %c0_i32_17 = arith.constant 0 : i32
      %34 = vector.broadcast %c0_i32_17 : i32 to vector<8x128xi32>
      %35 = arith.cmpi eq, %33, %34 : vector<8x128xi32>
      %cst = arith.constant 0.000000e+00 : f32
      %36 = vector.broadcast %cst : f32 to vector<8x128xf32>
      %37 = arith.subf %36, %15 : vector<8x128xf32>
      %38 = arith.select %35, %37, %16 : vector<8x128xi1>, vector<8x128xf32>
      %39 = arith.mulf %12, %13 : vector<8x128xf32>
      %40 = arith.mulf %38, %14 : vector<8x128xf32>
      %41 = arith.addf %39, %40 : vector<8x128xf32>
      %42 = vector.extract_strided_slice %41 {offsets = [0, 0], sizes = [8, 32], strides = [1, 1]} : vector<8x128xf32> to vector<8x32xf32>
      %cst_18 = arith.constant dense<0.000000e+00> : vector<8xf32>
      %43 = vector.multi_reduction <add>, %42, %cst_18 [1] : vector<8x32xf32> to vector<8xf32>
      %44 = vector.shape_cast %43 : vector<8xf32> to vector<8x1xf32>
      %cst_19 = arith.constant 3.200000e+01 : f32
      %45 = vector.broadcast %cst_19 : f32 to vector<8x1xf32>
      %46 = arith.divf %44, %45 : vector<8x1xf32>
      %47 = vector.broadcast %46 : vector<8x1xf32> to vector<8x32xf32>
      %48 = arith.subf %42, %47 : vector<8x32xf32>
      %49 = arith.mulf %48, %48 : vector<8x32xf32>
      %cst_20 = arith.constant dense<0.000000e+00> : vector<8xf32>
      %50 = vector.multi_reduction <add>, %49, %cst_20 [1] : vector<8x32xf32> to vector<8xf32>
      %51 = vector.shape_cast %50 : vector<8xf32> to vector<8x1xf32>
      %cst_21 = arith.constant 3.200000e+01 : f32
      %52 = vector.broadcast %cst_21 : f32 to vector<8x1xf32>
      %53 = arith.divf %51, %52 : vector<8x1xf32>
      %54 = vector.shape_cast %46 : vector<8x1xf32> to vector<8x1xf32>
      %55 = vector.broadcast %54 : vector<8x1xf32> to vector<8x32xf32>
      %cst_22 = arith.constant 9.99999974E-6 : f32
      %56 = vector.broadcast %cst_22 : f32 to vector<8x1xf32>
      %57 = arith.addf %53, %56 : vector<8x1xf32>
      %58 = math.rsqrt %57 : vector<8x1xf32>
      %59 = vector.shape_cast %58 : vector<8x1xf32> to vector<8x1xf32>
      %60 = vector.broadcast %59 : vector<8x1xf32> to vector<8x32xf32>
      %61 = vector.extract_strided_slice %41 {offsets = [0, 32], sizes = [8, 32], strides = [1, 1]} : vector<8x128xf32> to vector<8x32xf32>
      %cst_23 = arith.constant dense<0.000000e+00> : vector<8xf32>
      %62 = vector.multi_reduction <add>, %61, %cst_23 [1] : vector<8x32xf32> to vector<8xf32>
      %63 = vector.shape_cast %62 : vector<8xf32> to vector<8x1xf32>
      %cst_24 = arith.constant 3.200000e+01 : f32
      %64 = vector.broadcast %cst_24 : f32 to vector<8x1xf32>
      %65 = arith.divf %63, %64 : vector<8x1xf32>
      %66 = vector.broadcast %65 : vector<8x1xf32> to vector<8x32xf32>
      %67 = arith.subf %61, %66 : vector<8x32xf32>
      %68 = arith.mulf %67, %67 : vector<8x32xf32>
      %cst_25 = arith.constant dense<0.000000e+00> : vector<8xf32>
      %69 = vector.multi_reduction <add>, %68, %cst_25 [1] : vector<8x32xf32> to vector<8xf32>
      %70 = vector.shape_cast %69 : vector<8xf32> to vector<8x1xf32>
      %cst_26 = arith.constant 3.200000e+01 : f32
      %71 = vector.broadcast %cst_26 : f32 to vector<8x1xf32>
      %72 = arith.divf %70, %71 : vector<8x1xf32>
      %73 = vector.shape_cast %65 : vector<8x1xf32> to vector<8x1xf32>
      %74 = vector.broadcast %73 : vector<8x1xf32> to vector<8x32xf32>
      %cst_27 = arith.constant 9.99999974E-6 : f32
      %75 = vector.broadcast %cst_27 : f32 to vector<8x1xf32>
      %76 = arith.addf %72, %75 : vector<8x1xf32>
      %77 = math.rsqrt %76 : vector<8x1xf32>
      %78 = vector.shape_cast %77 : vector<8x1xf32> to vector<8x1xf32>
      %79 = vector.broadcast %78 : vector<8x1xf32> to vector<8x32xf32>
      %80 = vector.extract_strided_slice %41 {offsets = [0, 64], sizes = [8, 32], strides = [1, 1]} : vector<8x128xf32> to vector<8x32xf32>
      %cst_28 = arith.constant dense<0.000000e+00> : vector<8xf32>
      %81 = vector.multi_reduction <add>, %80, %cst_28 [1] : vector<8x32xf32> to vector<8xf32>
      %82 = vector.shape_cast %81 : vector<8xf32> to vector<8x1xf32>
      %cst_29 = arith.constant 3.200000e+01 : f32
      %83 = vector.broadcast %cst_29 : f32 to vector<8x1xf32>
      %84 = arith.divf %82, %83 : vector<8x1xf32>
      %85 = vector.broadcast %84 : vector<8x1xf32> to vector<8x32xf32>
      %86 = arith.subf %80, %85 : vector<8x32xf32>
      %87 = arith.mulf %86, %86 : vector<8x32xf32>
      %cst_30 = arith.constant dense<0.000000e+00> : vector<8xf32>
      %88 = vector.multi_reduction <add>, %87, %cst_30 [1] : vector<8x32xf32> to vector<8xf32>
      %89 = vector.shape_cast %88 : vector<8xf32> to vector<8x1xf32>
      %cst_31 = arith.constant 3.200000e+01 : f32
      %90 = vector.broadcast %cst_31 : f32 to vector<8x1xf32>
      %91 = arith.divf %89, %90 : vector<8x1xf32>
      %92 = vector.shape_cast %84 : vector<8x1xf32> to vector<8x1xf32>
      %93 = vector.broadcast %92 : vector<8x1xf32> to vector<8x32xf32>
      %cst_32 = arith.constant 9.99999974E-6 : f32
      %94 = vector.broadcast %cst_32 : f32 to vector<8x1xf32>
      %95 = arith.addf %91, %94 : vector<8x1xf32>
      %96 = math.rsqrt %95 : vector<8x1xf32>
      %97 = vector.shape_cast %96 : vector<8x1xf32> to vector<8x1xf32>
      %98 = vector.broadcast %97 : vector<8x1xf32> to vector<8x32xf32>
      %99 = vector.extract_strided_slice %41 {offsets = [0, 96], sizes = [8, 32], strides = [1, 1]} : vector<8x128xf32> to vector<8x32xf32>
      %cst_33 = arith.constant dense<0.000000e+00> : vector<8xf32>
      %100 = vector.multi_reduction <add>, %99, %cst_33 [1] : vector<8x32xf32> to vector<8xf32>
      %101 = vector.shape_cast %100 : vector<8xf32> to vector<8x1xf32>
      %cst_34 = arith.constant 3.200000e+01 : f32
      %102 = vector.broadcast %cst_34 : f32 to vector<8x1xf32>
      %103 = arith.divf %101, %102 : vector<8x1xf32>
      %104 = vector.broadcast %103 : vector<8x1xf32> to vector<8x32xf32>
      %105 = arith.subf %99, %104 : vector<8x32xf32>
      %106 = arith.mulf %105, %105 : vector<8x32xf32>
      %cst_35 = arith.constant dense<0.000000e+00> : vector<8xf32>
      %107 = vector.multi_reduction <add>, %106, %cst_35 [1] : vector<8x32xf32> to vector<8xf32>
      %108 = vector.shape_cast %107 : vector<8xf32> to vector<8x1xf32>
      %cst_36 = arith.constant 3.200000e+01 : f32
      %109 = vector.broadcast %cst_36 : f32 to vector<8x1xf32>
      %110 = arith.divf %108, %109 : vector<8x1xf32>
      %111 = vector.shape_cast %103 : vector<8x1xf32> to vector<8x1xf32>
      %112 = vector.broadcast %111 : vector<8x1xf32> to vector<8x32xf32>
      %cst_37 = arith.constant 9.99999974E-6 : f32
      %113 = vector.broadcast %cst_37 : f32 to vector<8x1xf32>
      %114 = arith.addf %110, %113 : vector<8x1xf32>
      %115 = math.rsqrt %114 : vector<8x1xf32>
      %116 = vector.shape_cast %115 : vector<8x1xf32> to vector<8x1xf32>
      %117 = vector.broadcast %116 : vector<8x1xf32> to vector<8x32xf32>
      %118 = tpu.concatenate %55, %74, %93, %112 in 1 : vector<8x32xf32>, vector<8x32xf32>, vector<8x32xf32>, vector<8x32xf32> -> vector<8x128xf32>
      %119 = tpu.concatenate %60, %79, %98, %117 in 1 : vector<8x32xf32>, vector<8x32xf32>, vector<8x32xf32>, vector<8x32xf32> -> vector<8x128xf32>
      %120 = arith.subf %41, %118 : vector<8x128xf32>
      %121 = arith.mulf %120, %119 : vector<8x128xf32>
      %122 = vector.broadcast %0 : vector<1x128xf32> to vector<8x128xf32>
      %123 = arith.mulf %121, %122 : vector<8x128xf32>
      %124 = arith.truncf %123 : vector<8x128xf32> to vector<8x128xbf16>
      %c0_38 = arith.constant 0 : index
      %c0_39 = arith.constant 0 : index
      %c0_40 = arith.constant 0 : index
      %125 = vector.load %arg5[%c0_38, %c0_39, %c0_40] : memref<1x8x128xbf16, #tpu.memory_space<vmem>>, vector<1x8x128xbf16>
      %126 = vector.shape_cast %125 : vector<1x8x128xbf16> to vector<8x128xbf16>
      %c0_41 = arith.constant 0 : index
      %c0_42 = arith.constant 0 : index
      %127 = vector.load %arg12[%c0_41, %c0_42] : memref<8x128xbf16, #tpu.memory_space<vmem>>, vector<8x128xbf16>
      %c0_43 = arith.constant 0 : index
      %c0_44 = arith.constant 0 : index
      %128 = vector.load %arg13[%c0_43, %c0_44] : memref<8x128xf32, #tpu.memory_space<vmem>>, vector<8x128xf32>
      %c8_i32 = arith.constant 8 : i32
      %129 = arith.muli %arg2, %c8_i32 : i32
      %130 = tpu.iota {dimensions = array<i32: 1>} : vector<8x8xi32>
      %131 = vector.broadcast %129 : i32 to vector<8x8xi32>
      %132 = arith.addi %131, %130 : vector<8x8xi32>
      %c8_i32_45 = arith.constant 8 : i32
      %133 = arith.muli %arg1, %c8_i32_45 : i32
      %134 = tpu.iota {dimensions = array<i32: 0>} : vector<8x8xi32>
      %135 = vector.broadcast %133 : i32 to vector<8x8xi32>
      %136 = arith.addi %135, %134 : vector<8x8xi32>
      %137 = arith.cmpi sle, %132, %136 : vector<8x8xi32>
      %cst_46 = arith.constant 0.000000e+00 : f32
      %cst_47 = arith.constant -1.000000e+30 : f32
      %138 = vector.broadcast %cst_46 : f32 to vector<8x8xf32>
      %139 = vector.broadcast %cst_47 : f32 to vector<8x8xf32>
      %140 = arith.select %137, %138, %139 : vector<8x8xi1>, vector<8x8xf32>
      %141 = vector.extract_strided_slice %127 {offsets = [0, 0], sizes = [8, 32], strides = [1, 1]} : vector<8x128xbf16> to vector<8x32xbf16>
      %142 = vector.extract_strided_slice %124 {offsets = [0, 0], sizes = [8, 32], strides = [1, 1]} : vector<8x128xbf16> to vector<8x32xbf16>
      %cst_48 = arith.constant dense<0.000000e+00> : vector<8x8xf32>
      %143 = tpu.matmul %141, %142, %cst_48 {dimension_numbers = #tpu.dot_dimension_numbers<[1], [1], [0], [0], [0, 0, 1, 0], [], []>} : vector<8x32xbf16>, vector<8x32xbf16>, vector<8x8xf32> -> vector<8x8xf32>
      %cst_49 = arith.constant 0.176776692 : f32
      %144 = vector.broadcast %cst_49 : f32 to vector<8x8xf32>
      %145 = arith.mulf %143, %144 : vector<8x8xf32>
      %146 = arith.addf %145, %140 : vector<8x8xf32>
      %147 = vector.extract_strided_slice %128 {offsets = [0, 0], sizes = [8, 1], strides = [1, 1]} : vector<8x128xf32> to vector<8x1xf32>
      %cst_50 = arith.constant dense<0xFF800000> : vector<8xf32>
      %148 = vector.multi_reduction <maximumf>, %146, %cst_50 [1] : vector<8x8xf32> to vector<8xf32>
      %149 = vector.shape_cast %148 : vector<8xf32> to vector<8x1xf32>
      %150 = arith.maximumf %147, %149 : vector<8x1xf32>
      %151 = vector.broadcast %150 : vector<8x1xf32> to vector<8x8xf32>
      %152 = arith.subf %146, %151 : vector<8x8xf32>
      %153 = math.exp %152 : vector<8x8xf32>
      %cst_51 = arith.constant dense<0.000000e+00> : vector<8xf32>
      %154 = vector.multi_reduction <add>, %153, %cst_51 [1] : vector<8x8xf32> to vector<8xf32>
      %155 = vector.shape_cast %154 : vector<8xf32> to vector<8x1xf32>
      %156 = arith.truncf %153 : vector<8x8xf32> to vector<8x8xbf16>
      %157 = vector.extract_strided_slice %126 {offsets = [0, 0], sizes = [8, 32], strides = [1, 1]} : vector<8x128xbf16> to vector<8x32xbf16>
      %cst_52 = arith.constant dense<0.000000e+00> : vector<8x32xf32>
      %158 = tpu.matmul %156, %157, %cst_52 {dimension_numbers = #tpu.dot_dimension_numbers<[1], [0], [0], [1], [0, 0, 1, 1], [], []>} : vector<8x8xbf16>, vector<8x32xbf16>, vector<8x32xf32> -> vector<8x32xf32>
      %159 = vector.shape_cast %150 : vector<8x1xf32> to vector<8x1xf32>
      %160 = vector.broadcast %159 : vector<8x1xf32> to vector<8x32xf32>
      %161 = vector.shape_cast %155 : vector<8x1xf32> to vector<8x1xf32>
      %162 = vector.broadcast %161 : vector<8x1xf32> to vector<8x32xf32>
      %163 = vector.extract_strided_slice %127 {offsets = [0, 32], sizes = [8, 32], strides = [1, 1]} : vector<8x128xbf16> to vector<8x32xbf16>
      %164 = vector.extract_strided_slice %124 {offsets = [0, 32], sizes = [8, 32], strides = [1, 1]} : vector<8x128xbf16> to vector<8x32xbf16>
      %cst_53 = arith.constant dense<0.000000e+00> : vector<8x8xf32>
      %165 = tpu.matmul %163, %164, %cst_53 {dimension_numbers = #tpu.dot_dimension_numbers<[1], [1], [0], [0], [0, 0, 1, 0], [], []>} : vector<8x32xbf16>, vector<8x32xbf16>, vector<8x8xf32> -> vector<8x8xf32>
      %cst_54 = arith.constant 0.176776692 : f32
      %166 = vector.broadcast %cst_54 : f32 to vector<8x8xf32>
      %167 = arith.mulf %165, %166 : vector<8x8xf32>
      %168 = arith.addf %167, %140 : vector<8x8xf32>
      %169 = vector.extract_strided_slice %128 {offsets = [0, 32], sizes = [8, 1], strides = [1, 1]} : vector<8x128xf32> to vector<8x1xf32>
      %cst_55 = arith.constant dense<0xFF800000> : vector<8xf32>
      %170 = vector.multi_reduction <maximumf>, %168, %cst_55 [1] : vector<8x8xf32> to vector<8xf32>
      %171 = vector.shape_cast %170 : vector<8xf32> to vector<8x1xf32>
      %172 = arith.maximumf %169, %171 : vector<8x1xf32>
      %173 = vector.broadcast %172 : vector<8x1xf32> to vector<8x8xf32>
      %174 = arith.subf %168, %173 : vector<8x8xf32>
      %175 = math.exp %174 : vector<8x8xf32>
      %cst_56 = arith.constant dense<0.000000e+00> : vector<8xf32>
      %176 = vector.multi_reduction <add>, %175, %cst_56 [1] : vector<8x8xf32> to vector<8xf32>
      %177 = vector.shape_cast %176 : vector<8xf32> to vector<8x1xf32>
      %178 = arith.truncf %175 : vector<8x8xf32> to vector<8x8xbf16>
      %179 = vector.extract_strided_slice %126 {offsets = [0, 32], sizes = [8, 32], strides = [1, 1]} : vector<8x128xbf16> to vector<8x32xbf16>
      %cst_57 = arith.constant dense<0.000000e+00> : vector<8x32xf32>
      %180 = tpu.matmul %178, %179, %cst_57 {dimension_numbers = #tpu.dot_dimension_numbers<[1], [0], [0], [1], [0, 0, 1, 1], [], []>} : vector<8x8xbf16>, vector<8x32xbf16>, vector<8x32xf32> -> vector<8x32xf32>
      %181 = vector.shape_cast %172 : vector<8x1xf32> to vector<8x1xf32>
      %182 = vector.broadcast %181 : vector<8x1xf32> to vector<8x32xf32>
      %183 = vector.shape_cast %177 : vector<8x1xf32> to vector<8x1xf32>
      %184 = vector.broadcast %183 : vector<8x1xf32> to vector<8x32xf32>
      %185 = vector.extract_strided_slice %127 {offsets = [0, 64], sizes = [8, 32], strides = [1, 1]} : vector<8x128xbf16> to vector<8x32xbf16>
      %186 = vector.extract_strided_slice %124 {offsets = [0, 64], sizes = [8, 32], strides = [1, 1]} : vector<8x128xbf16> to vector<8x32xbf16>
      %cst_58 = arith.constant dense<0.000000e+00> : vector<8x8xf32>
      %187 = tpu.matmul %185, %186, %cst_58 {dimension_numbers = #tpu.dot_dimension_numbers<[1], [1], [0], [0], [0, 0, 1, 0], [], []>} : vector<8x32xbf16>, vector<8x32xbf16>, vector<8x8xf32> -> vector<8x8xf32>
      %cst_59 = arith.constant 0.176776692 : f32
      %188 = vector.broadcast %cst_59 : f32 to vector<8x8xf32>
      %189 = arith.mulf %187, %188 : vector<8x8xf32>
      %190 = arith.addf %189, %140 : vector<8x8xf32>
      %191 = vector.extract_strided_slice %128 {offsets = [0, 64], sizes = [8, 1], strides = [1, 1]} : vector<8x128xf32> to vector<8x1xf32>
      %cst_60 = arith.constant dense<0xFF800000> : vector<8xf32>
      %192 = vector.multi_reduction <maximumf>, %190, %cst_60 [1] : vector<8x8xf32> to vector<8xf32>
      %193 = vector.shape_cast %192 : vector<8xf32> to vector<8x1xf32>
      %194 = arith.maximumf %191, %193 : vector<8x1xf32>
      %195 = vector.broadcast %194 : vector<8x1xf32> to vector<8x8xf32>
      %196 = arith.subf %190, %195 : vector<8x8xf32>
      %197 = math.exp %196 : vector<8x8xf32>
      %cst_61 = arith.constant dense<0.000000e+00> : vector<8xf32>
      %198 = vector.multi_reduction <add>, %197, %cst_61 [1] : vector<8x8xf32> to vector<8xf32>
      %199 = vector.shape_cast %198 : vector<8xf32> to vector<8x1xf32>
      %200 = arith.truncf %197 : vector<8x8xf32> to vector<8x8xbf16>
      %201 = vector.extract_strided_slice %126 {offsets = [0, 64], sizes = [8, 32], strides = [1, 1]} : vector<8x128xbf16> to vector<8x32xbf16>
      %cst_62 = arith.constant dense<0.000000e+00> : vector<8x32xf32>
      %202 = tpu.matmul %200, %201, %cst_62 {dimension_numbers = #tpu.dot_dimension_numbers<[1], [0], [0], [1], [0, 0, 1, 1], [], []>} : vector<8x8xbf16>, vector<8x32xbf16>, vector<8x32xf32> -> vector<8x32xf32>
      %203 = vector.shape_cast %194 : vector<8x1xf32> to vector<8x1xf32>
      %204 = vector.broadcast %203 : vector<8x1xf32> to vector<8x32xf32>
      %205 = vector.shape_cast %199 : vector<8x1xf32> to vector<8x1xf32>
      %206 = vector.broadcast %205 : vector<8x1xf32> to vector<8x32xf32>
      %207 = vector.extract_strided_slice %127 {offsets = [0, 96], sizes = [8, 32], strides = [1, 1]} : vector<8x128xbf16> to vector<8x32xbf16>
      %208 = vector.extract_strided_slice %124 {offsets = [0, 96], sizes = [8, 32], strides = [1, 1]} : vector<8x128xbf16> to vector<8x32xbf16>
      %cst_63 = arith.constant dense<0.000000e+00> : vector<8x8xf32>
      %209 = tpu.matmul %207, %208, %cst_63 {dimension_numbers = #tpu.dot_dimension_numbers<[1], [1], [0], [0], [0, 0, 1, 0], [], []>} : vector<8x32xbf16>, vector<8x32xbf16>, vector<8x8xf32> -> vector<8x8xf32>
      %cst_64 = arith.constant 0.176776692 : f32
      %210 = vector.broadcast %cst_64 : f32 to vector<8x8xf32>
      %211 = arith.mulf %209, %210 : vector<8x8xf32>
      %212 = arith.addf %211, %140 : vector<8x8xf32>
      %213 = vector.extract_strided_slice %128 {offsets = [0, 96], sizes = [8, 1], strides = [1, 1]} : vector<8x128xf32> to vector<8x1xf32>
      %cst_65 = arith.constant dense<0xFF800000> : vector<8xf32>
      %214 = vector.multi_reduction <maximumf>, %212, %cst_65 [1] : vector<8x8xf32> to vector<8xf32>
      %215 = vector.shape_cast %214 : vector<8xf32> to vector<8x1xf32>
      %216 = arith.maximumf %213, %215 : vector<8x1xf32>
      %217 = vector.broadcast %216 : vector<8x1xf32> to vector<8x8xf32>
      %218 = arith.subf %212, %217 : vector<8x8xf32>
      %219 = math.exp %218 : vector<8x8xf32>
      %cst_66 = arith.constant dense<0.000000e+00> : vector<8xf32>
      %220 = vector.multi_reduction <add>, %219, %cst_66 [1] : vector<8x8xf32> to vector<8xf32>
      %221 = vector.shape_cast %220 : vector<8xf32> to vector<8x1xf32>
      %222 = arith.truncf %219 : vector<8x8xf32> to vector<8x8xbf16>
      %223 = vector.extract_strided_slice %126 {offsets = [0, 96], sizes = [8, 32], strides = [1, 1]} : vector<8x128xbf16> to vector<8x32xbf16>
      %cst_67 = arith.constant dense<0.000000e+00> : vector<8x32xf32>
      %224 = tpu.matmul %222, %223, %cst_67 {dimension_numbers = #tpu.dot_dimension_numbers<[1], [0], [0], [1], [0, 0, 1, 1], [], []>} : vector<8x8xbf16>, vector<8x32xbf16>, vector<8x32xf32> -> vector<8x32xf32>
      %225 = vector.shape_cast %216 : vector<8x1xf32> to vector<8x1xf32>
      %226 = vector.broadcast %225 : vector<8x1xf32> to vector<8x32xf32>
      %227 = vector.shape_cast %221 : vector<8x1xf32> to vector<8x1xf32>
      %228 = vector.broadcast %227 : vector<8x1xf32> to vector<8x32xf32>
      %229 = tpu.concatenate %160, %182, %204, %226 in 1 : vector<8x32xf32>, vector<8x32xf32>, vector<8x32xf32>, vector<8x32xf32> -> vector<8x128xf32>
      %230 = arith.subf %128, %229 : vector<8x128xf32>
      %231 = math.exp %230 : vector<8x128xf32>
      %c0_68 = arith.constant 0 : index
      %c0_69 = arith.constant 0 : index
      %232 = vector.load %arg14[%c0_68, %c0_69] : memref<8x128xf32, #tpu.memory_space<vmem>>, vector<8x128xf32>
      %233 = arith.mulf %231, %232 : vector<8x128xf32>
      %234 = tpu.concatenate %162, %184, %206, %228 in 1 : vector<8x32xf32>, vector<8x32xf32>, vector<8x32xf32>, vector<8x32xf32> -> vector<8x128xf32>
      %235 = arith.addf %233, %234 : vector<8x128xf32>
      %c0_70 = arith.constant 0 : index
      %c0_71 = arith.constant 0 : index
      %236 = vector.load %arg14[%c0_70, %c0_71] : memref<8x128xf32, #tpu.memory_space<vmem>>, vector<8x128xf32>
      tpu.vector_store %arg14[%c0_70, %c0_71], %235 {strides = array<i32>} : memref<8x128xf32, #tpu.memory_space<vmem>>, vector<8x128xf32>,
      %c0_72 = arith.constant 0 : index
      %c0_73 = arith.constant 0 : index
      %237 = vector.load %arg15[%c0_72, %c0_73] : memref<8x128xf32, #tpu.memory_space<vmem>>, vector<8x128xf32>
      %238 = arith.mulf %231, %237 : vector<8x128xf32>
      %239 = tpu.concatenate %158, %180, %202, %224 in 1 : vector<8x32xf32>, vector<8x32xf32>, vector<8x32xf32>, vector<8x32xf32> -> vector<8x128xf32>
      %240 = arith.addf %238, %239 : vector<8x128xf32>
      %c0_74 = arith.constant 0 : index
      %c0_75 = arith.constant 0 : index
      %241 = vector.load %arg15[%c0_74, %c0_75] : memref<8x128xf32, #tpu.memory_space<vmem>>, vector<8x128xf32>
      tpu.vector_store %arg15[%c0_74, %c0_75], %240 {strides = array<i32>} : memref<8x128xf32, #tpu.memory_space<vmem>>, vector<8x128xf32>,
      %c0_76 = arith.constant 0 : index
      %c0_77 = arith.constant 0 : index
      %242 = vector.load %arg13[%c0_76, %c0_77] : memref<8x128xf32, #tpu.memory_space<vmem>>, vector<8x128xf32>
      tpu.vector_store %arg13[%c0_76, %c0_77], %229 {strides = array<i32>} : memref<8x128xf32, #tpu.memory_space<vmem>>, vector<8x128xf32>,
    } else {
    }
    %c0_i32_3 = arith.constant 0 : i32
    %7 = arith.cmpi eq, %arg2, %c0_i32_3 : i32
    %8 = arith.extui %7 : i1 to i32
    %c0_i32_4 = arith.constant 0 : i32
    %9 = arith.cmpi ne, %8, %c0_i32_4 : i32
    scf.if %9 {
      %c0_5 = arith.constant 0 : index
      %c0_6 = arith.constant 0 : index
      %10 = vector.load %arg14[%c0_5, %c0_6] : memref<8x128xf32, #tpu.memory_space<vmem>>, vector<8x128xf32>
      %11 = tpu.reciprocal %10 {approx = true} : vector<8x128xf32> -> vector<8x128xf32>
      %c0_7 = arith.constant 0 : index
      %c0_8 = arith.constant 0 : index
      %12 = vector.load %arg15[%c0_7, %c0_8] : memref<8x128xf32, #tpu.memory_space<vmem>>, vector<8x128xf32>
      %13 = arith.mulf %12, %11 : vector<8x128xf32>
      %14 = arith.truncf %13 : vector<8x128xf32> to vector<8x128xbf16>
      %c0_9 = arith.constant 0 : index
      %c0_10 = arith.constant 0 : index
      %c0_11 = arith.constant 0 : index
      %15 = vector.load %arg11[%c0_9, %c0_10, %c0_11] : memref<1x8x128xbf16, #tpu.memory_space<vmem>>, vector<1x8x128xbf16>
      %16 = vector.shape_cast %15 : vector<1x8x128xbf16> to vector<8x128xbf16>
      %17 = vector.shape_cast %14 : vector<8x128xbf16> to vector<1x8x128xbf16>
      tpu.vector_store %arg11[%c0_9, %c0_10, %c0_11], %17 {strides = array<i32>} : memref<1x8x128xbf16, #tpu.memory_space<vmem>>, vector<1x8x128xbf16>,
    } else {
    }
    return
  }
  func.func @transform_0(%arg0: i32, %arg1: i32, %arg2: i32) -> (i32, i32, i32) {
    %c0_i32 = arith.constant 0 : i32
    %c0_i32_0 = arith.constant 0 : i32
    return %arg0, %arg1, %c0_i32 : i32, i32, i32
  }
  func.func @transform_1(%arg0: i32, %arg1: i32, %arg2: i32) -> (i32, i32, i32) {
    %0 = arith.minsi %arg1, %arg2 : i32
    %c1_i32 = arith.constant 1 : i32
    %c0_i32 = arith.constant 0 : i32
    return %arg0, %0, %c1_i32 : i32, i32, i32
  }
  func.func @transform_2(%arg0: i32, %arg1: i32, %arg2: i32) -> (i32, i32, i32) {
    %0 = arith.minsi %arg1, %arg2 : i32
    %c2_i32 = arith.constant 2 : i32
    %c0_i32 = arith.constant 0 : i32
    return %arg0, %0, %c2_i32 : i32, i32, i32
  }
  func.func @transform_3(%arg0: i32, %arg1: i32, %arg2: i32) -> (i32, i32) {
    %c0_i32 = arith.constant 0 : i32
    %c0_i32_0 = arith.constant 0 : i32
    return %arg1, %c0_i32 : i32, i32
  }
  func.func @transform_4(%arg0: i32, %arg1: i32, %arg2: i32) -> (i32, i32) {
    %c0_i32 = arith.constant 0 : i32
    %c0_i32_0 = arith.constant 0 : i32
    return %arg1, %c0_i32 : i32, i32
  }
  func.func @transform_5(%arg0: i32, %arg1: i32, %arg2: i32) -> (i32, i32) {
    %0 = arith.minsi %arg1, %arg2 : i32
    %c0_i32 = arith.constant 0 : i32
    %c0_i32_0 = arith.constant 0 : i32
    return %0, %c0_i32 : i32, i32
  }
  func.func @transform_6(%arg0: i32, %arg1: i32, %arg2: i32) -> (i32, i32) {
    %0 = arith.minsi %arg1, %arg2 : i32
    %c0_i32 = arith.constant 0 : i32
    %c0_i32_0 = arith.constant 0 : i32
    return %0, %c0_i32 : i32, i32
  }
  func.func @transform_7(%arg0: i32, %arg1: i32, %arg2: i32) -> (i32, i32) {
    %c0_i32 = arith.constant 0 : i32
    %c0_i32_0 = arith.constant 0 : i32
    %c0_i32_1 = arith.constant 0 : i32
    return %c0_i32, %c0_i32_0 : i32, i32
  }
  func.func @transform_8(%arg0: i32, %arg1: i32, %arg2: i32) -> (i32, i32, i32) {
    %c0_i32 = arith.constant 0 : i32
    %c0_i32_0 = arith.constant 0 : i32
    return %arg0, %arg1, %c0_i32 : i32, i32, i32
  }
}

module attributes {stable_mosaic.version = 11 : i64} {
  func.func @_ln_matmul_kernel(%arg0: i32, %arg1: i32, %arg2: memref<16x128xf32, #tpu.memory_space<vmem>>, %arg3: memref<1x128xf32, #tpu.memory_space<vmem>>, %arg4: memref<1x128xf32, #tpu.memory_space<vmem>>, %arg5: memref<128x256xbf16, #tpu.memory_space<vmem>>, %arg6: memref<1x256xf32, #tpu.memory_space<vmem>>, %arg7: memref<16x256xf32, #tpu.memory_space<vmem>>, %arg8: memref<16x128xbf16, #tpu.memory_space<vmem>>) attributes {dimension_semantics = [#tpu.dimension_semantics<parallel>, #tpu.dimension_semantics<arbitrary>], iteration_bounds = array<i64: 1, 1>, scalar_prefetch = 0 : i64, scratch_operands = 1 : i64, tpu.core_type = #tpu.core_type<tc>, window_params = [{transform_indices = @transform_0, window_bounds = array<i64: 16, 128>}, {pipeline_mode = #tpu.pipeline_mode<synchronous>, transform_indices = @transform_1, window_bounds = array<i64: 1, 128>}, {pipeline_mode = #tpu.pipeline_mode<synchronous>, transform_indices = @transform_2, window_bounds = array<i64: 1, 128>}, {transform_indices = @transform_3, window_bounds = array<i64: 128, 256>}, {transform_indices = @transform_4, window_bounds = array<i64: 1, 256>}, {transform_indices = @transform_5, window_bounds = array<i64: 16, 256>}]} {
    %c0_i32 = arith.constant 0 : i32
    %0 = arith.cmpi eq, %arg1, %c0_i32 : i32
    %1 = arith.extui %0 : i1 to i32
    %c0_i32_0 = arith.constant 0 : i32
    %2 = arith.cmpi ne, %1, %c0_i32_0 : i32
    scf.if %2 {
      %c0_8 = arith.constant 0 : index
      %c0_9 = arith.constant 0 : index
      %10 = vector.load %arg2[%c0_8, %c0_9] : memref<16x128xf32, #tpu.memory_space<vmem>>, vector<16x128xf32>
      %cst_10 = arith.constant dense<0.000000e+00> : vector<16xf32>
      %11 = vector.multi_reduction <add>, %10, %cst_10 [1] : vector<16x128xf32> to vector<16xf32>
      %12 = vector.shape_cast %11 : vector<16xf32> to vector<16x1xf32>
      %cst_11 = arith.constant 1.280000e+02 : f32
      %13 = vector.broadcast %cst_11 : f32 to vector<16x1xf32>
      %14 = arith.divf %12, %13 : vector<16x1xf32>
      %15 = vector.broadcast %14 : vector<16x1xf32> to vector<16x128xf32>
      %16 = arith.subf %10, %15 : vector<16x128xf32>
      %17 = arith.mulf %16, %16 : vector<16x128xf32>
      %cst_12 = arith.constant dense<0.000000e+00> : vector<16xf32>
      %18 = vector.multi_reduction <add>, %17, %cst_12 [1] : vector<16x128xf32> to vector<16xf32>
      %19 = vector.shape_cast %18 : vector<16xf32> to vector<16x1xf32>
      %cst_13 = arith.constant 1.280000e+02 : f32
      %20 = vector.broadcast %cst_13 : f32 to vector<16x1xf32>
      %21 = arith.divf %19, %20 : vector<16x1xf32>
      %22 = vector.broadcast %14 : vector<16x1xf32> to vector<16x128xf32>
      %23 = arith.subf %10, %22 : vector<16x128xf32>
      %cst_14 = arith.constant 9.99999974E-6 : f32
      %24 = vector.broadcast %cst_14 : f32 to vector<16x1xf32>
      %25 = arith.addf %21, %24 : vector<16x1xf32>
      %26 = math.rsqrt %25 : vector<16x1xf32>
      %27 = vector.broadcast %26 : vector<16x1xf32> to vector<16x128xf32>
      %28 = arith.mulf %23, %27 : vector<16x128xf32>
      %c0_15 = arith.constant 0 : index
      %c0_16 = arith.constant 0 : index
      %29 = vector.load %arg3[%c0_15, %c0_16] : memref<1x128xf32, #tpu.memory_space<vmem>>, vector<1x128xf32>
      %30 = vector.broadcast %29 : vector<1x128xf32> to vector<16x128xf32>
      %31 = arith.mulf %28, %30 : vector<16x128xf32>
      %c0_17 = arith.constant 0 : index
      %c0_18 = arith.constant 0 : index
      %32 = vector.load %arg4[%c0_17, %c0_18] : memref<1x128xf32, #tpu.memory_space<vmem>>, vector<1x128xf32>
      %33 = vector.broadcast %32 : vector<1x128xf32> to vector<16x128xf32>
      %34 = arith.addf %31, %33 : vector<16x128xf32>
      %35 = arith.truncf %34 : vector<16x128xf32> to vector<16x128xbf16>
      %c0_19 = arith.constant 0 : index
      %c0_20 = arith.constant 0 : index
      %36 = vector.load %arg8[%c0_19, %c0_20] : memref<16x128xbf16, #tpu.memory_space<vmem>>, vector<16x128xbf16>
      tpu.vector_store %arg8[%c0_19, %c0_20], %35 {strides = array<i32>} : memref<16x128xbf16, #tpu.memory_space<vmem>>, vector<16x128xbf16>,
    } else {
    }
    %c0 = arith.constant 0 : index
    %c0_1 = arith.constant 0 : index
    %3 = vector.load %arg8[%c0, %c0_1] : memref<16x128xbf16, #tpu.memory_space<vmem>>, vector<16x128xbf16>
    %c0_2 = arith.constant 0 : index
    %c0_3 = arith.constant 0 : index
    %4 = vector.load %arg5[%c0_2, %c0_3] : memref<128x256xbf16, #tpu.memory_space<vmem>>, vector<128x256xbf16>
    %cst = arith.constant dense<0.000000e+00> : vector<16x256xf32>
    %5 = tpu.matmul %3, %4, %cst {dimension_numbers = #tpu.dot_dimension_numbers<[1], [0], [0], [1], [0, 0, 1, 1], [], []>} : vector<16x128xbf16>, vector<128x256xbf16>, vector<16x256xf32> -> vector<16x256xf32>
    %c0_4 = arith.constant 0 : index
    %c0_5 = arith.constant 0 : index
    %6 = vector.load %arg6[%c0_4, %c0_5] : memref<1x256xf32, #tpu.memory_space<vmem>>, vector<1x256xf32>
    %7 = vector.broadcast %6 : vector<1x256xf32> to vector<16x256xf32>
    %8 = arith.addf %5, %7 : vector<16x256xf32>
    %c0_6 = arith.constant 0 : index
    %c0_7 = arith.constant 0 : index
    %9 = vector.load %arg7[%c0_6, %c0_7] : memref<16x256xf32, #tpu.memory_space<vmem>>, vector<16x256xf32>
    tpu.vector_store %arg7[%c0_6, %c0_7], %8 {strides = array<i32>} : memref<16x256xf32, #tpu.memory_space<vmem>>, vector<16x256xf32>,
    return
  }
  func.func @transform_0(%arg0: i32, %arg1: i32) -> (i32, i32) {
    %c0_i32 = arith.constant 0 : i32
    %c0_i32_0 = arith.constant 0 : i32
    return %arg0, %c0_i32 : i32, i32
  }
  func.func @transform_1(%arg0: i32, %arg1: i32) -> (i32, i32) {
    %c0_i32 = arith.constant 0 : i32
    %c0_i32_0 = arith.constant 0 : i32
    %c0_i32_1 = arith.constant 0 : i32
    return %c0_i32, %c0_i32_0 : i32, i32
  }
  func.func @transform_2(%arg0: i32, %arg1: i32) -> (i32, i32) {
    %c0_i32 = arith.constant 0 : i32
    %c0_i32_0 = arith.constant 0 : i32
    %c0_i32_1 = arith.constant 0 : i32
    return %c0_i32, %c0_i32_0 : i32, i32
  }
  func.func @transform_3(%arg0: i32, %arg1: i32) -> (i32, i32) {
    %c0_i32 = arith.constant 0 : i32
    %c0_i32_0 = arith.constant 0 : i32
    return %c0_i32, %arg1 : i32, i32
  }
  func.func @transform_4(%arg0: i32, %arg1: i32) -> (i32, i32) {
    %c0_i32 = arith.constant 0 : i32
    %c0_i32_0 = arith.constant 0 : i32
    return %c0_i32, %arg1 : i32, i32
  }
  func.func @transform_5(%arg0: i32, %arg1: i32) -> (i32, i32) {
    %c0_i32 = arith.constant 0 : i32
    return %arg0, %arg1 : i32, i32
  }
}

module attributes {stable_mosaic.version = 11 : i64} {
  func.func @_matmul_kernel(%arg0: i32, %arg1: i32, %arg2: i32, %arg3: memref<16x512xbf16, #tpu.memory_space<vmem>>, %arg4: memref<512x128xbf16, #tpu.memory_space<vmem>>, %arg5: memref<1x128xf32, #tpu.memory_space<vmem>>, %arg6: memref<16x128xf32, #tpu.memory_space<vmem>>, %arg7: memref<16x128xf32, #tpu.memory_space<vmem>>) attributes {dimension_semantics = [#tpu.dimension_semantics<parallel>, #tpu.dimension_semantics<parallel>, #tpu.dimension_semantics<arbitrary>], iteration_bounds = array<i64: 1, 1, 1>, scalar_prefetch = 0 : i64, scratch_operands = 1 : i64, tpu.core_type = #tpu.core_type<tc>, window_params = [{transform_indices = @transform_0, window_bounds = array<i64: 16, 512>}, {transform_indices = @transform_1, window_bounds = array<i64: 512, 128>}, {transform_indices = @transform_2, window_bounds = array<i64: 1, 128>}, {transform_indices = @transform_3, window_bounds = array<i64: 16, 128>}]} {
    %c0_i32 = arith.constant 0 : i32
    %0 = arith.cmpi eq, %arg2, %c0_i32 : i32
    %1 = arith.extui %0 : i1 to i32
    %c0_i32_0 = arith.constant 0 : i32
    %2 = arith.cmpi ne, %1, %c0_i32_0 : i32
    scf.if %2 {
      %cst_10 = arith.constant 0.000000e+00 : f32
      %12 = vector.broadcast %cst_10 : f32 to vector<16x128xf32>
      %c0_11 = arith.constant 0 : index
      %c0_12 = arith.constant 0 : index
      %13 = vector.load %arg7[%c0_11, %c0_12] : memref<16x128xf32, #tpu.memory_space<vmem>>, vector<16x128xf32>
      tpu.vector_store %arg7[%c0_11, %c0_12], %12 {strides = array<i32>} : memref<16x128xf32, #tpu.memory_space<vmem>>, vector<16x128xf32>,
    } else {
    }
    %c0 = arith.constant 0 : index
    %c0_1 = arith.constant 0 : index
    %3 = vector.load %arg7[%c0, %c0_1] : memref<16x128xf32, #tpu.memory_space<vmem>>, vector<16x128xf32>
    %c0_2 = arith.constant 0 : index
    %c0_3 = arith.constant 0 : index
    %4 = vector.load %arg3[%c0_2, %c0_3] : memref<16x512xbf16, #tpu.memory_space<vmem>>, vector<16x512xbf16>
    %c0_4 = arith.constant 0 : index
    %c0_5 = arith.constant 0 : index
    %5 = vector.load %arg4[%c0_4, %c0_5] : memref<512x128xbf16, #tpu.memory_space<vmem>>, vector<512x128xbf16>
    %cst = arith.constant dense<0.000000e+00> : vector<16x128xf32>
    %6 = tpu.matmul %4, %5, %cst {dimension_numbers = #tpu.dot_dimension_numbers<[1], [0], [0], [1], [0, 0, 1, 1], [], []>} : vector<16x512xbf16>, vector<512x128xbf16>, vector<16x128xf32> -> vector<16x128xf32>
    %7 = arith.addf %3, %6 : vector<16x128xf32>
    %c0_6 = arith.constant 0 : index
    %c0_7 = arith.constant 0 : index
    %8 = vector.load %arg7[%c0_6, %c0_7] : memref<16x128xf32, #tpu.memory_space<vmem>>, vector<16x128xf32>
    tpu.vector_store %arg7[%c0_6, %c0_7], %7 {strides = array<i32>} : memref<16x128xf32, #tpu.memory_space<vmem>>, vector<16x128xf32>,
    %c0_i32_8 = arith.constant 0 : i32
    %9 = arith.cmpi eq, %arg2, %c0_i32_8 : i32
    %10 = arith.extui %9 : i1 to i32
    %c0_i32_9 = arith.constant 0 : i32
    %11 = arith.cmpi ne, %10, %c0_i32_9 : i32
    scf.if %11 {
      %c0_10 = arith.constant 0 : index
      %c0_11 = arith.constant 0 : index
      %12 = vector.load %arg7[%c0_10, %c0_11] : memref<16x128xf32, #tpu.memory_space<vmem>>, vector<16x128xf32>
      %c0_12 = arith.constant 0 : index
      %c0_13 = arith.constant 0 : index
      %13 = vector.load %arg5[%c0_12, %c0_13] : memref<1x128xf32, #tpu.memory_space<vmem>>, vector<1x128xf32>
      %14 = vector.broadcast %13 : vector<1x128xf32> to vector<16x128xf32>
      %15 = arith.addf %12, %14 : vector<16x128xf32>
      %c0_14 = arith.constant 0 : index
      %c0_15 = arith.constant 0 : index
      %16 = vector.load %arg6[%c0_14, %c0_15] : memref<16x128xf32, #tpu.memory_space<vmem>>, vector<16x128xf32>
      tpu.vector_store %arg6[%c0_14, %c0_15], %15 {strides = array<i32>} : memref<16x128xf32, #tpu.memory_space<vmem>>, vector<16x128xf32>,
    } else {
    }
    return
  }
  func.func @transform_0(%arg0: i32, %arg1: i32, %arg2: i32) -> (i32, i32) {
    %c0_i32 = arith.constant 0 : i32
    return %arg0, %arg2 : i32, i32
  }
  func.func @transform_1(%arg0: i32, %arg1: i32, %arg2: i32) -> (i32, i32) {
    %c0_i32 = arith.constant 0 : i32
    return %arg2, %arg1 : i32, i32
  }
  func.func @transform_2(%arg0: i32, %arg1: i32, %arg2: i32) -> (i32, i32) {
    %c0_i32 = arith.constant 0 : i32
    %c0_i32_0 = arith.constant 0 : i32
    return %c0_i32, %arg1 : i32, i32
  }
  func.func @transform_3(%arg0: i32, %arg1: i32, %arg2: i32) -> (i32, i32) {
    %c0_i32 = arith.constant 0 : i32
    return %arg0, %arg1 : i32, i32
  }
}

module attributes {stable_mosaic.version = 11 : i64} {
  func.func @_flash_kernel(%arg0: i32, %arg1: i32, %arg2: i32, %arg3: memref<1x8x128xbf16, #tpu.memory_space<vmem>>, %arg4: memref<1x8x128xbf16, #tpu.memory_space<vmem>>, %arg5: memref<1x8x128xbf16, #tpu.memory_space<vmem>>, %arg6: memref<8x128xf32, #tpu.memory_space<vmem>>, %arg7: memref<8x128xf32, #tpu.memory_space<vmem>>, %arg8: memref<8x128xf32, #tpu.memory_space<vmem>>, %arg9: memref<8x128xf32, #tpu.memory_space<vmem>>, %arg10: memref<1x128xf32, #tpu.memory_space<vmem>>, %arg11: memref<1x8x128xbf16, #tpu.memory_space<vmem>>, %arg12: memref<8x128xbf16, #tpu.memory_space<vmem>>, %arg13: memref<8x128xf32, #tpu.memory_space<vmem>>, %arg14: memref<8x128xf32, #tpu.memory_space<vmem>>, %arg15: memref<8x128xf32, #tpu.memory_space<vmem>>) attributes {dimension_semantics = [#tpu.dimension_semantics<parallel>, #tpu.dimension_semantics<parallel>, #tpu.dimension_semantics<arbitrary>], iteration_bounds = array<i64: 2, 1, 1>, scalar_prefetch = 0 : i64, scratch_operands = 4 : i64, tpu.core_type = #tpu.core_type<tc>, window_params = [{transform_indices = @transform_0, window_bounds = array<i64: 1, 8, 128>}, {transform_indices = @transform_1, window_bounds = array<i64: 1, 8, 128>}, {transform_indices = @transform_2, window_bounds = array<i64: 1, 8, 128>}, {transform_indices = @transform_3, window_bounds = array<i64: 8, 128>}, {transform_indices = @transform_4, window_bounds = array<i64: 8, 128>}, {transform_indices = @transform_5, window_bounds = array<i64: 8, 128>}, {transform_indices = @transform_6, window_bounds = array<i64: 8, 128>}, {pipeline_mode = #tpu.pipeline_mode<synchronous>, transform_indices = @transform_7, window_bounds = array<i64: 1, 128>}, {transform_indices = @transform_8, window_bounds = array<i64: 1, 8, 128>}]} {
    %c0 = arith.constant 0 : index
    %c0_0 = arith.constant 0 : index
    %0 = vector.load %arg10[%c0, %c0_0] : memref<1x128xf32, #tpu.memory_space<vmem>>, vector<1x128xf32>
    %c0_i32 = arith.constant 0 : i32
    %1 = arith.cmpi eq, %arg2, %c0_i32 : i32
    %2 = arith.extui %1 : i1 to i32
    %c0_i32_1 = arith.constant 0 : i32
    %3 = arith.cmpi ne, %2, %c0_i32_1 : i32
    scf.if %3 {
      %c0_74 = arith.constant 0 : index
      %c0_75 = arith.constant 0 : index
      %c0_76 = arith.constant 0 : index
      %224 = vector.load %arg3[%c0_74, %c0_75, %c0_76] : memref<1x8x128xbf16, #tpu.memory_space<vmem>>, vector<1x8x128xbf16>
      %225 = vector.shape_cast %224 : vector<1x8x128xbf16> to vector<8x128xbf16>
      %226 = arith.extf %225 : vector<8x128xbf16> to vector<8x128xf32>
      %c0_77 = arith.constant 0 : index
      %c0_78 = arith.constant 0 : index
      %227 = vector.load %arg6[%c0_77, %c0_78] : memref<8x128xf32, #tpu.memory_space<vmem>>, vector<8x128xf32>
      %c0_79 = arith.constant 0 : index
      %c0_80 = arith.constant 0 : index
      %228 = vector.load %arg7[%c0_79, %c0_80] : memref<8x128xf32, #tpu.memory_space<vmem>>, vector<8x128xf32>
      %c127_i32_81 = arith.constant 127 : i32
      %229 = tpu.dynamic_rotate %226 by %c127_i32_81 dim 1 : vector<8x128xf32>, i32 -> vector<8x128xf32>
      %c1_i32_82 = arith.constant 1 : i32
      %230 = tpu.dynamic_rotate %226 by %c1_i32_82 dim 1 : vector<8x128xf32>, i32 -> vector<8x128xf32>
      %231 = tpu.iota {dimensions = array<i32: 1>} : vector<8x128xi32>
      %c2_i32_83 = arith.constant 2 : i32
      %c0_i32_84 = arith.constant 0 : i32
      %232 = arith.cmpi eq, %c2_i32_83, %c0_i32_84 : i32
      %c1_i32_85 = arith.constant 1 : i32
      %233 = arith.select %232, %c1_i32_85, %c2_i32_83 : i32
      %234 = vector.broadcast %233 : i32 to vector<8x128xi32>
      %235 = arith.remsi %231, %234 : vector<8x128xi32>
      %c0_i32_86 = arith.constant 0 : i32
      %236 = vector.broadcast %c0_i32_86 : i32 to vector<8x128xi32>
      %237 = arith.cmpi ne, %235, %236 : vector<8x128xi32>
      %c0_i32_87 = arith.constant 0 : i32
      %238 = vector.broadcast %c0_i32_87 : i32 to vector<8x128xi32>
      %239 = arith.cmpi slt, %235, %238 : vector<8x128xi32>
      %c0_i32_88 = arith.constant 0 : i32
      %240 = arith.cmpi slt, %233, %c0_i32_88 : i32
      %241 = vector.broadcast %240 : i1 to vector<8x128xi1>
      %242 = vector.broadcast %241 : vector<8x128xi1> to vector<8x128xi1>
      %243 = arith.xori %239, %242 : vector<8x128xi1>
      %244 = arith.andi %243, %237 : vector<8x128xi1>
      %245 = vector.broadcast %233 : i32 to vector<8x128xi32>
      %246 = arith.addi %235, %245 : vector<8x128xi32>
      %247 = arith.select %244, %246, %235 : vector<8x128xi1>, vector<8x128xi32>
      %c0_i32_89 = arith.constant 0 : i32
      %248 = vector.broadcast %c0_i32_89 : i32 to vector<8x128xi32>
      %249 = arith.cmpi eq, %247, %248 : vector<8x128xi32>
      %cst_90 = arith.constant 0.000000e+00 : f32
      %250 = vector.broadcast %cst_90 : f32 to vector<8x128xf32>
      %251 = arith.subf %250, %229 : vector<8x128xf32>
      %252 = arith.select %249, %251, %230 : vector<8x128xi1>, vector<8x128xf32>
      %253 = arith.mulf %226, %227 : vector<8x128xf32>
      %254 = arith.mulf %252, %228 : vector<8x128xf32>
      %255 = arith.addf %253, %254 : vector<8x128xf32>
      %256 = vector.extract_strided_slice %255 {offsets = [0, 0], sizes = [8, 32], strides = [1, 1]} : vector<8x128xf32> to vector<8x32xf32>
      %cst_91 = arith.constant dense<0.000000e+00> : vector<8xf32>
      %257 = vector.multi_reduction <add>, %256, %cst_91 [1] : vector<8x32xf32> to vector<8xf32>
      %258 = vector.shape_cast %257 : vector<8xf32> to vector<8x1xf32>
      %cst_92 = arith.constant 3.200000e+01 : f32
      %259 = vector.broadcast %cst_92 : f32 to vector<8x1xf32>
      %260 = arith.divf %258, %259 : vector<8x1xf32>
      %261 = vector.broadcast %260 : vector<8x1xf32> to vector<8x32xf32>
      %262 = arith.subf %256, %261 : vector<8x32xf32>
      %263 = arith.mulf %262, %262 : vector<8x32xf32>
      %cst_93 = arith.constant dense<0.000000e+00> : vector<8xf32>
      %264 = vector.multi_reduction <add>, %263, %cst_93 [1] : vector<8x32xf32> to vector<8xf32>
      %265 = vector.shape_cast %264 : vector<8xf32> to vector<8x1xf32>
      %cst_94 = arith.constant 3.200000e+01 : f32
      %266 = vector.broadcast %cst_94 : f32 to vector<8x1xf32>
      %267 = arith.divf %265, %266 : vector<8x1xf32>
      %268 = vector.shape_cast %260 : vector<8x1xf32> to vector<8x1xf32>
      %269 = vector.broadcast %268 : vector<8x1xf32> to vector<8x32xf32>
      %cst_95 = arith.constant 9.99999974E-6 : f32
      %270 = vector.broadcast %cst_95 : f32 to vector<8x1xf32>
      %271 = arith.addf %267, %270 : vector<8x1xf32>
      %272 = math.rsqrt %271 : vector<8x1xf32>
      %273 = vector.shape_cast %272 : vector<8x1xf32> to vector<8x1xf32>
      %274 = vector.broadcast %273 : vector<8x1xf32> to vector<8x32xf32>
      %275 = vector.extract_strided_slice %255 {offsets = [0, 32], sizes = [8, 32], strides = [1, 1]} : vector<8x128xf32> to vector<8x32xf32>
      %cst_96 = arith.constant dense<0.000000e+00> : vector<8xf32>
      %276 = vector.multi_reduction <add>, %275, %cst_96 [1] : vector<8x32xf32> to vector<8xf32>
      %277 = vector.shape_cast %276 : vector<8xf32> to vector<8x1xf32>
      %cst_97 = arith.constant 3.200000e+01 : f32
      %278 = vector.broadcast %cst_97 : f32 to vector<8x1xf32>
      %279 = arith.divf %277, %278 : vector<8x1xf32>
      %280 = vector.broadcast %279 : vector<8x1xf32> to vector<8x32xf32>
      %281 = arith.subf %275, %280 : vector<8x32xf32>
      %282 = arith.mulf %281, %281 : vector<8x32xf32>
      %cst_98 = arith.constant dense<0.000000e+00> : vector<8xf32>
      %283 = vector.multi_reduction <add>, %282, %cst_98 [1] : vector<8x32xf32> to vector<8xf32>
      %284 = vector.shape_cast %283 : vector<8xf32> to vector<8x1xf32>
      %cst_99 = arith.constant 3.200000e+01 : f32
      %285 = vector.broadcast %cst_99 : f32 to vector<8x1xf32>
      %286 = arith.divf %284, %285 : vector<8x1xf32>
      %287 = vector.shape_cast %279 : vector<8x1xf32> to vector<8x1xf32>
      %288 = vector.broadcast %287 : vector<8x1xf32> to vector<8x32xf32>
      %cst_100 = arith.constant 9.99999974E-6 : f32
      %289 = vector.broadcast %cst_100 : f32 to vector<8x1xf32>
      %290 = arith.addf %286, %289 : vector<8x1xf32>
      %291 = math.rsqrt %290 : vector<8x1xf32>
      %292 = vector.shape_cast %291 : vector<8x1xf32> to vector<8x1xf32>
      %293 = vector.broadcast %292 : vector<8x1xf32> to vector<8x32xf32>
      %294 = vector.extract_strided_slice %255 {offsets = [0, 64], sizes = [8, 32], strides = [1, 1]} : vector<8x128xf32> to vector<8x32xf32>
      %cst_101 = arith.constant dense<0.000000e+00> : vector<8xf32>
      %295 = vector.multi_reduction <add>, %294, %cst_101 [1] : vector<8x32xf32> to vector<8xf32>
      %296 = vector.shape_cast %295 : vector<8xf32> to vector<8x1xf32>
      %cst_102 = arith.constant 3.200000e+01 : f32
      %297 = vector.broadcast %cst_102 : f32 to vector<8x1xf32>
      %298 = arith.divf %296, %297 : vector<8x1xf32>
      %299 = vector.broadcast %298 : vector<8x1xf32> to vector<8x32xf32>
      %300 = arith.subf %294, %299 : vector<8x32xf32>
      %301 = arith.mulf %300, %300 : vector<8x32xf32>
      %cst_103 = arith.constant dense<0.000000e+00> : vector<8xf32>
      %302 = vector.multi_reduction <add>, %301, %cst_103 [1] : vector<8x32xf32> to vector<8xf32>
      %303 = vector.shape_cast %302 : vector<8xf32> to vector<8x1xf32>
      %cst_104 = arith.constant 3.200000e+01 : f32
      %304 = vector.broadcast %cst_104 : f32 to vector<8x1xf32>
      %305 = arith.divf %303, %304 : vector<8x1xf32>
      %306 = vector.shape_cast %298 : vector<8x1xf32> to vector<8x1xf32>
      %307 = vector.broadcast %306 : vector<8x1xf32> to vector<8x32xf32>
      %cst_105 = arith.constant 9.99999974E-6 : f32
      %308 = vector.broadcast %cst_105 : f32 to vector<8x1xf32>
      %309 = arith.addf %305, %308 : vector<8x1xf32>
      %310 = math.rsqrt %309 : vector<8x1xf32>
      %311 = vector.shape_cast %310 : vector<8x1xf32> to vector<8x1xf32>
      %312 = vector.broadcast %311 : vector<8x1xf32> to vector<8x32xf32>
      %313 = vector.extract_strided_slice %255 {offsets = [0, 96], sizes = [8, 32], strides = [1, 1]} : vector<8x128xf32> to vector<8x32xf32>
      %cst_106 = arith.constant dense<0.000000e+00> : vector<8xf32>
      %314 = vector.multi_reduction <add>, %313, %cst_106 [1] : vector<8x32xf32> to vector<8xf32>
      %315 = vector.shape_cast %314 : vector<8xf32> to vector<8x1xf32>
      %cst_107 = arith.constant 3.200000e+01 : f32
      %316 = vector.broadcast %cst_107 : f32 to vector<8x1xf32>
      %317 = arith.divf %315, %316 : vector<8x1xf32>
      %318 = vector.broadcast %317 : vector<8x1xf32> to vector<8x32xf32>
      %319 = arith.subf %313, %318 : vector<8x32xf32>
      %320 = arith.mulf %319, %319 : vector<8x32xf32>
      %cst_108 = arith.constant dense<0.000000e+00> : vector<8xf32>
      %321 = vector.multi_reduction <add>, %320, %cst_108 [1] : vector<8x32xf32> to vector<8xf32>
      %322 = vector.shape_cast %321 : vector<8xf32> to vector<8x1xf32>
      %cst_109 = arith.constant 3.200000e+01 : f32
      %323 = vector.broadcast %cst_109 : f32 to vector<8x1xf32>
      %324 = arith.divf %322, %323 : vector<8x1xf32>
      %325 = vector.shape_cast %317 : vector<8x1xf32> to vector<8x1xf32>
      %326 = vector.broadcast %325 : vector<8x1xf32> to vector<8x32xf32>
      %cst_110 = arith.constant 9.99999974E-6 : f32
      %327 = vector.broadcast %cst_110 : f32 to vector<8x1xf32>
      %328 = arith.addf %324, %327 : vector<8x1xf32>
      %329 = math.rsqrt %328 : vector<8x1xf32>
      %330 = vector.shape_cast %329 : vector<8x1xf32> to vector<8x1xf32>
      %331 = vector.broadcast %330 : vector<8x1xf32> to vector<8x32xf32>
      %332 = tpu.concatenate %269, %288, %307, %326 in 1 : vector<8x32xf32>, vector<8x32xf32>, vector<8x32xf32>, vector<8x32xf32> -> vector<8x128xf32>
      %333 = tpu.concatenate %274, %293, %312, %331 in 1 : vector<8x32xf32>, vector<8x32xf32>, vector<8x32xf32>, vector<8x32xf32> -> vector<8x128xf32>
      %334 = arith.subf %255, %332 : vector<8x128xf32>
      %335 = arith.mulf %334, %333 : vector<8x128xf32>
      %336 = vector.broadcast %0 : vector<1x128xf32> to vector<8x128xf32>
      %337 = arith.mulf %335, %336 : vector<8x128xf32>
      %338 = arith.truncf %337 : vector<8x128xf32> to vector<8x128xbf16>
      %c0_111 = arith.constant 0 : index
      %c0_112 = arith.constant 0 : index
      %339 = vector.load %arg12[%c0_111, %c0_112] : memref<8x128xbf16, #tpu.memory_space<vmem>>, vector<8x128xbf16>
      tpu.vector_store %arg12[%c0_111, %c0_112], %338 {strides = array<i32>} : memref<8x128xbf16, #tpu.memory_space<vmem>>, vector<8x128xbf16>,
      %cst_113 = arith.constant -1.000000e+30 : f32
      %340 = vector.broadcast %cst_113 : f32 to vector<8x128xf32>
      %c0_114 = arith.constant 0 : index
      %c0_115 = arith.constant 0 : index
      %341 = vector.load %arg13[%c0_114, %c0_115] : memref<8x128xf32, #tpu.memory_space<vmem>>, vector<8x128xf32>
      tpu.vector_store %arg13[%c0_114, %c0_115], %340 {strides = array<i32>} : memref<8x128xf32, #tpu.memory_space<vmem>>, vector<8x128xf32>,
      %cst_116 = arith.constant 0.000000e+00 : f32
      %342 = vector.broadcast %cst_116 : f32 to vector<8x128xf32>
      %c0_117 = arith.constant 0 : index
      %c0_118 = arith.constant 0 : index
      %343 = vector.load %arg14[%c0_117, %c0_118] : memref<8x128xf32, #tpu.memory_space<vmem>>, vector<8x128xf32>
      tpu.vector_store %arg14[%c0_117, %c0_118], %342 {strides = array<i32>} : memref<8x128xf32, #tpu.memory_space<vmem>>, vector<8x128xf32>,
      %cst_119 = arith.constant 0.000000e+00 : f32
      %344 = vector.broadcast %cst_119 : f32 to vector<8x128xf32>
      %c0_120 = arith.constant 0 : index
      %c0_121 = arith.constant 0 : index
      %345 = vector.load %arg15[%c0_120, %c0_121] : memref<8x128xf32, #tpu.memory_space<vmem>>, vector<8x128xf32>
      tpu.vector_store %arg15[%c0_120, %c0_121], %344 {strides = array<i32>} : memref<8x128xf32, #tpu.memory_space<vmem>>, vector<8x128xf32>,
    } else {
    }
    %c0_2 = arith.constant 0 : index
    %c0_3 = arith.constant 0 : index
    %c0_4 = arith.constant 0 : index
    %4 = vector.load %arg4[%c0_2, %c0_3, %c0_4] : memref<1x8x128xbf16, #tpu.memory_space<vmem>>, vector<1x8x128xbf16>
    %5 = vector.shape_cast %4 : vector<1x8x128xbf16> to vector<8x128xbf16>
    %6 = arith.extf %5 : vector<8x128xbf16> to vector<8x128xf32>
    %c0_5 = arith.constant 0 : index
    %c0_6 = arith.constant 0 : index
    %7 = vector.load %arg8[%c0_5, %c0_6] : memref<8x128xf32, #tpu.memory_space<vmem>>, vector<8x128xf32>
    %c0_7 = arith.constant 0 : index
    %c0_8 = arith.constant 0 : index
    %8 = vector.load %arg9[%c0_7, %c0_8] : memref<8x128xf32, #tpu.memory_space<vmem>>, vector<8x128xf32>
    %c127_i32 = arith.constant 127 : i32
    %9 = tpu.dynamic_rotate %6 by %c127_i32 dim 1 : vector<8x128xf32>, i32 -> vector<8x128xf32>
    %c1_i32 = arith.constant 1 : i32
    %10 = tpu.dynamic_rotate %6 by %c1_i32 dim 1 : vector<8x128xf32>, i32 -> vector<8x128xf32>
    %11 = tpu.iota {dimensions = array<i32: 1>} : vector<8x128xi32>
    %c2_i32 = arith.constant 2 : i32
    %c0_i32_9 = arith.constant 0 : i32
    %12 = arith.cmpi eq, %c2_i32, %c0_i32_9 : i32
    %c1_i32_10 = arith.constant 1 : i32
    %13 = arith.select %12, %c1_i32_10, %c2_i32 : i32
    %14 = vector.broadcast %13 : i32 to vector<8x128xi32>
    %15 = arith.remsi %11, %14 : vector<8x128xi32>
    %c0_i32_11 = arith.constant 0 : i32
    %16 = vector.broadcast %c0_i32_11 : i32 to vector<8x128xi32>
    %17 = arith.cmpi ne, %15, %16 : vector<8x128xi32>
    %c0_i32_12 = arith.constant 0 : i32
    %18 = vector.broadcast %c0_i32_12 : i32 to vector<8x128xi32>
    %19 = arith.cmpi slt, %15, %18 : vector<8x128xi32>
    %c0_i32_13 = arith.constant 0 : i32
    %20 = arith.cmpi slt, %13, %c0_i32_13 : i32
    %21 = vector.broadcast %20 : i1 to vector<8x128xi1>
    %22 = vector.broadcast %21 : vector<8x128xi1> to vector<8x128xi1>
    %23 = arith.xori %19, %22 : vector<8x128xi1>
    %24 = arith.andi %23, %17 : vector<8x128xi1>
    %25 = vector.broadcast %13 : i32 to vector<8x128xi32>
    %26 = arith.addi %15, %25 : vector<8x128xi32>
    %27 = arith.select %24, %26, %15 : vector<8x128xi1>, vector<8x128xi32>
    %c0_i32_14 = arith.constant 0 : i32
    %28 = vector.broadcast %c0_i32_14 : i32 to vector<8x128xi32>
    %29 = arith.cmpi eq, %27, %28 : vector<8x128xi32>
    %cst = arith.constant 0.000000e+00 : f32
    %30 = vector.broadcast %cst : f32 to vector<8x128xf32>
    %31 = arith.subf %30, %9 : vector<8x128xf32>
    %32 = arith.select %29, %31, %10 : vector<8x128xi1>, vector<8x128xf32>
    %33 = arith.mulf %6, %7 : vector<8x128xf32>
    %34 = arith.mulf %32, %8 : vector<8x128xf32>
    %35 = arith.addf %33, %34 : vector<8x128xf32>
    %36 = vector.extract_strided_slice %35 {offsets = [0, 0], sizes = [8, 32], strides = [1, 1]} : vector<8x128xf32> to vector<8x32xf32>
    %cst_15 = arith.constant dense<0.000000e+00> : vector<8xf32>
    %37 = vector.multi_reduction <add>, %36, %cst_15 [1] : vector<8x32xf32> to vector<8xf32>
    %38 = vector.shape_cast %37 : vector<8xf32> to vector<8x1xf32>
    %cst_16 = arith.constant 3.200000e+01 : f32
    %39 = vector.broadcast %cst_16 : f32 to vector<8x1xf32>
    %40 = arith.divf %38, %39 : vector<8x1xf32>
    %41 = vector.broadcast %40 : vector<8x1xf32> to vector<8x32xf32>
    %42 = arith.subf %36, %41 : vector<8x32xf32>
    %43 = arith.mulf %42, %42 : vector<8x32xf32>
    %cst_17 = arith.constant dense<0.000000e+00> : vector<8xf32>
    %44 = vector.multi_reduction <add>, %43, %cst_17 [1] : vector<8x32xf32> to vector<8xf32>
    %45 = vector.shape_cast %44 : vector<8xf32> to vector<8x1xf32>
    %cst_18 = arith.constant 3.200000e+01 : f32
    %46 = vector.broadcast %cst_18 : f32 to vector<8x1xf32>
    %47 = arith.divf %45, %46 : vector<8x1xf32>
    %48 = vector.shape_cast %40 : vector<8x1xf32> to vector<8x1xf32>
    %49 = vector.broadcast %48 : vector<8x1xf32> to vector<8x32xf32>
    %cst_19 = arith.constant 9.99999974E-6 : f32
    %50 = vector.broadcast %cst_19 : f32 to vector<8x1xf32>
    %51 = arith.addf %47, %50 : vector<8x1xf32>
    %52 = math.rsqrt %51 : vector<8x1xf32>
    %53 = vector.shape_cast %52 : vector<8x1xf32> to vector<8x1xf32>
    %54 = vector.broadcast %53 : vector<8x1xf32> to vector<8x32xf32>
    %55 = vector.extract_strided_slice %35 {offsets = [0, 32], sizes = [8, 32], strides = [1, 1]} : vector<8x128xf32> to vector<8x32xf32>
    %cst_20 = arith.constant dense<0.000000e+00> : vector<8xf32>
    %56 = vector.multi_reduction <add>, %55, %cst_20 [1] : vector<8x32xf32> to vector<8xf32>
    %57 = vector.shape_cast %56 : vector<8xf32> to vector<8x1xf32>
    %cst_21 = arith.constant 3.200000e+01 : f32
    %58 = vector.broadcast %cst_21 : f32 to vector<8x1xf32>
    %59 = arith.divf %57, %58 : vector<8x1xf32>
    %60 = vector.broadcast %59 : vector<8x1xf32> to vector<8x32xf32>
    %61 = arith.subf %55, %60 : vector<8x32xf32>
    %62 = arith.mulf %61, %61 : vector<8x32xf32>
    %cst_22 = arith.constant dense<0.000000e+00> : vector<8xf32>
    %63 = vector.multi_reduction <add>, %62, %cst_22 [1] : vector<8x32xf32> to vector<8xf32>
    %64 = vector.shape_cast %63 : vector<8xf32> to vector<8x1xf32>
    %cst_23 = arith.constant 3.200000e+01 : f32
    %65 = vector.broadcast %cst_23 : f32 to vector<8x1xf32>
    %66 = arith.divf %64, %65 : vector<8x1xf32>
    %67 = vector.shape_cast %59 : vector<8x1xf32> to vector<8x1xf32>
    %68 = vector.broadcast %67 : vector<8x1xf32> to vector<8x32xf32>
    %cst_24 = arith.constant 9.99999974E-6 : f32
    %69 = vector.broadcast %cst_24 : f32 to vector<8x1xf32>
    %70 = arith.addf %66, %69 : vector<8x1xf32>
    %71 = math.rsqrt %70 : vector<8x1xf32>
    %72 = vector.shape_cast %71 : vector<8x1xf32> to vector<8x1xf32>
    %73 = vector.broadcast %72 : vector<8x1xf32> to vector<8x32xf32>
    %74 = vector.extract_strided_slice %35 {offsets = [0, 64], sizes = [8, 32], strides = [1, 1]} : vector<8x128xf32> to vector<8x32xf32>
    %cst_25 = arith.constant dense<0.000000e+00> : vector<8xf32>
    %75 = vector.multi_reduction <add>, %74, %cst_25 [1] : vector<8x32xf32> to vector<8xf32>
    %76 = vector.shape_cast %75 : vector<8xf32> to vector<8x1xf32>
    %cst_26 = arith.constant 3.200000e+01 : f32
    %77 = vector.broadcast %cst_26 : f32 to vector<8x1xf32>
    %78 = arith.divf %76, %77 : vector<8x1xf32>
    %79 = vector.broadcast %78 : vector<8x1xf32> to vector<8x32xf32>
    %80 = arith.subf %74, %79 : vector<8x32xf32>
    %81 = arith.mulf %80, %80 : vector<8x32xf32>
    %cst_27 = arith.constant dense<0.000000e+00> : vector<8xf32>
    %82 = vector.multi_reduction <add>, %81, %cst_27 [1] : vector<8x32xf32> to vector<8xf32>
    %83 = vector.shape_cast %82 : vector<8xf32> to vector<8x1xf32>
    %cst_28 = arith.constant 3.200000e+01 : f32
    %84 = vector.broadcast %cst_28 : f32 to vector<8x1xf32>
    %85 = arith.divf %83, %84 : vector<8x1xf32>
    %86 = vector.shape_cast %78 : vector<8x1xf32> to vector<8x1xf32>
    %87 = vector.broadcast %86 : vector<8x1xf32> to vector<8x32xf32>
    %cst_29 = arith.constant 9.99999974E-6 : f32
    %88 = vector.broadcast %cst_29 : f32 to vector<8x1xf32>
    %89 = arith.addf %85, %88 : vector<8x1xf32>
    %90 = math.rsqrt %89 : vector<8x1xf32>
    %91 = vector.shape_cast %90 : vector<8x1xf32> to vector<8x1xf32>
    %92 = vector.broadcast %91 : vector<8x1xf32> to vector<8x32xf32>
    %93 = vector.extract_strided_slice %35 {offsets = [0, 96], sizes = [8, 32], strides = [1, 1]} : vector<8x128xf32> to vector<8x32xf32>
    %cst_30 = arith.constant dense<0.000000e+00> : vector<8xf32>
    %94 = vector.multi_reduction <add>, %93, %cst_30 [1] : vector<8x32xf32> to vector<8xf32>
    %95 = vector.shape_cast %94 : vector<8xf32> to vector<8x1xf32>
    %cst_31 = arith.constant 3.200000e+01 : f32
    %96 = vector.broadcast %cst_31 : f32 to vector<8x1xf32>
    %97 = arith.divf %95, %96 : vector<8x1xf32>
    %98 = vector.broadcast %97 : vector<8x1xf32> to vector<8x32xf32>
    %99 = arith.subf %93, %98 : vector<8x32xf32>
    %100 = arith.mulf %99, %99 : vector<8x32xf32>
    %cst_32 = arith.constant dense<0.000000e+00> : vector<8xf32>
    %101 = vector.multi_reduction <add>, %100, %cst_32 [1] : vector<8x32xf32> to vector<8xf32>
    %102 = vector.shape_cast %101 : vector<8xf32> to vector<8x1xf32>
    %cst_33 = arith.constant 3.200000e+01 : f32
    %103 = vector.broadcast %cst_33 : f32 to vector<8x1xf32>
    %104 = arith.divf %102, %103 : vector<8x1xf32>
    %105 = vector.shape_cast %97 : vector<8x1xf32> to vector<8x1xf32>
    %106 = vector.broadcast %105 : vector<8x1xf32> to vector<8x32xf32>
    %cst_34 = arith.constant 9.99999974E-6 : f32
    %107 = vector.broadcast %cst_34 : f32 to vector<8x1xf32>
    %108 = arith.addf %104, %107 : vector<8x1xf32>
    %109 = math.rsqrt %108 : vector<8x1xf32>
    %110 = vector.shape_cast %109 : vector<8x1xf32> to vector<8x1xf32>
    %111 = vector.broadcast %110 : vector<8x1xf32> to vector<8x32xf32>
    %112 = tpu.concatenate %49, %68, %87, %106 in 1 : vector<8x32xf32>, vector<8x32xf32>, vector<8x32xf32>, vector<8x32xf32> -> vector<8x128xf32>
    %113 = tpu.concatenate %54, %73, %92, %111 in 1 : vector<8x32xf32>, vector<8x32xf32>, vector<8x32xf32>, vector<8x32xf32> -> vector<8x128xf32>
    %114 = arith.subf %35, %112 : vector<8x128xf32>
    %115 = arith.mulf %114, %113 : vector<8x128xf32>
    %116 = vector.broadcast %0 : vector<1x128xf32> to vector<8x128xf32>
    %117 = arith.mulf %115, %116 : vector<8x128xf32>
    %118 = arith.truncf %117 : vector<8x128xf32> to vector<8x128xbf16>
    %c0_35 = arith.constant 0 : index
    %c0_36 = arith.constant 0 : index
    %c0_37 = arith.constant 0 : index
    %119 = vector.load %arg5[%c0_35, %c0_36, %c0_37] : memref<1x8x128xbf16, #tpu.memory_space<vmem>>, vector<1x8x128xbf16>
    %120 = vector.shape_cast %119 : vector<1x8x128xbf16> to vector<8x128xbf16>
    %c0_38 = arith.constant 0 : index
    %c0_39 = arith.constant 0 : index
    %121 = vector.load %arg12[%c0_38, %c0_39] : memref<8x128xbf16, #tpu.memory_space<vmem>>, vector<8x128xbf16>
    %c0_40 = arith.constant 0 : index
    %c0_41 = arith.constant 0 : index
    %122 = vector.load %arg13[%c0_40, %c0_41] : memref<8x128xf32, #tpu.memory_space<vmem>>, vector<8x128xf32>
    %123 = vector.extract_strided_slice %121 {offsets = [0, 0], sizes = [8, 32], strides = [1, 1]} : vector<8x128xbf16> to vector<8x32xbf16>
    %124 = vector.extract_strided_slice %118 {offsets = [0, 0], sizes = [8, 32], strides = [1, 1]} : vector<8x128xbf16> to vector<8x32xbf16>
    %cst_42 = arith.constant dense<0.000000e+00> : vector<8x8xf32>
    %125 = tpu.matmul %123, %124, %cst_42 {dimension_numbers = #tpu.dot_dimension_numbers<[1], [1], [0], [0], [0, 0, 1, 0], [], []>} : vector<8x32xbf16>, vector<8x32xbf16>, vector<8x8xf32> -> vector<8x8xf32>
    %cst_43 = arith.constant 0.176776692 : f32
    %126 = vector.broadcast %cst_43 : f32 to vector<8x8xf32>
    %127 = arith.mulf %125, %126 : vector<8x8xf32>
    %128 = vector.extract_strided_slice %122 {offsets = [0, 0], sizes = [8, 1], strides = [1, 1]} : vector<8x128xf32> to vector<8x1xf32>
    %cst_44 = arith.constant dense<0xFF800000> : vector<8xf32>
    %129 = vector.multi_reduction <maximumf>, %127, %cst_44 [1] : vector<8x8xf32> to vector<8xf32>
    %130 = vector.shape_cast %129 : vector<8xf32> to vector<8x1xf32>
    %131 = arith.maximumf %128, %130 : vector<8x1xf32>
    %132 = vector.broadcast %131 : vector<8x1xf32> to vector<8x8xf32>
    %133 = arith.subf %127, %132 : vector<8x8xf32>
    %134 = math.exp %133 : vector<8x8xf32>
    %cst_45 = arith.constant dense<0.000000e+00> : vector<8xf32>
    %135 = vector.multi_reduction <add>, %134, %cst_45 [1] : vector<8x8xf32> to vector<8xf32>
    %136 = vector.shape_cast %135 : vector<8xf32> to vector<8x1xf32>
    %137 = arith.truncf %134 : vector<8x8xf32> to vector<8x8xbf16>
    %138 = vector.extract_strided_slice %120 {offsets = [0, 0], sizes = [8, 32], strides = [1, 1]} : vector<8x128xbf16> to vector<8x32xbf16>
    %cst_46 = arith.constant dense<0.000000e+00> : vector<8x32xf32>
    %139 = tpu.matmul %137, %138, %cst_46 {dimension_numbers = #tpu.dot_dimension_numbers<[1], [0], [0], [1], [0, 0, 1, 1], [], []>} : vector<8x8xbf16>, vector<8x32xbf16>, vector<8x32xf32> -> vector<8x32xf32>
    %140 = vector.shape_cast %131 : vector<8x1xf32> to vector<8x1xf32>
    %141 = vector.broadcast %140 : vector<8x1xf32> to vector<8x32xf32>
    %142 = vector.shape_cast %136 : vector<8x1xf32> to vector<8x1xf32>
    %143 = vector.broadcast %142 : vector<8x1xf32> to vector<8x32xf32>
    %144 = vector.extract_strided_slice %121 {offsets = [0, 32], sizes = [8, 32], strides = [1, 1]} : vector<8x128xbf16> to vector<8x32xbf16>
    %145 = vector.extract_strided_slice %118 {offsets = [0, 32], sizes = [8, 32], strides = [1, 1]} : vector<8x128xbf16> to vector<8x32xbf16>
    %cst_47 = arith.constant dense<0.000000e+00> : vector<8x8xf32>
    %146 = tpu.matmul %144, %145, %cst_47 {dimension_numbers = #tpu.dot_dimension_numbers<[1], [1], [0], [0], [0, 0, 1, 0], [], []>} : vector<8x32xbf16>, vector<8x32xbf16>, vector<8x8xf32> -> vector<8x8xf32>
    %cst_48 = arith.constant 0.176776692 : f32
    %147 = vector.broadcast %cst_48 : f32 to vector<8x8xf32>
    %148 = arith.mulf %146, %147 : vector<8x8xf32>
    %149 = vector.extract_strided_slice %122 {offsets = [0, 32], sizes = [8, 1], strides = [1, 1]} : vector<8x128xf32> to vector<8x1xf32>
    %cst_49 = arith.constant dense<0xFF800000> : vector<8xf32>
    %150 = vector.multi_reduction <maximumf>, %148, %cst_49 [1] : vector<8x8xf32> to vector<8xf32>
    %151 = vector.shape_cast %150 : vector<8xf32> to vector<8x1xf32>
    %152 = arith.maximumf %149, %151 : vector<8x1xf32>
    %153 = vector.broadcast %152 : vector<8x1xf32> to vector<8x8xf32>
    %154 = arith.subf %148, %153 : vector<8x8xf32>
    %155 = math.exp %154 : vector<8x8xf32>
    %cst_50 = arith.constant dense<0.000000e+00> : vector<8xf32>
    %156 = vector.multi_reduction <add>, %155, %cst_50 [1] : vector<8x8xf32> to vector<8xf32>
    %157 = vector.shape_cast %156 : vector<8xf32> to vector<8x1xf32>
    %158 = arith.truncf %155 : vector<8x8xf32> to vector<8x8xbf16>
    %159 = vector.extract_strided_slice %120 {offsets = [0, 32], sizes = [8, 32], strides = [1, 1]} : vector<8x128xbf16> to vector<8x32xbf16>
    %cst_51 = arith.constant dense<0.000000e+00> : vector<8x32xf32>
    %160 = tpu.matmul %158, %159, %cst_51 {dimension_numbers = #tpu.dot_dimension_numbers<[1], [0], [0], [1], [0, 0, 1, 1], [], []>} : vector<8x8xbf16>, vector<8x32xbf16>, vector<8x32xf32> -> vector<8x32xf32>
    %161 = vector.shape_cast %152 : vector<8x1xf32> to vector<8x1xf32>
    %162 = vector.broadcast %161 : vector<8x1xf32> to vector<8x32xf32>
    %163 = vector.shape_cast %157 : vector<8x1xf32> to vector<8x1xf32>
    %164 = vector.broadcast %163 : vector<8x1xf32> to vector<8x32xf32>
    %165 = vector.extract_strided_slice %121 {offsets = [0, 64], sizes = [8, 32], strides = [1, 1]} : vector<8x128xbf16> to vector<8x32xbf16>
    %166 = vector.extract_strided_slice %118 {offsets = [0, 64], sizes = [8, 32], strides = [1, 1]} : vector<8x128xbf16> to vector<8x32xbf16>
    %cst_52 = arith.constant dense<0.000000e+00> : vector<8x8xf32>
    %167 = tpu.matmul %165, %166, %cst_52 {dimension_numbers = #tpu.dot_dimension_numbers<[1], [1], [0], [0], [0, 0, 1, 0], [], []>} : vector<8x32xbf16>, vector<8x32xbf16>, vector<8x8xf32> -> vector<8x8xf32>
    %cst_53 = arith.constant 0.176776692 : f32
    %168 = vector.broadcast %cst_53 : f32 to vector<8x8xf32>
    %169 = arith.mulf %167, %168 : vector<8x8xf32>
    %170 = vector.extract_strided_slice %122 {offsets = [0, 64], sizes = [8, 1], strides = [1, 1]} : vector<8x128xf32> to vector<8x1xf32>
    %cst_54 = arith.constant dense<0xFF800000> : vector<8xf32>
    %171 = vector.multi_reduction <maximumf>, %169, %cst_54 [1] : vector<8x8xf32> to vector<8xf32>
    %172 = vector.shape_cast %171 : vector<8xf32> to vector<8x1xf32>
    %173 = arith.maximumf %170, %172 : vector<8x1xf32>
    %174 = vector.broadcast %173 : vector<8x1xf32> to vector<8x8xf32>
    %175 = arith.subf %169, %174 : vector<8x8xf32>
    %176 = math.exp %175 : vector<8x8xf32>
    %cst_55 = arith.constant dense<0.000000e+00> : vector<8xf32>
    %177 = vector.multi_reduction <add>, %176, %cst_55 [1] : vector<8x8xf32> to vector<8xf32>
    %178 = vector.shape_cast %177 : vector<8xf32> to vector<8x1xf32>
    %179 = arith.truncf %176 : vector<8x8xf32> to vector<8x8xbf16>
    %180 = vector.extract_strided_slice %120 {offsets = [0, 64], sizes = [8, 32], strides = [1, 1]} : vector<8x128xbf16> to vector<8x32xbf16>
    %cst_56 = arith.constant dense<0.000000e+00> : vector<8x32xf32>
    %181 = tpu.matmul %179, %180, %cst_56 {dimension_numbers = #tpu.dot_dimension_numbers<[1], [0], [0], [1], [0, 0, 1, 1], [], []>} : vector<8x8xbf16>, vector<8x32xbf16>, vector<8x32xf32> -> vector<8x32xf32>
    %182 = vector.shape_cast %173 : vector<8x1xf32> to vector<8x1xf32>
    %183 = vector.broadcast %182 : vector<8x1xf32> to vector<8x32xf32>
    %184 = vector.shape_cast %178 : vector<8x1xf32> to vector<8x1xf32>
    %185 = vector.broadcast %184 : vector<8x1xf32> to vector<8x32xf32>
    %186 = vector.extract_strided_slice %121 {offsets = [0, 96], sizes = [8, 32], strides = [1, 1]} : vector<8x128xbf16> to vector<8x32xbf16>
    %187 = vector.extract_strided_slice %118 {offsets = [0, 96], sizes = [8, 32], strides = [1, 1]} : vector<8x128xbf16> to vector<8x32xbf16>
    %cst_57 = arith.constant dense<0.000000e+00> : vector<8x8xf32>
    %188 = tpu.matmul %186, %187, %cst_57 {dimension_numbers = #tpu.dot_dimension_numbers<[1], [1], [0], [0], [0, 0, 1, 0], [], []>} : vector<8x32xbf16>, vector<8x32xbf16>, vector<8x8xf32> -> vector<8x8xf32>
    %cst_58 = arith.constant 0.176776692 : f32
    %189 = vector.broadcast %cst_58 : f32 to vector<8x8xf32>
    %190 = arith.mulf %188, %189 : vector<8x8xf32>
    %191 = vector.extract_strided_slice %122 {offsets = [0, 96], sizes = [8, 1], strides = [1, 1]} : vector<8x128xf32> to vector<8x1xf32>
    %cst_59 = arith.constant dense<0xFF800000> : vector<8xf32>
    %192 = vector.multi_reduction <maximumf>, %190, %cst_59 [1] : vector<8x8xf32> to vector<8xf32>
    %193 = vector.shape_cast %192 : vector<8xf32> to vector<8x1xf32>
    %194 = arith.maximumf %191, %193 : vector<8x1xf32>
    %195 = vector.broadcast %194 : vector<8x1xf32> to vector<8x8xf32>
    %196 = arith.subf %190, %195 : vector<8x8xf32>
    %197 = math.exp %196 : vector<8x8xf32>
    %cst_60 = arith.constant dense<0.000000e+00> : vector<8xf32>
    %198 = vector.multi_reduction <add>, %197, %cst_60 [1] : vector<8x8xf32> to vector<8xf32>
    %199 = vector.shape_cast %198 : vector<8xf32> to vector<8x1xf32>
    %200 = arith.truncf %197 : vector<8x8xf32> to vector<8x8xbf16>
    %201 = vector.extract_strided_slice %120 {offsets = [0, 96], sizes = [8, 32], strides = [1, 1]} : vector<8x128xbf16> to vector<8x32xbf16>
    %cst_61 = arith.constant dense<0.000000e+00> : vector<8x32xf32>
    %202 = tpu.matmul %200, %201, %cst_61 {dimension_numbers = #tpu.dot_dimension_numbers<[1], [0], [0], [1], [0, 0, 1, 1], [], []>} : vector<8x8xbf16>, vector<8x32xbf16>, vector<8x32xf32> -> vector<8x32xf32>
    %203 = vector.shape_cast %194 : vector<8x1xf32> to vector<8x1xf32>
    %204 = vector.broadcast %203 : vector<8x1xf32> to vector<8x32xf32>
    %205 = vector.shape_cast %199 : vector<8x1xf32> to vector<8x1xf32>
    %206 = vector.broadcast %205 : vector<8x1xf32> to vector<8x32xf32>
    %207 = tpu.concatenate %141, %162, %183, %204 in 1 : vector<8x32xf32>, vector<8x32xf32>, vector<8x32xf32>, vector<8x32xf32> -> vector<8x128xf32>
    %208 = arith.subf %122, %207 : vector<8x128xf32>
    %209 = math.exp %208 : vector<8x128xf32>
    %c0_62 = arith.constant 0 : index
    %c0_63 = arith.constant 0 : index
    %210 = vector.load %arg14[%c0_62, %c0_63] : memref<8x128xf32, #tpu.memory_space<vmem>>, vector<8x128xf32>
    %211 = arith.mulf %209, %210 : vector<8x128xf32>
    %212 = tpu.concatenate %143, %164, %185, %206 in 1 : vector<8x32xf32>, vector<8x32xf32>, vector<8x32xf32>, vector<8x32xf32> -> vector<8x128xf32>
    %213 = arith.addf %211, %212 : vector<8x128xf32>
    %c0_64 = arith.constant 0 : index
    %c0_65 = arith.constant 0 : index
    %214 = vector.load %arg14[%c0_64, %c0_65] : memref<8x128xf32, #tpu.memory_space<vmem>>, vector<8x128xf32>
    tpu.vector_store %arg14[%c0_64, %c0_65], %213 {strides = array<i32>} : memref<8x128xf32, #tpu.memory_space<vmem>>, vector<8x128xf32>,
    %c0_66 = arith.constant 0 : index
    %c0_67 = arith.constant 0 : index
    %215 = vector.load %arg15[%c0_66, %c0_67] : memref<8x128xf32, #tpu.memory_space<vmem>>, vector<8x128xf32>
    %216 = arith.mulf %209, %215 : vector<8x128xf32>
    %217 = tpu.concatenate %139, %160, %181, %202 in 1 : vector<8x32xf32>, vector<8x32xf32>, vector<8x32xf32>, vector<8x32xf32> -> vector<8x128xf32>
    %218 = arith.addf %216, %217 : vector<8x128xf32>
    %c0_68 = arith.constant 0 : index
    %c0_69 = arith.constant 0 : index
    %219 = vector.load %arg15[%c0_68, %c0_69] : memref<8x128xf32, #tpu.memory_space<vmem>>, vector<8x128xf32>
    tpu.vector_store %arg15[%c0_68, %c0_69], %218 {strides = array<i32>} : memref<8x128xf32, #tpu.memory_space<vmem>>, vector<8x128xf32>,
    %c0_70 = arith.constant 0 : index
    %c0_71 = arith.constant 0 : index
    %220 = vector.load %arg13[%c0_70, %c0_71] : memref<8x128xf32, #tpu.memory_space<vmem>>, vector<8x128xf32>
    tpu.vector_store %arg13[%c0_70, %c0_71], %207 {strides = array<i32>} : memref<8x128xf32, #tpu.memory_space<vmem>>, vector<8x128xf32>,
    %c0_i32_72 = arith.constant 0 : i32
    %221 = arith.cmpi eq, %arg2, %c0_i32_72 : i32
    %222 = arith.extui %221 : i1 to i32
    %c0_i32_73 = arith.constant 0 : i32
    %223 = arith.cmpi ne, %222, %c0_i32_73 : i32
    scf.if %223 {
      %c0_74 = arith.constant 0 : index
      %c0_75 = arith.constant 0 : index
      %224 = vector.load %arg14[%c0_74, %c0_75] : memref<8x128xf32, #tpu.memory_space<vmem>>, vector<8x128xf32>
      %225 = tpu.reciprocal %224 {approx = true} : vector<8x128xf32> -> vector<8x128xf32>
      %c0_76 = arith.constant 0 : index
      %c0_77 = arith.constant 0 : index
      %226 = vector.load %arg15[%c0_76, %c0_77] : memref<8x128xf32, #tpu.memory_space<vmem>>, vector<8x128xf32>
      %227 = arith.mulf %226, %225 : vector<8x128xf32>
      %228 = arith.truncf %227 : vector<8x128xf32> to vector<8x128xbf16>
      %c0_78 = arith.constant 0 : index
      %c0_79 = arith.constant 0 : index
      %c0_80 = arith.constant 0 : index
      %229 = vector.load %arg11[%c0_78, %c0_79, %c0_80] : memref<1x8x128xbf16, #tpu.memory_space<vmem>>, vector<1x8x128xbf16>
      %230 = vector.shape_cast %229 : vector<1x8x128xbf16> to vector<8x128xbf16>
      %231 = vector.shape_cast %228 : vector<8x128xbf16> to vector<1x8x128xbf16>
      tpu.vector_store %arg11[%c0_78, %c0_79, %c0_80], %231 {strides = array<i32>} : memref<1x8x128xbf16, #tpu.memory_space<vmem>>, vector<1x8x128xbf16>,
    } else {
    }
    return
  }
  func.func @transform_0(%arg0: i32, %arg1: i32, %arg2: i32) -> (i32, i32, i32) {
    %c0_i32 = arith.constant 0 : i32
    %c0_i32_0 = arith.constant 0 : i32
    return %arg0, %arg1, %c0_i32 : i32, i32, i32
  }
  func.func @transform_1(%arg0: i32, %arg1: i32, %arg2: i32) -> (i32, i32, i32) {
    %c1_i32 = arith.constant 1 : i32
    %c0_i32 = arith.constant 0 : i32
    return %arg0, %arg2, %c1_i32 : i32, i32, i32
  }
  func.func @transform_2(%arg0: i32, %arg1: i32, %arg2: i32) -> (i32, i32, i32) {
    %c2_i32 = arith.constant 2 : i32
    %c0_i32 = arith.constant 0 : i32
    return %arg0, %arg2, %c2_i32 : i32, i32, i32
  }
  func.func @transform_3(%arg0: i32, %arg1: i32, %arg2: i32) -> (i32, i32) {
    %c0_i32 = arith.constant 0 : i32
    %c0_i32_0 = arith.constant 0 : i32
    return %arg1, %c0_i32 : i32, i32
  }
  func.func @transform_4(%arg0: i32, %arg1: i32, %arg2: i32) -> (i32, i32) {
    %c0_i32 = arith.constant 0 : i32
    %c0_i32_0 = arith.constant 0 : i32
    return %arg1, %c0_i32 : i32, i32
  }
  func.func @transform_5(%arg0: i32, %arg1: i32, %arg2: i32) -> (i32, i32) {
    %c0_i32 = arith.constant 0 : i32
    %c0_i32_0 = arith.constant 0 : i32
    return %arg2, %c0_i32 : i32, i32
  }
  func.func @transform_6(%arg0: i32, %arg1: i32, %arg2: i32) -> (i32, i32) {
    %c0_i32 = arith.constant 0 : i32
    %c0_i32_0 = arith.constant 0 : i32
    return %arg2, %c0_i32 : i32, i32
  }
  func.func @transform_7(%arg0: i32, %arg1: i32, %arg2: i32) -> (i32, i32) {
    %c0_i32 = arith.constant 0 : i32
    %c0_i32_0 = arith.constant 0 : i32
    %c0_i32_1 = arith.constant 0 : i32
    return %c0_i32, %c0_i32_0 : i32, i32
  }
  func.func @transform_8(%arg0: i32, %arg1: i32, %arg2: i32) -> (i32, i32, i32) {
    %c0_i32 = arith.constant 0 : i32
    %c0_i32_0 = arith.constant 0 : i32
    return %arg0, %arg1, %c0_i32 : i32, i32, i32
  }
}

</mosaic_0001>

<llo_original>
// kernel: tile.19
$region0: #{tile.19}
  %s0 = inlined_call_operand.vmem [shape: f32[8,4,32], index: 0, kind: input, shape index: {}]
  %s1 = inlined_call_operand.vmem [shape: f32[8,128], index: 1, kind: output, shape index: {}]
  $region1: #{tile.19} parent=0
    #allocation0 [shape = 'u8[32768]{0}', space=vmem, size = 0x8000, scoped, tag = 'scoped mem for input reshape']
    %s3 = sshllo.u32 0, 4
    %s4 = smul.addr 4, 7
    %s5 = scalar_lea.vmem %s0, %s4
    %v6 = vld [vmem:[%s5] sm:%s3]
    %s7 = scalar_lea.vmem [#allocation0], 56
    %8 = vst [vmem:[%s7] sm:%s3] %v6
    %s9 = smul.addr 4, 6
    %s10 = scalar_lea.vmem %s0, %s9
    %v11 = vld [vmem:[%s10] sm:%s3]
    %s12 = scalar_lea.vmem [#allocation0], 48
    %13 = vst [vmem:[%s12] sm:%s3] %v11
    %s14 = smul.addr 4, 5
    %s15 = scalar_lea.vmem %s0, %s14
    %v16 = vld [vmem:[%s15] sm:%s3]
    %s17 = scalar_lea.vmem [#allocation0], 40
    %18 = vst [vmem:[%s17] sm:%s3] %v16
    %s19 = smul.addr 4, 4
    %s20 = scalar_lea.vmem %s0, %s19
    %v21 = vld [vmem:[%s20] sm:%s3]
    %s22 = scalar_lea.vmem [#allocation0], 32
    %23 = vst [vmem:[%s22] sm:%s3] %v21
    %s24 = smul.addr 4, 3
    %s25 = scalar_lea.vmem %s0, %s24
    %v26 = vld [vmem:[%s25] sm:%s3]
    %s27 = scalar_lea.vmem [#allocation0], 24
    %28 = vst [vmem:[%s27] sm:%s3] %v26
    %s29 = smul.addr 4, 2
    %s30 = scalar_lea.vmem %s0, %s29
    %v31 = vld [vmem:[%s30] sm:%s3]
    %s32 = scalar_lea.vmem [#allocation0], 16
    %33 = vst [vmem:[%s32] sm:%s3] %v31
    %s34 = scalar_lea.vmem %s0, 4
    %v35 = vld [vmem:[%s34] sm:%s3]
    %s36 = scalar_lea.vmem [#allocation0], 8
    %37 = vst [vmem:[%s36] sm:%s3] %v35
    %v38 = vld [vmem:[%s0] sm:%s3]
    %39 = vst [vmem:[#allocation0] sm:%s3] %v38
    %v40 = vld [vmem:[#allocation0] ss:$8 sm:$0xf]
    %v41 = vld [vmem:[#allocation0] ss:$8 sm:$0xf0]
    %vm42 = vcmask 1047556
    %v43 = vsel %vm42, %v41, %v40
    %vm44 = vcmask 261120
    %45 = vst.msk [vmem:[%s1] sm:$0xff] %vm44, %v43
    %s46 = scalar_lea.vmem [#allocation0], 3
    %v47 = vld [vmem:[%s46] ss:$8 sm:$0xf]
    %s48 = scalar_lea.vmem [#allocation0], 3
    %v49 = vld [vmem:[%s48] ss:$8 sm:$0xf0]
    %vm50 = vcmask 1047556
    %v51 = vsel %vm50, %v49, %v47
    %52 = vrot.lane.b32.xlu0 %v51, 96
    %v53 = vpop.permute.xlu0 %52
    %vm54 = vcmask 1048320
    %55 = vst.msk [vmem:[%s1] sm:$0xff] %vm54, %v53
    %s56 = scalar_lea.vmem [#allocation0], 2
    %v57 = vld [vmem:[%s56] ss:$8 sm:$0xf]
    %s58 = scalar_lea.vmem [#allocation0], 2
    %v59 = vld [vmem:[%s58] ss:$8 sm:$0xf0]
    %vm60 = vcmask 1047556
    %v61 = vsel %vm60, %v59, %v57
    %62 = vrot.lane.b32.xlu0 %v61, 64
    %v63 = vpop.permute.xlu0 %62
    %vm64 = vcmask 785920
    %65 = vst.msk [vmem:[%s1] sm:$0xff] %vm64, %v63
    %s66 = scalar_lea.vmem [#allocation0], 1
    %v67 = vld [vmem:[%s66] ss:$8 sm:$0xf]
    %s68 = scalar_lea.vmem [#allocation0], 1
    %v69 = vld [vmem:[%s68] ss:$8 sm:$0xf0]
    %vm70 = vcmask 1047556
    %v71 = vsel %vm70, %v69, %v67
    %72 = vrot.lane.b32.xlu0 %v71, 32
    %v73 = vpop.permute.xlu0 %72
    %vm74 = vcmask 523520
    %75 = vst.msk [vmem:[%s1] sm:$0xff] %vm74, %v73

// kernel: processor_forward.13
$region0: #{processor_forward.13}
  #allocation0 [shape = 'u32[]', space=smem, size = 0x4, offset = 0x4, fixed_abs, tag = 'smem constant byte address 0x4 - core index']
  #allocation1 [shape = 'u32[144,128]{1,0:T(1,128)}', space=vmem, size = 0x12000, scoped, tag = 'internal scratch']
  #allocation2 [shape = 'f32[16,128]{1,0:T(8,128)}', space=vmem, size = 0x2000, scoped, tag = 'scratch operand']
  %s0 = inlined_call_operand.vmem [shape: bf16[16,128], index: 0, kind: input, shape index: {}]
  %s1 = inlined_call_operand.vmem [shape: bf16[128,128], index: 1, kind: input, shape index: {}]
  %s2 = inlined_call_operand.vmem [shape: f32[1,128], index: 2, kind: input, shape index: {}]
  %s3 = inlined_call_operand.vmem [shape: f32[16,128], index: 3, kind: output, shape index: {}]
  %s4 = sld [smem:[#allocation0]]
  $region30: #{processor_forward.13} parent=0
    _
  %s6 = ssub.s32 1, %s4
  %s7 = scalar_select 0, %s6, %s4
  // Predicated region
  $region2: #{processor_forward.13} parent=0 // pred_check
    _
  $region3: #{processor_forward.13} parent=0 // pred_check_branch
    %9 = sbr.rel (0) target = $region5
  $region4: #{processor_forward.13} parent=0 // pred_region
    _
  $region5: #{processor_forward.13} parent=0 // pred_fallthru
    _
  // Predicated region
  $region6: #{processor_forward.13} parent=0 // pred_check
    _
  $region7: #{processor_forward.13} parent=0 // pred_check_branch
    %11 = sbr.rel (0) target = $region9
  $region8: #{processor_forward.13} parent=0 // pred_region
    _
  $region9: #{processor_forward.13} parent=0 // pred_fallthru
    _
  // Predicated region
  $region10: #{processor_forward.13} parent=0 // pred_check
    _
  $region11: #{processor_forward.13} parent=0 // pred_check_branch
    %13 = sbr.rel (0) target = $region13
  $region12: #{processor_forward.13} parent=0 // pred_region
    _
  $region13: #{processor_forward.13} parent=0 // pred_fallthru
    _
  %p15 = scmp.eq.s32.totalorder 0, 0
  // Predicated region
  $region14: #{processor_forward.13} parent=0 // pred_check
    %p16 = pneg %p15
  $region15: #{processor_forward.13} parent=0 // pred_check_branch
    %18 = sbr.rel (%p16) target = $region17
  $region16: #{processor_forward.13} parent=0 // pred_region
    %19 = vst [vmem:[#allocation2] sm:$0xff] 0.0
    %20 = vst [vmem:[#allocation2 + $0x8] sm:$0xff] 0.0
  $region17: #{processor_forward.13} parent=0 // pred_fallthru
    _
  %v21 = vld [vmem:[#allocation2] sm:$0xff]
  %v22 = vld [vmem:[#allocation2 + $0x8] sm:$0xff]
  %v23 = vld [vmem:[%s0] sm:$0xf]
  %v24 = vld [vmem:[%s0 + $0x4] sm:$0xf]
  %v25 = vld [vmem:[%s1] sm:$0xf]
  %v26 = vld [vmem:[%s1 + $0x4] sm:$0xf]
  %v27 = vld [vmem:[%s1 + $0x8] sm:$0xf]
  %v28 = vld [vmem:[%s1 + $0xc] sm:$0xf]
  %v29 = vld [vmem:[%s1 + $0x10] sm:$0xf]
  %v30 = vld [vmem:[%s1 + $0x14] sm:$0xf]
  %v31 = vld [vmem:[%s1 + $0x18] sm:$0xf]
  %v32 = vld [vmem:[%s1 + $0x1c] sm:$0xf]
  %v33 = vld [vmem:[%s1 + $0x20] sm:$0xf]
  %v34 = vld [vmem:[%s1 + $0x24] sm:$0xf]
  %v35 = vld [vmem:[%s1 + $0x28] sm:$0xf]
  %v36 = vld [vmem:[%s1 + $0x2c] sm:$0xf]
  %v37 = vld [vmem:[%s1 + $0x30] sm:$0xf]
  %v38 = vld [vmem:[%s1 + $0x34] sm:$0xf]
  %v39 = vld [vmem:[%s1 + $0x38] sm:$0xf]
  %v40 = vld [vmem:[%s1 + $0x3c] sm:$0xf]
  %v43 = vunpack.c.l.b16 %v23
  %v44 = vunpack.c.l.b16 %v24
  %v45 = vpack.c.b16 %v44, %v43
  %v63 = vunpack.c.l.b16 %v25
  %v64 = vunpack.c.l.b16 %v26
  %v65 = vunpack.c.l.b16 %v27
  %v66 = vunpack.c.l.b16 %v28
  %v67 = vunpack.c.l.b16 %v29
  %v68 = vunpack.c.l.b16 %v30
  %v69 = vunpack.c.l.b16 %v31
  %v70 = vunpack.c.l.b16 %v32
  %v71 = vunpack.c.l.b16 %v33
  %v72 = vunpack.c.l.b16 %v34
  %v73 = vunpack.c.l.b16 %v35
  %v74 = vunpack.c.l.b16 %v36
  %v75 = vunpack.c.l.b16 %v37
  %v76 = vunpack.c.l.b16 %v38
  %v77 = vunpack.c.l.b16 %v39
  %v78 = vunpack.c.l.b16 %v40
  %v79 = vpack.c.b16 %v64, %v63
  %v80 = vpack.c.b16 %v66, %v65
  %v81 = vpack.c.b16 %v68, %v67
  %v82 = vpack.c.b16 %v70, %v69
  %v83 = vpack.c.b16 %v72, %v71
  %v84 = vpack.c.b16 %v74, %v73
  %v85 = vpack.c.b16 %v76, %v75
  %v86 = vpack.c.b16 %v78, %v77
  %95 = vmatprep.subr.bf16.mxu0 0
  %96 = vmatpush1.bf16.msra.mxu0 %v79
  %97 = vmatprep.subr.bf16.mxu0 0
  %98 = vmatpush1.bf16.msra.mxu0 %v80
  %99 = vmatprep.subr.bf16.mxu0 0
  %100 = vmatpush1.bf16.msra.mxu0 %v81
  %101 = vmatprep.subr.bf16.mxu0 0
  %102 = vmatpush1.bf16.msra.mxu0 %v82
  %103 = vmatprep.subr.bf16.mxu0 0
  %104 = vmatpush1.bf16.msra.mxu0 %v83
  %105 = vmatprep.subr.bf16.mxu0 0
  %106 = vmatpush1.bf16.msra.mxu0 %v84
  %107 = vmatprep.subr.bf16.mxu0 0
  %108 = vmatpush1.bf16.msra.mxu0 %v85
  %109 = vmatprep.subr.bf16.mxu0 0
  %110 = vmatpush1.bf16.msra.mxu0 %v86
  %111 = vmatprep.subr.bf16.mxu0 0
  %112 = vmatpush1.bf16.msra.mxu0 0
  %113 = vmatprep.subr.bf16.mxu0 0
  %114 = vmatpush1.bf16.msra.mxu0 0
  %115 = vmatprep.subr.bf16.mxu0 0
  %116 = vmatpush1.bf16.msra.mxu0 0
  %117 = vmatprep.subr.bf16.mxu0 0
  %118 = vmatpush1.bf16.msra.mxu0 0
  %119 = vmatprep.subr.bf16.mxu0 0
  %120 = vmatpush1.bf16.msra.mxu0 0
  %121 = vmatprep.subr.bf16.mxu0 0
  %122 = vmatpush1.bf16.msra.mxu0 0
  %123 = vmatprep.subr.bf16.mxu0 0
  %124 = vmatpush1.bf16.msra.mxu0 0
  %125 = vmatprep.subr.bf16.mxu0 0
  %126 = vmatpush1.bf16.msra.mxu0 0
  %127 = vmatprep.mubr.bf16.mxu0 0
  %128 = vmatmul.mubr.bf16.gmra.mrb[0].mxu0 %v45
  %v129 = vpop.f32.mrb[0].mxu0
  %v130 = vadd.f32 0.0, %v129
  %v131 = vpop.f32.mrb[0].mxu0
  %v132 = vpop.f32.mrb[0].mxu0
  %v133 = vadd.f32 0.0, %v132
  %v134 = vpop.f32.mrb[0].mxu0
  %135 = vdwg.mxu0
  %v136 = vadd.f32 %v21, %v130
  %v137 = vadd.f32 %v22, %v133
  %138 = vst [vmem:[#allocation2] sm:$0xff] %v136
  %139 = vst [vmem:[#allocation2 + $0x8] sm:$0xff] %v137
  // Predicated region
  $region18: #{processor_forward.13} parent=0 // pred_check
    %p140 = pneg %p15
  $region19: #{processor_forward.13} parent=0 // pred_check_branch
    %142 = sbr.rel (%p140) target = $region21
  $region20: #{processor_forward.13} parent=0 // pred_region
    %v143 = vld [vmem:[#allocation2] sm:$0xff]
    %v144 = vld [vmem:[#allocation2 + $0x8] sm:$0xff]
    %v145 = vld [vmem:[%s2] sm:$0x1]
    %v147 = vlaneseq
    %v148 = vshrl.u32 %v147, 7
    %v149 = vsub.s32 0, %v148
    %v150 = vrot.slane %v145, %v149
    %v152 = vadd.f32 %v143, %v150
    %v153 = vadd.f32 %v144, %v150
    %154 = vst [vmem:[%s3] sm:$0xff] %v152
    %155 = vst [vmem:[%s3 + $0x8] sm:$0xff] %v153
  $region21: #{processor_forward.13} parent=0 // pred_fallthru
    _
  // Predicated region
  $region22: #{processor_forward.13} parent=0 // pred_check
    _
  $region23: #{processor_forward.13} parent=0 // pred_check_branch
    %157 = sbr.rel (0) target = $region25
  $region24: #{processor_forward.13} parent=0 // pred_region
    _
  $region25: #{processor_forward.13} parent=0 // pred_fallthru
    _
  // Predicated region
  $region26: #{processor_forward.13} parent=0 // pred_check
    _
  $region27: #{processor_forward.13} parent=0 // pred_check_branch
    %159 = sbr.rel (0) target = $region29
  $region28: #{processor_forward.13} parent=0 // pred_region
    _
  $region29: #{processor_forward.13} parent=0 // pred_fallthru
    _

// kernel: processor_forward.11
$region0: #{processor_forward.11}
  #allocation0 [shape = 'u32[]', space=smem, size = 0x4, offset = 0x4, fixed_abs, tag = 'smem constant byte address 0x4 - core index']
  #allocation1 [shape = 'u32[144,128]{1,0:T(1,128)}', space=vmem, size = 0x12000, scoped, tag = 'internal scratch']
  #allocation2 [shape = 'bf16[16,128]{1,0:T(16,128)(2,1)}', space=vmem, size = 0x1000, scoped, tag = 'scratch operand']
  %s0 = inlined_call_operand.vmem [shape: f32[16,128], index: 0, kind: input, shape index: {}]
  %s1 = inlined_call_operand.vmem [shape: f32[2,128], index: 1, kind: input, shape index: {}]
  %s2 = inlined_call_operand.vmem [shape: f32[2,128], index: 2, kind: input, shape index: {}]
  %s3 = inlined_call_operand.vmem [shape: bf16[128,384], index: 3, kind: input, shape index: {}]
  %s4 = inlined_call_operand.vmem [shape: f32[1,384], index: 4, kind: input, shape index: {}]
  %s5 = inlined_call_operand.vmem [shape: bf16[16,384], index: 5, kind: output, shape index: {}]
  %s6 = sld [smem:[#allocation0]]
  $region34: #{processor_forward.11} parent=0
    _
  %s8 = ssub.s32 1, %s6
  %s9 = scalar_select 0, %s8, %s6
  // Predicated region
  $region2: #{processor_forward.11} parent=0 // pred_check
    _
  $region3: #{processor_forward.11} parent=0 // pred_check_branch
    %11 = sbr.rel (0) target = $region5
  $region4: #{processor_forward.11} parent=0 // pred_region
    _
  $region5: #{processor_forward.11} parent=0 // pred_fallthru
    _
  // Predicated region
  $region6: #{processor_forward.11} parent=0 // pred_check
    _
  $region7: #{processor_forward.11} parent=0 // pred_check_branch
    %13 = sbr.rel (0) target = $region9
  $region8: #{processor_forward.11} parent=0 // pred_region
    _
  $region9: #{processor_forward.11} parent=0 // pred_fallthru
    _
  // Predicated region
  $region10: #{processor_forward.11} parent=0 // pred_check
    _
  $region11: #{processor_forward.11} parent=0 // pred_check_branch
    %15 = sbr.rel (0) target = $region13
  $region12: #{processor_forward.11} parent=0 // pred_region
    _
  $region13: #{processor_forward.11} parent=0 // pred_fallthru
    _
  // Predicated region
  $region14: #{processor_forward.11} parent=0 // pred_check
    _
  $region15: #{processor_forward.11} parent=0 // pred_check_branch
    %17 = sbr.rel (0) target = $region17
  $region16: #{processor_forward.11} parent=0 // pred_region
    _
  $region17: #{processor_forward.11} parent=0 // pred_fallthru
    _
  // Predicated region
  $region18: #{processor_forward.11} parent=0 // pred_check
    _
  $region19: #{processor_forward.11} parent=0 // pred_check_branch
    %19 = sbr.rel (0) target = $region21
  $region20: #{processor_forward.11} parent=0 // pred_region
    _
  $region21: #{processor_forward.11} parent=0 // pred_fallthru
    _
  %p21 = scmp.eq.s32.totalorder 0, 0
  // Predicated region
  $region22: #{processor_forward.11} parent=0 // pred_check
    %p22 = pneg %p21
  $region23: #{processor_forward.11} parent=0 // pred_check_branch
    %24 = sbr.rel (%p22) target = $region25
  $region24: #{processor_forward.11} parent=0 // pred_region
    %v25 = vld [vmem:[%s0] sm:$0xff]
    %v26 = vld [vmem:[%s0 + $0x8] sm:$0xff]
    %27 = vadd.xlane.f32.xlu0 %v25
    %v28 = vpop.xlane.xlu0 %27
    %29 = vadd.xlane.f32.xlu0 %v26
    %v30 = vpop.xlane.xlu0 %29
    %v31 = vrcp.pop 128.0
    %v32 = vmul.f32 %v28, %v31
    %v33 = vmul.f32 %v30, %v31
    %v34 = vsub.f32 %v25, %v32
    %v35 = vsub.f32 %v26, %v33
    %v36 = vmul.f32 %v34, %v34
    %v37 = vmul.f32 %v35, %v35
    %38 = vadd.xlane.f32.xlu0 %v36
    %v39 = vpop.xlane.xlu0 %38
    %40 = vadd.xlane.f32.xlu0 %v37
    %v41 = vpop.xlane.xlu0 %40
    %v42 = vmul.f32 %v39, %v31
    %v43 = vmul.f32 %v41, %v31
    %v44 = vadd.f32 %v42, 1e-05
    %v45 = vadd.f32 %v43, 1e-05
    %v46 = vrsqrt.pop %v44
    %v47 = vrsqrt.pop %v45
    %v48 = vmul.f32 %v34, %v46
    %v49 = vmul.f32 %v35, %v47
    %v50 = vld [vmem:[%s1] sm:$0x1]
    %v51 = vlaneseq
    %v52 = vshrl.u32 %v51, 7
    %v53 = vsub.s32 0, %v52
    %v54 = vrot.slane %v50, %v53
    %v55 = vmul.f32 %v48, %v54
    %v56 = vmul.f32 %v49, %v54
    %v57 = vld [vmem:[%s2] sm:$0x1]
    %v58 = vlaneseq
    %v59 = vshrl.u32 %v58, 7
    %v60 = vsub.s32 0, %v59
    %v61 = vrot.slane %v57, %v60
    %v62 = vadd.f32 %v55, %v61
    %v63 = vadd.f32 %v56, %v61
    %64 = vadd.xlane.f32.xlu0 %v62
    %v65 = vpop.xlane.xlu0 %64
    %66 = vadd.xlane.f32.xlu0 %v63
    %v67 = vpop.xlane.xlu0 %66
    %v68 = vmul.f32 %v65, %v31
    %v69 = vmul.f32 %v67, %v31
    %v70 = vsub.f32 %v62, %v68
    %v71 = vsub.f32 %v63, %v69
    %v72 = vmul.f32 %v70, %v70
    %v73 = vmul.f32 %v71, %v71
    %74 = vadd.xlane.f32.xlu0 %v72
    %v75 = vpop.xlane.xlu0 %74
    %76 = vadd.xlane.f32.xlu0 %v73
    %v77 = vpop.xlane.xlu0 %76
    %v78 = vmul.f32 %v75, %v31
    %v79 = vmul.f32 %v77, %v31
    %v80 = vadd.f32 %v78, 1e-05
    %v81 = vadd.f32 %v79, 1e-05
    %v82 = vrsqrt.pop %v80
    %v83 = vrsqrt.pop %v81
    %v84 = vmul.f32 %v70, %v82
    %v85 = vmul.f32 %v71, %v83
    %v86 = vld [vmem:[%s1 + $0x1] sm:$0x1]
    %v87 = vlaneseq
    %v88 = vshrl.u32 %v87, 7
    %v89 = vsub.s32 0, %v88
    %v90 = vrot.slane %v86, %v89
    %v91 = vmul.f32 %v84, %v90
    %v92 = vmul.f32 %v85, %v90
    %v93 = vld [vmem:[%s2 + $0x1] sm:$0x1]
    %v94 = vlaneseq
    %v95 = vshrl.u32 %v94, 7
    %v96 = vsub.s32 0, %v95
    %v97 = vrot.slane %v93, %v96
    %v98 = vadd.f32 %v91, %v97
    %v99 = vadd.f32 %v92, %v97
    %v100 = vpack.c.bf16 %v99, %v98
    %101 = vst [vmem:[#allocation2] sm:$0xff] %v100
  $region25: #{processor_forward.11} parent=0 // pred_fallthru
    _
  %v102 = vld [vmem:[#allocation2] sm:$0xff]
  %v103 = vld [vmem:[%s3] sm:$0xff]
  %v104 = vld [vmem:[%s3 + $0x8] sm:$0xf]
  %v105 = vld [vmem:[%s3 + $0xc] sm:$0xff]
  %v106 = vld [vmem:[%s3 + $0x14] sm:$0xf]
  %v107 = vld [vmem:[%s3 + $0x18] sm:$0xff]
  %v108 = vld [vmem:[%s3 + $0x20] sm:$0xf]
  %v109 = vld [vmem:[%s3 + $0x24] sm:$0xff]
  %v110 = vld [vmem:[%s3 + $0x2c] sm:$0xf]
  %v111 = vld [vmem:[%s3 + $0x30] sm:$0xff]
  %v112 = vld [vmem:[%s3 + $0x38] sm:$0xf]
  %v113 = vld [vmem:[%s3 + $0x3c] sm:$0xff]
  %v114 = vld [vmem:[%s3 + $0x44] sm:$0xf]
  %v115 = vld [vmem:[%s3 + $0x48] sm:$0xff]
  %v116 = vld [vmem:[%s3 + $0x50] sm:$0xf]
  %v117 = vld [vmem:[%s3 + $0x54] sm:$0xff]
  %v118 = vld [vmem:[%s3 + $0x5c] sm:$0xf]
  %v119 = vld [vmem:[%s3 + $0x60] sm:$0xff]
  %v120 = vld [vmem:[%s3 + $0x68] sm:$0xf]
  %v121 = vld [vmem:[%s3 + $0x6c] sm:$0xff]
  %v122 = vld [vmem:[%s3 + $0x74] sm:$0xf]
  %v123 = vld [vmem:[%s3 + $0x78] sm:$0xff]
  %v124 = vld [vmem:[%s3 + $0x80] sm:$0xf]
  %v125 = vld [vmem:[%s3 + $0x84] sm:$0xff]
  %v126 = vld [vmem:[%s3 + $0x8c] sm:$0xf]
  %v127 = vld [vmem:[%s3 + $0x90] sm:$0xff]
  %v128 = vld [vmem:[%s3 + $0x98] sm:$0xf]
  %v129 = vld [vmem:[%s3 + $0x9c] sm:$0xff]
  %v130 = vld [vmem:[%s3 + $0xa4] sm:$0xf]
  %v131 = vld [vmem:[%s3 + $0xa8] sm:$0xff]
  %v132 = vld [vmem:[%s3 + $0xb0] sm:$0xf]
  %v133 = vld [vmem:[%s3 + $0xb4] sm:$0xff]
  %v134 = vld [vmem:[%s3 + $0xbc] sm:$0xf]
  %v135 = vld [vmem:[%s4] sm:$0x7]
  %v137 = vlaneseq
  %v138 = vshrl.u32 %v137, 7
  %v139 = vsub.s32 0, %v138
  %v140 = vrot.slane %v135, %v139
  %v141 = vlaneseq
  %v142 = vshrl.u32 %v141, 7
  %v143 = vsub.s32 1, %v142
  %v144 = vrot.slane %v135, %v143
  %v145 = vlaneseq
  %v146 = vshrl.u32 %v145, 7
  %v147 = vsub.s32 2, %v146
  %v148 = vrot.slane %v135, %v147
  %v184 = vunpack.c.l.b16 %v103
  %v185 = vunpack.c.h.b16 %v103
  %v186 = vunpack.c.l.b16 %v104
  %v187 = vunpack.c.l.b16 %v105
  %v188 = vunpack.c.h.b16 %v105
  %v189 = vunpack.c.l.b16 %v106
  %v190 = vunpack.c.l.b16 %v107
  %v191 = vunpack.c.h.b16 %v107
  %v192 = vunpack.c.l.b16 %v108
  %v193 = vunpack.c.l.b16 %v109
  %v194 = vunpack.c.h.b16 %v109
  %v195 = vunpack.c.l.b16 %v110
  %v196 = vunpack.c.l.b16 %v111
  %v197 = vunpack.c.h.b16 %v111
  %v198 = vunpack.c.l.b16 %v112
  %v199 = vunpack.c.l.b16 %v113
  %v200 = vunpack.c.h.b16 %v113
  %v201 = vunpack.c.l.b16 %v114
  %v202 = vunpack.c.l.b16 %v115
  %v203 = vunpack.c.h.b16 %v115
  %v204 = vunpack.c.l.b16 %v116
  %v205 = vunpack.c.l.b16 %v117
  %v206 = vunpack.c.h.b16 %v117
  %v207 = vunpack.c.l.b16 %v118
  %v208 = vunpack.c.l.b16 %v119
  %v209 = vunpack.c.h.b16 %v119
  %v210 = vunpack.c.l.b16 %v120
  %v211 = vunpack.c.l.b16 %v121
  %v212 = vunpack.c.h.b16 %v121
  %v213 = vunpack.c.l.b16 %v122
  %v214 = vunpack.c.l.b16 %v123
  %v215 = vunpack.c.h.b16 %v123
  %v216 = vunpack.c.l.b16 %v124
  %v217 = vunpack.c.l.b16 %v125
  %v218 = vunpack.c.h.b16 %v125
  %v219 = vunpack.c.l.b16 %v126
  %v220 = vunpack.c.l.b16 %v127
  %v221 = vunpack.c.h.b16 %v127
  %v222 = vunpack.c.l.b16 %v128
  %v223 = vunpack.c.l.b16 %v129
  %v224 = vunpack.c.h.b16 %v129
  %v225 = vunpack.c.l.b16 %v130
  %v226 = vunpack.c.l.b16 %v131
  %v227 = vunpack.c.h.b16 %v131
  %v228 = vunpack.c.l.b16 %v132
  %v229 = vunpack.c.l.b16 %v133
  %v230 = vunpack.c.h.b16 %v133
  %v231 = vunpack.c.l.b16 %v134
  %v232 = vpack.c.b16 %v187, %v184
  %v233 = vpack.c.b16 %v188, %v185
  %v234 = vpack.c.b16 %v189, %v186
  %v235 = vpack.c.b16 %v193, %v190
  %v236 = vpack.c.b16 %v194, %v191
  %v237 = vpack.c.b16 %v195, %v192
  %v238 = vpack.c.b16 %v199, %v196
  %v239 = vpack.c.b16 %v200, %v197
  %v240 = vpack.c.b16 %v201, %v198
  %v241 = vpack.c.b16 %v205, %v202
  %v242 = vpack.c.b16 %v206, %v203
  %v243 = vpack.c.b16 %v207, %v204
  %v244 = vpack.c.b16 %v211, %v208
  %v245 = vpack.c.b16 %v212, %v209
  %v246 = vpack.c.b16 %v213, %v210
  %v247 = vpack.c.b16 %v217, %v214
  %v248 = vpack.c.b16 %v218, %v215
  %v249 = vpack.c.b16 %v219, %v216
  %v250 = vpack.c.b16 %v223, %v220
  %v251 = vpack.c.b16 %v224, %v221
  %v252 = vpack.c.b16 %v225, %v222
  %v253 = vpack.c.b16 %v229, %v226
  %v254 = vpack.c.b16 %v230, %v227
  %v255 = vpack.c.b16 %v231, %v228
  %280 = vmatprep.subr.bf16.mxu0 %v233
  %281 = vmatpush1.bf16.msra.mxu0 %v232
  %282 = vmatprep.subr.bf16.mxu0 %v236
  %283 = vmatpush1.bf16.msra.mxu0 %v235
  %284 = vmatprep.subr.bf16.mxu0 %v239
  %285 = vmatpush1.bf16.msra.mxu0 %v238
  %286 = vmatprep.subr.bf16.mxu0 %v242
  %287 = vmatpush1.bf16.msra.mxu0 %v241
  %288 = vmatprep.subr.bf16.mxu0 %v245
  %289 = vmatpush1.bf16.msra.mxu0 %v244
  %290 = vmatprep.subr.bf16.mxu0 %v248
  %291 = vmatpush1.bf16.msra.mxu0 %v247
  %292 = vmatprep.subr.bf16.mxu0 %v251
  %293 = vmatpush1.bf16.msra.mxu0 %v250
  %294 = vmatprep.subr.bf16.mxu0 %v254
  %295 = vmatpush1.bf16.msra.mxu0 %v253
  %296 = vmatprep.subr.bf16.mxu0 0
  %297 = vmatpush1.bf16.msra.mxu0 0
  %298 = vmatprep.subr.bf16.mxu0 0
  %299 = vmatpush1.bf16.msra.mxu0 0
  %300 = vmatprep.subr.bf16.mxu0 0
  %301 = vmatpush1.bf16.msra.mxu0 0
  %302 = vmatprep.subr.bf16.mxu0 0
  %303 = vmatpush1.bf16.msra.mxu0 0
  %304 = vmatprep.subr.bf16.mxu0 0
  %305 = vmatpush1.bf16.msra.mxu0 0
  %306 = vmatprep.subr.bf16.mxu0 0
  %307 = vmatpush1.bf16.msra.mxu0 0
  %308 = vmatprep.subr.bf16.mxu0 0
  %309 = vmatpush1.bf16.msra.mxu0 0
  %310 = vmatprep.subr.bf16.mxu0 0
  %311 = vmatpush1.bf16.msra.mxu0 0
  %312 = vmatprep.mubr.bf16.mxu0 0
  %313 = vmatmul.mubr.bf16.gmra.mrb[0].mxu0 %v102
  %v314 = vpop.f32.mrb[0].mxu0
  %v315 = vadd.f32 %v140, %v314
  %v316 = vpop.f32.mrb[0].mxu0
  %v317 = vadd.f32 %v144, %v316
  %v318 = vpop.f32.mrb[0].mxu0
  %v319 = vadd.f32 %v140, %v318
  %v320 = vpop.f32.mrb[0].mxu0
  %v321 = vadd.f32 %v144, %v320
  %322 = vdwg.mxu0
  %323 = vmatprep.subr.bf16.mxu0 0
  %324 = vmatpush1.bf16.msra.mxu0 %v234
  %325 = vmatprep.subr.bf16.mxu0 0
  %326 = vmatpush1.bf16.msra.mxu0 %v237
  %327 = vmatprep.subr.bf16.mxu0 0
  %328 = vmatpush1.bf16.msra.mxu0 %v240
  %329 = vmatprep.subr.bf16.mxu0 0
  %330 = vmatpush1.bf16.msra.mxu0 %v243
  %331 = vmatprep.subr.bf16.mxu0 0
  %332 = vmatpush1.bf16.msra.mxu0 %v246
  %333 = vmatprep.subr.bf16.mxu0 0
  %334 = vmatpush1.bf16.msra.mxu0 %v249
  %335 = vmatprep.subr.bf16.mxu0 0
  %336 = vmatpush1.bf16.msra.mxu0 %v252
  %337 = vmatprep.subr.bf16.mxu0 0
  %338 = vmatpush1.bf16.msra.mxu0 %v255
  %339 = vmatprep.subr.bf16.mxu0 0
  %340 = vmatpush1.bf16.msra.mxu0 0
  %341 = vmatprep.subr.bf16.mxu0 0
  %342 = vmatpush1.bf16.msra.mxu0 0
  %343 = vmatprep.subr.bf16.mxu0 0
  %344 = vmatpush1.bf16.msra.mxu0 0
  %345 = vmatprep.subr.bf16.mxu0 0
  %346 = vmatpush1.bf16.msra.mxu0 0
  %347 = vmatprep.subr.bf16.mxu0 0
  %348 = vmatpush1.bf16.msra.mxu0 0
  %349 = vmatprep.subr.bf16.mxu0 0
  %350 = vmatpush1.bf16.msra.mxu0 0
  %351 = vmatprep.subr.bf16.mxu0 0
  %352 = vmatpush1.bf16.msra.mxu0 0
  %353 = vmatprep.subr.bf16.mxu0 0
  %354 = vmatpush1.bf16.msra.mxu0 0
  %355 = vmatprep.mubr.bf16.mxu0 0
  %356 = vmatmul.mubr.bf16.gmra.mrb[0].mxu0 %v102
  %v357 = vpop.f32.mrb[0].mxu0
  %v358 = vadd.f32 %v148, %v357
  %v359 = vpop.f32.mrb[0].mxu0
  %v360 = vpop.f32.mrb[0].mxu0
  %v361 = vadd.f32 %v148, %v360
  %v362 = vpop.f32.mrb[0].mxu0
  %363 = vdwg.mxu0
  %v364 = vpack.c.bf16 %v319, %v315
  %v365 = vpack.c.bf16 %v321, %v317
  %v366 = vpack.c.bf16 %v361, %v358
  %v370 = vunpack.c.l.b16 %v364
  %v371 = vunpack.c.l.b16 %v365
  %v372 = vunpack.c.l.b16 %v366
  %v373 = vunpack.c.h.b16 %v364
  %v374 = vunpack.c.h.b16 %v365
  %v375 = vunpack.c.h.b16 %v366
  %v376 = vpack.c.b16 %v371, %v370
  %v377 = vpack.c.b16 %v372, %v372
  %v378 = vpack.c.b16 %v374, %v373
  %v379 = vpack.c.b16 %v375, %v375
  %384 = vst [vmem:[%s5] sm:$0xff] %v376
  %385 = vst [vmem:[%s5 + $0x8] sm:$0xf] %v377
  %386 = vst [vmem:[%s5 + $0xc] sm:$0xff] %v378
  %387 = vst [vmem:[%s5 + $0x14] sm:$0xf] %v379
  // Predicated region
  $region26: #{processor_forward.11} parent=0 // pred_check
    _
  $region27: #{processor_forward.11} parent=0 // pred_check_branch
    %389 = sbr.rel (0) target = $region29
  $region28: #{processor_forward.11} parent=0 // pred_region
    _
  $region29: #{processor_forward.11} parent=0 // pred_fallthru
    _
  // Predicated region
  $region30: #{processor_forward.11} parent=0 // pred_check
    _
  $region31: #{processor_forward.11} parent=0 // pred_check_branch
    %391 = sbr.rel (0) target = $region33
  $region32: #{processor_forward.11} parent=0 // pred_region
    _
  $region33: #{processor_forward.11} parent=0 // pred_fallthru
    _

// kernel: processor_forward.14
$region0: #{processor_forward.14}
  #allocation0 [shape = 'u32[]', space=smem, size = 0x4, offset = 0x4, fixed_abs, tag = 'smem constant byte address 0x4 - core index']
  #allocation1 [shape = 'u32[144,128]{1,0:T(1,128)}', space=vmem, size = 0x12000, scoped, tag = 'internal scratch']
  #allocation2 [shape = 'bf16[16,128]{1,0:T(16,128)(2,1)}', space=vmem, size = 0x1000, scoped, tag = 'scratch operand']
  %s0 = inlined_call_operand.vmem [shape: f32[16,128], index: 0, kind: input, shape index: {}]
  %s1 = inlined_call_operand.vmem [shape: f32[1,128], index: 1, kind: input, shape index: {}]
  %s2 = inlined_call_operand.vmem [shape: f32[1,128], index: 2, kind: input, shape index: {}]
  %s3 = inlined_call_operand.vmem [shape: bf16[128,512], index: 3, kind: input, shape index: {}]
  %s4 = inlined_call_operand.vmem [shape: f32[1,512], index: 4, kind: input, shape index: {}]
  %s5 = inlined_call_operand.vmem [shape: bf16[16,512], index: 5, kind: output, shape index: {}]
  %s6 = sld [smem:[#allocation0]]
  $region34: #{processor_forward.14} parent=0
    _
  %s8 = ssub.s32 1, %s6
  %s9 = scalar_select 0, %s8, %s6
  // Predicated region
  $region2: #{processor_forward.14} parent=0 // pred_check
    _
  $region3: #{processor_forward.14} parent=0 // pred_check_branch
    %11 = sbr.rel (0) target = $region5
  $region4: #{processor_forward.14} parent=0 // pred_region
    _
  $region5: #{processor_forward.14} parent=0 // pred_fallthru
    _
  // Predicated region
  $region6: #{processor_forward.14} parent=0 // pred_check
    _
  $region7: #{processor_forward.14} parent=0 // pred_check_branch
    %13 = sbr.rel (0) target = $region9
  $region8: #{processor_forward.14} parent=0 // pred_region
    _
  $region9: #{processor_forward.14} parent=0 // pred_fallthru
    _
  // Predicated region
  $region10: #{processor_forward.14} parent=0 // pred_check
    _
  $region11: #{processor_forward.14} parent=0 // pred_check_branch
    %15 = sbr.rel (0) target = $region13
  $region12: #{processor_forward.14} parent=0 // pred_region
    _
  $region13: #{processor_forward.14} parent=0 // pred_fallthru
    _
  // Predicated region
  $region14: #{processor_forward.14} parent=0 // pred_check
    _
  $region15: #{processor_forward.14} parent=0 // pred_check_branch
    %17 = sbr.rel (0) target = $region17
  $region16: #{processor_forward.14} parent=0 // pred_region
    _
  $region17: #{processor_forward.14} parent=0 // pred_fallthru
    _
  // Predicated region
  $region18: #{processor_forward.14} parent=0 // pred_check
    _
  $region19: #{processor_forward.14} parent=0 // pred_check_branch
    %19 = sbr.rel (0) target = $region21
  $region20: #{processor_forward.14} parent=0 // pred_region
    _
  $region21: #{processor_forward.14} parent=0 // pred_fallthru
    _
  %p21 = scmp.eq.s32.totalorder 0, 0
  // Predicated region
  $region22: #{processor_forward.14} parent=0 // pred_check
    %p22 = pneg %p21
  $region23: #{processor_forward.14} parent=0 // pred_check_branch
    %24 = sbr.rel (%p22) target = $region25
  $region24: #{processor_forward.14} parent=0 // pred_region
    %v25 = vld [vmem:[%s0] sm:$0xff]
    %v26 = vld [vmem:[%s0 + $0x8] sm:$0xff]
    %27 = vadd.xlane.f32.xlu0 %v25
    %v28 = vpop.xlane.xlu0 %27
    %29 = vadd.xlane.f32.xlu0 %v26
    %v30 = vpop.xlane.xlu0 %29
    %v31 = vrcp.pop 128.0
    %v32 = vmul.f32 %v28, %v31
    %v33 = vmul.f32 %v30, %v31
    %v34 = vsub.f32 %v25, %v32
    %v35 = vsub.f32 %v26, %v33
    %v36 = vmul.f32 %v34, %v34
    %v37 = vmul.f32 %v35, %v35
    %38 = vadd.xlane.f32.xlu0 %v36
    %v39 = vpop.xlane.xlu0 %38
    %40 = vadd.xlane.f32.xlu0 %v37
    %v41 = vpop.xlane.xlu0 %40
    %v42 = vmul.f32 %v39, %v31
    %v43 = vmul.f32 %v41, %v31
    %v44 = vadd.f32 %v42, 1e-05
    %v45 = vadd.f32 %v43, 1e-05
    %v46 = vrsqrt.pop %v44
    %v47 = vrsqrt.pop %v45
    %v48 = vmul.f32 %v34, %v46
    %v49 = vmul.f32 %v35, %v47
    %v50 = vld [vmem:[%s1] sm:$0x1]
    %v52 = vlaneseq
    %v53 = vshrl.u32 %v52, 7
    %v54 = vsub.s32 0, %v53
    %v55 = vrot.slane %v50, %v54
    %v57 = vmul.f32 %v48, %v55
    %v58 = vmul.f32 %v49, %v55
    %v59 = vld [vmem:[%s2] sm:$0x1]
    %v61 = vlaneseq
    %v62 = vshrl.u32 %v61, 7
    %v63 = vsub.s32 0, %v62
    %v64 = vrot.slane %v59, %v63
    %v66 = vadd.f32 %v57, %v64
    %v67 = vadd.f32 %v58, %v64
    %v68 = vpack.c.bf16 %v67, %v66
    %69 = vst [vmem:[#allocation2] sm:$0xff] %v68
  $region25: #{processor_forward.14} parent=0 // pred_fallthru
    _
  %v70 = vld [vmem:[#allocation2] sm:$0xff]
  %v71 = vld [vmem:[%s3] sm:$0xff]
  %v72 = vld [vmem:[%s3 + $0x8] sm:$0xff]
  %v73 = vld [vmem:[%s3 + $0x10] sm:$0xff]
  %v74 = vld [vmem:[%s3 + $0x18] sm:$0xff]
  %v75 = vld [vmem:[%s3 + $0x20] sm:$0xff]
  %v76 = vld [vmem:[%s3 + $0x28] sm:$0xff]
  %v77 = vld [vmem:[%s3 + $0x30] sm:$0xff]
  %v78 = vld [vmem:[%s3 + $0x38] sm:$0xff]
  %v79 = vld [vmem:[%s3 + $0x40] sm:$0xff]
  %v80 = vld [vmem:[%s3 + $0x48] sm:$0xff]
  %v81 = vld [vmem:[%s3 + $0x50] sm:$0xff]
  %v82 = vld [vmem:[%s3 + $0x58] sm:$0xff]
  %v83 = vld [vmem:[%s3 + $0x60] sm:$0xff]
  %v84 = vld [vmem:[%s3 + $0x68] sm:$0xff]
  %v85 = vld [vmem:[%s3 + $0x70] sm:$0xff]
  %v86 = vld [vmem:[%s3 + $0x78] sm:$0xff]
  %v87 = vld [vmem:[%s3 + $0x80] sm:$0xff]
  %v88 = vld [vmem:[%s3 + $0x88] sm:$0xff]
  %v89 = vld [vmem:[%s3 + $0x90] sm:$0xff]
  %v90 = vld [vmem:[%s3 + $0x98] sm:$0xff]
  %v91 = vld [vmem:[%s3 + $0xa0] sm:$0xff]
  %v92 = vld [vmem:[%s3 + $0xa8] sm:$0xff]
  %v93 = vld [vmem:[%s3 + $0xb0] sm:$0xff]
  %v94 = vld [vmem:[%s3 + $0xb8] sm:$0xff]
  %v95 = vld [vmem:[%s3 + $0xc0] sm:$0xff]
  %v96 = vld [vmem:[%s3 + $0xc8] sm:$0xff]
  %v97 = vld [vmem:[%s3 + $0xd0] sm:$0xff]
  %v98 = vld [vmem:[%s3 + $0xd8] sm:$0xff]
  %v99 = vld [vmem:[%s3 + $0xe0] sm:$0xff]
  %v100 = vld [vmem:[%s3 + $0xe8] sm:$0xff]
  %v101 = vld [vmem:[%s3 + $0xf0] sm:$0xff]
  %v102 = vld [vmem:[%s3 + $0xf8] sm:$0xff]
  %v103 = vld [vmem:[%s4] sm:$0xf]
  %v105 = vlaneseq
  %v106 = vshrl.u32 %v105, 7
  %v107 = vsub.s32 0, %v106
  %v108 = vrot.slane %v103, %v107
  %v109 = vlaneseq
  %v110 = vshrl.u32 %v109, 7
  %v111 = vsub.s32 1, %v110
  %v112 = vrot.slane %v103, %v111
  %v113 = vlaneseq
  %v114 = vshrl.u32 %v113, 7
  %v115 = vsub.s32 2, %v114
  %v116 = vrot.slane %v103, %v115
  %v117 = vlaneseq
  %v118 = vshrl.u32 %v117, 7
  %v119 = vsub.s32 3, %v118
  %v120 = vrot.slane %v103, %v119
  %v157 = vunpack.c.l.b16 %v71
  %v158 = vunpack.c.h.b16 %v71
  %v159 = vunpack.c.l.b16 %v72
  %v160 = vunpack.c.h.b16 %v72
  %v161 = vunpack.c.l.b16 %v73
  %v162 = vunpack.c.h.b16 %v73
  %v163 = vunpack.c.l.b16 %v74
  %v164 = vunpack.c.h.b16 %v74
  %v165 = vunpack.c.l.b16 %v75
  %v166 = vunpack.c.h.b16 %v75
  %v167 = vunpack.c.l.b16 %v76
  %v168 = vunpack.c.h.b16 %v76
  %v169 = vunpack.c.l.b16 %v77
  %v170 = vunpack.c.h.b16 %v77
  %v171 = vunpack.c.l.b16 %v78
  %v172 = vunpack.c.h.b16 %v78
  %v173 = vunpack.c.l.b16 %v79
  %v174 = vunpack.c.h.b16 %v79
  %v175 = vunpack.c.l.b16 %v80
  %v176 = vunpack.c.h.b16 %v80
  %v177 = vunpack.c.l.b16 %v81
  %v178 = vunpack.c.h.b16 %v81
  %v179 = vunpack.c.l.b16 %v82
  %v180 = vunpack.c.h.b16 %v82
  %v181 = vunpack.c.l.b16 %v83
  %v182 = vunpack.c.h.b16 %v83
  %v183 = vunpack.c.l.b16 %v84
  %v184 = vunpack.c.h.b16 %v84
  %v185 = vunpack.c.l.b16 %v85
  %v186 = vunpack.c.h.b16 %v85
  %v187 = vunpack.c.l.b16 %v86
  %v188 = vunpack.c.h.b16 %v86
  %v189 = vunpack.c.l.b16 %v87
  %v190 = vunpack.c.h.b16 %v87
  %v191 = vunpack.c.l.b16 %v88
  %v192 = vunpack.c.h.b16 %v88
  %v193 = vunpack.c.l.b16 %v89
  %v194 = vunpack.c.h.b16 %v89
  %v195 = vunpack.c.l.b16 %v90
  %v196 = vunpack.c.h.b16 %v90
  %v197 = vunpack.c.l.b16 %v91
  %v198 = vunpack.c.h.b16 %v91
  %v199 = vunpack.c.l.b16 %v92
  %v200 = vunpack.c.h.b16 %v92
  %v201 = vunpack.c.l.b16 %v93
  %v202 = vunpack.c.h.b16 %v93
  %v203 = vunpack.c.l.b16 %v94
  %v204 = vunpack.c.h.b16 %v94
  %v205 = vunpack.c.l.b16 %v95
  %v206 = vunpack.c.h.b16 %v95
  %v207 = vunpack.c.l.b16 %v96
  %v208 = vunpack.c.h.b16 %v96
  %v209 = vunpack.c.l.b16 %v97
  %v210 = vunpack.c.h.b16 %v97
  %v211 = vunpack.c.l.b16 %v98
  %v212 = vunpack.c.h.b16 %v98
  %v213 = vunpack.c.l.b16 %v99
  %v214 = vunpack.c.h.b16 %v99
  %v215 = vunpack.c.l.b16 %v100
  %v216 = vunpack.c.h.b16 %v100
  %v217 = vunpack.c.l.b16 %v101
  %v218 = vunpack.c.h.b16 %v101
  %v219 = vunpack.c.l.b16 %v102
  %v220 = vunpack.c.h.b16 %v102
  %v221 = vpack.c.b16 %v161, %v157
  %v222 = vpack.c.b16 %v162, %v158
  %v223 = vpack.c.b16 %v163, %v159
  %v224 = vpack.c.b16 %v164, %v160
  %v225 = vpack.c.b16 %v169, %v165
  %v226 = vpack.c.b16 %v170, %v166
  %v227 = vpack.c.b16 %v171, %v167
  %v228 = vpack.c.b16 %v172, %v168
  %v229 = vpack.c.b16 %v177, %v173
  %v230 = vpack.c.b16 %v178, %v174
  %v231 = vpack.c.b16 %v179, %v175
  %v232 = vpack.c.b16 %v180, %v176
  %v233 = vpack.c.b16 %v185, %v181
  %v234 = vpack.c.b16 %v186, %v182
  %v235 = vpack.c.b16 %v187, %v183
  %v236 = vpack.c.b16 %v188, %v184
  %v237 = vpack.c.b16 %v193, %v189
  %v238 = vpack.c.b16 %v194, %v190
  %v239 = vpack.c.b16 %v195, %v191
  %v240 = vpack.c.b16 %v196, %v192
  %v241 = vpack.c.b16 %v201, %v197
  %v242 = vpack.c.b16 %v202, %v198
  %v243 = vpack.c.b16 %v203, %v199
  %v244 = vpack.c.b16 %v204, %v200
  %v245 = vpack.c.b16 %v209, %v205
  %v246 = vpack.c.b16 %v210, %v206
  %v247 = vpack.c.b16 %v211, %v207
  %v248 = vpack.c.b16 %v212, %v208
  %v249 = vpack.c.b16 %v217, %v213
  %v250 = vpack.c.b16 %v218, %v214
  %v251 = vpack.c.b16 %v219, %v215
  %v252 = vpack.c.b16 %v220, %v216
  %285 = vmatprep.subr.bf16.mxu0 %v222
  %286 = vmatpush1.bf16.msra.mxu0 %v221
  %287 = vmatprep.subr.bf16.mxu0 %v226
  %288 = vmatpush1.bf16.msra.mxu0 %v225
  %289 = vmatprep.subr.bf16.mxu0 %v230
  %290 = vmatpush1.bf16.msra.mxu0 %v229
  %291 = vmatprep.subr.bf16.mxu0 %v234
  %292 = vmatpush1.bf16.msra.mxu0 %v233
  %293 = vmatprep.subr.bf16.mxu0 %v238
  %294 = vmatpush1.bf16.msra.mxu0 %v237
  %295 = vmatprep.subr.bf16.mxu0 %v242
  %296 = vmatpush1.bf16.msra.mxu0 %v241
  %297 = vmatprep.subr.bf16.mxu0 %v246
  %298 = vmatpush1.bf16.msra.mxu0 %v245
  %299 = vmatprep.subr.bf16.mxu0 %v250
  %300 = vmatpush1.bf16.msra.mxu0 %v249
  %301 = vmatprep.subr.bf16.mxu0 0
  %302 = vmatpush1.bf16.msra.mxu0 0
  %303 = vmatprep.subr.bf16.mxu0 0
  %304 = vmatpush1.bf16.msra.mxu0 0
  %305 = vmatprep.subr.bf16.mxu0 0
  %306 = vmatpush1.bf16.msra.mxu0 0
  %307 = vmatprep.subr.bf16.mxu0 0
  %308 = vmatpush1.bf16.msra.mxu0 0
  %309 = vmatprep.subr.bf16.mxu0 0
  %310 = vmatpush1.bf16.msra.mxu0 0
  %311 = vmatprep.subr.bf16.mxu0 0
  %312 = vmatpush1.bf16.msra.mxu0 0
  %313 = vmatprep.subr.bf16.mxu0 0
  %314 = vmatpush1.bf16.msra.mxu0 0
  %315 = vmatprep.subr.bf16.mxu0 0
  %316 = vmatpush1.bf16.msra.mxu0 0
  %317 = vmatprep.mubr.bf16.mxu0 0
  %318 = vmatmul.mubr.bf16.gmra.mrb[0].mxu0 %v70
  %v319 = vpop.f32.mrb[0].mxu0
  %v320 = vadd.f32 %v108, %v319
  %v321 = vpop.f32.mrb[0].mxu0
  %v322 = vadd.f32 %v112, %v321
  %v323 = vpop.f32.mrb[0].mxu0
  %v324 = vadd.f32 %v108, %v323
  %v325 = vpop.f32.mrb[0].mxu0
  %v326 = vadd.f32 %v112, %v325
  %327 = vdwg.mxu0
  %328 = vmatprep.subr.bf16.mxu0 %v224
  %329 = vmatpush1.bf16.msra.mxu0 %v223
  %330 = vmatprep.subr.bf16.mxu0 %v228
  %331 = vmatpush1.bf16.msra.mxu0 %v227
  %332 = vmatprep.subr.bf16.mxu0 %v232
  %333 = vmatpush1.bf16.msra.mxu0 %v231
  %334 = vmatprep.subr.bf16.mxu0 %v236
  %335 = vmatpush1.bf16.msra.mxu0 %v235
  %336 = vmatprep.subr.bf16.mxu0 %v240
  %337 = vmatpush1.bf16.msra.mxu0 %v239
  %338 = vmatprep.subr.bf16.mxu0 %v244
  %339 = vmatpush1.bf16.msra.mxu0 %v243
  %340 = vmatprep.subr.bf16.mxu0 %v248
  %341 = vmatpush1.bf16.msra.mxu0 %v247
  %342 = vmatprep.subr.bf16.mxu0 %v252
  %343 = vmatpush1.bf16.msra.mxu0 %v251
  %344 = vmatprep.subr.bf16.mxu0 0
  %345 = vmatpush1.bf16.msra.mxu0 0
  %346 = vmatprep.subr.bf16.mxu0 0
  %347 = vmatpush1.bf16.msra.mxu0 0
  %348 = vmatprep.subr.bf16.mxu0 0
  %349 = vmatpush1.bf16.msra.mxu0 0
  %350 = vmatprep.subr.bf16.mxu0 0
  %351 = vmatpush1.bf16.msra.mxu0 0
  %352 = vmatprep.subr.bf16.mxu0 0
  %353 = vmatpush1.bf16.msra.mxu0 0
  %354 = vmatprep.subr.bf16.mxu0 0
  %355 = vmatpush1.bf16.msra.mxu0 0
  %356 = vmatprep.subr.bf16.mxu0 0
  %357 = vmatpush1.bf16.msra.mxu0 0
  %358 = vmatprep.subr.bf16.mxu0 0
  %359 = vmatpush1.bf16.msra.mxu0 0
  %360 = vmatprep.mubr.bf16.mxu0 0
  %361 = vmatmul.mubr.bf16.gmra.mrb[0].mxu0 %v70
  %v362 = vpop.f32.mrb[0].mxu0
  %v363 = vadd.f32 %v116, %v362
  %v364 = vpop.f32.mrb[0].mxu0
  %v365 = vadd.f32 %v120, %v364
  %v366 = vpop.f32.mrb[0].mxu0
  %v367 = vadd.f32 %v116, %v366
  %v368 = vpop.f32.mrb[0].mxu0
  %v369 = vadd.f32 %v120, %v368
  %370 = vdwg.mxu0
  %v371 = vmul.f32 %v320, 0.5
  %v372 = vmul.f32 %v322, 0.5
  %v373 = vmul.f32 %v363, 0.5
  %v374 = vmul.f32 %v365, 0.5
  %v375 = vmul.f32 %v324, 0.5
  %v376 = vmul.f32 %v326, 0.5
  %v377 = vmul.f32 %v367, 0.5
  %v378 = vmul.f32 %v369, 0.5
  %v379 = vmul.f32 %v320, 0.70710677
  %v380 = vmul.f32 %v322, 0.70710677
  %v381 = vmul.f32 %v363, 0.70710677
  %v382 = vmul.f32 %v365, 0.70710677
  %v383 = vmul.f32 %v324, 0.70710677
  %v384 = vmul.f32 %v326, 0.70710677
  %v385 = vmul.f32 %v367, 0.70710677
  %v386 = vmul.f32 %v369, 0.70710677
  %v387 = verf.f32.pop %v379
  %v388 = verf.f32.pop %v380
  %v389 = verf.f32.pop %v381
  %v390 = verf.f32.pop %v382
  %v391 = verf.f32.pop %v383
  %v392 = verf.f32.pop %v384
  %v393 = verf.f32.pop %v385
  %v394 = verf.f32.pop %v386
  %v395 = vadd.f32 %v387, 1.0
  %v396 = vadd.f32 %v388, 1.0
  %v397 = vadd.f32 %v389, 1.0
  %v398 = vadd.f32 %v390, 1.0
  %v399 = vadd.f32 %v391, 1.0
  %v400 = vadd.f32 %v392, 1.0
  %v401 = vadd.f32 %v393, 1.0
  %v402 = vadd.f32 %v394, 1.0
  %v403 = vmul.f32 %v371, %v395
  %v404 = vmul.f32 %v372, %v396
  %v405 = vmul.f32 %v373, %v397
  %v406 = vmul.f32 %v374, %v398
  %v407 = vmul.f32 %v375, %v399
  %v408 = vmul.f32 %v376, %v400
  %v409 = vmul.f32 %v377, %v401
  %v410 = vmul.f32 %v378, %v402
  %v411 = vpack.c.bf16 %v407, %v403
  %v412 = vpack.c.bf16 %v408, %v404
  %v413 = vpack.c.bf16 %v409, %v405
  %v414 = vpack.c.bf16 %v410, %v406
  %v419 = vunpack.c.l.b16 %v411
  %v420 = vunpack.c.l.b16 %v412
  %v421 = vunpack.c.l.b16 %v413
  %v422 = vunpack.c.l.b16 %v414
  %v423 = vunpack.c.h.b16 %v411
  %v424 = vunpack.c.h.b16 %v412
  %v425 = vunpack.c.h.b16 %v413
  %v426 = vunpack.c.h.b16 %v414
  %v427 = vpack.c.b16 %v420, %v419
  %v428 = vpack.c.b16 %v422, %v421
  %v429 = vpack.c.b16 %v424, %v423
  %v430 = vpack.c.b16 %v426, %v425
  %435 = vst [vmem:[%s5] sm:$0xff] %v427
  %436 = vst [vmem:[%s5 + $0x8] sm:$0xff] %v428
  %437 = vst [vmem:[%s5 + $0x10] sm:$0xff] %v429
  %438 = vst [vmem:[%s5 + $0x18] sm:$0xff] %v430
  // Predicated region
  $region26: #{processor_forward.14} parent=0 // pred_check
    _
  $region27: #{processor_forward.14} parent=0 // pred_check_branch
    %440 = sbr.rel (0) target = $region29
  $region28: #{processor_forward.14} parent=0 // pred_region
    _
  $region29: #{processor_forward.14} parent=0 // pred_fallthru
    _
  // Predicated region
  $region30: #{processor_forward.14} parent=0 // pred_check
    _
  $region31: #{processor_forward.14} parent=0 // pred_check_branch
    %442 = sbr.rel (0) target = $region33
  $region32: #{processor_forward.14} parent=0 // pred_region
    _
  $region33: #{processor_forward.14} parent=0 // pred_fallthru
    _

// kernel: processor_forward.12
$region0: #{processor_forward.12}
  #allocation0 [shape = 'u32[]', space=smem, size = 0x4, offset = 0x4, fixed_abs, tag = 'smem constant byte address 0x4 - core index']
  #allocation1 [shape = 'u32[144,128]{1,0:T(1,128)}', space=vmem, size = 0x12000, scoped, tag = 'internal scratch']
  #allocation2 [shape = 'bf16[8,128]{1,0:T(8,128)(2,1)}', space=vmem, size = 0x800, scoped, tag = 'scratch operand']
  #allocation3 [shape = 'f32[8,128]{1,0:T(8,128)}', space=vmem, size = 0x1000, scoped, tag = 'scratch operand']
  #allocation4 [shape = 'f32[8,128]{1,0:T(8,128)}', space=vmem, size = 0x1000, scoped, tag = 'scratch operand']
  #allocation5 [shape = 'f32[8,128]{1,0:T(8,128)}', space=vmem, size = 0x1000, scoped, tag = 'scratch operand']
  %s0 = inlined_call_operand.vmem [shape: bf16[2,8,384], index: 0, kind: input, shape index: {}, may-alias: {0,1,2}]
  %s1 = inlined_call_operand.vmem [shape: bf16[2,8,384], index: 1, kind: input, shape index: {}, may-alias: {0,1,2}]
  %s2 = inlined_call_operand.vmem [shape: bf16[2,8,384], index: 2, kind: input, shape index: {}, may-alias: {0,1,2}]
  %s3 = inlined_call_operand.vmem [shape: f32[8,128], index: 3, kind: input, shape index: {}, may-alias: {3,5}]
  %s4 = inlined_call_operand.vmem [shape: f32[8,128], index: 4, kind: input, shape index: {}, may-alias: {4,6}]
  %s5 = inlined_call_operand.vmem [shape: f32[8,128], index: 5, kind: input, shape index: {}, may-alias: {3,5}]
  %s6 = inlined_call_operand.vmem [shape: f32[8,128], index: 6, kind: input, shape index: {}, may-alias: {4,6}]
  %s7 = inlined_call_operand.vmem [shape: f32[1,128], index: 7, kind: input, shape index: {}]
  %s8 = inlined_call_operand.vmem [shape: bf16[2,8,128], index: 8, kind: output, shape index: {}]
  %s9 = sld [smem:[#allocation0]]
  $region77: #{processor_forward.12} parent=0
    _
  %s11 = ssub.s32 1, %s9
  %s12 = scalar_select 0, %s11, %s9
  loop: start=0, step=1, limit=4
  $region2: #{processor_forward.12} parent=0 // loop_pre_header
    _
  $region3: #{processor_forward.12} parent=0 // loop_header
    %s14 = sphi 0, %s18
    %p15 = scmp.ge.s32.totalorder %s14, 4
    %s21 = sphi 0, %s40
    %s22 = sphi 0, %s36
    %s23 = sphi 0, %s32
    %s24 = sphi 0, %s21
    %s25 = sphi 0, %s22
    %s26 = sphi 0, %s23
    %s27 = sphi 0, %s24
    %s28 = sphi 0, %s25
    %s29 = sphi 0, %s26
    %s45 = sphi 0, %s47
    %s48 = sphi 0, %s45
    %s49 = sphi 0, %s48
    %s65 = sphi 0, %s49
    %s77 = sphi 0, %s79
    %s80 = sphi 0, %s77
    %s81 = sphi 0, %s80
    %s97 = sphi 0, %s81
    %s109 = sphi 0, %s111
    %s112 = sphi 0, %s109
    %s113 = sphi 0, %s112
    %s129 = sphi 0, %s113
    %s135 = sphi 0, %s137
    %s138 = sphi 0, %s135
    %s139 = sphi 0, %s138
    %s155 = sphi 0, %s139
    %s161 = sphi 0, %s163
    %s164 = sphi 0, %s161
    %s165 = sphi 0, %s164
    %s181 = sphi 0, %s165
    %s191 = sphi 0, %s193
    %s194 = sphi 0, %s191
    %s195 = sphi 0, %s194
    %s211 = sphi 0, %s195
    %s221 = sphi 0, %s223
    %s224 = sphi 0, %s221
    %s225 = sphi 0, %s224
    %s241 = sphi 0, %s225
    %s245 = sphi 0, %s245
    %s247 = sphi 0, %s245
    %s248 = sphi 0, %s247
    %s262 = sphi 0, %s248
    %s270 = sphi 0, %s272
    %s273 = sphi 0, %s270
    %s274 = sphi 0, %s273
    %s290 = sphi 0, %s274
  $region4: #{processor_forward.12} parent=0 // loop_header_branch
    %17 = sbr.rel (%p15) target = $region8
  $region5: #{processor_forward.12} parent=0 // loop_body
    %s19 = ssub.s32 %s14, 1
    %s20 = ssub.s32 %s14, 2
    %s30 = sadd.s32 1, %s23
    %p31 = scmp.ge.s32.totalorder %s30, 1
    %s32 = scalar_select %p31, 0, %s30
    %s33 = sadd.s32 1, %s22
    %s34 = scalar_select %p31, %s33, %s22
    %p35 = scmp.ge.s32.totalorder %s34, 1
    %s36 = scalar_select %p35, 0, %s34
    %s37 = sadd.s32 1, %s21
    %s38 = scalar_select %p35, %s37, %s21
    %p39 = scmp.ge.s32.totalorder %s38, 2
    %s40 = scalar_select %p39, 0, %s38
    %s41 = ssub.s32 %s21, %s40
    %s42 = ssub.s32 %s22, %s36
    %s43 = sor.u32 %s41, %s42
    %p44 = scmp.eq.s32.totalorder %s43, 0
    %s46 = sadd.s32 %s45, 1
    %s47 = scalar_select %p44, %s45, %s46
    %p50 = pneg %p44
    %p51 = scmp.eq.s32.totalorder %s14, 1
    %p52 = por %p50, %p51
    %p53 = scmp.ne.s32.totalorder %s45, %s48
    %p54 = scmp.eq.s32.totalorder %s14, 0
    %p55 = por %p53, %p54
    %p56 = scmp.ne.s32.totalorder %s45, %s48
    %p57 = scmp.eq.s32.totalorder %s19, 1
    %p58 = por %p56, %p57
    %p59 = scmp.ne.s32.totalorder %s48, %s49
    %p60 = scmp.eq.s32.totalorder %s19, 0
    %p61 = por %p59, %p60
    %p62 = scmp.ne.s32.totalorder %s48, %s49
    %p63 = scmp.eq.s32.totalorder %s20, 1
    %p64 = por %p62, %p63
    %p66 = scmp.ne.s32.totalorder %s49, %s65
    %p67 = scmp.eq.s32.totalorder %s20, 0
    %p68 = por %p66, %p67
    %p69 = scmp.lt.s32.totalorder %s22, %s23
    %s70 = scalar_select %p69, %s22, %s23
    %p71 = scmp.lt.s32.totalorder %s36, %s32
    %s72 = scalar_select %p71, %s36, %s32
    %s73 = ssub.s32 %s21, %s40
    %s74 = ssub.s32 %s70, %s72
    %s75 = sor.u32 %s73, %s74
    %p76 = scmp.eq.s32.totalorder %s75, 0
    %s78 = sadd.s32 %s77, 1
    %s79 = scalar_select %p76, %s77, %s78
    %p82 = pneg %p76
    %p83 = scmp.eq.s32.totalorder %s14, 1
    %p84 = por %p82, %p83
    %p85 = scmp.ne.s32.totalorder %s77, %s80
    %p86 = scmp.eq.s32.totalorder %s14, 0
    %p87 = por %p85, %p86
    %p88 = scmp.ne.s32.totalorder %s77, %s80
    %p89 = scmp.eq.s32.totalorder %s19, 1
    %p90 = por %p88, %p89
    %p91 = scmp.ne.s32.totalorder %s80, %s81
    %p92 = scmp.eq.s32.totalorder %s19, 0
    %p93 = por %p91, %p92
    %p94 = scmp.ne.s32.totalorder %s80, %s81
    %p95 = scmp.eq.s32.totalorder %s20, 1
    %p96 = por %p94, %p95
    %p98 = scmp.ne.s32.totalorder %s81, %s97
    %p99 = scmp.eq.s32.totalorder %s20, 0
    %p100 = por %p98, %p99
    %p101 = scmp.lt.s32.totalorder %s22, %s23
    %s102 = scalar_select %p101, %s22, %s23
    %p103 = scmp.lt.s32.totalorder %s36, %s32
    %s104 = scalar_select %p103, %s36, %s32
    %s105 = ssub.s32 %s21, %s40
    %s106 = ssub.s32 %s102, %s104
    %s107 = sor.u32 %s105, %s106
    %p108 = scmp.eq.s32.totalorder %s107, 0
    %s110 = sadd.s32 %s109, 1
    %s111 = scalar_select %p108, %s109, %s110
    %p114 = pneg %p108
    %p115 = scmp.eq.s32.totalorder %s14, 1
    %p116 = por %p114, %p115
    %p117 = scmp.ne.s32.totalorder %s109, %s112
    %p118 = scmp.eq.s32.totalorder %s14, 0
    %p119 = por %p117, %p118
    %p120 = scmp.ne.s32.totalorder %s109, %s112
    %p121 = scmp.eq.s32.totalorder %s19, 1
    %p122 = por %p120, %p121
    %p123 = scmp.ne.s32.totalorder %s112, %s113
    %p124 = scmp.eq.s32.totalorder %s19, 0
    %p125 = por %p123, %p124
    %p126 = scmp.ne.s32.totalorder %s112, %s113
    %p127 = scmp.eq.s32.totalorder %s20, 1
    %p128 = por %p126, %p127
    %p130 = scmp.ne.s32.totalorder %s113, %s129
    %p131 = scmp.eq.s32.totalorder %s20, 0
    %p132 = por %p130, %p131
    %s133 = ssub.s32 %s22, %s36
    %p134 = scmp.eq.s32.totalorder %s133, 0
    %s136 = sadd.s32 %s135, 1
    %s137 = scalar_select %p134, %s135, %s136
    %p140 = pneg %p134
    %p141 = scmp.eq.s32.totalorder %s14, 1
    %p142 = por %p140, %p141
    %p143 = scmp.ne.s32.totalorder %s135, %s138
    %p144 = scmp.eq.s32.totalorder %s14, 0
    %p145 = por %p143, %p144
    %p146 = scmp.ne.s32.totalorder %s135, %s138
    %p147 = scmp.eq.s32.totalorder %s19, 1
    %p148 = por %p146, %p147
    %p149 = scmp.ne.s32.totalorder %s138, %s139
    %p150 = scmp.eq.s32.totalorder %s19, 0
    %p151 = por %p149, %p150
    %p152 = scmp.ne.s32.totalorder %s138, %s139
    %p153 = scmp.eq.s32.totalorder %s20, 1
    %p154 = por %p152, %p153
    %p156 = scmp.ne.s32.totalorder %s139, %s155
    %p157 = scmp.eq.s32.totalorder %s20, 0
    %p158 = por %p156, %p157
    %s159 = ssub.s32 %s22, %s36
    %p160 = scmp.eq.s32.totalorder %s159, 0
    %s162 = sadd.s32 %s161, 1
    %s163 = scalar_select %p160, %s161, %s162
    %p166 = pneg %p160
    %p167 = scmp.eq.s32.totalorder %s14, 1
    %p168 = por %p166, %p167
    %p169 = scmp.ne.s32.totalorder %s161, %s164
    %p170 = scmp.eq.s32.totalorder %s14, 0
    %p171 = por %p169, %p170
    %p172 = scmp.ne.s32.totalorder %s161, %s164
    %p173 = scmp.eq.s32.totalorder %s19, 1
    %p174 = por %p172, %p173
    %p175 = scmp.ne.s32.totalorder %s164, %s165
    %p176 = scmp.eq.s32.totalorder %s19, 0
    %p177 = por %p175, %p176
    %p178 = scmp.ne.s32.totalorder %s164, %s165
    %p179 = scmp.eq.s32.totalorder %s20, 1
    %p180 = por %p178, %p179
    %p182 = scmp.ne.s32.totalorder %s165, %s181
    %p183 = scmp.eq.s32.totalorder %s20, 0
    %p184 = por %p182, %p183
    %p185 = scmp.lt.s32.totalorder %s22, %s23
    %s186 = scalar_select %p185, %s22, %s23
    %p187 = scmp.lt.s32.totalorder %s36, %s32
    %s188 = scalar_select %p187, %s36, %s32
    %s189 = ssub.s32 %s186, %s188
    %p190 = scmp.eq.s32.totalorder %s189, 0
    %s192 = sadd.s32 %s191, 1
    %s193 = scalar_select %p190, %s191, %s192
    %p196 = pneg %p190
    %p197 = scmp.eq.s32.totalorder %s14, 1
    %p198 = por %p196, %p197
    %p199 = scmp.ne.s32.totalorder %s191, %s194
    %p200 = scmp.eq.s32.totalorder %s14, 0
    %p201 = por %p199, %p200
    %p202 = scmp.ne.s32.totalorder %s191, %s194
    %p203 = scmp.eq.s32.totalorder %s19, 1
    %p204 = por %p202, %p203
    %p205 = scmp.ne.s32.totalorder %s194, %s195
    %p206 = scmp.eq.s32.totalorder %s19, 0
    %p207 = por %p205, %p206
    %p208 = scmp.ne.s32.totalorder %s194, %s195
    %p209 = scmp.eq.s32.totalorder %s20, 1
    %p210 = por %p208, %p209
    %p212 = scmp.ne.s32.totalorder %s195, %s211
    %p213 = scmp.eq.s32.totalorder %s20, 0
    %p214 = por %p212, %p213
    %p215 = scmp.lt.s32.totalorder %s22, %s23
    %s216 = scalar_select %p215, %s22, %s23
    %p217 = scmp.lt.s32.totalorder %s36, %s32
    %s218 = scalar_select %p217, %s36, %s32
    %s219 = ssub.s32 %s216, %s218
    %p220 = scmp.eq.s32.totalorder %s219, 0
    %s222 = sadd.s32 %s221, 1
    %s223 = scalar_select %p220, %s221, %s222
    %p226 = pneg %p220
    %p227 = scmp.eq.s32.totalorder %s14, 1
    %p228 = por %p226, %p227
    %p229 = scmp.ne.s32.totalorder %s221, %s224
    %p230 = scmp.eq.s32.totalorder %s14, 0
    %p231 = por %p229, %p230
    %p232 = scmp.ne.s32.totalorder %s221, %s224
    %p233 = scmp.eq.s32.totalorder %s19, 1
    %p234 = por %p232, %p233
    %p235 = scmp.ne.s32.totalorder %s224, %s225
    %p236 = scmp.eq.s32.totalorder %s19, 0
    %p237 = por %p235, %p236
    %p238 = scmp.ne.s32.totalorder %s224, %s225
    %p239 = scmp.eq.s32.totalorder %s20, 1
    %p240 = por %p238, %p239
    %p242 = scmp.ne.s32.totalorder %s225, %s241
    %p243 = scmp.eq.s32.totalorder %s20, 0
    %p244 = por %p242, %p243
    %s246 = sadd.s32 %s245, 1
    %p249 = scmp.eq.s32.totalorder %s14, 1
    %p250 = scmp.ne.s32.totalorder %s245, %s247
    %p251 = scmp.eq.s32.totalorder %s14, 0
    %p252 = por %p250, %p251
    %p253 = scmp.ne.s32.totalorder %s245, %s247
    %p254 = scmp.eq.s32.totalorder %s19, 1
    %p255 = por %p253, %p254
    %p256 = scmp.ne.s32.totalorder %s247, %s248
    %p257 = scmp.eq.s32.totalorder %s19, 0
    %p258 = por %p256, %p257
    %p259 = scmp.ne.s32.totalorder %s247, %s248
    %p260 = scmp.eq.s32.totalorder %s20, 1
    %p261 = por %p259, %p260
    %p263 = scmp.ne.s32.totalorder %s248, %s262
    %p264 = scmp.eq.s32.totalorder %s20, 0
    %p265 = por %p263, %p264
    %s266 = ssub.s32 %s21, %s40
    %s267 = ssub.s32 %s22, %s36
    %s268 = sor.u32 %s266, %s267
    %p269 = scmp.eq.s32.totalorder %s268, 0
    %s271 = sadd.s32 %s270, 1
    %s272 = scalar_select %p269, %s270, %s271
    %p275 = pneg %p269
    %p276 = scmp.eq.s32.totalorder %s14, 1
    %p277 = por %p275, %p276
    %p278 = scmp.ne.s32.totalorder %s270, %s273
    %p279 = scmp.eq.s32.totalorder %s14, 0
    %p280 = por %p278, %p279
    %p281 = scmp.ne.s32.totalorder %s270, %s273
    %p282 = scmp.eq.s32.totalorder %s19, 1
    %p283 = por %p281, %p282
    %p284 = scmp.ne.s32.totalorder %s273, %s274
    %p285 = scmp.eq.s32.totalorder %s19, 0
    %p286 = por %p284, %p285
    %p287 = scmp.ne.s32.totalorder %s273, %s274
    %p288 = scmp.eq.s32.totalorder %s20, 1
    %p289 = por %p287, %p288
    %p291 = scmp.ne.s32.totalorder %s274, %s290
    %p292 = scmp.eq.s32.totalorder %s20, 0
    %p293 = por %p291, %p292
    %p294 = scmp.le.s32.totalorder 1, %s14
    %p295 = scmp.lt.s32.totalorder %s14, 3
    %p296 = pnand %p294, %p295
    %p297 = pneg %p296
    // Predicated region
    $region9: #{processor_forward.12} parent=5 // pred_check
      _
    $region10: #{processor_forward.12} parent=5 // pred_check_branch
      %299 = sbr.rel (%p296) target = $region12
    $region11: #{processor_forward.12} parent=5 // pred_region
      %s300 = ssub.s32 %s14, 1
      // Predicated region
      $region13: #{processor_forward.12} parent=11 // pred_check
        %p301 = pneg %p151
      $region14: #{processor_forward.12} parent=11 // pred_check_branch
        %303 = sbr.rel (%p301) target = $region16
      $region15: #{processor_forward.12} parent=11 // pred_region
        %p304 = scmp.lt.s32.totalorder %s25, 0
        %s305 = scalar_select %p304, %s25, 0
        %s306 = smul.addr %s305, 8
        %s307 = scalar_lea.vmem %s3, %s306
      $region16: #{processor_forward.12} parent=11 // pred_fallthru
        _
      // Predicated region
      $region17: #{processor_forward.12} parent=11 // pred_check
        %p308 = pneg %p177
      $region18: #{processor_forward.12} parent=11 // pred_check_branch
        %310 = sbr.rel (%p308) target = $region20
      $region19: #{processor_forward.12} parent=11 // pred_region
        %p311 = scmp.lt.s32.totalorder %s25, 0
        %s312 = scalar_select %p311, %s25, 0
        %s313 = smul.addr %s312, 8
        %s314 = scalar_lea.vmem %s4, %s313
      $region20: #{processor_forward.12} parent=11 // pred_fallthru
        _
      // Predicated region
      $region21: #{processor_forward.12} parent=11 // pred_check
        %p315 = pneg %p207
      $region22: #{processor_forward.12} parent=11 // pred_check_branch
        %317 = sbr.rel (%p315) target = $region24
      $region23: #{processor_forward.12} parent=11 // pred_region
        %p318 = scmp.lt.s32.totalorder %s25, %s26
        %s319 = scalar_select %p318, %s25, %s26
        %p320 = scmp.lt.s32.totalorder %s319, 0
        %s321 = scalar_select %p320, %s319, 0
        %s322 = smul.addr %s321, 8
        %s323 = scalar_lea.vmem %s5, %s322
        %p324 = scmp.lt.s32.totalorder %s25, %s26
        %s325 = scalar_select %p324, %s25, %s26
      $region24: #{processor_forward.12} parent=11 // pred_fallthru
        _
      // Predicated region
      $region25: #{processor_forward.12} parent=11 // pred_check
        %p326 = pneg %p237
      $region26: #{processor_forward.12} parent=11 // pred_check_branch
        %328 = sbr.rel (%p326) target = $region28
      $region27: #{processor_forward.12} parent=11 // pred_region
        %p329 = scmp.lt.s32.totalorder %s25, %s26
        %s330 = scalar_select %p329, %s25, %s26
        %p331 = scmp.lt.s32.totalorder %s330, 0
        %s332 = scalar_select %p331, %s330, 0
        %s333 = smul.addr %s332, 8
        %s334 = scalar_lea.vmem %s6, %s333
        %p335 = scmp.lt.s32.totalorder %s25, %s26
        %s336 = scalar_select %p335, %s25, %s26
      $region28: #{processor_forward.12} parent=11 // pred_fallthru
        _
      // Predicated region
      $region29: #{processor_forward.12} parent=11 // pred_check
        %p337 = pneg %p258
      $region30: #{processor_forward.12} parent=11 // pred_check_branch
        %339 = sbr.rel (%p337) target = $region32
      $region31: #{processor_forward.12} parent=11 // pred_region
        _
      $region32: #{processor_forward.12} parent=11 // pred_fallthru
        _
    $region12: #{processor_forward.12} parent=5 // pred_fallthru
      _
    %p340 = scmp.lt.s32.totalorder %s14, 2
    // Predicated region
    $region33: #{processor_forward.12} parent=5 // pred_check
      %p341 = pneg %p340
    $region34: #{processor_forward.12} parent=5 // pred_check_branch
      %343 = sbr.rel (%p341) target = $region36
    $region35: #{processor_forward.12} parent=5 // pred_region
      // Predicated region
      $region37: #{processor_forward.12} parent=35 // pred_check
        %p344 = pneg %p55
      $region38: #{processor_forward.12} parent=35 // pred_check_branch
        %346 = sbr.rel (%p344) target = $region40
      $region39: #{processor_forward.12} parent=35 // pred_region
        %p347 = scmp.lt.s32.totalorder %s21, 1
        %s348 = scalar_select %p347, %s21, 1
        %p349 = scmp.lt.s32.totalorder %s22, 0
        %s350 = scalar_select %p349, %s22, 0
        %s351 = smul.addr %s350, 3
        %s352 = smul.addr %s348, 3
        %s353 = sadd.s32 %s351, %s352
        %s354 = smul.addr %s353, 4
        %s355 = scalar_lea.vmem %s0, %s354
      $region40: #{processor_forward.12} parent=35 // pred_fallthru
        _
      // Predicated region
      $region41: #{processor_forward.12} parent=35 // pred_check
        %p356 = pneg %p87
      $region42: #{processor_forward.12} parent=35 // pred_check_branch
        %358 = sbr.rel (%p356) target = $region44
      $region43: #{processor_forward.12} parent=35 // pred_region
        %p359 = scmp.lt.s32.totalorder %s22, %s23
        %s360 = scalar_select %p359, %s22, %s23
        %p361 = scmp.lt.s32.totalorder %s21, 1
        %s362 = scalar_select %p361, %s21, 1
        %p363 = scmp.lt.s32.totalorder %s360, 0
        %s364 = scalar_select %p363, %s360, 0
        %s365 = smul.addr %s364, 3
        %s366 = sadd.s32 1, %s365
        %s367 = smul.addr %s362, 3
        %s368 = sadd.s32 %s366, %s367
        %s369 = smul.addr %s368, 4
        %s370 = scalar_lea.vmem %s1, %s369
        %p371 = scmp.lt.s32.totalorder %s22, %s23
        %s372 = scalar_select %p371, %s22, %s23
      $region44: #{processor_forward.12} parent=35 // pred_fallthru
        _
      // Predicated region
      $region45: #{processor_forward.12} parent=35 // pred_check
        %p373 = pneg %p119
      $region46: #{processor_forward.12} parent=35 // pred_check_branch
        %375 = sbr.rel (%p373) target = $region48
      $region47: #{processor_forward.12} parent=35 // pred_region
        %p376 = scmp.lt.s32.totalorder %s22, %s23
        %s377 = scalar_select %p376, %s22, %s23
        %p378 = scmp.lt.s32.totalorder %s21, 1
        %s379 = scalar_select %p378, %s21, 1
        %p380 = scmp.lt.s32.totalorder %s377, 0
        %s381 = scalar_select %p380, %s377, 0
        %s382 = smul.addr %s381, 3
        %s383 = sadd.s32 2, %s382
        %s384 = smul.addr %s379, 3
        %s385 = sadd.s32 %s383, %s384
        %s386 = smul.addr %s385, 4
        %s387 = scalar_lea.vmem %s2, %s386
        %p388 = scmp.lt.s32.totalorder %s22, %s23
        %s389 = scalar_select %p388, %s22, %s23
      $region48: #{processor_forward.12} parent=35 // pred_fallthru
        _
    $region36: #{processor_forward.12} parent=5 // pred_fallthru
      _
    %p390 = scmp.le.s32.totalorder 1, %s14
    %p391 = scmp.lt.s32.totalorder %s14, 3
    %p392 = pnand %p390, %p391
    %p393 = pneg %p392
    // Predicated region
    $region49: #{processor_forward.12} parent=5 // pred_check
      _
    $region50: #{processor_forward.12} parent=5 // pred_check_branch
      %395 = sbr.rel (%p392) target = $region52
    $region51: #{processor_forward.12} parent=5 // pred_region
      %s396 = ssub.s32 %s14, 1
      %p397 = scmp.lt.s32.totalorder %s24, 1
      %s398 = scalar_select %p397, %s24, 1
      %p399 = scmp.lt.s32.totalorder %s25, 0
      %s400 = scalar_select %p399, %s25, 0
      %s401 = smul.addr %s400, 3
      %s402 = smul.addr %s398, 3
      %s403 = sadd.s32 %s401, %s402
      %s404 = smul.addr %s403, 4
      %s405 = scalar_lea.vmem %s0, %s404
      %p406 = pneg %p61
      %p407 = pneg %p58
      %p408 = scmp.lt.s32.totalorder %s25, %s26
      %s409 = scalar_select %p408, %s25, %s26
      %p410 = scmp.lt.s32.totalorder %s24, 1
      %s411 = scalar_select %p410, %s24, 1
      %p412 = scmp.lt.s32.totalorder %s409, 0
      %s413 = scalar_select %p412, %s409, 0
      %s414 = smul.addr %s413, 3
      %s415 = sadd.s32 1, %s414
      %s416 = smul.addr %s411, 3
      %s417 = sadd.s32 %s415, %s416
      %s418 = smul.addr %s417, 4
      %s419 = scalar_lea.vmem %s1, %s418
      %p420 = pneg %p93
      %p421 = pneg %p90
      %p422 = scmp.lt.s32.totalorder %s25, %s26
      %s423 = scalar_select %p422, %s25, %s26
      %p424 = scmp.lt.s32.totalorder %s24, 1
      %s425 = scalar_select %p424, %s24, 1
      %p426 = scmp.lt.s32.totalorder %s423, 0
      %s427 = scalar_select %p426, %s423, 0
      %s428 = smul.addr %s427, 3
      %s429 = sadd.s32 2, %s428
      %s430 = smul.addr %s425, 3
      %s431 = sadd.s32 %s429, %s430
      %s432 = smul.addr %s431, 4
      %s433 = scalar_lea.vmem %s2, %s432
      %p434 = pneg %p125
      %p435 = pneg %p122
      %p436 = scmp.lt.s32.totalorder %s25, 0
      %s437 = scalar_select %p436, %s25, 0
      %s438 = smul.addr %s437, 8
      %s439 = scalar_lea.vmem %s3, %s438
      %p440 = pneg %p151
      %p441 = pneg %p148
      %p442 = scmp.lt.s32.totalorder %s25, 0
      %s443 = scalar_select %p442, %s25, 0
      %s444 = smul.addr %s443, 8
      %s445 = scalar_lea.vmem %s4, %s444
      %p446 = pneg %p177
      %p447 = pneg %p174
      %p448 = scmp.lt.s32.totalorder %s25, %s26
      %s449 = scalar_select %p448, %s25, %s26
      %p450 = scmp.lt.s32.totalorder %s449, 0
      %s451 = scalar_select %p450, %s449, 0
      %s452 = smul.addr %s451, 8
      %s453 = scalar_lea.vmem %s5, %s452
      %p454 = pneg %p207
      %p455 = pneg %p204
      %p456 = scmp.lt.s32.totalorder %s25, %s26
      %s457 = scalar_select %p456, %s25, %s26
      %p458 = scmp.lt.s32.totalorder %s457, 0
      %s459 = scalar_select %p458, %s457, 0
      %s460 = smul.addr %s459, 8
      %s461 = scalar_lea.vmem %s6, %s460
      %p462 = pneg %p237
      %p463 = pneg %p234
      %p464 = pneg %p258
      %p465 = pneg %p255
      %p466 = pneg %p286
      %p467 = pneg %p283
      %p468 = scmp.lt.s32.totalorder %s24, 1
      %s469 = scalar_select %p468, %s24, 1
      %p470 = scmp.lt.s32.totalorder %s25, 0
      %s471 = scalar_select %p470, %s25, 0
      %s472 = sadd.s32 %s471, %s469
      %s473 = smul.addr %s472, 4
      %s474 = scalar_lea.vmem %s8, %s473
      %p475 = scmp.lt.s32.totalorder %s24, 1
      %s476 = scalar_select %p475, %s24, 1
      %p477 = scmp.lt.s32.totalorder %s25, 0
      %s478 = scalar_select %p477, %s25, 0
      %s479 = smul.addr %s478, 3
      %s480 = smul.addr %s476, 3
      %s481 = sadd.s32 %s479, %s480
      %s482 = smul.addr %s481, 4
      %s483 = scalar_lea.vmem %s0, %s482
      %p484 = scmp.lt.s32.totalorder %s25, %s26
      %s485 = scalar_select %p484, %s25, %s26
      %p486 = scmp.lt.s32.totalorder %s24, 1
      %s487 = scalar_select %p486, %s24, 1
      %p488 = scmp.lt.s32.totalorder %s485, 0
      %s489 = scalar_select %p488, %s485, 0
      %s490 = smul.addr %s489, 3
      %s491 = sadd.s32 1, %s490
      %s492 = smul.addr %s487, 3
      %s493 = sadd.s32 %s491, %s492
      %s494 = smul.addr %s493, 4
      %s495 = scalar_lea.vmem %s1, %s494
      %p496 = scmp.lt.s32.totalorder %s25, %s26
      %s497 = scalar_select %p496, %s25, %s26
      %p498 = scmp.lt.s32.totalorder %s25, %s26
      %s499 = scalar_select %p498, %s25, %s26
      %p500 = scmp.lt.s32.totalorder %s24, 1
      %s501 = scalar_select %p500, %s24, 1
      %p502 = scmp.lt.s32.totalorder %s499, 0
      %s503 = scalar_select %p502, %s499, 0
      %s504 = smul.addr %s503, 3
      %s505 = sadd.s32 2, %s504
      %s506 = smul.addr %s501, 3
      %s507 = sadd.s32 %s505, %s506
      %s508 = smul.addr %s507, 4
      %s509 = scalar_lea.vmem %s2, %s508
      %p510 = scmp.lt.s32.totalorder %s25, %s26
      %s511 = scalar_select %p510, %s25, %s26
      %p512 = scmp.lt.s32.totalorder %s25, 0
      %s513 = scalar_select %p512, %s25, 0
      %s514 = smul.addr %s513, 8
      %s515 = scalar_lea.vmem %s3, %s514
      %p516 = scmp.lt.s32.totalorder %s25, 0
      %s517 = scalar_select %p516, %s25, 0
      %s518 = smul.addr %s517, 8
      %s519 = scalar_lea.vmem %s4, %s518
      %p520 = scmp.lt.s32.totalorder %s25, %s26
      %s521 = scalar_select %p520, %s25, %s26
      %p522 = scmp.lt.s32.totalorder %s521, 0
      %s523 = scalar_select %p522, %s521, 0
      %s524 = smul.addr %s523, 8
      %s525 = scalar_lea.vmem %s5, %s524
      %p526 = scmp.lt.s32.totalorder %s25, %s26
      %s527 = scalar_select %p526, %s25, %s26
      %p528 = scmp.lt.s32.totalorder %s25, %s26
      %s529 = scalar_select %p528, %s25, %s26
      %p530 = scmp.lt.s32.totalorder %s529, 0
      %s531 = scalar_select %p530, %s529, 0
      %s532 = smul.addr %s531, 8
      %s533 = scalar_lea.vmem %s6, %s532
      %p534 = scmp.lt.s32.totalorder %s25, %s26
      %s535 = scalar_select %p534, %s25, %s26
      %p536 = scmp.lt.s32.totalorder %s24, 1
      %s537 = scalar_select %p536, %s24, 1
      %p538 = scmp.lt.s32.totalorder %s25, 0
      %s539 = scalar_select %p538, %s25, 0
      %s540 = sadd.s32 %s539, %s537
      %s541 = smul.addr %s540, 4
      %s542 = scalar_lea.vmem %s8, %s541
      %v544 = vld [vmem:[%s7] sm:$0x1]
      %p545 = scmp.eq.s32.totalorder %s26, 0
      // Predicated region
      $region53: #{processor_forward.12} parent=51 // pred_check
        %p546 = pneg %p545
      $region54: #{processor_forward.12} parent=51 // pred_check_branch
        %548 = sbr.rel (%p546) target = $region56
      $region55: #{processor_forward.12} parent=51 // pred_region
        %v549 = vld [vmem:[%s483] sm:$0xf]
        %v550 = vunpack.c.l.bf16 %v549
        %v551 = vld [vmem:[%s515] sm:$0xff]
        %v552 = vld [vmem:[%s519] sm:$0xff]
        %553 = vrot.lane.b32.xlu0 %v550, 127
        %v554 = vpop.permute.xlu0 %553
        %555 = vrot.lane.b32.xlu0 %v550, 1
        %v556 = vpop.permute.xlu0 %555
        %v557 = vlaneseq
        %v558 = vand.u32 %v557, 127
        %vm559 = vcmp.lt.s32.totalorder %v558, 0
        %v560 = vsub.s32 0, %v558
        %v561 = vsel %vm559, %v560, %v558
        %v562 = vshrl.u32 %v561, 1
        %v563 = vand.u32 %v561, 1
        %v564 = vsub.s32 0, %v563
        %v565 = vsel %vm559, %v564, %v563
        %vm566 = vcmp.ne.s32.totalorder %v565, 0
        %vm567 = vcmp.lt.s32.totalorder %v565, 0
        %vm568 = vmand %vm567, %vm566
        %v569 = vadd.s32 %v565, 2
        %v570 = vsel %vm568, %v569, %v565
        %vm571 = vcmp.eq.s32.totalorder %v570, 0
        %v572 = vsub.f32 0.0, %v554
        %v573 = vsel %vm571, %v572, %v556
        %v574 = vmul.f32 %v550, %v551
        %v575 = vmul.f32 %v573, %v552
        %v576 = vadd.f32 %v574, %v575
        %vm577 = vcmask 261120
        %v578 = vsel %vm577, %v576, 0.0
        %579 = vadd.xlane.f32.xlu0 %v578
        %v580 = vpop.xlane.xlu0 %579
        %v581 = vrcp.pop 32.0
        %v582 = vmul.f32 %v580, %v581
        %v583 = vsub.f32 %v576, %v582
        %v584 = vmul.f32 %v583, %v583
        %v585 = vsel %vm577, %v584, 0.0
        %586 = vadd.xlane.f32.xlu0 %v585
        %v587 = vpop.xlane.xlu0 %586
        %v588 = vmul.f32 %v587, %v581
        %v589 = vadd.f32 %v588, 1e-05
        %v590 = vrsqrt.pop %v589
        %592 = vrot.lane.b32.xlu0 %v576, 96
        %v593 = vpop.permute.xlu0 %592
        %v595 = vsel %vm577, %v593, 0.0
        %596 = vadd.xlane.f32.xlu0 %v595
        %v597 = vpop.xlane.xlu0 %596
        %v598 = vmul.f32 %v597, %v581
        %v599 = vsub.f32 %v576, %v598
        %v600 = vmul.f32 %v599, %v599
        %602 = vrot.lane.b32.xlu0 %v600, 96
        %v603 = vpop.permute.xlu0 %602
        %v605 = vsel %vm577, %v603, 0.0
        %606 = vadd.xlane.f32.xlu0 %v605
        %v607 = vpop.xlane.xlu0 %606
        %v608 = vmul.f32 %v607, %v581
        %v609 = vadd.f32 %v608, 1e-05
        %v610 = vrsqrt.pop %v609
        %611 = vrot.lane.b32.xlu0 %v576, 64
        %v612 = vpop.permute.xlu0 %611
        %v614 = vsel %vm577, %v612, 0.0
        %615 = vadd.xlane.f32.xlu0 %v614
        %v616 = vpop.xlane.xlu0 %615
        %v617 = vmul.f32 %v616, %v581
        %v618 = vsub.f32 %v576, %v617
        %v619 = vmul.f32 %v618, %v618
        %621 = vrot.lane.b32.xlu0 %v619, 64
        %v622 = vpop.permute.xlu0 %621
        %v624 = vsel %vm577, %v622, 0.0
        %625 = vadd.xlane.f32.xlu0 %v624
        %v626 = vpop.xlane.xlu0 %625
        %v627 = vmul.f32 %v626, %v581
        %v628 = vadd.f32 %v627, 1e-05
        %v629 = vrsqrt.pop %v628
        %630 = vrot.lane.b32.xlu0 %v576, 32
        %v631 = vpop.permute.xlu0 %630
        %v633 = vsel %vm577, %v631, 0.0
        %634 = vadd.xlane.f32.xlu0 %v633
        %v635 = vpop.xlane.xlu0 %634
        %v636 = vmul.f32 %v635, %v581
        %v637 = vsub.f32 %v576, %v636
        %v638 = vmul.f32 %v637, %v637
        %640 = vrot.lane.b32.xlu0 %v638, 32
        %v641 = vpop.permute.xlu0 %640
        %v643 = vsel %vm577, %v641, 0.0
        %644 = vadd.xlane.f32.xlu0 %v643
        %v645 = vpop.xlane.xlu0 %644
        %v646 = vmul.f32 %v645, %v581
        %v647 = vadd.f32 %v646, 1e-05
        %v648 = vrsqrt.pop %v647
        %v649 = vsel %vm577, %v582, %v598
        %vm650 = vcmask 523264
        %v651 = vsel %vm650, %v649, %v617
        %vm652 = vcmask 785408
        %v653 = vsel %vm652, %v651, %v636
        %v654 = vsel %vm577, %v590, %v610
        %v655 = vsel %vm650, %v654, %v629
        %v656 = vsel %vm652, %v655, %v648
        %v657 = vsub.f32 %v576, %v653
        %v658 = vmul.f32 %v657, %v656
        %v660 = vlaneseq
        %v661 = vshrl.u32 %v660, 7
        %v662 = vsub.s32 0, %v661
        %v663 = vrot.slane %v544, %v662
        %v665 = vmul.f32 %v658, %v663
        %v666 = vpack.c.bf16 %v665, %v665
        %667 = vst [vmem:[#allocation2] sm:$0xf] %v666
        %668 = vst [vmem:[#allocation3] sm:$0xff] -1e+30
        %669 = vst [vmem:[#allocation4] sm:$0xff] 0.0
        %670 = vst [vmem:[#allocation5] sm:$0xff] 0.0
      $region56: #{processor_forward.12} parent=51 // pred_fallthru
        _
      %p671 = scmp.le.s32.totalorder %s26, %s25
      // Predicated region
      $region57: #{processor_forward.12} parent=51 // pred_check
        %p672 = pneg %p671
      $region58: #{processor_forward.12} parent=51 // pred_check_branch
        %674 = sbr.rel (%p672) target = $region60
      $region59: #{processor_forward.12} parent=51 // pred_region
        %v675 = vld [vmem:[%s495] sm:$0xf]
        %v676 = vunpack.c.l.bf16 %v675
        %v677 = vld [vmem:[%s525] sm:$0xff]
        %v678 = vld [vmem:[%s533] sm:$0xff]
        %679 = vrot.lane.b32.xlu0 %v676, 127
        %v680 = vpop.permute.xlu0 %679
        %681 = vrot.lane.b32.xlu0 %v676, 1
        %v682 = vpop.permute.xlu0 %681
        %v683 = vlaneseq
        %v684 = vand.u32 %v683, 127
        %vm685 = vcmp.lt.s32.totalorder %v684, 0
        %v686 = vsub.s32 0, %v684
        %v687 = vsel %vm685, %v686, %v684
        %v688 = vshrl.u32 %v687, 1
        %v689 = vand.u32 %v687, 1
        %v690 = vsub.s32 0, %v689
        %v691 = vsel %vm685, %v690, %v689
        %vm692 = vcmp.ne.s32.totalorder %v691, 0
        %vm693 = vcmp.lt.s32.totalorder %v691, 0
        %vm694 = vmand %vm693, %vm692
        %v695 = vadd.s32 %v691, 2
        %v696 = vsel %vm694, %v695, %v691
        %vm697 = vcmp.eq.s32.totalorder %v696, 0
        %v698 = vsub.f32 0.0, %v680
        %v699 = vsel %vm697, %v698, %v682
        %v700 = vmul.f32 %v676, %v677
        %v701 = vmul.f32 %v699, %v678
        %v702 = vadd.f32 %v700, %v701
        %vm703 = vcmask 261120
        %v704 = vsel %vm703, %v702, 0.0
        %705 = vadd.xlane.f32.xlu0 %v704
        %v706 = vpop.xlane.xlu0 %705
        %v707 = vrcp.pop 32.0
        %v708 = vmul.f32 %v706, %v707
        %v709 = vsub.f32 %v702, %v708
        %v710 = vmul.f32 %v709, %v709
        %v711 = vsel %vm703, %v710, 0.0
        %712 = vadd.xlane.f32.xlu0 %v711
        %v713 = vpop.xlane.xlu0 %712
        %v714 = vmul.f32 %v713, %v707
        %v715 = vadd.f32 %v714, 1e-05
        %v716 = vrsqrt.pop %v715
        %718 = vrot.lane.b32.xlu0 %v702, 96
        %v719 = vpop.permute.xlu0 %718
        %v721 = vsel %vm703, %v719, 0.0
        %722 = vadd.xlane.f32.xlu0 %v721
        %v723 = vpop.xlane.xlu0 %722
        %v724 = vmul.f32 %v723, %v707
        %v725 = vsub.f32 %v702, %v724
        %v726 = vmul.f32 %v725, %v725
        %728 = vrot.lane.b32.xlu0 %v726, 96
        %v729 = vpop.permute.xlu0 %728
        %v731 = vsel %vm703, %v729, 0.0
        %732 = vadd.xlane.f32.xlu0 %v731
        %v733 = vpop.xlane.xlu0 %732
        %v734 = vmul.f32 %v733, %v707
        %v735 = vadd.f32 %v734, 1e-05
        %v736 = vrsqrt.pop %v735
        %737 = vrot.lane.b32.xlu0 %v702, 64
        %v738 = vpop.permute.xlu0 %737
        %v740 = vsel %vm703, %v738, 0.0
        %741 = vadd.xlane.f32.xlu0 %v740
        %v742 = vpop.xlane.xlu0 %741
        %v743 = vmul.f32 %v742, %v707
        %v744 = vsub.f32 %v702, %v743
        %v745 = vmul.f32 %v744, %v744
        %747 = vrot.lane.b32.xlu0 %v745, 64
        %v748 = vpop.permute.xlu0 %747
        %v750 = vsel %vm703, %v748, 0.0
        %751 = vadd.xlane.f32.xlu0 %v750
        %v752 = vpop.xlane.xlu0 %751
        %v753 = vmul.f32 %v752, %v707
        %v754 = vadd.f32 %v753, 1e-05
        %v755 = vrsqrt.pop %v754
        %756 = vrot.lane.b32.xlu0 %v702, 32
        %v757 = vpop.permute.xlu0 %756
        %v759 = vsel %vm703, %v757, 0.0
        %760 = vadd.xlane.f32.xlu0 %v759
        %v761 = vpop.xlane.xlu0 %760
        %v762 = vmul.f32 %v761, %v707
        %v763 = vsub.f32 %v702, %v762
        %v764 = vmul.f32 %v763, %v763
        %766 = vrot.lane.b32.xlu0 %v764, 32
        %v767 = vpop.permute.xlu0 %766
        %v769 = vsel %vm703, %v767, 0.0
        %770 = vadd.xlane.f32.xlu0 %v769
        %v771 = vpop.xlane.xlu0 %770
        %v772 = vmul.f32 %v771, %v707
        %v773 = vadd.f32 %v772, 1e-05
        %v774 = vrsqrt.pop %v773
        %v775 = vsel %vm703, %v708, %v724
        %vm776 = vcmask 523264
        %v777 = vsel %vm776, %v775, %v743
        %vm778 = vcmask 785408
        %v779 = vsel %vm778, %v777, %v762
        %v780 = vsel %vm703, %v716, %v736
        %v781 = vsel %vm776, %v780, %v755
        %v782 = vsel %vm778, %v781, %v774
        %v783 = vsub.f32 %v702, %v779
        %v784 = vmul.f32 %v783, %v782
        %v786 = vlaneseq
        %v787 = vshrl.u32 %v786, 7
        %v788 = vsub.s32 0, %v787
        %v789 = vrot.slane %v544, %v788
        %v791 = vmul.f32 %v784, %v789
        %v792 = vpack.c.bf16 %v791, %v791
        %v793 = vld [vmem:[%s509] sm:$0xf]
        %v794 = vld [vmem:[#allocation2] sm:$0xf]
        %v795 = vld [vmem:[#allocation3] sm:$0xff]
        %s796 = smul.u32 %s26, 8
        %v797 = vstv %s796
        %v798 = vadd.s32 %v797, %v684
        %s799 = smul.u32 %s25, 8
        %v800 = vlaneseq
        %v801 = vshrl.u32 %v800, 7
        %v802 = vstv %s799
        %v803 = vadd.s32 %v802, %v801
        %vm804 = vcmp.le.s32.totalorder %v798, %v803
        %v805 = vsel %vm804, 0.0, -1e+30
        %v807 = vsel %vm703, %v794, 0
        %v810 = vsel %vm703, %v792, 0
        %812 = vmatprep.subr.bf16.mxu0 0
        %813 = vmatpush1.bf16.xpose.msra.mxu0 %v810
        %814 = vmatprep.subr.bf16.mxu0 0
        %815 = vmatpush1.bf16.xpose.msra.mxu0 0
        %816 = vmatprep.subr.bf16.mxu0 0
        %817 = vmatpush1.bf16.xpose.msra.mxu0 0
        %818 = vmatprep.subr.bf16.mxu0 0
        %819 = vmatpush1.bf16.xpose.msra.mxu0 0
        %820 = vmatprep.subr.bf16.mxu0 0
        %821 = vmatpush1.bf16.xpose.msra.mxu0 0
        %822 = vmatprep.subr.bf16.mxu0 0
        %823 = vmatpush1.bf16.xpose.msra.mxu0 0
        %824 = vmatprep.subr.bf16.mxu0 0
        %825 = vmatpush1.bf16.xpose.msra.mxu0 0
        %826 = vmatprep.subr.bf16.mxu0 0
        %827 = vmatpush1.bf16.xpose.msra.mxu0 0
        %828 = vmatprep.subr.bf16.mxu0 0
        %829 = vmatpush1.bf16.xpose.msra.mxu0 0
        %830 = vmatprep.subr.bf16.mxu0 0
        %831 = vmatpush1.bf16.xpose.msra.mxu0 0
        %832 = vmatprep.subr.bf16.mxu0 0
        %833 = vmatpush1.bf16.xpose.msra.mxu0 0
        %834 = vmatprep.subr.bf16.mxu0 0
        %835 = vmatpush1.bf16.xpose.msra.mxu0 0
        %836 = vmatprep.subr.bf16.mxu0 0
        %837 = vmatpush1.bf16.xpose.msra.mxu0 0
        %838 = vmatprep.subr.bf16.mxu0 0
        %839 = vmatpush1.bf16.xpose.msra.mxu0 0
        %840 = vmatprep.subr.bf16.mxu0 0
        %841 = vmatpush1.bf16.xpose.msra.mxu0 0
        %842 = vmatprep.subr.bf16.mxu0 0
        %843 = vmatpush1.bf16.xpose.msra.mxu0 0
        %844 = vmatprep.mubr.bf16.mxu0 0
        %845 = vmatmul.mubr.bf16.gmra.mrb[0].mxu0 %v807
        %v846 = vpop.f32.mrb[0].mxu0
        %v847 = vadd.f32 0.0, %v846
        %v848 = vpop.f32.mrb[0].mxu0
        %v849 = vpop.f32.mrb[0].mxu0
        %v850 = vpop.f32.mrb[0].mxu0
        %851 = vdwg.mxu0
        %v852 = vmul.f32 %v847, 0.17677669
        %v853 = vadd.f32 %v852, %v805
        %vm854 = vcmask 64512
        %v855 = vsel %vm854, %v853, -inf
        %856 = vmax.xlane.f32.xlu0 %v855
        %v857 = vpop.xlane.xlu0 %856
        %v858 = vmax.f32 %v795, %v857
        %860 = vset.pattern.permute.xlu0 0
        %861 = vperm.xlu0 %860, %v858
        %v862 = vpop.permute.xlu0 %861
        %v864 = vsub.f32 %v853, %v862
        %v865 = vmul.f32 %v864, 1.442695
        %v866 = vpow.pop %v865
        %v867 = vsel %vm854, %v866, 0.0
        %868 = vadd.xlane.f32.xlu0 %v867
        %v869 = vpop.xlane.xlu0 %868
        %v870 = vpack.c.bf16 %v866, %v866
        %v872 = vsel %vm854, %v870, 0
        %vm874 = vcmask 1043456
        %v876 = vsel %vm874, %v793, 0
        %878 = vmatprep.subr.bf16.mxu0 0
        %879 = vmatpush1.bf16.msra.mxu0 %v876
        %880 = vmatprep.subr.bf16.mxu0 0
        %881 = vmatpush1.bf16.msra.mxu0 0
        %882 = vmatprep.subr.bf16.mxu0 0
        %883 = vmatpush1.bf16.msra.mxu0 0
        %884 = vmatprep.subr.bf16.mxu0 0
        %885 = vmatpush1.bf16.msra.mxu0 0
        %886 = vmatprep.subr.bf16.mxu0 0
        %887 = vmatpush1.bf16.msra.mxu0 0
        %888 = vmatprep.subr.bf16.mxu0 0
        %889 = vmatpush1.bf16.msra.mxu0 0
        %890 = vmatprep.subr.bf16.mxu0 0
        %891 = vmatpush1.bf16.msra.mxu0 0
        %892 = vmatprep.subr.bf16.mxu0 0
        %893 = vmatpush1.bf16.msra.mxu0 0
        %894 = vmatprep.subr.bf16.mxu0 0
        %895 = vmatpush1.bf16.msra.mxu0 0
        %896 = vmatprep.subr.bf16.mxu0 0
        %897 = vmatpush1.bf16.msra.mxu0 0
        %898 = vmatprep.subr.bf16.mxu0 0
        %899 = vmatpush1.bf16.msra.mxu0 0
        %900 = vmatprep.subr.bf16.mxu0 0
        %901 = vmatpush1.bf16.msra.mxu0 0
        %902 = vmatprep.subr.bf16.mxu0 0
        %903 = vmatpush1.bf16.msra.mxu0 0
        %904 = vmatprep.subr.bf16.mxu0 0
        %905 = vmatpush1.bf16.msra.mxu0 0
        %906 = vmatprep.subr.bf16.mxu0 0
        %907 = vmatpush1.bf16.msra.mxu0 0
        %908 = vmatprep.subr.bf16.mxu0 0
        %909 = vmatpush1.bf16.msra.mxu0 0
        %910 = vmatprep.mubr.bf16.mxu0 0
        %911 = vmatmul.mubr.bf16.gmra.mrb[0].mxu0 %v872
        %v912 = vpop.f32.mrb[0].mxu0
        %v913 = vadd.f32 0.0, %v912
        %v914 = vpop.f32.mrb[0].mxu0
        %v915 = vpop.f32.mrb[0].mxu0
        %v916 = vpop.f32.mrb[0].mxu0
        %917 = vdwg.mxu0
        %v919 = vunpack.c.l.b16 %v794
        %v920 = vpack.c.b16 %v919, %v919
        %921 = vrot.lane.b32.xlu0 %v920, 96
        %v922 = vpop.permute.xlu0 %921
        %924 = vrot.lane.b32.xlu0 %v792, 96
        %v925 = vpop.permute.xlu0 %924
        %v927 = vsel %vm703, %v922, 0
        %v930 = vsel %vm703, %v925, 0
        %932 = vmatprep.subr.bf16.mxu0 0
        %933 = vmatpush1.bf16.xpose.msra.mxu0 %v930
        %934 = vmatprep.subr.bf16.mxu0 0
        %935 = vmatpush1.bf16.xpose.msra.mxu0 0
        %936 = vmatprep.subr.bf16.mxu0 0
        %937 = vmatpush1.bf16.xpose.msra.mxu0 0
        %938 = vmatprep.subr.bf16.mxu0 0
        %939 = vmatpush1.bf16.xpose.msra.mxu0 0
        %940 = vmatprep.subr.bf16.mxu0 0
        %941 = vmatpush1.bf16.xpose.msra.mxu0 0
        %942 = vmatprep.subr.bf16.mxu0 0
        %943 = vmatpush1.bf16.xpose.msra.mxu0 0
        %944 = vmatprep.subr.bf16.mxu0 0
        %945 = vmatpush1.bf16.xpose.msra.mxu0 0
        %946 = vmatprep.subr.bf16.mxu0 0
        %947 = vmatpush1.bf16.xpose.msra.mxu0 0
        %948 = vmatprep.subr.bf16.mxu0 0
        %949 = vmatpush1.bf16.xpose.msra.mxu0 0
        %950 = vmatprep.subr.bf16.mxu0 0
        %951 = vmatpush1.bf16.xpose.msra.mxu0 0
        %952 = vmatprep.subr.bf16.mxu0 0
        %953 = vmatpush1.bf16.xpose.msra.mxu0 0
        %954 = vmatprep.subr.bf16.mxu0 0
        %955 = vmatpush1.bf16.xpose.msra.mxu0 0
        %956 = vmatprep.subr.bf16.mxu0 0
        %957 = vmatpush1.bf16.xpose.msra.mxu0 0
        %958 = vmatprep.subr.bf16.mxu0 0
        %959 = vmatpush1.bf16.xpose.msra.mxu0 0
        %960 = vmatprep.subr.bf16.mxu0 0
        %961 = vmatpush1.bf16.xpose.msra.mxu0 0
        %962 = vmatprep.subr.bf16.mxu0 0
        %963 = vmatpush1.bf16.xpose.msra.mxu0 0
        %964 = vmatprep.mubr.bf16.mxu0 0
        %965 = vmatmul.mubr.bf16.gmra.mrb[0].mxu0 %v927
        %v966 = vpop.f32.mrb[0].mxu0
        %v967 = vadd.f32 0.0, %v966
        %v968 = vpop.f32.mrb[0].mxu0
        %v969 = vpop.f32.mrb[0].mxu0
        %v970 = vpop.f32.mrb[0].mxu0
        %971 = vdwg.mxu0
        %v972 = vmul.f32 %v967, 0.17677669
        %v973 = vadd.f32 %v972, %v805
        %v974 = vsel %vm854, %v973, -inf
        %975 = vmax.xlane.f32.xlu0 %v974
        %v976 = vpop.xlane.xlu0 %975
        %v977 = vmax.f32 %v795, %v976
        %979 = vset.pattern.permute.xlu0 32
        %980 = vperm.xlu0 %979, %v977
        %v981 = vpop.permute.xlu0 %980
        %v983 = vsub.f32 %v973, %v981
        %v984 = vmul.f32 %v983, 1.442695
        %v985 = vpow.pop %v984
        %v986 = vsel %vm854, %v985, 0.0
        %987 = vadd.xlane.f32.xlu0 %v986
        %v988 = vpop.xlane.xlu0 %987
        %v989 = vpack.c.bf16 %v985, %v985
        %v991 = vunpack.c.l.b16 %v793
        %v992 = vpack.c.b16 %v991, %v991
        %993 = vrot.lane.b32.xlu0 %v992, 96
        %v994 = vpop.permute.xlu0 %993
        %v996 = vsel %vm854, %v989, 0
        %v999 = vsel %vm874, %v994, 0
        %1001 = vmatprep.subr.bf16.mxu0 0
        %1002 = vmatpush1.bf16.msra.mxu0 %v999
        %1003 = vmatprep.subr.bf16.mxu0 0
        %1004 = vmatpush1.bf16.msra.mxu0 0
        %1005 = vmatprep.subr.bf16.mxu0 0
        %1006 = vmatpush1.bf16.msra.mxu0 0
        %1007 = vmatprep.subr.bf16.mxu0 0
        %1008 = vmatpush1.bf16.msra.mxu0 0
        %1009 = vmatprep.subr.bf16.mxu0 0
        %1010 = vmatpush1.bf16.msra.mxu0 0
        %1011 = vmatprep.subr.bf16.mxu0 0
        %1012 = vmatpush1.bf16.msra.mxu0 0
        %1013 = vmatprep.subr.bf16.mxu0 0
        %1014 = vmatpush1.bf16.msra.mxu0 0
        %1015 = vmatprep.subr.bf16.mxu0 0
        %1016 = vmatpush1.bf16.msra.mxu0 0
        %1017 = vmatprep.subr.bf16.mxu0 0
        %1018 = vmatpush1.bf16.msra.mxu0 0
        %1019 = vmatprep.subr.bf16.mxu0 0
        %1020 = vmatpush1.bf16.msra.mxu0 0
        %1021 = vmatprep.subr.bf16.mxu0 0
        %1022 = vmatpush1.bf16.msra.mxu0 0
        %1023 = vmatprep.subr.bf16.mxu0 0
        %1024 = vmatpush1.bf16.msra.mxu0 0
        %1025 = vmatprep.subr.bf16.mxu0 0
        %1026 = vmatpush1.bf16.msra.mxu0 0
        %1027 = vmatprep.subr.bf16.mxu0 0
        %1028 = vmatpush1.bf16.msra.mxu0 0
        %1029 = vmatprep.subr.bf16.mxu0 0
        %1030 = vmatpush1.bf16.msra.mxu0 0
        %1031 = vmatprep.subr.bf16.mxu0 0
        %1032 = vmatpush1.bf16.msra.mxu0 0
        %1033 = vmatprep.mubr.bf16.mxu0 0
        %1034 = vmatmul.mubr.bf16.gmra.mrb[0].mxu0 %v996
        %v1035 = vpop.f32.mrb[0].mxu0
        %v1036 = vadd.f32 0.0, %v1035
        %v1037 = vpop.f32.mrb[0].mxu0
        %v1038 = vpop.f32.mrb[0].mxu0
        %v1039 = vpop.f32.mrb[0].mxu0
        %1040 = vdwg.mxu0
        %1041 = vrot.lane.b32.xlu0 %v920, 64
        %v1042 = vpop.permute.xlu0 %1041
        %1043 = vrot.lane.b32.xlu0 %v792, 64
        %v1044 = vpop.permute.xlu0 %1043
        %v1046 = vsel %vm703, %v1042, 0
        %v1049 = vsel %vm703, %v1044, 0
        %1051 = vmatprep.subr.bf16.mxu0 0
        %1052 = vmatpush1.bf16.xpose.msra.mxu0 %v1049
        %1053 = vmatprep.subr.bf16.mxu0 0
        %1054 = vmatpush1.bf16.xpose.msra.mxu0 0
        %1055 = vmatprep.subr.bf16.mxu0 0
        %1056 = vmatpush1.bf16.xpose.msra.mxu0 0
        %1057 = vmatprep.subr.bf16.mxu0 0
        %1058 = vmatpush1.bf16.xpose.msra.mxu0 0
        %1059 = vmatprep.subr.bf16.mxu0 0
        %1060 = vmatpush1.bf16.xpose.msra.mxu0 0
        %1061 = vmatprep.subr.bf16.mxu0 0
        %1062 = vmatpush1.bf16.xpose.msra.mxu0 0
        %1063 = vmatprep.subr.bf16.mxu0 0
        %1064 = vmatpush1.bf16.xpose.msra.mxu0 0
        %1065 = vmatprep.subr.bf16.mxu0 0
        %1066 = vmatpush1.bf16.xpose.msra.mxu0 0
        %1067 = vmatprep.subr.bf16.mxu0 0
        %1068 = vmatpush1.bf16.xpose.msra.mxu0 0
        %1069 = vmatprep.subr.bf16.mxu0 0
        %1070 = vmatpush1.bf16.xpose.msra.mxu0 0
        %1071 = vmatprep.subr.bf16.mxu0 0
        %1072 = vmatpush1.bf16.xpose.msra.mxu0 0
        %1073 = vmatprep.subr.bf16.mxu0 0
        %1074 = vmatpush1.bf16.xpose.msra.mxu0 0
        %1075 = vmatprep.subr.bf16.mxu0 0
        %1076 = vmatpush1.bf16.xpose.msra.mxu0 0
        %1077 = vmatprep.subr.bf16.mxu0 0
        %1078 = vmatpush1.bf16.xpose.msra.mxu0 0
        %1079 = vmatprep.subr.bf16.mxu0 0
        %1080 = vmatpush1.bf16.xpose.msra.mxu0 0
        %1081 = vmatprep.subr.bf16.mxu0 0
        %1082 = vmatpush1.bf16.xpose.msra.mxu0 0
        %1083 = vmatprep.mubr.bf16.mxu0 0
        %1084 = vmatmul.mubr.bf16.gmra.mrb[0].mxu0 %v1046
        %v1085 = vpop.f32.mrb[0].mxu0
        %v1086 = vadd.f32 0.0, %v1085
        %v1087 = vpop.f32.mrb[0].mxu0
        %v1088 = vpop.f32.mrb[0].mxu0
        %v1089 = vpop.f32.mrb[0].mxu0
        %1090 = vdwg.mxu0
        %v1091 = vmul.f32 %v1086, 0.17677669
        %v1092 = vadd.f32 %v1091, %v805
        %v1093 = vsel %vm854, %v1092, -inf
        %1094 = vmax.xlane.f32.xlu0 %v1093
        %v1095 = vpop.xlane.xlu0 %1094
        %v1096 = vmax.f32 %v795, %v1095
        %1098 = vset.pattern.permute.xlu0 64
        %1099 = vperm.xlu0 %1098, %v1096
        %v1100 = vpop.permute.xlu0 %1099
        %v1102 = vsub.f32 %v1092, %v1100
        %v1103 = vmul.f32 %v1102, 1.442695
        %v1104 = vpow.pop %v1103
        %v1105 = vsel %vm854, %v1104, 0.0
        %1106 = vadd.xlane.f32.xlu0 %v1105
        %v1107 = vpop.xlane.xlu0 %1106
        %v1108 = vpack.c.bf16 %v1104, %v1104
        %1109 = vrot.lane.b32.xlu0 %v992, 64
        %v1110 = vpop.permute.xlu0 %1109
        %v1112 = vsel %vm854, %v1108, 0
        %v1115 = vsel %vm874, %v1110, 0
        %1117 = vmatprep.subr.bf16.mxu0 0
        %1118 = vmatpush1.bf16.msra.mxu0 %v1115
        %1119 = vmatprep.subr.bf16.mxu0 0
        %1120 = vmatpush1.bf16.msra.mxu0 0
        %1121 = vmatprep.subr.bf16.mxu0 0
        %1122 = vmatpush1.bf16.msra.mxu0 0
        %1123 = vmatprep.subr.bf16.mxu0 0
        %1124 = vmatpush1.bf16.msra.mxu0 0
        %1125 = vmatprep.subr.bf16.mxu0 0
        %1126 = vmatpush1.bf16.msra.mxu0 0
        %1127 = vmatprep.subr.bf16.mxu0 0
        %1128 = vmatpush1.bf16.msra.mxu0 0
        %1129 = vmatprep.subr.bf16.mxu0 0
        %1130 = vmatpush1.bf16.msra.mxu0 0
        %1131 = vmatprep.subr.bf16.mxu0 0
        %1132 = vmatpush1.bf16.msra.mxu0 0
        %1133 = vmatprep.subr.bf16.mxu0 0
        %1134 = vmatpush1.bf16.msra.mxu0 0
        %1135 = vmatprep.subr.bf16.mxu0 0
        %1136 = vmatpush1.bf16.msra.mxu0 0
        %1137 = vmatprep.subr.bf16.mxu0 0
        %1138 = vmatpush1.bf16.msra.mxu0 0
        %1139 = vmatprep.subr.bf16.mxu0 0
        %1140 = vmatpush1.bf16.msra.mxu0 0
        %1141 = vmatprep.subr.bf16.mxu0 0
        %1142 = vmatpush1.bf16.msra.mxu0 0
        %1143 = vmatprep.subr.bf16.mxu0 0
        %1144 = vmatpush1.bf16.msra.mxu0 0
        %1145 = vmatprep.subr.bf16.mxu0 0
        %1146 = vmatpush1.bf16.msra.mxu0 0
        %1147 = vmatprep.subr.bf16.mxu0 0
        %1148 = vmatpush1.bf16.msra.mxu0 0
        %1149 = vmatprep.mubr.bf16.mxu0 0
        %1150 = vmatmul.mubr.bf16.gmra.mrb[0].mxu0 %v1112
        %v1151 = vpop.f32.mrb[0].mxu0
        %v1152 = vadd.f32 0.0, %v1151
        %v1153 = vpop.f32.mrb[0].mxu0
        %v1154 = vpop.f32.mrb[0].mxu0
        %v1155 = vpop.f32.mrb[0].mxu0
        %1156 = vdwg.mxu0
        %1157 = vrot.lane.b32.xlu0 %v920, 32
        %v1158 = vpop.permute.xlu0 %1157
        %1159 = vrot.lane.b32.xlu0 %v792, 32
        %v1160 = vpop.permute.xlu0 %1159
        %v1162 = vsel %vm703, %v1158, 0
        %v1165 = vsel %vm703, %v1160, 0
        %1167 = vmatprep.subr.bf16.mxu0 0
        %1168 = vmatpush1.bf16.xpose.msra.mxu0 %v1165
        %1169 = vmatprep.subr.bf16.mxu0 0
        %1170 = vmatpush1.bf16.xpose.msra.mxu0 0
        %1171 = vmatprep.subr.bf16.mxu0 0
        %1172 = vmatpush1.bf16.xpose.msra.mxu0 0
        %1173 = vmatprep.subr.bf16.mxu0 0
        %1174 = vmatpush1.bf16.xpose.msra.mxu0 0
        %1175 = vmatprep.subr.bf16.mxu0 0
        %1176 = vmatpush1.bf16.xpose.msra.mxu0 0
        %1177 = vmatprep.subr.bf16.mxu0 0
        %1178 = vmatpush1.bf16.xpose.msra.mxu0 0
        %1179 = vmatprep.subr.bf16.mxu0 0
        %1180 = vmatpush1.bf16.xpose.msra.mxu0 0
        %1181 = vmatprep.subr.bf16.mxu0 0
        %1182 = vmatpush1.bf16.xpose.msra.mxu0 0
        %1183 = vmatprep.subr.bf16.mxu0 0
        %1184 = vmatpush1.bf16.xpose.msra.mxu0 0
        %1185 = vmatprep.subr.bf16.mxu0 0
        %1186 = vmatpush1.bf16.xpose.msra.mxu0 0
        %1187 = vmatprep.subr.bf16.mxu0 0
        %1188 = vmatpush1.bf16.xpose.msra.mxu0 0
        %1189 = vmatprep.subr.bf16.mxu0 0
        %1190 = vmatpush1.bf16.xpose.msra.mxu0 0
        %1191 = vmatprep.subr.bf16.mxu0 0
        %1192 = vmatpush1.bf16.xpose.msra.mxu0 0
        %1193 = vmatprep.subr.bf16.mxu0 0
        %1194 = vmatpush1.bf16.xpose.msra.mxu0 0
        %1195 = vmatprep.subr.bf16.mxu0 0
        %1196 = vmatpush1.bf16.xpose.msra.mxu0 0
        %1197 = vmatprep.subr.bf16.mxu0 0
        %1198 = vmatpush1.bf16.xpose.msra.mxu0 0
        %1199 = vmatprep.mubr.bf16.mxu0 0
        %1200 = vmatmul.mubr.bf16.gmra.mrb[0].mxu0 %v1162
        %v1201 = vpop.f32.mrb[0].mxu0
        %v1202 = vadd.f32 0.0, %v1201
        %v1203 = vpop.f32.mrb[0].mxu0
        %v1204 = vpop.f32.mrb[0].mxu0
        %v1205 = vpop.f32.mrb[0].mxu0
        %1206 = vdwg.mxu0
        %v1207 = vmul.f32 %v1202, 0.17677669
        %v1208 = vadd.f32 %v1207, %v805
        %v1209 = vsel %vm854, %v1208, -inf
        %1210 = vmax.xlane.f32.xlu0 %v1209
        %v1211 = vpop.xlane.xlu0 %1210
        %v1212 = vmax.f32 %v795, %v1211
        %1214 = vset.pattern.permute.xlu0 96
        %1215 = vperm.xlu0 %1214, %v1212
        %v1216 = vpop.permute.xlu0 %1215
        %v1218 = vsub.f32 %v1208, %v1216
        %v1219 = vmul.f32 %v1218, 1.442695
        %v1220 = vpow.pop %v1219
        %v1221 = vsel %vm854, %v1220, 0.0
        %1222 = vadd.xlane.f32.xlu0 %v1221
        %v1223 = vpop.xlane.xlu0 %1222
        %v1224 = vpack.c.bf16 %v1220, %v1220
        %1225 = vrot.lane.b32.xlu0 %v992, 32
        %v1226 = vpop.permute.xlu0 %1225
        %v1228 = vsel %vm854, %v1224, 0
        %v1231 = vsel %vm874, %v1226, 0
        %1233 = vmatprep.subr.bf16.mxu0 0
        %1234 = vmatpush1.bf16.msra.mxu0 %v1231
        %1235 = vmatprep.subr.bf16.mxu0 0
        %1236 = vmatpush1.bf16.msra.mxu0 0
        %1237 = vmatprep.subr.bf16.mxu0 0
        %1238 = vmatpush1.bf16.msra.mxu0 0
        %1239 = vmatprep.subr.bf16.mxu0 0
        %1240 = vmatpush1.bf16.msra.mxu0 0
        %1241 = vmatprep.subr.bf16.mxu0 0
        %1242 = vmatpush1.bf16.msra.mxu0 0
        %1243 = vmatprep.subr.bf16.mxu0 0
        %1244 = vmatpush1.bf16.msra.mxu0 0
        %1245 = vmatprep.subr.bf16.mxu0 0
        %1246 = vmatpush1.bf16.msra.mxu0 0
        %1247 = vmatprep.subr.bf16.mxu0 0
        %1248 = vmatpush1.bf16.msra.mxu0 0
        %1249 = vmatprep.subr.bf16.mxu0 0
        %1250 = vmatpush1.bf16.msra.mxu0 0
        %1251 = vmatprep.subr.bf16.mxu0 0
        %1252 = vmatpush1.bf16.msra.mxu0 0
        %1253 = vmatprep.subr.bf16.mxu0 0
        %1254 = vmatpush1.bf16.msra.mxu0 0
        %1255 = vmatprep.subr.bf16.mxu0 0
        %1256 = vmatpush1.bf16.msra.mxu0 0
        %1257 = vmatprep.subr.bf16.mxu0 0
        %1258 = vmatpush1.bf16.msra.mxu0 0
        %1259 = vmatprep.subr.bf16.mxu0 0
        %1260 = vmatpush1.bf16.msra.mxu0 0
        %1261 = vmatprep.subr.bf16.mxu0 0
        %1262 = vmatpush1.bf16.msra.mxu0 0
        %1263 = vmatprep.subr.bf16.mxu0 0
        %1264 = vmatpush1.bf16.msra.mxu0 0
        %1265 = vmatprep.mubr.bf16.mxu0 0
        %1266 = vmatmul.mubr.bf16.gmra.mrb[0].mxu0 %v1228
        %v1267 = vpop.f32.mrb[0].mxu0
        %v1268 = vadd.f32 0.0, %v1267
        %v1269 = vpop.f32.mrb[0].mxu0
        %v1270 = vpop.f32.mrb[0].mxu0
        %v1271 = vpop.f32.mrb[0].mxu0
        %1272 = vdwg.mxu0
        %v1273 = vsel %vm703, %v862, %v981
        %v1274 = vsel %vm776, %v1273, %v1100
        %v1275 = vsel %vm778, %v1274, %v1216
        %v1276 = vsub.f32 %v795, %v1275
        %v1277 = vmul.f32 %v1276, 1.442695
        %v1278 = vpow.pop %v1277
        %v1279 = vld [vmem:[#allocation4] sm:$0xff]
        %v1280 = vmul.f32 %v1278, %v1279
        %v1281 = vsel %vm703, %v869, %v988
        %v1282 = vsel %vm776, %v1281, %v1107
        %v1283 = vsel %vm778, %v1282, %v1223
        %v1284 = vadd.f32 %v1280, %v1283
        %1285 = vst [vmem:[#allocation4] sm:$0xff] %v1284
        %v1286 = vld [vmem:[#allocation5] sm:$0xff]
        %v1287 = vmul.f32 %v1278, %v1286
        %1289 = vrot.lane.b32.xlu0 %v1036, 32
        %v1290 = vpop.permute.xlu0 %1289
        %1293 = vrot.lane.b32.xlu0 %v1152, 64
        %v1294 = vpop.permute.xlu0 %1293
        %1297 = vrot.lane.b32.xlu0 %v1268, 96
        %v1298 = vpop.permute.xlu0 %1297
        %v1300 = vsel %vm703, %v913, %v1290
        %v1301 = vsel %vm776, %v1300, %v1294
        %v1302 = vsel %vm778, %v1301, %v1298
        %v1303 = vadd.f32 %v1287, %v1302
        %1304 = vst [vmem:[#allocation5] sm:$0xff] %v1303
        %1305 = vst [vmem:[#allocation3] sm:$0xff] %v1275
      $region60: #{processor_forward.12} parent=51 // pred_fallthru
        _
      // Predicated region
      $region61: #{processor_forward.12} parent=51 // pred_check
        %p1306 = pneg %p545
      $region62: #{processor_forward.12} parent=51 // pred_check_branch
        %1308 = sbr.rel (%p1306) target = $region64
      $region63: #{processor_forward.12} parent=51 // pred_region
        %v1309 = vld [vmem:[#allocation4] sm:$0xff]
        %v1310 = vrcp.pop %v1309
        %v1311 = vld [vmem:[#allocation5] sm:$0xff]
        %v1312 = vmul.f32 %v1311, %v1310
        %v1313 = vpack.c.bf16 %v1312, %v1312
        %1314 = vst [vmem:[%s542] sm:$0xf] %v1313
      $region64: #{processor_forward.12} parent=51 // pred_fallthru
        _
      %p1315 = scmp.lt.s32.totalorder %s24, 1
      %s1316 = scalar_select %p1315, %s24, 1
      %p1317 = scmp.lt.s32.totalorder %s25, 0
      %s1318 = scalar_select %p1317, %s25, 0
      %s1319 = sadd.s32 %s1318, %s1316
      %s1320 = smul.addr %s1319, 4
      %s1321 = scalar_lea.vmem %s8, %s1320
      // Predicated region
      $region65: #{processor_forward.12} parent=51 // pred_check
        %p1322 = pneg %p283
      $region66: #{processor_forward.12} parent=51 // pred_check_branch
        %1324 = sbr.rel (%p1322) target = $region68
      $region67: #{processor_forward.12} parent=51 // pred_region
        _
      $region68: #{processor_forward.12} parent=51 // pred_fallthru
        _
    $region52: #{processor_forward.12} parent=5 // pred_fallthru
      _
    %p1325 = scmp.le.s32.totalorder 2, %s14
    // Predicated region
    $region69: #{processor_forward.12} parent=5 // pred_check
      %p1326 = pneg %p1325
    $region70: #{processor_forward.12} parent=5 // pred_check_branch
      %1328 = sbr.rel (%p1326) target = $region72
    $region71: #{processor_forward.12} parent=5 // pred_region
      %s1329 = ssub.s32 %s14, 2
      // Predicated region
      $region73: #{processor_forward.12} parent=71 // pred_check
        %p1330 = pneg %p289
      $region74: #{processor_forward.12} parent=71 // pred_check_branch
        %1332 = sbr.rel (%p1330) target = $region76
      $region75: #{processor_forward.12} parent=71 // pred_region
        %p1333 = scmp.lt.s32.totalorder %s27, 1
        %s1334 = scalar_select %p1333, %s27, 1
        %p1335 = scmp.lt.s32.totalorder %s28, 0
        %s1336 = scalar_select %p1335, %s28, 0
        %s1337 = sadd.s32 %s1336, %s1334
        %s1338 = smul.addr %s1337, 4
        %s1339 = scalar_lea.vmem %s8, %s1338
      $region76: #{processor_forward.12} parent=71 // pred_fallthru
        _
    $region72: #{processor_forward.12} parent=5 // pred_fallthru
      _
  $region6: #{processor_forward.12} parent=0 // loop_footer
    %s18 = sadd.s32 1, %s14
  $region7: #{processor_forward.12} parent=0 // loop_footer_branch
    %13 = sbr.rel target = $region3
  $region8: #{processor_forward.12} parent=0 // loop_exit
    _

// kernel: processor_forward.21
$region0: #{processor_forward.21}
  #allocation0 [shape = 'u32[]', space=smem, size = 0x4, offset = 0x4, fixed_abs, tag = 'smem constant byte address 0x4 - core index']
  #allocation1 [shape = 'u32[144,128]{1,0:T(1,128)}', space=vmem, size = 0x12000, scoped, tag = 'internal scratch']
  #allocation2 [shape = 'bf16[16,128]{1,0:T(16,128)(2,1)}', space=vmem, size = 0x1000, scoped, tag = 'scratch operand']
  %s0 = inlined_call_operand.vmem [shape: f32[16,128], index: 0, kind: input, shape index: {}]
  %s1 = inlined_call_operand.vmem [shape: f32[1,128], index: 1, kind: input, shape index: {}]
  %s2 = inlined_call_operand.vmem [shape: f32[1,128], index: 2, kind: input, shape index: {}]
  %s3 = inlined_call_operand.vmem [shape: bf16[128,256], index: 3, kind: input, shape index: {}]
  %s4 = inlined_call_operand.vmem [shape: f32[1,256], index: 4, kind: input, shape index: {}]
  %s5 = inlined_call_operand.hbm [shape: f32[16,256], index: 5, kind: output, shape index: {}]
  %s6 = sld [smem:[#allocation0]]
  $region34: #{processor_forward.21} parent=0
    _
  %s8 = ssub.s32 1, %s6
  %s9 = scalar_select 0, %s8, %s6
  $region1: #{processor_forward.21} parent=0
    #allocation3 [shape = 'u8[16384]{0}', space=vmem, size = 0x4000, scoped, tag = 'output window, operand 0, single buffered']
    #allocation4 [shape = 's32[1]{0}', space=sflag, size = 0x4, scoped, tag = 'scoped memory for processor_forward.21']
    %10 = vsyncpa [#allocation4], 0
    // Predicated region
    $region2: #{processor_forward.21} parent=1 // pred_check
      _
    $region3: #{processor_forward.21} parent=1 // pred_check_branch
      %12 = sbr.rel (0) target = $region5
    $region4: #{processor_forward.21} parent=1 // pred_region
      _
    $region5: #{processor_forward.21} parent=1 // pred_fallthru
      _
    // Predicated region
    $region6: #{processor_forward.21} parent=1 // pred_check
      _
    $region7: #{processor_forward.21} parent=1 // pred_check_branch
      %14 = sbr.rel (0) target = $region9
    $region8: #{processor_forward.21} parent=1 // pred_region
      _
    $region9: #{processor_forward.21} parent=1 // pred_fallthru
      _
    // Predicated region
    $region10: #{processor_forward.21} parent=1 // pred_check
      _
    $region11: #{processor_forward.21} parent=1 // pred_check_branch
      %16 = sbr.rel (0) target = $region13
    $region12: #{processor_forward.21} parent=1 // pred_region
      _
    $region13: #{processor_forward.21} parent=1 // pred_fallthru
      _
    // Predicated region
    $region14: #{processor_forward.21} parent=1 // pred_check
      _
    $region15: #{processor_forward.21} parent=1 // pred_check_branch
      %18 = sbr.rel (0) target = $region17
    $region16: #{processor_forward.21} parent=1 // pred_region
      _
    $region17: #{processor_forward.21} parent=1 // pred_fallthru
      _
    // Predicated region
    $region18: #{processor_forward.21} parent=1 // pred_check
      _
    $region19: #{processor_forward.21} parent=1 // pred_check_branch
      %20 = sbr.rel (0) target = $region21
    $region20: #{processor_forward.21} parent=1 // pred_region
      _
    $region21: #{processor_forward.21} parent=1 // pred_fallthru
      _
    %p22 = scmp.eq.s32.totalorder 0, 0
    // Predicated region
    $region22: #{processor_forward.21} parent=1 // pred_check
      %p23 = pneg %p22
    $region23: #{processor_forward.21} parent=1 // pred_check_branch
      %25 = sbr.rel (%p23) target = $region25
    $region24: #{processor_forward.21} parent=1 // pred_region
      %v26 = vld [vmem:[%s0] sm:$0xff]
      %v27 = vld [vmem:[%s0 + $0x8] sm:$0xff]
      %28 = vadd.xlane.f32.xlu0 %v26
      %v29 = vpop.xlane.xlu0 %28
      %30 = vadd.xlane.f32.xlu0 %v27
      %v31 = vpop.xlane.xlu0 %30
      %v32 = vrcp.pop 128.0
      %v33 = vmul.f32 %v29, %v32
      %v34 = vmul.f32 %v31, %v32
      %v35 = vsub.f32 %v26, %v33
      %v36 = vsub.f32 %v27, %v34
      %v37 = vmul.f32 %v35, %v35
      %v38 = vmul.f32 %v36, %v36
      %39 = vadd.xlane.f32.xlu0 %v37
      %v40 = vpop.xlane.xlu0 %39
      %41 = vadd.xlane.f32.xlu0 %v38
      %v42 = vpop.xlane.xlu0 %41
      %v43 = vmul.f32 %v40, %v32
      %v44 = vmul.f32 %v42, %v32
      %v45 = vadd.f32 %v43, 1e-05
      %v46 = vadd.f32 %v44, 1e-05
      %v47 = vrsqrt.pop %v45
      %v48 = vrsqrt.pop %v46
      %v49 = vmul.f32 %v35, %v47
      %v50 = vmul.f32 %v36, %v48
      %v51 = vld [vmem:[%s1] sm:$0x1]
      %v53 = vlaneseq
      %v54 = vshrl.u32 %v53, 7
      %v55 = vsub.s32 0, %v54
      %v56 = vrot.slane %v51, %v55
      %v58 = vmul.f32 %v49, %v56
      %v59 = vmul.f32 %v50, %v56
      %v60 = vld [vmem:[%s2] sm:$0x1]
      %v62 = vlaneseq
      %v63 = vshrl.u32 %v62, 7
      %v64 = vsub.s32 0, %v63
      %v65 = vrot.slane %v60, %v64
      %v67 = vadd.f32 %v58, %v65
      %v68 = vadd.f32 %v59, %v65
      %v69 = vpack.c.bf16 %v68, %v67
      %70 = vst [vmem:[#allocation2] sm:$0xff] %v69
    $region25: #{processor_forward.21} parent=1 // pred_fallthru
      _
    %v71 = vld [vmem:[#allocation2] sm:$0xff]
    %v72 = vld [vmem:[%s3] sm:$0xff]
    %v73 = vld [vmem:[%s3 + $0x8] sm:$0xff]
    %v74 = vld [vmem:[%s3 + $0x10] sm:$0xff]
    %v75 = vld [vmem:[%s3 + $0x18] sm:$0xff]
    %v76 = vld [vmem:[%s3 + $0x20] sm:$0xff]
    %v77 = vld [vmem:[%s3 + $0x28] sm:$0xff]
    %v78 = vld [vmem:[%s3 + $0x30] sm:$0xff]
    %v79 = vld [vmem:[%s3 + $0x38] sm:$0xff]
    %v80 = vld [vmem:[%s3 + $0x40] sm:$0xff]
    %v81 = vld [vmem:[%s3 + $0x48] sm:$0xff]
    %v82 = vld [vmem:[%s3 + $0x50] sm:$0xff]
    %v83 = vld [vmem:[%s3 + $0x58] sm:$0xff]
    %v84 = vld [vmem:[%s3 + $0x60] sm:$0xff]
    %v85 = vld [vmem:[%s3 + $0x68] sm:$0xff]
    %v86 = vld [vmem:[%s3 + $0x70] sm:$0xff]
    %v87 = vld [vmem:[%s3 + $0x78] sm:$0xff]
    %v88 = vld [vmem:[%s4] sm:$0x3]
    %v90 = vlaneseq
    %v91 = vshrl.u32 %v90, 7
    %v92 = vsub.s32 0, %v91
    %v93 = vrot.slane %v88, %v92
    %v94 = vlaneseq
    %v95 = vshrl.u32 %v94, 7
    %v96 = vsub.s32 1, %v95
    %v97 = vrot.slane %v88, %v96
    %v116 = vunpack.c.l.b16 %v72
    %v117 = vunpack.c.h.b16 %v72
    %v118 = vunpack.c.l.b16 %v73
    %v119 = vunpack.c.h.b16 %v73
    %v120 = vunpack.c.l.b16 %v74
    %v121 = vunpack.c.h.b16 %v74
    %v122 = vunpack.c.l.b16 %v75
    %v123 = vunpack.c.h.b16 %v75
    %v124 = vunpack.c.l.b16 %v76
    %v125 = vunpack.c.h.b16 %v76
    %v126 = vunpack.c.l.b16 %v77
    %v127 = vunpack.c.h.b16 %v77
    %v128 = vunpack.c.l.b16 %v78
    %v129 = vunpack.c.h.b16 %v78
    %v130 = vunpack.c.l.b16 %v79
    %v131 = vunpack.c.h.b16 %v79
    %v132 = vunpack.c.l.b16 %v80
    %v133 = vunpack.c.h.b16 %v80
    %v134 = vunpack.c.l.b16 %v81
    %v135 = vunpack.c.h.b16 %v81
    %v136 = vunpack.c.l.b16 %v82
    %v137 = vunpack.c.h.b16 %v82
    %v138 = vunpack.c.l.b16 %v83
    %v139 = vunpack.c.h.b16 %v83
    %v140 = vunpack.c.l.b16 %v84
    %v141 = vunpack.c.h.b16 %v84
    %v142 = vunpack.c.l.b16 %v85
    %v143 = vunpack.c.h.b16 %v85
    %v144 = vunpack.c.l.b16 %v86
    %v145 = vunpack.c.h.b16 %v86
    %v146 = vunpack.c.l.b16 %v87
    %v147 = vunpack.c.h.b16 %v87
    %v148 = vpack.c.b16 %v118, %v116
    %v149 = vpack.c.b16 %v119, %v117
    %v150 = vpack.c.b16 %v122, %v120
    %v151 = vpack.c.b16 %v123, %v121
    %v152 = vpack.c.b16 %v126, %v124
    %v153 = vpack.c.b16 %v127, %v125
    %v154 = vpack.c.b16 %v130, %v128
    %v155 = vpack.c.b16 %v131, %v129
    %v156 = vpack.c.b16 %v134, %v132
    %v157 = vpack.c.b16 %v135, %v133
    %v158 = vpack.c.b16 %v138, %v136
    %v159 = vpack.c.b16 %v139, %v137
    %v160 = vpack.c.b16 %v142, %v140
    %v161 = vpack.c.b16 %v143, %v141
    %v162 = vpack.c.b16 %v146, %v144
    %v163 = vpack.c.b16 %v147, %v145
    %180 = vmatprep.subr.bf16.mxu0 %v149
    %181 = vmatpush1.bf16.msra.mxu0 %v148
    %182 = vmatprep.subr.bf16.mxu0 %v151
    %183 = vmatpush1.bf16.msra.mxu0 %v150
    %184 = vmatprep.subr.bf16.mxu0 %v153
    %185 = vmatpush1.bf16.msra.mxu0 %v152
    %186 = vmatprep.subr.bf16.mxu0 %v155
    %187 = vmatpush1.bf16.msra.mxu0 %v154
    %188 = vmatprep.subr.bf16.mxu0 %v157
    %189 = vmatpush1.bf16.msra.mxu0 %v156
    %190 = vmatprep.subr.bf16.mxu0 %v159
    %191 = vmatpush1.bf16.msra.mxu0 %v158
    %192 = vmatprep.subr.bf16.mxu0 %v161
    %193 = vmatpush1.bf16.msra.mxu0 %v160
    %194 = vmatprep.subr.bf16.mxu0 %v163
    %195 = vmatpush1.bf16.msra.mxu0 %v162
    %196 = vmatprep.subr.bf16.mxu0 0
    %197 = vmatpush1.bf16.msra.mxu0 0
    %198 = vmatprep.subr.bf16.mxu0 0
    %199 = vmatpush1.bf16.msra.mxu0 0
    %200 = vmatprep.subr.bf16.mxu0 0
    %201 = vmatpush1.bf16.msra.mxu0 0
    %202 = vmatprep.subr.bf16.mxu0 0
    %203 = vmatpush1.bf16.msra.mxu0 0
    %204 = vmatprep.subr.bf16.mxu0 0
    %205 = vmatpush1.bf16.msra.mxu0 0
    %206 = vmatprep.subr.bf16.mxu0 0
    %207 = vmatpush1.bf16.msra.mxu0 0
    %208 = vmatprep.subr.bf16.mxu0 0
    %209 = vmatpush1.bf16.msra.mxu0 0
    %210 = vmatprep.subr.bf16.mxu0 0
    %211 = vmatpush1.bf16.msra.mxu0 0
    %212 = vmatprep.mubr.bf16.mxu0 0
    %213 = vmatmul.mubr.bf16.gmra.mrb[0].mxu0 %v71
    %v214 = vpop.f32.mrb[0].mxu0
    %v215 = vadd.f32 %v93, %v214
    %v216 = vpop.f32.mrb[0].mxu0
    %v217 = vadd.f32 %v97, %v216
    %v218 = vpop.f32.mrb[0].mxu0
    %v219 = vadd.f32 %v93, %v218
    %v220 = vpop.f32.mrb[0].mxu0
    %v221 = vadd.f32 %v97, %v220
    %222 = vdwg.mxu0
    %223 = vst [vmem:[#allocation3] sm:$0xff] %v215
    %224 = vst [vmem:[#allocation3 + $0x8] sm:$0xff] %v217
    %225 = vst [vmem:[#allocation3 + $0x10] sm:$0xff] %v219
    %226 = vst [vmem:[#allocation3 + $0x18] sm:$0xff] %v221
    // Predicated region
    $region26: #{processor_forward.21} parent=1 // pred_check
      _
    $region27: #{processor_forward.21} parent=1 // pred_check_branch
      %228 = sbr.rel (0) target = $region29
    $region28: #{processor_forward.21} parent=1 // pred_region
      %s230 = ssub.s32 512, 512
      %231 = vsyncadd [#allocation4], %s230
      %s232 = sshll.u32 [#allocation3], 4
      %s233 = int_to_ptr.vmem [resolvable:$true] %s232
      %238 = dma.vmem_to_hbm [thread:$0]  %s233, 512, %s5, [#allocation4], 256, 256, 16
    $region29: #{processor_forward.21} parent=1 // pred_fallthru
      _
    // Predicated region
    $region30: #{processor_forward.21} parent=1 // pred_check
      _
    $region31: #{processor_forward.21} parent=1 // pred_check_branch
      %240 = sbr.rel (0) target = $region33
    $region32: #{processor_forward.21} parent=1 // pred_region
      %241 = dma.done [#allocation4], 512
    $region33: #{processor_forward.21} parent=1 // pred_fallthru
      _
    %242 = vsyncpa [#allocation4], 1

// kernel: processor_forward.15
$region0: #{processor_forward.15}
  #allocation0 [shape = 'u32[]', space=smem, size = 0x4, offset = 0x4, fixed_abs, tag = 'smem constant byte address 0x4 - core index']
  #allocation1 [shape = 'u32[144,128]{1,0:T(1,128)}', space=vmem, size = 0x12000, scoped, tag = 'internal scratch']
  #allocation2 [shape = 'f32[16,128]{1,0:T(8,128)}', space=vmem, size = 0x2000, scoped, tag = 'scratch operand']
  %s0 = inlined_call_operand.vmem [shape: bf16[16,512], index: 0, kind: input, shape index: {}]
  %s1 = inlined_call_operand.vmem [shape: bf16[512,128], index: 1, kind: input, shape index: {}]
  %s2 = inlined_call_operand.vmem [shape: f32[1,128], index: 2, kind: input, shape index: {}]
  %s3 = inlined_call_operand.vmem [shape: f32[16,128], index: 3, kind: output, shape index: {}]
  %s4 = sld [smem:[#allocation0]]
  $region30: #{processor_forward.15} parent=0
    _
  %s6 = ssub.s32 1, %s4
  %s7 = scalar_select 0, %s6, %s4
  // Predicated region
  $region2: #{processor_forward.15} parent=0 // pred_check
    _
  $region3: #{processor_forward.15} parent=0 // pred_check_branch
    %9 = sbr.rel (0) target = $region5
  $region4: #{processor_forward.15} parent=0 // pred_region
    _
  $region5: #{processor_forward.15} parent=0 // pred_fallthru
    _
  // Predicated region
  $region6: #{processor_forward.15} parent=0 // pred_check
    _
  $region7: #{processor_forward.15} parent=0 // pred_check_branch
    %11 = sbr.rel (0) target = $region9
  $region8: #{processor_forward.15} parent=0 // pred_region
    _
  $region9: #{processor_forward.15} parent=0 // pred_fallthru
    _
  // Predicated region
  $region10: #{processor_forward.15} parent=0 // pred_check
    _
  $region11: #{processor_forward.15} parent=0 // pred_check_branch
    %13 = sbr.rel (0) target = $region13
  $region12: #{processor_forward.15} parent=0 // pred_region
    _
  $region13: #{processor_forward.15} parent=0 // pred_fallthru
    _
  %p15 = scmp.eq.s32.totalorder 0, 0
  // Predicated region
  $region14: #{processor_forward.15} parent=0 // pred_check
    %p16 = pneg %p15
  $region15: #{processor_forward.15} parent=0 // pred_check_branch
    %18 = sbr.rel (%p16) target = $region17
  $region16: #{processor_forward.15} parent=0 // pred_region
    %19 = vst [vmem:[#allocation2] sm:$0xff] 0.0
    %20 = vst [vmem:[#allocation2 + $0x8] sm:$0xff] 0.0
  $region17: #{processor_forward.15} parent=0 // pred_fallthru
    _
  %v21 = vld [vmem:[#allocation2] sm:$0xff]
  %v22 = vld [vmem:[#allocation2 + $0x8] sm:$0xff]
  %v23 = vld [vmem:[%s0] sm:$0xff]
  %v24 = vld [vmem:[%s0 + $0x8] sm:$0xff]
  %v25 = vld [vmem:[%s0 + $0x10] sm:$0xff]
  %v26 = vld [vmem:[%s0 + $0x18] sm:$0xff]
  %v27 = vld [vmem:[%s1] sm:$0xf]
  %v28 = vld [vmem:[%s1 + $0x4] sm:$0xf]
  %v29 = vld [vmem:[%s1 + $0x8] sm:$0xf]
  %v30 = vld [vmem:[%s1 + $0xc] sm:$0xf]
  %v31 = vld [vmem:[%s1 + $0x10] sm:$0xf]
  %v32 = vld [vmem:[%s1 + $0x14] sm:$0xf]
  %v33 = vld [vmem:[%s1 + $0x18] sm:$0xf]
  %v34 = vld [vmem:[%s1 + $0x1c] sm:$0xf]
  %v35 = vld [vmem:[%s1 + $0x20] sm:$0xf]
  %v36 = vld [vmem:[%s1 + $0x24] sm:$0xf]
  %v37 = vld [vmem:[%s1 + $0x28] sm:$0xf]
  %v38 = vld [vmem:[%s1 + $0x2c] sm:$0xf]
  %v39 = vld [vmem:[%s1 + $0x30] sm:$0xf]
  %v40 = vld [vmem:[%s1 + $0x34] sm:$0xf]
  %v41 = vld [vmem:[%s1 + $0x38] sm:$0xf]
  %v42 = vld [vmem:[%s1 + $0x3c] sm:$0xf]
  %v43 = vld [vmem:[%s1 + $0x40] sm:$0xf]
  %v44 = vld [vmem:[%s1 + $0x44] sm:$0xf]
  %v45 = vld [vmem:[%s1 + $0x48] sm:$0xf]
  %v46 = vld [vmem:[%s1 + $0x4c] sm:$0xf]
  %v47 = vld [vmem:[%s1 + $0x50] sm:$0xf]
  %v48 = vld [vmem:[%s1 + $0x54] sm:$0xf]
  %v49 = vld [vmem:[%s1 + $0x58] sm:$0xf]
  %v50 = vld [vmem:[%s1 + $0x5c] sm:$0xf]
  %v51 = vld [vmem:[%s1 + $0x60] sm:$0xf]
  %v52 = vld [vmem:[%s1 + $0x64] sm:$0xf]
  %v53 = vld [vmem:[%s1 + $0x68] sm:$0xf]
  %v54 = vld [vmem:[%s1 + $0x6c] sm:$0xf]
  %v55 = vld [vmem:[%s1 + $0x70] sm:$0xf]
  %v56 = vld [vmem:[%s1 + $0x74] sm:$0xf]
  %v57 = vld [vmem:[%s1 + $0x78] sm:$0xf]
  %v58 = vld [vmem:[%s1 + $0x7c] sm:$0xf]
  %v59 = vld [vmem:[%s1 + $0x80] sm:$0xf]
  %v60 = vld [vmem:[%s1 + $0x84] sm:$0xf]
  %v61 = vld [vmem:[%s1 + $0x88] sm:$0xf]
  %v62 = vld [vmem:[%s1 + $0x8c] sm:$0xf]
  %v63 = vld [vmem:[%s1 + $0x90] sm:$0xf]
  %v64 = vld [vmem:[%s1 + $0x94] sm:$0xf]
  %v65 = vld [vmem:[%s1 + $0x98] sm:$0xf]
  %v66 = vld [vmem:[%s1 + $0x9c] sm:$0xf]
  %v67 = vld [vmem:[%s1 + $0xa0] sm:$0xf]
  %v68 = vld [vmem:[%s1 + $0xa4] sm:$0xf]
  %v69 = vld [vmem:[%s1 + $0xa8] sm:$0xf]
  %v70 = vld [vmem:[%s1 + $0xac] sm:$0xf]
  %v71 = vld [vmem:[%s1 + $0xb0] sm:$0xf]
  %v72 = vld [vmem:[%s1 + $0xb4] sm:$0xf]
  %v73 = vld [vmem:[%s1 + $0xb8] sm:$0xf]
  %v74 = vld [vmem:[%s1 + $0xbc] sm:$0xf]
  %v75 = vld [vmem:[%s1 + $0xc0] sm:$0xf]
  %v76 = vld [vmem:[%s1 + $0xc4] sm:$0xf]
  %v77 = vld [vmem:[%s1 + $0xc8] sm:$0xf]
  %v78 = vld [vmem:[%s1 + $0xcc] sm:$0xf]
  %v79 = vld [vmem:[%s1 + $0xd0] sm:$0xf]
  %v80 = vld [vmem:[%s1 + $0xd4] sm:$0xf]
  %v81 = vld [vmem:[%s1 + $0xd8] sm:$0xf]
  %v82 = vld [vmem:[%s1 + $0xdc] sm:$0xf]
  %v83 = vld [vmem:[%s1 + $0xe0] sm:$0xf]
  %v84 = vld [vmem:[%s1 + $0xe4] sm:$0xf]
  %v85 = vld [vmem:[%s1 + $0xe8] sm:$0xf]
  %v86 = vld [vmem:[%s1 + $0xec] sm:$0xf]
  %v87 = vld [vmem:[%s1 + $0xf0] sm:$0xf]
  %v88 = vld [vmem:[%s1 + $0xf4] sm:$0xf]
  %v89 = vld [vmem:[%s1 + $0xf8] sm:$0xf]
  %v90 = vld [vmem:[%s1 + $0xfc] sm:$0xf]
  %v95 = vunpack.c.l.b16 %v23
  %v96 = vunpack.c.h.b16 %v23
  %v97 = vunpack.c.l.b16 %v24
  %v98 = vunpack.c.h.b16 %v24
  %v99 = vunpack.c.l.b16 %v25
  %v100 = vunpack.c.h.b16 %v25
  %v101 = vunpack.c.l.b16 %v26
  %v102 = vunpack.c.h.b16 %v26
  %v103 = vpack.c.b16 %v99, %v95
  %v104 = vpack.c.b16 %v100, %v96
  %v105 = vpack.c.b16 %v101, %v97
  %v106 = vpack.c.b16 %v102, %v98
  %v175 = vunpack.c.l.b16 %v27
  %v176 = vunpack.c.l.b16 %v28
  %v177 = vunpack.c.l.b16 %v29
  %v178 = vunpack.c.l.b16 %v30
  %v179 = vunpack.c.l.b16 %v31
  %v180 = vunpack.c.l.b16 %v32
  %v181 = vunpack.c.l.b16 %v33
  %v182 = vunpack.c.l.b16 %v34
  %v183 = vunpack.c.l.b16 %v35
  %v184 = vunpack.c.l.b16 %v36
  %v185 = vunpack.c.l.b16 %v37
  %v186 = vunpack.c.l.b16 %v38
  %v187 = vunpack.c.l.b16 %v39
  %v188 = vunpack.c.l.b16 %v40
  %v189 = vunpack.c.l.b16 %v41
  %v190 = vunpack.c.l.b16 %v42
  %v191 = vunpack.c.l.b16 %v43
  %v192 = vunpack.c.l.b16 %v44
  %v193 = vunpack.c.l.b16 %v45
  %v194 = vunpack.c.l.b16 %v46
  %v195 = vunpack.c.l.b16 %v47
  %v196 = vunpack.c.l.b16 %v48
  %v197 = vunpack.c.l.b16 %v49
  %v198 = vunpack.c.l.b16 %v50
  %v199 = vunpack.c.l.b16 %v51
  %v200 = vunpack.c.l.b16 %v52
  %v201 = vunpack.c.l.b16 %v53
  %v202 = vunpack.c.l.b16 %v54
  %v203 = vunpack.c.l.b16 %v55
  %v204 = vunpack.c.l.b16 %v56
  %v205 = vunpack.c.l.b16 %v57
  %v206 = vunpack.c.l.b16 %v58
  %v207 = vunpack.c.l.b16 %v59
  %v208 = vunpack.c.l.b16 %v60
  %v209 = vunpack.c.l.b16 %v61
  %v210 = vunpack.c.l.b16 %v62
  %v211 = vunpack.c.l.b16 %v63
  %v212 = vunpack.c.l.b16 %v64
  %v213 = vunpack.c.l.b16 %v65
  %v214 = vunpack.c.l.b16 %v66
  %v215 = vunpack.c.l.b16 %v67
  %v216 = vunpack.c.l.b16 %v68
  %v217 = vunpack.c.l.b16 %v69
  %v218 = vunpack.c.l.b16 %v70
  %v219 = vunpack.c.l.b16 %v71
  %v220 = vunpack.c.l.b16 %v72
  %v221 = vunpack.c.l.b16 %v73
  %v222 = vunpack.c.l.b16 %v74
  %v223 = vunpack.c.l.b16 %v75
  %v224 = vunpack.c.l.b16 %v76
  %v225 = vunpack.c.l.b16 %v77
  %v226 = vunpack.c.l.b16 %v78
  %v227 = vunpack.c.l.b16 %v79
  %v228 = vunpack.c.l.b16 %v80
  %v229 = vunpack.c.l.b16 %v81
  %v230 = vunpack.c.l.b16 %v82
  %v231 = vunpack.c.l.b16 %v83
  %v232 = vunpack.c.l.b16 %v84
  %v233 = vunpack.c.l.b16 %v85
  %v234 = vunpack.c.l.b16 %v86
  %v235 = vunpack.c.l.b16 %v87
  %v236 = vunpack.c.l.b16 %v88
  %v237 = vunpack.c.l.b16 %v89
  %v238 = vunpack.c.l.b16 %v90
  %v239 = vpack.c.b16 %v176, %v175
  %v240 = vpack.c.b16 %v178, %v177
  %v241 = vpack.c.b16 %v180, %v179
  %v242 = vpack.c.b16 %v182, %v181
  %v243 = vpack.c.b16 %v184, %v183
  %v244 = vpack.c.b16 %v186, %v185
  %v245 = vpack.c.b16 %v188, %v187
  %v246 = vpack.c.b16 %v190, %v189
  %v247 = vpack.c.b16 %v192, %v191
  %v248 = vpack.c.b16 %v194, %v193
  %v249 = vpack.c.b16 %v196, %v195
  %v250 = vpack.c.b16 %v198, %v197
  %v251 = vpack.c.b16 %v200, %v199
  %v252 = vpack.c.b16 %v202, %v201
  %v253 = vpack.c.b16 %v204, %v203
  %v254 = vpack.c.b16 %v206, %v205
  %v255 = vpack.c.b16 %v208, %v207
  %v256 = vpack.c.b16 %v210, %v209
  %v257 = vpack.c.b16 %v212, %v211
  %v258 = vpack.c.b16 %v214, %v213
  %v259 = vpack.c.b16 %v216, %v215
  %v260 = vpack.c.b16 %v218, %v217
  %v261 = vpack.c.b16 %v220, %v219
  %v262 = vpack.c.b16 %v222, %v221
  %v263 = vpack.c.b16 %v224, %v223
  %v264 = vpack.c.b16 %v226, %v225
  %v265 = vpack.c.b16 %v228, %v227
  %v266 = vpack.c.b16 %v230, %v229
  %v267 = vpack.c.b16 %v232, %v231
  %v268 = vpack.c.b16 %v234, %v233
  %v269 = vpack.c.b16 %v236, %v235
  %v270 = vpack.c.b16 %v238, %v237
  %303 = vmatprep.subr.bf16.mxu0 0
  %304 = vmatpush1.bf16.msra.mxu0 %v239
  %305 = vmatprep.subr.bf16.mxu0 0
  %306 = vmatpush1.bf16.msra.mxu0 %v240
  %307 = vmatprep.subr.bf16.mxu0 0
  %308 = vmatpush1.bf16.msra.mxu0 %v241
  %309 = vmatprep.subr.bf16.mxu0 0
  %310 = vmatpush1.bf16.msra.mxu0 %v242
  %311 = vmatprep.subr.bf16.mxu0 0
  %312 = vmatpush1.bf16.msra.mxu0 %v243
  %313 = vmatprep.subr.bf16.mxu0 0
  %314 = vmatpush1.bf16.msra.mxu0 %v244
  %315 = vmatprep.subr.bf16.mxu0 0
  %316 = vmatpush1.bf16.msra.mxu0 %v245
  %317 = vmatprep.subr.bf16.mxu0 0
  %318 = vmatpush1.bf16.msra.mxu0 %v246
  %319 = vmatprep.subr.bf16.mxu0 0
  %320 = vmatpush1.bf16.msra.mxu0 %v247
  %321 = vmatprep.subr.bf16.mxu0 0
  %322 = vmatpush1.bf16.msra.mxu0 %v248
  %323 = vmatprep.subr.bf16.mxu0 0
  %324 = vmatpush1.bf16.msra.mxu0 %v249
  %325 = vmatprep.subr.bf16.mxu0 0
  %326 = vmatpush1.bf16.msra.mxu0 %v250
  %327 = vmatprep.subr.bf16.mxu0 0
  %328 = vmatpush1.bf16.msra.mxu0 %v251
  %329 = vmatprep.subr.bf16.mxu0 0
  %330 = vmatpush1.bf16.msra.mxu0 %v252
  %331 = vmatprep.subr.bf16.mxu0 0
  %332 = vmatpush1.bf16.msra.mxu0 %v253
  %333 = vmatprep.subr.bf16.mxu0 0
  %334 = vmatpush1.bf16.msra.mxu0 %v254
  %335 = vmatprep.mubr.bf16.mxu0 %v104
  %336 = vmatmul.mubr.bf16.gmra.mrb[0].mxu0 %v103
  %v337 = vpop.f32.mrb[0].mxu0
  %v338 = vadd.f32 0.0, %v337
  %v339 = vpop.f32.mrb[0].mxu0
  %v340 = vpop.f32.mrb[0].mxu0
  %v341 = vadd.f32 0.0, %v340
  %v342 = vpop.f32.mrb[0].mxu0
  %343 = vdwg.mxu0
  %344 = vmatprep.subr.bf16.mxu0 0
  %345 = vmatpush1.bf16.msra.mxu0 %v255
  %346 = vmatprep.subr.bf16.mxu0 0
  %347 = vmatpush1.bf16.msra.mxu0 %v256
  %348 = vmatprep.subr.bf16.mxu0 0
  %349 = vmatpush1.bf16.msra.mxu0 %v257
  %350 = vmatprep.subr.bf16.mxu0 0
  %351 = vmatpush1.bf16.msra.mxu0 %v258
  %352 = vmatprep.subr.bf16.mxu0 0
  %353 = vmatpush1.bf16.msra.mxu0 %v259
  %354 = vmatprep.subr.bf16.mxu0 0
  %355 = vmatpush1.bf16.msra.mxu0 %v260
  %356 = vmatprep.subr.bf16.mxu0 0
  %357 = vmatpush1.bf16.msra.mxu0 %v261
  %358 = vmatprep.subr.bf16.mxu0 0
  %359 = vmatpush1.bf16.msra.mxu0 %v262
  %360 = vmatprep.subr.bf16.mxu0 0
  %361 = vmatpush1.bf16.msra.mxu0 %v263
  %362 = vmatprep.subr.bf16.mxu0 0
  %363 = vmatpush1.bf16.msra.mxu0 %v264
  %364 = vmatprep.subr.bf16.mxu0 0
  %365 = vmatpush1.bf16.msra.mxu0 %v265
  %366 = vmatprep.subr.bf16.mxu0 0
  %367 = vmatpush1.bf16.msra.mxu0 %v266
  %368 = vmatprep.subr.bf16.mxu0 0
  %369 = vmatpush1.bf16.msra.mxu0 %v267
  %370 = vmatprep.subr.bf16.mxu0 0
  %371 = vmatpush1.bf16.msra.mxu0 %v268
  %372 = vmatprep.subr.bf16.mxu0 0
  %373 = vmatpush1.bf16.msra.mxu0 %v269
  %374 = vmatprep.subr.bf16.mxu0 0
  %375 = vmatpush1.bf16.msra.mxu0 %v270
  %376 = vmatprep.mubr.bf16.mxu0 %v106
  %377 = vmatmul.mubr.bf16.gmra.mrb[0].mxu0 %v105
  %v378 = vpop.f32.mrb[0].mxu0
  %v379 = vadd.f32 %v338, %v378
  %v380 = vpop.f32.mrb[0].mxu0
  %v381 = vpop.f32.mrb[0].mxu0
  %v382 = vadd.f32 %v341, %v381
  %v383 = vpop.f32.mrb[0].mxu0
  %384 = vdwg.mxu0
  %v385 = vadd.f32 %v21, %v379
  %v386 = vadd.f32 %v22, %v382
  %387 = vst [vmem:[#allocation2] sm:$0xff] %v385
  %388 = vst [vmem:[#allocation2 + $0x8] sm:$0xff] %v386
  // Predicated region
  $region18: #{processor_forward.15} parent=0 // pred_check
    %p389 = pneg %p15
  $region19: #{processor_forward.15} parent=0 // pred_check_branch
    %391 = sbr.rel (%p389) target = $region21
  $region20: #{processor_forward.15} parent=0 // pred_region
    %v392 = vld [vmem:[#allocation2] sm:$0xff]
    %v393 = vld [vmem:[#allocation2 + $0x8] sm:$0xff]
    %v394 = vld [vmem:[%s2] sm:$0x1]
    %v396 = vlaneseq
    %v397 = vshrl.u32 %v396, 7
    %v398 = vsub.s32 0, %v397
    %v399 = vrot.slane %v394, %v398
    %v401 = vadd.f32 %v392, %v399
    %v402 = vadd.f32 %v393, %v399
    %403 = vst [vmem:[%s3] sm:$0xff] %v401
    %404 = vst [vmem:[%s3 + $0x8] sm:$0xff] %v402
  $region21: #{processor_forward.15} parent=0 // pred_fallthru
    _
  // Predicated region
  $region22: #{processor_forward.15} parent=0 // pred_check
    _
  $region23: #{processor_forward.15} parent=0 // pred_check_branch
    %406 = sbr.rel (0) target = $region25
  $region24: #{processor_forward.15} parent=0 // pred_region
    _
  $region25: #{processor_forward.15} parent=0 // pred_fallthru
    _
  // Predicated region
  $region26: #{processor_forward.15} parent=0 // pred_check
    _
  $region27: #{processor_forward.15} parent=0 // pred_check_branch
    %408 = sbr.rel (0) target = $region29
  $region28: #{processor_forward.15} parent=0 // pred_region
    _
  $region29: #{processor_forward.15} parent=0 // pred_fallthru
    _

// kernel: processor_forward.17
$region0: #{processor_forward.17}
  #allocation0 [shape = 'u32[]', space=smem, size = 0x4, offset = 0x4, fixed_abs, tag = 'smem constant byte address 0x4 - core index']
  #allocation1 [shape = 'u32[144,128]{1,0:T(1,128)}', space=vmem, size = 0x12000, scoped, tag = 'internal scratch']
  #allocation2 [shape = 'bf16[8,128]{1,0:T(8,128)(2,1)}', space=vmem, size = 0x800, scoped, tag = 'scratch operand']
  #allocation3 [shape = 'f32[8,128]{1,0:T(8,128)}', space=vmem, size = 0x1000, scoped, tag = 'scratch operand']
  #allocation4 [shape = 'f32[8,128]{1,0:T(8,128)}', space=vmem, size = 0x1000, scoped, tag = 'scratch operand']
  #allocation5 [shape = 'f32[8,128]{1,0:T(8,128)}', space=vmem, size = 0x1000, scoped, tag = 'scratch operand']
  %s0 = inlined_call_operand.vmem [shape: bf16[2,8,384], index: 0, kind: input, shape index: {}, may-alias: {0,1,2}]
  %s1 = inlined_call_operand.vmem [shape: bf16[2,8,384], index: 1, kind: input, shape index: {}, may-alias: {0,1,2}]
  %s2 = inlined_call_operand.vmem [shape: bf16[2,8,384], index: 2, kind: input, shape index: {}, may-alias: {0,1,2}]
  %s3 = inlined_call_operand.vmem [shape: f32[8,128], index: 3, kind: input, shape index: {}, may-alias: {3,5}]
  %s4 = inlined_call_operand.vmem [shape: f32[8,128], index: 4, kind: input, shape index: {}, may-alias: {4,6}]
  %s5 = inlined_call_operand.vmem [shape: f32[8,128], index: 5, kind: input, shape index: {}, may-alias: {3,5}]
  %s6 = inlined_call_operand.vmem [shape: f32[8,128], index: 6, kind: input, shape index: {}, may-alias: {4,6}]
  %s7 = inlined_call_operand.vmem [shape: f32[1,128], index: 7, kind: input, shape index: {}]
  %s8 = inlined_call_operand.vmem [shape: bf16[2,8,128], index: 8, kind: output, shape index: {}]
  %s9 = sld [smem:[#allocation0]]
  $region73: #{processor_forward.17} parent=0
    _
  %s11 = ssub.s32 1, %s9
  %s12 = scalar_select 0, %s11, %s9
  loop: start=0, step=1, limit=4
  $region2: #{processor_forward.17} parent=0 // loop_pre_header
    _
  $region3: #{processor_forward.17} parent=0 // loop_header
    %s14 = sphi 0, %s18
    %p15 = scmp.ge.s32.totalorder %s14, 4
    %s21 = sphi 0, %s40
    %s22 = sphi 0, %s36
    %s23 = sphi 0, %s32
    %s24 = sphi 0, %s21
    %s25 = sphi 0, %s22
    %s26 = sphi 0, %s23
    %s27 = sphi 0, %s24
    %s28 = sphi 0, %s25
    %s29 = sphi 0, %s26
    %s45 = sphi 0, %s47
    %s48 = sphi 0, %s45
    %s49 = sphi 0, %s48
    %s65 = sphi 0, %s49
    %s73 = sphi 0, %s75
    %s76 = sphi 0, %s73
    %s77 = sphi 0, %s76
    %s93 = sphi 0, %s77
    %s101 = sphi 0, %s103
    %s104 = sphi 0, %s101
    %s105 = sphi 0, %s104
    %s121 = sphi 0, %s105
    %s127 = sphi 0, %s129
    %s130 = sphi 0, %s127
    %s131 = sphi 0, %s130
    %s147 = sphi 0, %s131
    %s153 = sphi 0, %s155
    %s156 = sphi 0, %s153
    %s157 = sphi 0, %s156
    %s173 = sphi 0, %s157
    %s179 = sphi 0, %s181
    %s182 = sphi 0, %s179
    %s183 = sphi 0, %s182
    %s199 = sphi 0, %s183
    %s205 = sphi 0, %s207
    %s208 = sphi 0, %s205
    %s209 = sphi 0, %s208
    %s225 = sphi 0, %s209
    %s229 = sphi 0, %s229
    %s231 = sphi 0, %s229
    %s232 = sphi 0, %s231
    %s246 = sphi 0, %s232
    %s254 = sphi 0, %s256
    %s257 = sphi 0, %s254
    %s258 = sphi 0, %s257
    %s274 = sphi 0, %s258
  $region4: #{processor_forward.17} parent=0 // loop_header_branch
    %17 = sbr.rel (%p15) target = $region8
  $region5: #{processor_forward.17} parent=0 // loop_body
    %s19 = ssub.s32 %s14, 1
    %s20 = ssub.s32 %s14, 2
    %s30 = sadd.s32 1, %s23
    %p31 = scmp.ge.s32.totalorder %s30, 1
    %s32 = scalar_select %p31, 0, %s30
    %s33 = sadd.s32 1, %s22
    %s34 = scalar_select %p31, %s33, %s22
    %p35 = scmp.ge.s32.totalorder %s34, 1
    %s36 = scalar_select %p35, 0, %s34
    %s37 = sadd.s32 1, %s21
    %s38 = scalar_select %p35, %s37, %s21
    %p39 = scmp.ge.s32.totalorder %s38, 2
    %s40 = scalar_select %p39, 0, %s38
    %s41 = ssub.s32 %s21, %s40
    %s42 = ssub.s32 %s22, %s36
    %s43 = sor.u32 %s41, %s42
    %p44 = scmp.eq.s32.totalorder %s43, 0
    %s46 = sadd.s32 %s45, 1
    %s47 = scalar_select %p44, %s45, %s46
    %p50 = pneg %p44
    %p51 = scmp.eq.s32.totalorder %s14, 1
    %p52 = por %p50, %p51
    %p53 = scmp.ne.s32.totalorder %s45, %s48
    %p54 = scmp.eq.s32.totalorder %s14, 0
    %p55 = por %p53, %p54
    %p56 = scmp.ne.s32.totalorder %s45, %s48
    %p57 = scmp.eq.s32.totalorder %s19, 1
    %p58 = por %p56, %p57
    %p59 = scmp.ne.s32.totalorder %s48, %s49
    %p60 = scmp.eq.s32.totalorder %s19, 0
    %p61 = por %p59, %p60
    %p62 = scmp.ne.s32.totalorder %s48, %s49
    %p63 = scmp.eq.s32.totalorder %s20, 1
    %p64 = por %p62, %p63
    %p66 = scmp.ne.s32.totalorder %s49, %s65
    %p67 = scmp.eq.s32.totalorder %s20, 0
    %p68 = por %p66, %p67
    %s69 = ssub.s32 %s21, %s40
    %s70 = ssub.s32 %s23, %s32
    %s71 = sor.u32 %s69, %s70
    %p72 = scmp.eq.s32.totalorder %s71, 0
    %s74 = sadd.s32 %s73, 1
    %s75 = scalar_select %p72, %s73, %s74
    %p78 = pneg %p72
    %p79 = scmp.eq.s32.totalorder %s14, 1
    %p80 = por %p78, %p79
    %p81 = scmp.ne.s32.totalorder %s73, %s76
    %p82 = scmp.eq.s32.totalorder %s14, 0
    %p83 = por %p81, %p82
    %p84 = scmp.ne.s32.totalorder %s73, %s76
    %p85 = scmp.eq.s32.totalorder %s19, 1
    %p86 = por %p84, %p85
    %p87 = scmp.ne.s32.totalorder %s76, %s77
    %p88 = scmp.eq.s32.totalorder %s19, 0
    %p89 = por %p87, %p88
    %p90 = scmp.ne.s32.totalorder %s76, %s77
    %p91 = scmp.eq.s32.totalorder %s20, 1
    %p92 = por %p90, %p91
    %p94 = scmp.ne.s32.totalorder %s77, %s93
    %p95 = scmp.eq.s32.totalorder %s20, 0
    %p96 = por %p94, %p95
    %s97 = ssub.s32 %s21, %s40
    %s98 = ssub.s32 %s23, %s32
    %s99 = sor.u32 %s97, %s98
    %p100 = scmp.eq.s32.totalorder %s99, 0
    %s102 = sadd.s32 %s101, 1
    %s103 = scalar_select %p100, %s101, %s102
    %p106 = pneg %p100
    %p107 = scmp.eq.s32.totalorder %s14, 1
    %p108 = por %p106, %p107
    %p109 = scmp.ne.s32.totalorder %s101, %s104
    %p110 = scmp.eq.s32.totalorder %s14, 0
    %p111 = por %p109, %p110
    %p112 = scmp.ne.s32.totalorder %s101, %s104
    %p113 = scmp.eq.s32.totalorder %s19, 1
    %p114 = por %p112, %p113
    %p115 = scmp.ne.s32.totalorder %s104, %s105
    %p116 = scmp.eq.s32.totalorder %s19, 0
    %p117 = por %p115, %p116
    %p118 = scmp.ne.s32.totalorder %s104, %s105
    %p119 = scmp.eq.s32.totalorder %s20, 1
    %p120 = por %p118, %p119
    %p122 = scmp.ne.s32.totalorder %s105, %s121
    %p123 = scmp.eq.s32.totalorder %s20, 0
    %p124 = por %p122, %p123
    %s125 = ssub.s32 %s22, %s36
    %p126 = scmp.eq.s32.totalorder %s125, 0
    %s128 = sadd.s32 %s127, 1
    %s129 = scalar_select %p126, %s127, %s128
    %p132 = pneg %p126
    %p133 = scmp.eq.s32.totalorder %s14, 1
    %p134 = por %p132, %p133
    %p135 = scmp.ne.s32.totalorder %s127, %s130
    %p136 = scmp.eq.s32.totalorder %s14, 0
    %p137 = por %p135, %p136
    %p138 = scmp.ne.s32.totalorder %s127, %s130
    %p139 = scmp.eq.s32.totalorder %s19, 1
    %p140 = por %p138, %p139
    %p141 = scmp.ne.s32.totalorder %s130, %s131
    %p142 = scmp.eq.s32.totalorder %s19, 0
    %p143 = por %p141, %p142
    %p144 = scmp.ne.s32.totalorder %s130, %s131
    %p145 = scmp.eq.s32.totalorder %s20, 1
    %p146 = por %p144, %p145
    %p148 = scmp.ne.s32.totalorder %s131, %s147
    %p149 = scmp.eq.s32.totalorder %s20, 0
    %p150 = por %p148, %p149
    %s151 = ssub.s32 %s22, %s36
    %p152 = scmp.eq.s32.totalorder %s151, 0
    %s154 = sadd.s32 %s153, 1
    %s155 = scalar_select %p152, %s153, %s154
    %p158 = pneg %p152
    %p159 = scmp.eq.s32.totalorder %s14, 1
    %p160 = por %p158, %p159
    %p161 = scmp.ne.s32.totalorder %s153, %s156
    %p162 = scmp.eq.s32.totalorder %s14, 0
    %p163 = por %p161, %p162
    %p164 = scmp.ne.s32.totalorder %s153, %s156
    %p165 = scmp.eq.s32.totalorder %s19, 1
    %p166 = por %p164, %p165
    %p167 = scmp.ne.s32.totalorder %s156, %s157
    %p168 = scmp.eq.s32.totalorder %s19, 0
    %p169 = por %p167, %p168
    %p170 = scmp.ne.s32.totalorder %s156, %s157
    %p171 = scmp.eq.s32.totalorder %s20, 1
    %p172 = por %p170, %p171
    %p174 = scmp.ne.s32.totalorder %s157, %s173
    %p175 = scmp.eq.s32.totalorder %s20, 0
    %p176 = por %p174, %p175
    %s177 = ssub.s32 %s23, %s32
    %p178 = scmp.eq.s32.totalorder %s177, 0
    %s180 = sadd.s32 %s179, 1
    %s181 = scalar_select %p178, %s179, %s180
    %p184 = pneg %p178
    %p185 = scmp.eq.s32.totalorder %s14, 1
    %p186 = por %p184, %p185
    %p187 = scmp.ne.s32.totalorder %s179, %s182
    %p188 = scmp.eq.s32.totalorder %s14, 0
    %p189 = por %p187, %p188
    %p190 = scmp.ne.s32.totalorder %s179, %s182
    %p191 = scmp.eq.s32.totalorder %s19, 1
    %p192 = por %p190, %p191
    %p193 = scmp.ne.s32.totalorder %s182, %s183
    %p194 = scmp.eq.s32.totalorder %s19, 0
    %p195 = por %p193, %p194
    %p196 = scmp.ne.s32.totalorder %s182, %s183
    %p197 = scmp.eq.s32.totalorder %s20, 1
    %p198 = por %p196, %p197
    %p200 = scmp.ne.s32.totalorder %s183, %s199
    %p201 = scmp.eq.s32.totalorder %s20, 0
    %p202 = por %p200, %p201
    %s203 = ssub.s32 %s23, %s32
    %p204 = scmp.eq.s32.totalorder %s203, 0
    %s206 = sadd.s32 %s205, 1
    %s207 = scalar_select %p204, %s205, %s206
    %p210 = pneg %p204
    %p211 = scmp.eq.s32.totalorder %s14, 1
    %p212 = por %p210, %p211
    %p213 = scmp.ne.s32.totalorder %s205, %s208
    %p214 = scmp.eq.s32.totalorder %s14, 0
    %p215 = por %p213, %p214
    %p216 = scmp.ne.s32.totalorder %s205, %s208
    %p217 = scmp.eq.s32.totalorder %s19, 1
    %p218 = por %p216, %p217
    %p219 = scmp.ne.s32.totalorder %s208, %s209
    %p220 = scmp.eq.s32.totalorder %s19, 0
    %p221 = por %p219, %p220
    %p222 = scmp.ne.s32.totalorder %s208, %s209
    %p223 = scmp.eq.s32.totalorder %s20, 1
    %p224 = por %p222, %p223
    %p226 = scmp.ne.s32.totalorder %s209, %s225
    %p227 = scmp.eq.s32.totalorder %s20, 0
    %p228 = por %p226, %p227
    %s230 = sadd.s32 %s229, 1
    %p233 = scmp.eq.s32.totalorder %s14, 1
    %p234 = scmp.ne.s32.totalorder %s229, %s231
    %p235 = scmp.eq.s32.totalorder %s14, 0
    %p236 = por %p234, %p235
    %p237 = scmp.ne.s32.totalorder %s229, %s231
    %p238 = scmp.eq.s32.totalorder %s19, 1
    %p239 = por %p237, %p238
    %p240 = scmp.ne.s32.totalorder %s231, %s232
    %p241 = scmp.eq.s32.totalorder %s19, 0
    %p242 = por %p240, %p241
    %p243 = scmp.ne.s32.totalorder %s231, %s232
    %p244 = scmp.eq.s32.totalorder %s20, 1
    %p245 = por %p243, %p244
    %p247 = scmp.ne.s32.totalorder %s232, %s246
    %p248 = scmp.eq.s32.totalorder %s20, 0
    %p249 = por %p247, %p248
    %s250 = ssub.s32 %s21, %s40
    %s251 = ssub.s32 %s22, %s36
    %s252 = sor.u32 %s250, %s251
    %p253 = scmp.eq.s32.totalorder %s252, 0
    %s255 = sadd.s32 %s254, 1
    %s256 = scalar_select %p253, %s254, %s255
    %p259 = pneg %p253
    %p260 = scmp.eq.s32.totalorder %s14, 1
    %p261 = por %p259, %p260
    %p262 = scmp.ne.s32.totalorder %s254, %s257
    %p263 = scmp.eq.s32.totalorder %s14, 0
    %p264 = por %p262, %p263
    %p265 = scmp.ne.s32.totalorder %s254, %s257
    %p266 = scmp.eq.s32.totalorder %s19, 1
    %p267 = por %p265, %p266
    %p268 = scmp.ne.s32.totalorder %s257, %s258
    %p269 = scmp.eq.s32.totalorder %s19, 0
    %p270 = por %p268, %p269
    %p271 = scmp.ne.s32.totalorder %s257, %s258
    %p272 = scmp.eq.s32.totalorder %s20, 1
    %p273 = por %p271, %p272
    %p275 = scmp.ne.s32.totalorder %s258, %s274
    %p276 = scmp.eq.s32.totalorder %s20, 0
    %p277 = por %p275, %p276
    %p278 = scmp.le.s32.totalorder 1, %s14
    %p279 = scmp.lt.s32.totalorder %s14, 3
    %p280 = pnand %p278, %p279
    %p281 = pneg %p280
    // Predicated region
    $region9: #{processor_forward.17} parent=5 // pred_check
      _
    $region10: #{processor_forward.17} parent=5 // pred_check_branch
      %283 = sbr.rel (%p280) target = $region12
    $region11: #{processor_forward.17} parent=5 // pred_region
      %s284 = ssub.s32 %s14, 1
      // Predicated region
      $region13: #{processor_forward.17} parent=11 // pred_check
        %p285 = pneg %p143
      $region14: #{processor_forward.17} parent=11 // pred_check_branch
        %287 = sbr.rel (%p285) target = $region16
      $region15: #{processor_forward.17} parent=11 // pred_region
        %p288 = scmp.lt.s32.totalorder %s25, 0
        %s289 = scalar_select %p288, %s25, 0
        %s290 = smul.addr %s289, 8
        %s291 = scalar_lea.vmem %s3, %s290
      $region16: #{processor_forward.17} parent=11 // pred_fallthru
        _
      // Predicated region
      $region17: #{processor_forward.17} parent=11 // pred_check
        %p292 = pneg %p169
      $region18: #{processor_forward.17} parent=11 // pred_check_branch
        %294 = sbr.rel (%p292) target = $region20
      $region19: #{processor_forward.17} parent=11 // pred_region
        %p295 = scmp.lt.s32.totalorder %s25, 0
        %s296 = scalar_select %p295, %s25, 0
        %s297 = smul.addr %s296, 8
        %s298 = scalar_lea.vmem %s4, %s297
      $region20: #{processor_forward.17} parent=11 // pred_fallthru
        _
      // Predicated region
      $region21: #{processor_forward.17} parent=11 // pred_check
        %p299 = pneg %p195
      $region22: #{processor_forward.17} parent=11 // pred_check_branch
        %301 = sbr.rel (%p299) target = $region24
      $region23: #{processor_forward.17} parent=11 // pred_region
        %p302 = scmp.lt.s32.totalorder %s26, 0
        %s303 = scalar_select %p302, %s26, 0
        %s304 = smul.addr %s303, 8
        %s305 = scalar_lea.vmem %s5, %s304
      $region24: #{processor_forward.17} parent=11 // pred_fallthru
        _
      // Predicated region
      $region25: #{processor_forward.17} parent=11 // pred_check
        %p306 = pneg %p221
      $region26: #{processor_forward.17} parent=11 // pred_check_branch
        %308 = sbr.rel (%p306) target = $region28
      $region27: #{processor_forward.17} parent=11 // pred_region
        %p309 = scmp.lt.s32.totalorder %s26, 0
        %s310 = scalar_select %p309, %s26, 0
        %s311 = smul.addr %s310, 8
        %s312 = scalar_lea.vmem %s6, %s311
      $region28: #{processor_forward.17} parent=11 // pred_fallthru
        _
      // Predicated region
      $region29: #{processor_forward.17} parent=11 // pred_check
        %p313 = pneg %p242
      $region30: #{processor_forward.17} parent=11 // pred_check_branch
        %315 = sbr.rel (%p313) target = $region32
      $region31: #{processor_forward.17} parent=11 // pred_region
        _
      $region32: #{processor_forward.17} parent=11 // pred_fallthru
        _
    $region12: #{processor_forward.17} parent=5 // pred_fallthru
      _
    %p316 = scmp.lt.s32.totalorder %s14, 2
    // Predicated region
    $region33: #{processor_forward.17} parent=5 // pred_check
      %p317 = pneg %p316
    $region34: #{processor_forward.17} parent=5 // pred_check_branch
      %319 = sbr.rel (%p317) target = $region36
    $region35: #{processor_forward.17} parent=5 // pred_region
      // Predicated region
      $region37: #{processor_forward.17} parent=35 // pred_check
        %p320 = pneg %p55
      $region38: #{processor_forward.17} parent=35 // pred_check_branch
        %322 = sbr.rel (%p320) target = $region40
      $region39: #{processor_forward.17} parent=35 // pred_region
        %p323 = scmp.lt.s32.totalorder %s21, 1
        %s324 = scalar_select %p323, %s21, 1
        %p325 = scmp.lt.s32.totalorder %s22, 0
        %s326 = scalar_select %p325, %s22, 0
        %s327 = smul.addr %s326, 3
        %s328 = smul.addr %s324, 3
        %s329 = sadd.s32 %s327, %s328
        %s330 = smul.addr %s329, 4
        %s331 = scalar_lea.vmem %s0, %s330
      $region40: #{processor_forward.17} parent=35 // pred_fallthru
        _
      // Predicated region
      $region41: #{processor_forward.17} parent=35 // pred_check
        %p332 = pneg %p83
      $region42: #{processor_forward.17} parent=35 // pred_check_branch
        %334 = sbr.rel (%p332) target = $region44
      $region43: #{processor_forward.17} parent=35 // pred_region
        %p335 = scmp.lt.s32.totalorder %s21, 1
        %s336 = scalar_select %p335, %s21, 1
        %p337 = scmp.lt.s32.totalorder %s23, 0
        %s338 = scalar_select %p337, %s23, 0
        %s339 = smul.addr %s338, 3
        %s340 = sadd.s32 1, %s339
        %s341 = smul.addr %s336, 3
        %s342 = sadd.s32 %s340, %s341
        %s343 = smul.addr %s342, 4
        %s344 = scalar_lea.vmem %s1, %s343
      $region44: #{processor_forward.17} parent=35 // pred_fallthru
        _
      // Predicated region
      $region45: #{processor_forward.17} parent=35 // pred_check
        %p345 = pneg %p111
      $region46: #{processor_forward.17} parent=35 // pred_check_branch
        %347 = sbr.rel (%p345) target = $region48
      $region47: #{processor_forward.17} parent=35 // pred_region
        %p348 = scmp.lt.s32.totalorder %s21, 1
        %s349 = scalar_select %p348, %s21, 1
        %p350 = scmp.lt.s32.totalorder %s23, 0
        %s351 = scalar_select %p350, %s23, 0
        %s352 = smul.addr %s351, 3
        %s353 = sadd.s32 2, %s352
        %s354 = smul.addr %s349, 3
        %s355 = sadd.s32 %s353, %s354
        %s356 = smul.addr %s355, 4
        %s357 = scalar_lea.vmem %s2, %s356
      $region48: #{processor_forward.17} parent=35 // pred_fallthru
        _
    $region36: #{processor_forward.17} parent=5 // pred_fallthru
      _
    %p358 = scmp.le.s32.totalorder 1, %s14
    %p359 = scmp.lt.s32.totalorder %s14, 3
    %p360 = pnand %p358, %p359
    %p361 = pneg %p360
    // Predicated region
    $region49: #{processor_forward.17} parent=5 // pred_check
      _
    $region50: #{processor_forward.17} parent=5 // pred_check_branch
      %363 = sbr.rel (%p360) target = $region52
    $region51: #{processor_forward.17} parent=5 // pred_region
      %s364 = ssub.s32 %s14, 1
      %p365 = scmp.lt.s32.totalorder %s24, 1
      %s366 = scalar_select %p365, %s24, 1
      %p367 = scmp.lt.s32.totalorder %s25, 0
      %s368 = scalar_select %p367, %s25, 0
      %s369 = smul.addr %s368, 3
      %s370 = smul.addr %s366, 3
      %s371 = sadd.s32 %s369, %s370
      %s372 = smul.addr %s371, 4
      %s373 = scalar_lea.vmem %s0, %s372
      %p374 = pneg %p61
      %p375 = pneg %p58
      %p376 = scmp.lt.s32.totalorder %s24, 1
      %s377 = scalar_select %p376, %s24, 1
      %p378 = scmp.lt.s32.totalorder %s26, 0
      %s379 = scalar_select %p378, %s26, 0
      %s380 = smul.addr %s379, 3
      %s381 = sadd.s32 1, %s380
      %s382 = smul.addr %s377, 3
      %s383 = sadd.s32 %s381, %s382
      %s384 = smul.addr %s383, 4
      %s385 = scalar_lea.vmem %s1, %s384
      %p386 = pneg %p89
      %p387 = pneg %p86
      %p388 = scmp.lt.s32.totalorder %s24, 1
      %s389 = scalar_select %p388, %s24, 1
      %p390 = scmp.lt.s32.totalorder %s26, 0
      %s391 = scalar_select %p390, %s26, 0
      %s392 = smul.addr %s391, 3
      %s393 = sadd.s32 2, %s392
      %s394 = smul.addr %s389, 3
      %s395 = sadd.s32 %s393, %s394
      %s396 = smul.addr %s395, 4
      %s397 = scalar_lea.vmem %s2, %s396
      %p398 = pneg %p117
      %p399 = pneg %p114
      %p400 = scmp.lt.s32.totalorder %s25, 0
      %s401 = scalar_select %p400, %s25, 0
      %s402 = smul.addr %s401, 8
      %s403 = scalar_lea.vmem %s3, %s402
      %p404 = pneg %p143
      %p405 = pneg %p140
      %p406 = scmp.lt.s32.totalorder %s25, 0
      %s407 = scalar_select %p406, %s25, 0
      %s408 = smul.addr %s407, 8
      %s409 = scalar_lea.vmem %s4, %s408
      %p410 = pneg %p169
      %p411 = pneg %p166
      %p412 = scmp.lt.s32.totalorder %s26, 0
      %s413 = scalar_select %p412, %s26, 0
      %s414 = smul.addr %s413, 8
      %s415 = scalar_lea.vmem %s5, %s414
      %p416 = pneg %p195
      %p417 = pneg %p192
      %p418 = scmp.lt.s32.totalorder %s26, 0
      %s419 = scalar_select %p418, %s26, 0
      %s420 = smul.addr %s419, 8
      %s421 = scalar_lea.vmem %s6, %s420
      %p422 = pneg %p221
      %p423 = pneg %p218
      %p424 = pneg %p242
      %p425 = pneg %p239
      %p426 = pneg %p270
      %p427 = pneg %p267
      %p428 = scmp.lt.s32.totalorder %s24, 1
      %s429 = scalar_select %p428, %s24, 1
      %p430 = scmp.lt.s32.totalorder %s25, 0
      %s431 = scalar_select %p430, %s25, 0
      %s432 = sadd.s32 %s431, %s429
      %s433 = smul.addr %s432, 4
      %s434 = scalar_lea.vmem %s8, %s433
      %p435 = scmp.lt.s32.totalorder %s24, 1
      %s436 = scalar_select %p435, %s24, 1
      %p437 = scmp.lt.s32.totalorder %s25, 0
      %s438 = scalar_select %p437, %s25, 0
      %s439 = smul.addr %s438, 3
      %s440 = smul.addr %s436, 3
      %s441 = sadd.s32 %s439, %s440
      %s442 = smul.addr %s441, 4
      %s443 = scalar_lea.vmem %s0, %s442
      %p444 = scmp.lt.s32.totalorder %s24, 1
      %s445 = scalar_select %p444, %s24, 1
      %p446 = scmp.lt.s32.totalorder %s26, 0
      %s447 = scalar_select %p446, %s26, 0
      %s448 = smul.addr %s447, 3
      %s449 = sadd.s32 1, %s448
      %s450 = smul.addr %s445, 3
      %s451 = sadd.s32 %s449, %s450
      %s452 = smul.addr %s451, 4
      %s453 = scalar_lea.vmem %s1, %s452
      %p454 = scmp.lt.s32.totalorder %s24, 1
      %s455 = scalar_select %p454, %s24, 1
      %p456 = scmp.lt.s32.totalorder %s26, 0
      %s457 = scalar_select %p456, %s26, 0
      %s458 = smul.addr %s457, 3
      %s459 = sadd.s32 2, %s458
      %s460 = smul.addr %s455, 3
      %s461 = sadd.s32 %s459, %s460
      %s462 = smul.addr %s461, 4
      %s463 = scalar_lea.vmem %s2, %s462
      %p464 = scmp.lt.s32.totalorder %s25, 0
      %s465 = scalar_select %p464, %s25, 0
      %s466 = smul.addr %s465, 8
      %s467 = scalar_lea.vmem %s3, %s466
      %p468 = scmp.lt.s32.totalorder %s25, 0
      %s469 = scalar_select %p468, %s25, 0
      %s470 = smul.addr %s469, 8
      %s471 = scalar_lea.vmem %s4, %s470
      %p472 = scmp.lt.s32.totalorder %s26, 0
      %s473 = scalar_select %p472, %s26, 0
      %s474 = smul.addr %s473, 8
      %s475 = scalar_lea.vmem %s5, %s474
      %p476 = scmp.lt.s32.totalorder %s26, 0
      %s477 = scalar_select %p476, %s26, 0
      %s478 = smul.addr %s477, 8
      %s479 = scalar_lea.vmem %s6, %s478
      %p480 = scmp.lt.s32.totalorder %s24, 1
      %s481 = scalar_select %p480, %s24, 1
      %p482 = scmp.lt.s32.totalorder %s25, 0
      %s483 = scalar_select %p482, %s25, 0
      %s484 = sadd.s32 %s483, %s481
      %s485 = smul.addr %s484, 4
      %s486 = scalar_lea.vmem %s8, %s485
      %v488 = vld [vmem:[%s7] sm:$0x1]
      %p489 = scmp.eq.s32.totalorder %s26, 0
      // Predicated region
      $region53: #{processor_forward.17} parent=51 // pred_check
        %p490 = pneg %p489
      $region54: #{processor_forward.17} parent=51 // pred_check_branch
        %492 = sbr.rel (%p490) target = $region56
      $region55: #{processor_forward.17} parent=51 // pred_region
        %v493 = vld [vmem:[%s443] sm:$0xf]
        %v494 = vunpack.c.l.bf16 %v493
        %v495 = vld [vmem:[%s467] sm:$0xff]
        %v496 = vld [vmem:[%s471] sm:$0xff]
        %497 = vrot.lane.b32.xlu0 %v494, 127
        %v498 = vpop.permute.xlu0 %497
        %499 = vrot.lane.b32.xlu0 %v494, 1
        %v500 = vpop.permute.xlu0 %499
        %v501 = vlaneseq
        %v502 = vand.u32 %v501, 127
        %vm503 = vcmp.lt.s32.totalorder %v502, 0
        %v504 = vsub.s32 0, %v502
        %v505 = vsel %vm503, %v504, %v502
        %v506 = vshrl.u32 %v505, 1
        %v507 = vand.u32 %v505, 1
        %v508 = vsub.s32 0, %v507
        %v509 = vsel %vm503, %v508, %v507
        %vm510 = vcmp.ne.s32.totalorder %v509, 0
        %vm511 = vcmp.lt.s32.totalorder %v509, 0
        %vm512 = vmand %vm511, %vm510
        %v513 = vadd.s32 %v509, 2
        %v514 = vsel %vm512, %v513, %v509
        %vm515 = vcmp.eq.s32.totalorder %v514, 0
        %v516 = vsub.f32 0.0, %v498
        %v517 = vsel %vm515, %v516, %v500
        %v518 = vmul.f32 %v494, %v495
        %v519 = vmul.f32 %v517, %v496
        %v520 = vadd.f32 %v518, %v519
        %vm521 = vcmask 261120
        %v522 = vsel %vm521, %v520, 0.0
        %523 = vadd.xlane.f32.xlu0 %v522
        %v524 = vpop.xlane.xlu0 %523
        %v525 = vrcp.pop 32.0
        %v526 = vmul.f32 %v524, %v525
        %v527 = vsub.f32 %v520, %v526
        %v528 = vmul.f32 %v527, %v527
        %v529 = vsel %vm521, %v528, 0.0
        %530 = vadd.xlane.f32.xlu0 %v529
        %v531 = vpop.xlane.xlu0 %530
        %v532 = vmul.f32 %v531, %v525
        %v533 = vadd.f32 %v532, 1e-05
        %v534 = vrsqrt.pop %v533
        %536 = vrot.lane.b32.xlu0 %v520, 96
        %v537 = vpop.permute.xlu0 %536
        %v539 = vsel %vm521, %v537, 0.0
        %540 = vadd.xlane.f32.xlu0 %v539
        %v541 = vpop.xlane.xlu0 %540
        %v542 = vmul.f32 %v541, %v525
        %v543 = vsub.f32 %v520, %v542
        %v544 = vmul.f32 %v543, %v543
        %546 = vrot.lane.b32.xlu0 %v544, 96
        %v547 = vpop.permute.xlu0 %546
        %v549 = vsel %vm521, %v547, 0.0
        %550 = vadd.xlane.f32.xlu0 %v549
        %v551 = vpop.xlane.xlu0 %550
        %v552 = vmul.f32 %v551, %v525
        %v553 = vadd.f32 %v552, 1e-05
        %v554 = vrsqrt.pop %v553
        %555 = vrot.lane.b32.xlu0 %v520, 64
        %v556 = vpop.permute.xlu0 %555
        %v558 = vsel %vm521, %v556, 0.0
        %559 = vadd.xlane.f32.xlu0 %v558
        %v560 = vpop.xlane.xlu0 %559
        %v561 = vmul.f32 %v560, %v525
        %v562 = vsub.f32 %v520, %v561
        %v563 = vmul.f32 %v562, %v562
        %565 = vrot.lane.b32.xlu0 %v563, 64
        %v566 = vpop.permute.xlu0 %565
        %v568 = vsel %vm521, %v566, 0.0
        %569 = vadd.xlane.f32.xlu0 %v568
        %v570 = vpop.xlane.xlu0 %569
        %v571 = vmul.f32 %v570, %v525
        %v572 = vadd.f32 %v571, 1e-05
        %v573 = vrsqrt.pop %v572
        %574 = vrot.lane.b32.xlu0 %v520, 32
        %v575 = vpop.permute.xlu0 %574
        %v577 = vsel %vm521, %v575, 0.0
        %578 = vadd.xlane.f32.xlu0 %v577
        %v579 = vpop.xlane.xlu0 %578
        %v580 = vmul.f32 %v579, %v525
        %v581 = vsub.f32 %v520, %v580
        %v582 = vmul.f32 %v581, %v581
        %584 = vrot.lane.b32.xlu0 %v582, 32
        %v585 = vpop.permute.xlu0 %584
        %v587 = vsel %vm521, %v585, 0.0
        %588 = vadd.xlane.f32.xlu0 %v587
        %v589 = vpop.xlane.xlu0 %588
        %v590 = vmul.f32 %v589, %v525
        %v591 = vadd.f32 %v590, 1e-05
        %v592 = vrsqrt.pop %v591
        %v593 = vsel %vm521, %v526, %v542
        %vm594 = vcmask 523264
        %v595 = vsel %vm594, %v593, %v561
        %vm596 = vcmask 785408
        %v597 = vsel %vm596, %v595, %v580
        %v598 = vsel %vm521, %v534, %v554
        %v599 = vsel %vm594, %v598, %v573
        %v600 = vsel %vm596, %v599, %v592
        %v601 = vsub.f32 %v520, %v597
        %v602 = vmul.f32 %v601, %v600
        %v604 = vlaneseq
        %v605 = vshrl.u32 %v604, 7
        %v606 = vsub.s32 0, %v605
        %v607 = vrot.slane %v488, %v606
        %v609 = vmul.f32 %v602, %v607
        %v610 = vpack.c.bf16 %v609, %v609
        %611 = vst [vmem:[#allocation2] sm:$0xf] %v610
        %612 = vst [vmem:[#allocation3] sm:$0xff] -1e+30
        %613 = vst [vmem:[#allocation4] sm:$0xff] 0.0
        %614 = vst [vmem:[#allocation5] sm:$0xff] 0.0
      $region56: #{processor_forward.17} parent=51 // pred_fallthru
        _
      %v615 = vld [vmem:[%s453] sm:$0xf]
      %v616 = vunpack.c.l.bf16 %v615
      %v617 = vld [vmem:[%s475] sm:$0xff]
      %v618 = vld [vmem:[%s479] sm:$0xff]
      %619 = vrot.lane.b32.xlu0 %v616, 127
      %v620 = vpop.permute.xlu0 %619
      %621 = vrot.lane.b32.xlu0 %v616, 1
      %v622 = vpop.permute.xlu0 %621
      %v623 = vlaneseq
      %v624 = vand.u32 %v623, 127
      %vm625 = vcmp.lt.s32.totalorder %v624, 0
      %v626 = vsub.s32 0, %v624
      %v627 = vsel %vm625, %v626, %v624
      %v628 = vshrl.u32 %v627, 1
      %v629 = vand.u32 %v627, 1
      %v630 = vsub.s32 0, %v629
      %v631 = vsel %vm625, %v630, %v629
      %vm632 = vcmp.ne.s32.totalorder %v631, 0
      %vm633 = vcmp.lt.s32.totalorder %v631, 0
      %vm634 = vmand %vm633, %vm632
      %v635 = vadd.s32 %v631, 2
      %v636 = vsel %vm634, %v635, %v631
      %vm637 = vcmp.eq.s32.totalorder %v636, 0
      %v638 = vsub.f32 0.0, %v620
      %v639 = vsel %vm637, %v638, %v622
      %v640 = vmul.f32 %v616, %v617
      %v641 = vmul.f32 %v639, %v618
      %v642 = vadd.f32 %v640, %v641
      %vm643 = vcmask 261120
      %v644 = vsel %vm643, %v642, 0.0
      %645 = vadd.xlane.f32.xlu0 %v644
      %v646 = vpop.xlane.xlu0 %645
      %v647 = vrcp.pop 32.0
      %v648 = vmul.f32 %v646, %v647
      %v649 = vsub.f32 %v642, %v648
      %v650 = vmul.f32 %v649, %v649
      %v651 = vsel %vm643, %v650, 0.0
      %652 = vadd.xlane.f32.xlu0 %v651
      %v653 = vpop.xlane.xlu0 %652
      %v654 = vmul.f32 %v653, %v647
      %v655 = vadd.f32 %v654, 1e-05
      %v656 = vrsqrt.pop %v655
      %658 = vrot.lane.b32.xlu0 %v642, 96
      %v659 = vpop.permute.xlu0 %658
      %v661 = vsel %vm643, %v659, 0.0
      %662 = vadd.xlane.f32.xlu0 %v661
      %v663 = vpop.xlane.xlu0 %662
      %v664 = vmul.f32 %v663, %v647
      %v665 = vsub.f32 %v642, %v664
      %v666 = vmul.f32 %v665, %v665
      %668 = vrot.lane.b32.xlu0 %v666, 96
      %v669 = vpop.permute.xlu0 %668
      %v671 = vsel %vm643, %v669, 0.0
      %672 = vadd.xlane.f32.xlu0 %v671
      %v673 = vpop.xlane.xlu0 %672
      %v674 = vmul.f32 %v673, %v647
      %v675 = vadd.f32 %v674, 1e-05
      %v676 = vrsqrt.pop %v675
      %677 = vrot.lane.b32.xlu0 %v642, 64
      %v678 = vpop.permute.xlu0 %677
      %v680 = vsel %vm643, %v678, 0.0
      %681 = vadd.xlane.f32.xlu0 %v680
      %v682 = vpop.xlane.xlu0 %681
      %v683 = vmul.f32 %v682, %v647
      %v684 = vsub.f32 %v642, %v683
      %v685 = vmul.f32 %v684, %v684
      %687 = vrot.lane.b32.xlu0 %v685, 64
      %v688 = vpop.permute.xlu0 %687
      %v690 = vsel %vm643, %v688, 0.0
      %691 = vadd.xlane.f32.xlu0 %v690
      %v692 = vpop.xlane.xlu0 %691
      %v693 = vmul.f32 %v692, %v647
      %v694 = vadd.f32 %v693, 1e-05
      %v695 = vrsqrt.pop %v694
      %696 = vrot.lane.b32.xlu0 %v642, 32
      %v697 = vpop.permute.xlu0 %696
      %v699 = vsel %vm643, %v697, 0.0
      %700 = vadd.xlane.f32.xlu0 %v699
      %v701 = vpop.xlane.xlu0 %700
      %v702 = vmul.f32 %v701, %v647
      %v703 = vsub.f32 %v642, %v702
      %v704 = vmul.f32 %v703, %v703
      %706 = vrot.lane.b32.xlu0 %v704, 32
      %v707 = vpop.permute.xlu0 %706
      %v709 = vsel %vm643, %v707, 0.0
      %710 = vadd.xlane.f32.xlu0 %v709
      %v711 = vpop.xlane.xlu0 %710
      %v712 = vmul.f32 %v711, %v647
      %v713 = vadd.f32 %v712, 1e-05
      %v714 = vrsqrt.pop %v713
      %v715 = vsel %vm643, %v648, %v664
      %vm716 = vcmask 523264
      %v717 = vsel %vm716, %v715, %v683
      %vm718 = vcmask 785408
      %v719 = vsel %vm718, %v717, %v702
      %v720 = vsel %vm643, %v656, %v676
      %v721 = vsel %vm716, %v720, %v695
      %v722 = vsel %vm718, %v721, %v714
      %v723 = vsub.f32 %v642, %v719
      %v724 = vmul.f32 %v723, %v722
      %v726 = vlaneseq
      %v727 = vshrl.u32 %v726, 7
      %v728 = vsub.s32 0, %v727
      %v729 = vrot.slane %v488, %v728
      %v731 = vmul.f32 %v724, %v729
      %v732 = vpack.c.bf16 %v731, %v731
      %v733 = vld [vmem:[%s463] sm:$0xf]
      %v734 = vld [vmem:[#allocation2] sm:$0xf]
      %v735 = vld [vmem:[#allocation3] sm:$0xff]
      %v737 = vsel %vm643, %v734, 0
      %v740 = vsel %vm643, %v732, 0
      %742 = vmatprep.subr.bf16.mxu0 0
      %743 = vmatpush1.bf16.xpose.msra.mxu0 %v740
      %744 = vmatprep.subr.bf16.mxu0 0
      %745 = vmatpush1.bf16.xpose.msra.mxu0 0
      %746 = vmatprep.subr.bf16.mxu0 0
      %747 = vmatpush1.bf16.xpose.msra.mxu0 0
      %748 = vmatprep.subr.bf16.mxu0 0
      %749 = vmatpush1.bf16.xpose.msra.mxu0 0
      %750 = vmatprep.subr.bf16.mxu0 0
      %751 = vmatpush1.bf16.xpose.msra.mxu0 0
      %752 = vmatprep.subr.bf16.mxu0 0
      %753 = vmatpush1.bf16.xpose.msra.mxu0 0
      %754 = vmatprep.subr.bf16.mxu0 0
      %755 = vmatpush1.bf16.xpose.msra.mxu0 0
      %756 = vmatprep.subr.bf16.mxu0 0
      %757 = vmatpush1.bf16.xpose.msra.mxu0 0
      %758 = vmatprep.subr.bf16.mxu0 0
      %759 = vmatpush1.bf16.xpose.msra.mxu0 0
      %760 = vmatprep.subr.bf16.mxu0 0
      %761 = vmatpush1.bf16.xpose.msra.mxu0 0
      %762 = vmatprep.subr.bf16.mxu0 0
      %763 = vmatpush1.bf16.xpose.msra.mxu0 0
      %764 = vmatprep.subr.bf16.mxu0 0
      %765 = vmatpush1.bf16.xpose.msra.mxu0 0
      %766 = vmatprep.subr.bf16.mxu0 0
      %767 = vmatpush1.bf16.xpose.msra.mxu0 0
      %768 = vmatprep.subr.bf16.mxu0 0
      %769 = vmatpush1.bf16.xpose.msra.mxu0 0
      %770 = vmatprep.subr.bf16.mxu0 0
      %771 = vmatpush1.bf16.xpose.msra.mxu0 0
      %772 = vmatprep.subr.bf16.mxu0 0
      %773 = vmatpush1.bf16.xpose.msra.mxu0 0
      %774 = vmatprep.mubr.bf16.mxu0 0
      %775 = vmatmul.mubr.bf16.gmra.mrb[0].mxu0 %v737
      %v776 = vpop.f32.mrb[0].mxu0
      %v777 = vadd.f32 0.0, %v776
      %v778 = vpop.f32.mrb[0].mxu0
      %v779 = vpop.f32.mrb[0].mxu0
      %v780 = vpop.f32.mrb[0].mxu0
      %781 = vdwg.mxu0
      %v782 = vmul.f32 %v777, 0.17677669
      %vm783 = vcmask 64512
      %v784 = vsel %vm783, %v782, -inf
      %785 = vmax.xlane.f32.xlu0 %v784
      %v786 = vpop.xlane.xlu0 %785
      %v787 = vmax.f32 %v735, %v786
      %789 = vset.pattern.permute.xlu0 0
      %790 = vperm.xlu0 %789, %v787
      %v791 = vpop.permute.xlu0 %790
      %v793 = vsub.f32 %v782, %v791
      %v794 = vmul.f32 %v793, 1.442695
      %v795 = vpow.pop %v794
      %v796 = vsel %vm783, %v795, 0.0
      %797 = vadd.xlane.f32.xlu0 %v796
      %v798 = vpop.xlane.xlu0 %797
      %v799 = vpack.c.bf16 %v795, %v795
      %v801 = vsel %vm783, %v799, 0
      %vm803 = vcmask 1043456
      %v805 = vsel %vm803, %v733, 0
      %807 = vmatprep.subr.bf16.mxu0 0
      %808 = vmatpush1.bf16.msra.mxu0 %v805
      %809 = vmatprep.subr.bf16.mxu0 0
      %810 = vmatpush1.bf16.msra.mxu0 0
      %811 = vmatprep.subr.bf16.mxu0 0
      %812 = vmatpush1.bf16.msra.mxu0 0
      %813 = vmatprep.subr.bf16.mxu0 0
      %814 = vmatpush1.bf16.msra.mxu0 0
      %815 = vmatprep.subr.bf16.mxu0 0
      %816 = vmatpush1.bf16.msra.mxu0 0
      %817 = vmatprep.subr.bf16.mxu0 0
      %818 = vmatpush1.bf16.msra.mxu0 0
      %819 = vmatprep.subr.bf16.mxu0 0
      %820 = vmatpush1.bf16.msra.mxu0 0
      %821 = vmatprep.subr.bf16.mxu0 0
      %822 = vmatpush1.bf16.msra.mxu0 0
      %823 = vmatprep.subr.bf16.mxu0 0
      %824 = vmatpush1.bf16.msra.mxu0 0
      %825 = vmatprep.subr.bf16.mxu0 0
      %826 = vmatpush1.bf16.msra.mxu0 0
      %827 = vmatprep.subr.bf16.mxu0 0
      %828 = vmatpush1.bf16.msra.mxu0 0
      %829 = vmatprep.subr.bf16.mxu0 0
      %830 = vmatpush1.bf16.msra.mxu0 0
      %831 = vmatprep.subr.bf16.mxu0 0
      %832 = vmatpush1.bf16.msra.mxu0 0
      %833 = vmatprep.subr.bf16.mxu0 0
      %834 = vmatpush1.bf16.msra.mxu0 0
      %835 = vmatprep.subr.bf16.mxu0 0
      %836 = vmatpush1.bf16.msra.mxu0 0
      %837 = vmatprep.subr.bf16.mxu0 0
      %838 = vmatpush1.bf16.msra.mxu0 0
      %839 = vmatprep.mubr.bf16.mxu0 0
      %840 = vmatmul.mubr.bf16.gmra.mrb[0].mxu0 %v801
      %v841 = vpop.f32.mrb[0].mxu0
      %v842 = vadd.f32 0.0, %v841
      %v843 = vpop.f32.mrb[0].mxu0
      %v844 = vpop.f32.mrb[0].mxu0
      %v845 = vpop.f32.mrb[0].mxu0
      %846 = vdwg.mxu0
      %v848 = vunpack.c.l.b16 %v734
      %v849 = vpack.c.b16 %v848, %v848
      %850 = vrot.lane.b32.xlu0 %v849, 96
      %v851 = vpop.permute.xlu0 %850
      %853 = vrot.lane.b32.xlu0 %v732, 96
      %v854 = vpop.permute.xlu0 %853
      %v856 = vsel %vm643, %v851, 0
      %v859 = vsel %vm643, %v854, 0
      %861 = vmatprep.subr.bf16.mxu0 0
      %862 = vmatpush1.bf16.xpose.msra.mxu0 %v859
      %863 = vmatprep.subr.bf16.mxu0 0
      %864 = vmatpush1.bf16.xpose.msra.mxu0 0
      %865 = vmatprep.subr.bf16.mxu0 0
      %866 = vmatpush1.bf16.xpose.msra.mxu0 0
      %867 = vmatprep.subr.bf16.mxu0 0
      %868 = vmatpush1.bf16.xpose.msra.mxu0 0
      %869 = vmatprep.subr.bf16.mxu0 0
      %870 = vmatpush1.bf16.xpose.msra.mxu0 0
      %871 = vmatprep.subr.bf16.mxu0 0
      %872 = vmatpush1.bf16.xpose.msra.mxu0 0
      %873 = vmatprep.subr.bf16.mxu0 0
      %874 = vmatpush1.bf16.xpose.msra.mxu0 0
      %875 = vmatprep.subr.bf16.mxu0 0
      %876 = vmatpush1.bf16.xpose.msra.mxu0 0
      %877 = vmatprep.subr.bf16.mxu0 0
      %878 = vmatpush1.bf16.xpose.msra.mxu0 0
      %879 = vmatprep.subr.bf16.mxu0 0
      %880 = vmatpush1.bf16.xpose.msra.mxu0 0
      %881 = vmatprep.subr.bf16.mxu0 0
      %882 = vmatpush1.bf16.xpose.msra.mxu0 0
      %883 = vmatprep.subr.bf16.mxu0 0
      %884 = vmatpush1.bf16.xpose.msra.mxu0 0
      %885 = vmatprep.subr.bf16.mxu0 0
      %886 = vmatpush1.bf16.xpose.msra.mxu0 0
      %887 = vmatprep.subr.bf16.mxu0 0
      %888 = vmatpush1.bf16.xpose.msra.mxu0 0
      %889 = vmatprep.subr.bf16.mxu0 0
      %890 = vmatpush1.bf16.xpose.msra.mxu0 0
      %891 = vmatprep.subr.bf16.mxu0 0
      %892 = vmatpush1.bf16.xpose.msra.mxu0 0
      %893 = vmatprep.mubr.bf16.mxu0 0
      %894 = vmatmul.mubr.bf16.gmra.mrb[0].mxu0 %v856
      %v895 = vpop.f32.mrb[0].mxu0
      %v896 = vadd.f32 0.0, %v895
      %v897 = vpop.f32.mrb[0].mxu0
      %v898 = vpop.f32.mrb[0].mxu0
      %v899 = vpop.f32.mrb[0].mxu0
      %900 = vdwg.mxu0
      %v901 = vmul.f32 %v896, 0.17677669
      %v902 = vsel %vm783, %v901, -inf
      %903 = vmax.xlane.f32.xlu0 %v902
      %v904 = vpop.xlane.xlu0 %903
      %v905 = vmax.f32 %v735, %v904
      %907 = vset.pattern.permute.xlu0 32
      %908 = vperm.xlu0 %907, %v905
      %v909 = vpop.permute.xlu0 %908
      %v911 = vsub.f32 %v901, %v909
      %v912 = vmul.f32 %v911, 1.442695
      %v913 = vpow.pop %v912
      %v914 = vsel %vm783, %v913, 0.0
      %915 = vadd.xlane.f32.xlu0 %v914
      %v916 = vpop.xlane.xlu0 %915
      %v917 = vpack.c.bf16 %v913, %v913
      %v919 = vunpack.c.l.b16 %v733
      %v920 = vpack.c.b16 %v919, %v919
      %921 = vrot.lane.b32.xlu0 %v920, 96
      %v922 = vpop.permute.xlu0 %921
      %v924 = vsel %vm783, %v917, 0
      %v927 = vsel %vm803, %v922, 0
      %929 = vmatprep.subr.bf16.mxu0 0
      %930 = vmatpush1.bf16.msra.mxu0 %v927
      %931 = vmatprep.subr.bf16.mxu0 0
      %932 = vmatpush1.bf16.msra.mxu0 0
      %933 = vmatprep.subr.bf16.mxu0 0
      %934 = vmatpush1.bf16.msra.mxu0 0
      %935 = vmatprep.subr.bf16.mxu0 0
      %936 = vmatpush1.bf16.msra.mxu0 0
      %937 = vmatprep.subr.bf16.mxu0 0
      %938 = vmatpush1.bf16.msra.mxu0 0
      %939 = vmatprep.subr.bf16.mxu0 0
      %940 = vmatpush1.bf16.msra.mxu0 0
      %941 = vmatprep.subr.bf16.mxu0 0
      %942 = vmatpush1.bf16.msra.mxu0 0
      %943 = vmatprep.subr.bf16.mxu0 0
      %944 = vmatpush1.bf16.msra.mxu0 0
      %945 = vmatprep.subr.bf16.mxu0 0
      %946 = vmatpush1.bf16.msra.mxu0 0
      %947 = vmatprep.subr.bf16.mxu0 0
      %948 = vmatpush1.bf16.msra.mxu0 0
      %949 = vmatprep.subr.bf16.mxu0 0
      %950 = vmatpush1.bf16.msra.mxu0 0
      %951 = vmatprep.subr.bf16.mxu0 0
      %952 = vmatpush1.bf16.msra.mxu0 0
      %953 = vmatprep.subr.bf16.mxu0 0
      %954 = vmatpush1.bf16.msra.mxu0 0
      %955 = vmatprep.subr.bf16.mxu0 0
      %956 = vmatpush1.bf16.msra.mxu0 0
      %957 = vmatprep.subr.bf16.mxu0 0
      %958 = vmatpush1.bf16.msra.mxu0 0
      %959 = vmatprep.subr.bf16.mxu0 0
      %960 = vmatpush1.bf16.msra.mxu0 0
      %961 = vmatprep.mubr.bf16.mxu0 0
      %962 = vmatmul.mubr.bf16.gmra.mrb[0].mxu0 %v924
      %v963 = vpop.f32.mrb[0].mxu0
      %v964 = vadd.f32 0.0, %v963
      %v965 = vpop.f32.mrb[0].mxu0
      %v966 = vpop.f32.mrb[0].mxu0
      %v967 = vpop.f32.mrb[0].mxu0
      %968 = vdwg.mxu0
      %969 = vrot.lane.b32.xlu0 %v849, 64
      %v970 = vpop.permute.xlu0 %969
      %971 = vrot.lane.b32.xlu0 %v732, 64
      %v972 = vpop.permute.xlu0 %971
      %v974 = vsel %vm643, %v970, 0
      %v977 = vsel %vm643, %v972, 0
      %979 = vmatprep.subr.bf16.mxu0 0
      %980 = vmatpush1.bf16.xpose.msra.mxu0 %v977
      %981 = vmatprep.subr.bf16.mxu0 0
      %982 = vmatpush1.bf16.xpose.msra.mxu0 0
      %983 = vmatprep.subr.bf16.mxu0 0
      %984 = vmatpush1.bf16.xpose.msra.mxu0 0
      %985 = vmatprep.subr.bf16.mxu0 0
      %986 = vmatpush1.bf16.xpose.msra.mxu0 0
      %987 = vmatprep.subr.bf16.mxu0 0
      %988 = vmatpush1.bf16.xpose.msra.mxu0 0
      %989 = vmatprep.subr.bf16.mxu0 0
      %990 = vmatpush1.bf16.xpose.msra.mxu0 0
      %991 = vmatprep.subr.bf16.mxu0 0
      %992 = vmatpush1.bf16.xpose.msra.mxu0 0
      %993 = vmatprep.subr.bf16.mxu0 0
      %994 = vmatpush1.bf16.xpose.msra.mxu0 0
      %995 = vmatprep.subr.bf16.mxu0 0
      %996 = vmatpush1.bf16.xpose.msra.mxu0 0
      %997 = vmatprep.subr.bf16.mxu0 0
      %998 = vmatpush1.bf16.xpose.msra.mxu0 0
      %999 = vmatprep.subr.bf16.mxu0 0
      %1000 = vmatpush1.bf16.xpose.msra.mxu0 0
      %1001 = vmatprep.subr.bf16.mxu0 0
      %1002 = vmatpush1.bf16.xpose.msra.mxu0 0
      %1003 = vmatprep.subr.bf16.mxu0 0
      %1004 = vmatpush1.bf16.xpose.msra.mxu0 0
      %1005 = vmatprep.subr.bf16.mxu0 0
      %1006 = vmatpush1.bf16.xpose.msra.mxu0 0
      %1007 = vmatprep.subr.bf16.mxu0 0
      %1008 = vmatpush1.bf16.xpose.msra.mxu0 0
      %1009 = vmatprep.subr.bf16.mxu0 0
      %1010 = vmatpush1.bf16.xpose.msra.mxu0 0
      %1011 = vmatprep.mubr.bf16.mxu0 0
      %1012 = vmatmul.mubr.bf16.gmra.mrb[0].mxu0 %v974
      %v1013 = vpop.f32.mrb[0].mxu0
      %v1014 = vadd.f32 0.0, %v1013
      %v1015 = vpop.f32.mrb[0].mxu0
      %v1016 = vpop.f32.mrb[0].mxu0
      %v1017 = vpop.f32.mrb[0].mxu0
      %1018 = vdwg.mxu0
      %v1019 = vmul.f32 %v1014, 0.17677669
      %v1020 = vsel %vm783, %v1019, -inf
      %1021 = vmax.xlane.f32.xlu0 %v1020
      %v1022 = vpop.xlane.xlu0 %1021
      %v1023 = vmax.f32 %v735, %v1022
      %1025 = vset.pattern.permute.xlu0 64
      %1026 = vperm.xlu0 %1025, %v1023
      %v1027 = vpop.permute.xlu0 %1026
      %v1029 = vsub.f32 %v1019, %v1027
      %v1030 = vmul.f32 %v1029, 1.442695
      %v1031 = vpow.pop %v1030
      %v1032 = vsel %vm783, %v1031, 0.0
      %1033 = vadd.xlane.f32.xlu0 %v1032
      %v1034 = vpop.xlane.xlu0 %1033
      %v1035 = vpack.c.bf16 %v1031, %v1031
      %1036 = vrot.lane.b32.xlu0 %v920, 64
      %v1037 = vpop.permute.xlu0 %1036
      %v1039 = vsel %vm783, %v1035, 0
      %v1042 = vsel %vm803, %v1037, 0
      %1044 = vmatprep.subr.bf16.mxu0 0
      %1045 = vmatpush1.bf16.msra.mxu0 %v1042
      %1046 = vmatprep.subr.bf16.mxu0 0
      %1047 = vmatpush1.bf16.msra.mxu0 0
      %1048 = vmatprep.subr.bf16.mxu0 0
      %1049 = vmatpush1.bf16.msra.mxu0 0
      %1050 = vmatprep.subr.bf16.mxu0 0
      %1051 = vmatpush1.bf16.msra.mxu0 0
      %1052 = vmatprep.subr.bf16.mxu0 0
      %1053 = vmatpush1.bf16.msra.mxu0 0
      %1054 = vmatprep.subr.bf16.mxu0 0
      %1055 = vmatpush1.bf16.msra.mxu0 0
      %1056 = vmatprep.subr.bf16.mxu0 0
      %1057 = vmatpush1.bf16.msra.mxu0 0
      %1058 = vmatprep.subr.bf16.mxu0 0
      %1059 = vmatpush1.bf16.msra.mxu0 0
      %1060 = vmatprep.subr.bf16.mxu0 0
      %1061 = vmatpush1.bf16.msra.mxu0 0
      %1062 = vmatprep.subr.bf16.mxu0 0
      %1063 = vmatpush1.bf16.msra.mxu0 0
      %1064 = vmatprep.subr.bf16.mxu0 0
      %1065 = vmatpush1.bf16.msra.mxu0 0
      %1066 = vmatprep.subr.bf16.mxu0 0
      %1067 = vmatpush1.bf16.msra.mxu0 0
      %1068 = vmatprep.subr.bf16.mxu0 0
      %1069 = vmatpush1.bf16.msra.mxu0 0
      %1070 = vmatprep.subr.bf16.mxu0 0
      %1071 = vmatpush1.bf16.msra.mxu0 0
      %1072 = vmatprep.subr.bf16.mxu0 0
      %1073 = vmatpush1.bf16.msra.mxu0 0
      %1074 = vmatprep.subr.bf16.mxu0 0
      %1075 = vmatpush1.bf16.msra.mxu0 0
      %1076 = vmatprep.mubr.bf16.mxu0 0
      %1077 = vmatmul.mubr.bf16.gmra.mrb[0].mxu0 %v1039
      %v1078 = vpop.f32.mrb[0].mxu0
      %v1079 = vadd.f32 0.0, %v1078
      %v1080 = vpop.f32.mrb[0].mxu0
      %v1081 = vpop.f32.mrb[0].mxu0
      %v1082 = vpop.f32.mrb[0].mxu0
      %1083 = vdwg.mxu0
      %1084 = vrot.lane.b32.xlu0 %v849, 32
      %v1085 = vpop.permute.xlu0 %1084
      %1086 = vrot.lane.b32.xlu0 %v732, 32
      %v1087 = vpop.permute.xlu0 %1086
      %v1089 = vsel %vm643, %v1085, 0
      %v1092 = vsel %vm643, %v1087, 0
      %1094 = vmatprep.subr.bf16.mxu0 0
      %1095 = vmatpush1.bf16.xpose.msra.mxu0 %v1092
      %1096 = vmatprep.subr.bf16.mxu0 0
      %1097 = vmatpush1.bf16.xpose.msra.mxu0 0
      %1098 = vmatprep.subr.bf16.mxu0 0
      %1099 = vmatpush1.bf16.xpose.msra.mxu0 0
      %1100 = vmatprep.subr.bf16.mxu0 0
      %1101 = vmatpush1.bf16.xpose.msra.mxu0 0
      %1102 = vmatprep.subr.bf16.mxu0 0
      %1103 = vmatpush1.bf16.xpose.msra.mxu0 0
      %1104 = vmatprep.subr.bf16.mxu0 0
      %1105 = vmatpush1.bf16.xpose.msra.mxu0 0
      %1106 = vmatprep.subr.bf16.mxu0 0
      %1107 = vmatpush1.bf16.xpose.msra.mxu0 0
      %1108 = vmatprep.subr.bf16.mxu0 0
      %1109 = vmatpush1.bf16.xpose.msra.mxu0 0
      %1110 = vmatprep.subr.bf16.mxu0 0
      %1111 = vmatpush1.bf16.xpose.msra.mxu0 0
      %1112 = vmatprep.subr.bf16.mxu0 0
      %1113 = vmatpush1.bf16.xpose.msra.mxu0 0
      %1114 = vmatprep.subr.bf16.mxu0 0
      %1115 = vmatpush1.bf16.xpose.msra.mxu0 0
      %1116 = vmatprep.subr.bf16.mxu0 0
      %1117 = vmatpush1.bf16.xpose.msra.mxu0 0
      %1118 = vmatprep.subr.bf16.mxu0 0
      %1119 = vmatpush1.bf16.xpose.msra.mxu0 0
      %1120 = vmatprep.subr.bf16.mxu0 0
      %1121 = vmatpush1.bf16.xpose.msra.mxu0 0
      %1122 = vmatprep.subr.bf16.mxu0 0
      %1123 = vmatpush1.bf16.xpose.msra.mxu0 0
      %1124 = vmatprep.subr.bf16.mxu0 0
      %1125 = vmatpush1.bf16.xpose.msra.mxu0 0
      %1126 = vmatprep.mubr.bf16.mxu0 0
      %1127 = vmatmul.mubr.bf16.gmra.mrb[0].mxu0 %v1089
      %v1128 = vpop.f32.mrb[0].mxu0
      %v1129 = vadd.f32 0.0, %v1128
      %v1130 = vpop.f32.mrb[0].mxu0
      %v1131 = vpop.f32.mrb[0].mxu0
      %v1132 = vpop.f32.mrb[0].mxu0
      %1133 = vdwg.mxu0
      %v1134 = vmul.f32 %v1129, 0.17677669
      %v1135 = vsel %vm783, %v1134, -inf
      %1136 = vmax.xlane.f32.xlu0 %v1135
      %v1137 = vpop.xlane.xlu0 %1136
      %v1138 = vmax.f32 %v735, %v1137
      %1140 = vset.pattern.permute.xlu0 96
      %1141 = vperm.xlu0 %1140, %v1138
      %v1142 = vpop.permute.xlu0 %1141
      %v1144 = vsub.f32 %v1134, %v1142
      %v1145 = vmul.f32 %v1144, 1.442695
      %v1146 = vpow.pop %v1145
      %v1147 = vsel %vm783, %v1146, 0.0
      %1148 = vadd.xlane.f32.xlu0 %v1147
      %v1149 = vpop.xlane.xlu0 %1148
      %v1150 = vpack.c.bf16 %v1146, %v1146
      %1151 = vrot.lane.b32.xlu0 %v920, 32
      %v1152 = vpop.permute.xlu0 %1151
      %v1154 = vsel %vm783, %v1150, 0
      %v1157 = vsel %vm803, %v1152, 0
      %1159 = vmatprep.subr.bf16.mxu0 0
      %1160 = vmatpush1.bf16.msra.mxu0 %v1157
      %1161 = vmatprep.subr.bf16.mxu0 0
      %1162 = vmatpush1.bf16.msra.mxu0 0
      %1163 = vmatprep.subr.bf16.mxu0 0
      %1164 = vmatpush1.bf16.msra.mxu0 0
      %1165 = vmatprep.subr.bf16.mxu0 0
      %1166 = vmatpush1.bf16.msra.mxu0 0
      %1167 = vmatprep.subr.bf16.mxu0 0
      %1168 = vmatpush1.bf16.msra.mxu0 0
      %1169 = vmatprep.subr.bf16.mxu0 0
      %1170 = vmatpush1.bf16.msra.mxu0 0
      %1171 = vmatprep.subr.bf16.mxu0 0
      %1172 = vmatpush1.bf16.msra.mxu0 0
      %1173 = vmatprep.subr.bf16.mxu0 0
      %1174 = vmatpush1.bf16.msra.mxu0 0
      %1175 = vmatprep.subr.bf16.mxu0 0
      %1176 = vmatpush1.bf16.msra.mxu0 0
      %1177 = vmatprep.subr.bf16.mxu0 0
      %1178 = vmatpush1.bf16.msra.mxu0 0
      %1179 = vmatprep.subr.bf16.mxu0 0
      %1180 = vmatpush1.bf16.msra.mxu0 0
      %1181 = vmatprep.subr.bf16.mxu0 0
      %1182 = vmatpush1.bf16.msra.mxu0 0
      %1183 = vmatprep.subr.bf16.mxu0 0
      %1184 = vmatpush1.bf16.msra.mxu0 0
      %1185 = vmatprep.subr.bf16.mxu0 0
      %1186 = vmatpush1.bf16.msra.mxu0 0
      %1187 = vmatprep.subr.bf16.mxu0 0
      %1188 = vmatpush1.bf16.msra.mxu0 0
      %1189 = vmatprep.subr.bf16.mxu0 0
      %1190 = vmatpush1.bf16.msra.mxu0 0
      %1191 = vmatprep.mubr.bf16.mxu0 0
      %1192 = vmatmul.mubr.bf16.gmra.mrb[0].mxu0 %v1154
      %v1193 = vpop.f32.mrb[0].mxu0
      %v1194 = vadd.f32 0.0, %v1193
      %v1195 = vpop.f32.mrb[0].mxu0
      %v1196 = vpop.f32.mrb[0].mxu0
      %v1197 = vpop.f32.mrb[0].mxu0
      %1198 = vdwg.mxu0
      %v1199 = vsel %vm643, %v791, %v909
      %v1200 = vsel %vm716, %v1199, %v1027
      %v1201 = vsel %vm718, %v1200, %v1142
      %v1202 = vsub.f32 %v735, %v1201
      %v1203 = vmul.f32 %v1202, 1.442695
      %v1204 = vpow.pop %v1203
      %v1205 = vld [vmem:[#allocation4] sm:$0xff]
      %v1206 = vmul.f32 %v1204, %v1205
      %v1207 = vsel %vm643, %v798, %v916
      %v1208 = vsel %vm716, %v1207, %v1034
      %v1209 = vsel %vm718, %v1208, %v1149
      %v1210 = vadd.f32 %v1206, %v1209
      %1211 = vst [vmem:[#allocation4] sm:$0xff] %v1210
      %v1212 = vld [vmem:[#allocation5] sm:$0xff]
      %v1213 = vmul.f32 %v1204, %v1212
      %1215 = vrot.lane.b32.xlu0 %v964, 32
      %v1216 = vpop.permute.xlu0 %1215
      %1219 = vrot.lane.b32.xlu0 %v1079, 64
      %v1220 = vpop.permute.xlu0 %1219
      %1223 = vrot.lane.b32.xlu0 %v1194, 96
      %v1224 = vpop.permute.xlu0 %1223
      %v1226 = vsel %vm643, %v842, %v1216
      %v1227 = vsel %vm716, %v1226, %v1220
      %v1228 = vsel %vm718, %v1227, %v1224
      %v1229 = vadd.f32 %v1213, %v1228
      %1230 = vst [vmem:[#allocation5] sm:$0xff] %v1229
      %1231 = vst [vmem:[#allocation3] sm:$0xff] %v1201
      // Predicated region
      $region57: #{processor_forward.17} parent=51 // pred_check
        %p1232 = pneg %p489
      $region58: #{processor_forward.17} parent=51 // pred_check_branch
        %1234 = sbr.rel (%p1232) target = $region60
      $region59: #{processor_forward.17} parent=51 // pred_region
        %v1235 = vld [vmem:[#allocation4] sm:$0xff]
        %v1236 = vrcp.pop %v1235
        %v1237 = vld [vmem:[#allocation5] sm:$0xff]
        %v1238 = vmul.f32 %v1237, %v1236
        %v1239 = vpack.c.bf16 %v1238, %v1238
        %1240 = vst [vmem:[%s486] sm:$0xf] %v1239
      $region60: #{processor_forward.17} parent=51 // pred_fallthru
        _
      %p1241 = scmp.lt.s32.totalorder %s24, 1
      %s1242 = scalar_select %p1241, %s24, 1
      %p1243 = scmp.lt.s32.totalorder %s25, 0
      %s1244 = scalar_select %p1243, %s25, 0
      %s1245 = sadd.s32 %s1244, %s1242
      %s1246 = smul.addr %s1245, 4
      %s1247 = scalar_lea.vmem %s8, %s1246
      // Predicated region
      $region61: #{processor_forward.17} parent=51 // pred_check
        %p1248 = pneg %p267
      $region62: #{processor_forward.17} parent=51 // pred_check_branch
        %1250 = sbr.rel (%p1248) target = $region64
      $region63: #{processor_forward.17} parent=51 // pred_region
        _
      $region64: #{processor_forward.17} parent=51 // pred_fallthru
        _
    $region52: #{processor_forward.17} parent=5 // pred_fallthru
      _
    %p1251 = scmp.le.s32.totalorder 2, %s14
    // Predicated region
    $region65: #{processor_forward.17} parent=5 // pred_check
      %p1252 = pneg %p1251
    $region66: #{processor_forward.17} parent=5 // pred_check_branch
      %1254 = sbr.rel (%p1252) target = $region68
    $region67: #{processor_forward.17} parent=5 // pred_region
      %s1255 = ssub.s32 %s14, 2
      // Predicated region
      $region69: #{processor_forward.17} parent=67 // pred_check
        %p1256 = pneg %p273
      $region70: #{processor_forward.17} parent=67 // pred_check_branch
        %1258 = sbr.rel (%p1256) target = $region72
      $region71: #{processor_forward.17} parent=67 // pred_region
        %p1259 = scmp.lt.s32.totalorder %s27, 1
        %s1260 = scalar_select %p1259, %s27, 1
        %p1261 = scmp.lt.s32.totalorder %s28, 0
        %s1262 = scalar_select %p1261, %s28, 0
        %s1263 = sadd.s32 %s1262, %s1260
        %s1264 = smul.addr %s1263, 4
        %s1265 = scalar_lea.vmem %s8, %s1264
      $region72: #{processor_forward.17} parent=67 // pred_fallthru
        _
    $region68: #{processor_forward.17} parent=5 // pred_fallthru
      _
  $region6: #{processor_forward.17} parent=0 // loop_footer
    %s18 = sadd.s32 1, %s14
  $region7: #{processor_forward.17} parent=0 // loop_footer_branch
    %13 = sbr.rel target = $region3
  $region8: #{processor_forward.17} parent=0 // loop_exit
    _

</llo_original>
